<compile_context>
chip_gen: v7x
topology: tpu7x:2x2x1
jax: 0.10.0
libtpu: 0.0.40
codegen_flags: <defaults>
</compile_context>

<pallas_src>
import functools

import numpy as np
import jax
import jax.numpy as jnp
from jax import lax
from jax.experimental import pallas as pl
from jax.experimental.pallas import tpu as pltpu

# --- StressTransformer default hyper-parameters -------------------------------
INPUT_DIM = 1
EMBED = 64
HEADS = 4
HEAD_DIM = EMBED // HEADS
FF = 128
NBLOCKS = 2
MLP = 64          # mlp_units=[64]
NCLASS = 2
OUT_PAD = 128     # lane-dense logits block; real logits live in lanes [0, NCLASS)
LN_EPS = 1e-5

# layout of the stacked per-block (1, E) vectors (axis 1 of vecE)
V_BQ, V_BK, V_AOUT_B, V_FF_B2, V_LN1_W, V_LN1_B, V_LN2_W, V_LN2_B = range(8)


def _layernorm(v, g, b):
    mu = jnp.mean(v, axis=-1, keepdims=True)
    var = jnp.mean((v - mu) ** 2, axis=-1, keepdims=True)
    return (v - mu) * lax.rsqrt(var + LN_EPS) * g + b


def stress_transformer_kernel(
    x_ref,       # (TOK, 1)      flattened token slab for TB batch elements
    pool_ref,    # (TB, TOK)     mean-pool matrix (1/S on each example's tokens)
    mask_ref,    # (TOK, TOK)    block-diagonal additive mask (0 / -1e9)
    embv_ref,    # (2, 1, E)     [emb_w_row, emb_b]
    wq_ref,      # (NB, E, E)    1/sqrt(Dh) folded in
    wk_ref,      # (NB, E, E)
    wvo_ref,     # (NB, E, H*E)  Wv_h @ Wout_h, heads concatenated on out axis
    ff_w1_ref,   # (NB, E, FF)
    ff_b1_ref,   # (NB, 1, FF)
    ff_w2_ref,   # (NB, FF, E)
    vecE_ref,    # (NB, 8, 1, E) [bq, bk, aout_b(+bv@Wout), ff_b2, ln1_w, ln1_b, ln2_w, ln2_b]
    mlp_w_ref,   # (E, MLP)
    mlp_b_ref,   # (1, MLP)
    head_w_ref,  # (MLP, OUT_PAD)  zero-padded classifier weight
    head_b_ref,  # (1, OUT_PAD)    zero-padded classifier bias
    o_ref,       # (TB, OUT_PAD)
    *, mxu_dtype,
):
    f32 = jnp.float32

    neg_mask = mask_ref[...]                               # (TOK, TOK)
    x = x_ref[...]                                         # (TOK, 1)

    # embedding: nn.Linear(1, E) -> broadcast multiply
    h = x * embv_ref[0] + embv_ref[1]                      # (TOK, E), f32

    for blk in range(NBLOCKS):
        bq = vecE_ref[blk, V_BQ]
        bk = vecE_ref[blk, V_BK]
        aout_b = vecE_ref[blk, V_AOUT_B]
        ff_b2 = vecE_ref[blk, V_FF_B2]
        ln1_w = vecE_ref[blk, V_LN1_W]
        ln1_b = vecE_ref[blk, V_LN1_B]
        ln2_w = vecE_ref[blk, V_LN2_W]
        ln2_b = vecE_ref[blk, V_LN2_B]

        # ---- multi-head self attention (eval mode, flat block-diag) ----
        hm = h.astype(mxu_dtype)
        q = jnp.dot(hm, wq_ref[blk], preferred_element_type=f32) + bq    # (TOK, E)
        k = jnp.dot(hm, wk_ref[blk], preferred_element_type=f32) + bk    # (TOK, E)
        vo = jnp.dot(hm, wvo_ref[blk], preferred_element_type=f32)       # (TOK, H*E)

        qm = q.astype(mxu_dtype)
        km = k.astype(mxu_dtype)
        vom = vo.astype(mxu_dtype)

        attn = None
        for hd in range(HEADS):
            qh = qm[:, hd * HEAD_DIM:(hd + 1) * HEAD_DIM]   # (TOK, Dh)
            kh = km[:, hd * HEAD_DIM:(hd + 1) * HEAD_DIM]   # (TOK, Dh)
            voh = vom[:, hd * EMBED:(hd + 1) * EMBED]       # (TOK, E)

            # scores over the whole slab; off-example entries masked to -1e9
            s = lax.dot_general(qh, kh, (((1,), (1,)), ((), ())),
                                preferred_element_type=f32)              # (TOK, TOK)
            s = s + neg_mask
            s = s - jnp.max(s, axis=-1, keepdims=True)
            p = jnp.exp(s)
            p = p * pl.reciprocal(jnp.sum(p, axis=-1, keepdims=True),
                                  approx=True)
            ctx = jnp.dot(p.astype(mxu_dtype), voh,
                          preferred_element_type=f32)                    # (TOK, E)
            attn = ctx if attn is None else attn + ctx

        attn = attn + aout_b
        h = _layernorm(h + attn, ln1_w, ln1_b)

        # ---- feed-forward ----
        f = jnp.dot(h.astype(mxu_dtype), ff_w1_ref[blk],
                    preferred_element_type=f32) + ff_b1_ref[blk]
        f = jnp.maximum(f, 0.0)
        f = jnp.dot(f.astype(mxu_dtype), ff_w2_ref[blk],
                    preferred_element_type=f32) + ff_b2
        h = _layernorm(h + f, ln2_w, ln2_b)

    # ---- mean pool over sequence (one matmul), MLP head, output layer ----
    pooled = jnp.dot(pool_ref[...], h, preferred_element_type=f32)       # (TB, E)
    m = jnp.dot(pooled.astype(mxu_dtype), mlp_w_ref[...],
                preferred_element_type=f32) + mlp_b_ref[...]
    m = jnp.maximum(m, 0.0)                                              # (TB, MLP)
    logits = jnp.dot(m.astype(mxu_dtype), head_w_ref[...],
                     preferred_element_type=f32) + head_b_ref[...]       # (TB, OUT_PAD)
    o_ref[...] = logits


# --- host-side weight packing (head-fused projections + value/out-proj fold) ---
def pack_params(p, mxu_dtype=jnp.float32):
    scale = 1.0 / (HEAD_DIM ** 0.5)
    in_w = p["in_w"]                                   # (NB, E, 3E)  (x @ in_w layout)
    in_b = p["in_b"]                                   # (NB, 1, 3E)
    wq = in_w[:, :, 0:EMBED] * scale
    wk = in_w[:, :, EMBED:2 * EMBED]
    wv = in_w[:, :, 2 * EMBED:3 * EMBED]
    bq = in_b[:, :, 0:EMBED] * scale
    bk = in_b[:, :, EMBED:2 * EMBED]
    bv = in_b[:, :, 2 * EMBED:3 * EMBED]

    # Fold value-proj and attention out-proj: per head Wvo_h = Wv_h @ Wout_h,
    # concatenated head-major along the output axis -> (NB, E, H*E).
    wv_h = wv.reshape(NBLOCKS, EMBED, HEADS, HEAD_DIM)                  # (NB, E, H, Dh)
    wout_h = p["aout_w"].reshape(NBLOCKS, HEADS, HEAD_DIM, EMBED)       # (NB, H, Dh, E)
    wvo = jnp.einsum("nehd,nhdf->nhef", wv_h, wout_h)                   # (NB, H, E, E)
    wvo = wvo.transpose(0, 2, 1, 3).reshape(NBLOCKS, EMBED, HEADS * EMBED)

    # The value bias passes through softmax exactly (rows sum to 1), so fold it
    # into the out-proj bias instead of adding it to vo inside the kernel.
    aout_b_eff = p["aout_b"] + jnp.einsum("nxe,nef->nxf", bv, p["aout_w"])

    vecE = jnp.stack(
        [bq, bk, aout_b_eff, p["ff_b2"],
         p["ln1_w"], p["ln1_b"], p["ln2_w"], p["ln2_b"]], axis=1)       # (NB, 8, 1, E)
    embv = jnp.stack([p["emb_w"], p["emb_b"]], axis=0)                  # (2, 1, E)

    # classifier head zero-padded to a lane-dense 128-wide output block
    head_w = jnp.zeros((MLP, OUT_PAD), jnp.float32).at[:, :NCLASS].set(p["head_w"])
    head_b = jnp.zeros((1, OUT_PAD), jnp.float32).at[:, :NCLASS].set(p["head_b"])

    md = mxu_dtype
    return {
        "embv": embv.astype(jnp.float32),
        "wq": wq.astype(md), "wk": wk.astype(md), "wvo": wvo.astype(md),
        "ff_w1": p["ff_w1"].astype(md), "ff_b1": p["ff_b1"].astype(jnp.float32),
        "ff_w2": p["ff_w2"].astype(md),
        "vecE": vecE.astype(jnp.float32),
        "mlp_w": p["mlp_w"].astype(md), "mlp_b": p["mlp_b"].astype(jnp.float32),
        "head_w": head_w.astype(md), "head_b": head_b,
    }


# --- generation-aware defaults --------------------------------------------------
def _device_kind():
    try:
        return jax.devices()[0].device_kind.lower()
    except Exception:
        return ""


def _pick_mxu_dtype():
    kind = _device_kind()
    # bf16 MXU operands on v6e / v7x (f32 accumulate); keep f32 elsewhere.
    if ("v6" in kind) or ("v7" in kind):
        return jnp.bfloat16
    return jnp.float32


def _pick_tb(B, S):
    kind = _device_kind()
    target_tok = 256 if (("v6" in kind) or ("v7" in kind)) else 128
    tb = max(1, target_tok // S)
    if "v7" in kind:
        # keep >= 2 grid tiles so both v7x TensorCores get work
        while tb > 1 and (B + tb - 1) // tb < 2:
            tb //= 2
    return tb


# --- wrapper --------------------------------------------------------------------
def stress_transformer_forward(x, params, tb=None, mxu_dtype=None):
    B, S, _ = x.shape
    if mxu_dtype is None:
        mxu_dtype = _pick_mxu_dtype()
    if tb is None:
        tb = _pick_tb(B, S)

    # pad batch to a multiple of tb
    b_pad = ((B + tb - 1) // tb) * tb
    if b_pad != B:
        x = jnp.concatenate(
            [x, jnp.zeros((b_pad - B, S, INPUT_DIM), x.dtype)], axis=0)
    tok = tb * S
    num_tiles = b_pad // tb

    x_flat = x.reshape(b_pad * S, INPUT_DIM).astype(jnp.float32)

    # mean-pool matrix: pool[i, t] = 1/S if token t belongs to example i
    pool_mat = jnp.asarray(
        np.kron(np.eye(tb, dtype=np.float32),
                np.full((1, S), 1.0 / S, dtype=np.float32)))            # (TB, TOK)
    # block-diagonal additive attention mask (finite large-negative, not -inf)
    blkdiag = np.kron(np.eye(tb, dtype=np.float32),
                      np.ones((S, S), dtype=np.float32))
    neg_mask = jnp.asarray(
        np.where(blkdiag > 0.5, 0.0, -1e9).astype(np.float32))          # (TOK, TOK)

    kp = pack_params(params, mxu_dtype)

    args = [
        x_flat, pool_mat, neg_mask,
        kp["embv"], kp["wq"], kp["wk"], kp["wvo"],
        kp["ff_w1"], kp["ff_b1"], kp["ff_w2"], kp["vecE"],
        kp["mlp_w"], kp["mlp_b"], kp["head_w"], kp["head_b"],
    ]

    def full_spec(arr):
        n = arr.ndim
        return pl.BlockSpec(arr.shape, lambda b, n=n: (0,) * n)

    in_specs = [pl.BlockSpec((tok, INPUT_DIM), lambda b: (b, 0))]
    in_specs += [full_spec(a) for a in args[1:]]

    kernel = functools.partial(stress_transformer_kernel, mxu_dtype=mxu_dtype)

    out = pl.pallas_call(
        kernel,
        out_shape=jax.ShapeDtypeStruct((b_pad, OUT_PAD), jnp.float32),
        grid=(num_tiles,),
        in_specs=in_specs,
        out_specs=pl.BlockSpec((tb, OUT_PAD), lambda b: (b, 0)),
        compiler_params=pltpu.CompilerParams(
            dimension_semantics=("parallel",)),
    )(*args)
    return out[:B, :NCLASS]


# --- deterministic synthetic parameter init (torch-layout then transposed) ----
def init_params(key):
    ks = iter(jax.random.split(key, 32))

    def w(shape, scale=0.1):
        return scale * jax.random.normal(next(ks), shape, jnp.float32)

    p = {}
    # embedding: torch Linear(1, E): weight (E, 1) -> transposed (1, E)
    p["emb_w"] = w((EMBED, INPUT_DIM)).T
    p["emb_b"] = w((1, EMBED), 0.02)

    # per-transformer-block parameters, stacked along a leading NBLOCKS axis
    # MHA in_proj_weight (3E, E) -> (E, 3E);  out_proj.weight (E, E) -> (E, E)
    p["in_w"] = jnp.stack([w((3 * EMBED, EMBED)).T for _ in range(NBLOCKS)])
    p["in_b"] = jnp.stack([w((1, 3 * EMBED), 0.02) for _ in range(NBLOCKS)])
    p["aout_w"] = jnp.stack([w((EMBED, EMBED)).T for _ in range(NBLOCKS)])
    p["aout_b"] = jnp.stack([w((1, EMBED), 0.02) for _ in range(NBLOCKS)])
    # ffn Linear(E, FF) and Linear(FF, E)
    p["ff_w1"] = jnp.stack([w((FF, EMBED)).T for _ in range(NBLOCKS)])
    p["ff_b1"] = jnp.stack([w((1, FF), 0.02) for _ in range(NBLOCKS)])
    p["ff_w2"] = jnp.stack([w((EMBED, FF)).T for _ in range(NBLOCKS)])
    p["ff_b2"] = jnp.stack([w((1, EMBED), 0.02) for _ in range(NBLOCKS)])
    # LayerNorm affine params (torch default init: gamma=1, beta=0)
    p["ln1_w"] = jnp.ones((NBLOCKS, 1, EMBED), jnp.float32)
    p["ln1_b"] = jnp.zeros((NBLOCKS, 1, EMBED), jnp.float32)
    p["ln2_w"] = jnp.ones((NBLOCKS, 1, EMBED), jnp.float32)
    p["ln2_b"] = jnp.zeros((NBLOCKS, 1, EMBED), jnp.float32)

    # mlp Linear(E, 64) + output Linear(64, 2)
    p["mlp_w"] = w((MLP, EMBED)).T
    p["mlp_b"] = w((1, MLP), 0.02)
    p["head_w"] = w((NCLASS, MLP)).T
    p["head_b"] = w((1, NCLASS), 0.02)
    return p


# --- pure-JAX reference (mirrors PyTorch eval-mode forward) --------------------
def reference_forward(x, p):
    B, S, _ = x.shape
    h = x * p["emb_w"] + p["emb_b"]                                  # (B, S, E)
    for blk in range(NBLOCKS):
        qkv = h @ p["in_w"][blk] + p["in_b"][blk]                    # (B, S, 3E)
        q, k, v = jnp.split(qkv, 3, axis=-1)
        qh = q.reshape(B, S, HEADS, HEAD_DIM).transpose(0, 2, 1, 3)
        kh = k.reshape(B, S, HEADS, HEAD_DIM).transpose(0, 2, 1, 3)
        vh = v.reshape(B, S, HEADS, HEAD_DIM).transpose(0, 2, 1, 3)
        s = (qh @ kh.transpose(0, 1, 3, 2)) / (HEAD_DIM ** 0.5)
        a = jax.nn.softmax(s, axis=-1)
        o = (a @ vh).transpose(0, 2, 1, 3).reshape(B, S, EMBED)
        o = o @ p["aout_w"][blk] + p["aout_b"][blk]
        h = _layernorm(h + o, p["ln1_w"][blk], p["ln1_b"][blk])
        f = jax.nn.relu(h @ p["ff_w1"][blk] + p["ff_b1"][blk])
        f = f @ p["ff_w2"][blk] + p["ff_b2"][blk]
        h = _layernorm(h + f, p["ln2_w"][blk], p["ln2_b"][blk])
    pooled = h.mean(axis=1)                                          # (B, E)
    m = jax.nn.relu(pooled @ p["mlp_w"] + p["mlp_b"])
    return m @ p["head_w"] + p["head_b"]                             # (B, 2)


if __name__ == "__main__":
    key = jax.random.PRNGKey(0)
    k_x, k_p = jax.random.split(key)

    # B=16, S=16.  tb / matmul dtype are picked per TPU generation:
    # v5e/unknown -> tok=128 f32; v6e -> tok=256 bf16 (1 tile);
    # v7x -> tok=128 bf16 x 2 tiles (both TensorCores busy).
    B, S = 16, 16
    x = jax.random.normal(k_x, (B, S, INPUT_DIM), jnp.float32)
    params = init_params(k_p)

    out = stress_transformer_forward(x, params)
    out = jax.block_until_ready(out)

    ref = jax.block_until_ready(reference_forward(x, params))
    assert out.shape == (B, NCLASS)
    assert np.all(np.isfinite(np.asarray(out)))
    assert np.allclose(np.asarray(out), np.asarray(ref), rtol=5e-2, atol=5e-2), (
        f"mismatch: {np.asarray(out)} vs {np.asarray(ref)}")

    print("KERNEL_OK")
</pallas_src>

<mosaic_0001>
module attributes {stable_mosaic.version = 11 : i64} {
  func.func @stress_transformer_kernel(%arg0: i32, %arg1: memref<128x1xf32, #tpu.memory_space<vmem>>, %arg2: memref<8x128xf32, #tpu.memory_space<vmem>>, %arg3: memref<128x128xf32, #tpu.memory_space<vmem>>, %arg4: memref<2x1x64xf32, #tpu.memory_space<vmem>>, %arg5: memref<2x64x64xf32, #tpu.memory_space<vmem>>, %arg6: memref<2x64x64xf32, #tpu.memory_space<vmem>>, %arg7: memref<2x64x256xf32, #tpu.memory_space<vmem>>, %arg8: memref<2x64x128xf32, #tpu.memory_space<vmem>>, %arg9: memref<2x1x128xf32, #tpu.memory_space<vmem>>, %arg10: memref<2x128x64xf32, #tpu.memory_space<vmem>>, %arg11: memref<2x8x1x64xf32, #tpu.memory_space<vmem>>, %arg12: memref<64x64xf32, #tpu.memory_space<vmem>>, %arg13: memref<1x64xf32, #tpu.memory_space<vmem>>, %arg14: memref<64x128xf32, #tpu.memory_space<vmem>>, %arg15: memref<1x128xf32, #tpu.memory_space<vmem>>, %arg16: memref<8x128xf32, #tpu.memory_space<vmem>>) attributes {dimension_semantics = [#tpu.dimension_semantics<parallel>], iteration_bounds = array<i64: 2>, scalar_prefetch = 0 : i64, scratch_operands = 0 : i64, tpu.core_type = #tpu.core_type<tc>, window_params = [{transform_indices = @transform_0, window_bounds = array<i64: 128, 1>}, {pipeline_mode = #tpu.pipeline_mode<synchronous>, transform_indices = @transform_1, window_bounds = array<i64: 8, 128>}, {pipeline_mode = #tpu.pipeline_mode<synchronous>, transform_indices = @transform_2, window_bounds = array<i64: 128, 128>}, {pipeline_mode = #tpu.pipeline_mode<synchronous>, transform_indices = @transform_3, window_bounds = array<i64: 2, 1, 64>}, {pipeline_mode = #tpu.pipeline_mode<synchronous>, transform_indices = @transform_4, window_bounds = array<i64: 2, 64, 64>}, {pipeline_mode = #tpu.pipeline_mode<synchronous>, transform_indices = @transform_5, window_bounds = array<i64: 2, 64, 64>}, {pipeline_mode = #tpu.pipeline_mode<synchronous>, transform_indices = @transform_6, window_bounds = array<i64: 2, 64, 256>}, {pipeline_mode = #tpu.pipeline_mode<synchronous>, transform_indices = @transform_7, window_bounds = array<i64: 2, 64, 128>}, {pipeline_mode = #tpu.pipeline_mode<synchronous>, transform_indices = @transform_8, window_bounds = array<i64: 2, 1, 128>}, {pipeline_mode = #tpu.pipeline_mode<synchronous>, transform_indices = @transform_9, window_bounds = array<i64: 2, 128, 64>}, {pipeline_mode = #tpu.pipeline_mode<synchronous>, transform_indices = @transform_10, window_bounds = array<i64: 2, 8, 1, 64>}, {pipeline_mode = #tpu.pipeline_mode<synchronous>, transform_indices = @transform_11, window_bounds = array<i64: 64, 64>}, {pipeline_mode = #tpu.pipeline_mode<synchronous>, transform_indices = @transform_12, window_bounds = array<i64: 1, 64>}, {pipeline_mode = #tpu.pipeline_mode<synchronous>, transform_indices = @transform_13, window_bounds = array<i64: 64, 128>}, {pipeline_mode = #tpu.pipeline_mode<synchronous>, transform_indices = @transform_14, window_bounds = array<i64: 1, 128>}, {transform_indices = @transform_15, window_bounds = array<i64: 8, 128>}]} {
    %c0 = arith.constant 0 : index
    %c0_0 = arith.constant 0 : index
    %0 = vector.load %arg3[%c0, %c0_0] : memref<128x128xf32, #tpu.memory_space<vmem>>, vector<128x128xf32>
    %c0_1 = arith.constant 0 : index
    %c0_2 = arith.constant 0 : index
    %1 = vector.load %arg1[%c0_1, %c0_2] : memref<128x1xf32, #tpu.memory_space<vmem>>, vector<128x1xf32>
    %c0_3 = arith.constant 0 : index
    %c0_4 = arith.constant 0 : index
    %c0_5 = arith.constant 0 : index
    %2 = vector.load %arg4[%c0_3, %c0_4, %c0_5] : memref<2x1x64xf32, #tpu.memory_space<vmem>>, vector<1x1x64xf32>
    %3 = vector.shape_cast %2 : vector<1x1x64xf32> to vector<1x64xf32>
    %4 = vector.broadcast %1 : vector<128x1xf32> to vector<128x64xf32>
    %5 = vector.broadcast %3 : vector<1x64xf32> to vector<128x64xf32>
    %6 = arith.mulf %4, %5 : vector<128x64xf32>
    %c1 = arith.constant 1 : index
    %c0_6 = arith.constant 0 : index
    %c0_7 = arith.constant 0 : index
    %7 = vector.load %arg4[%c1, %c0_6, %c0_7] : memref<2x1x64xf32, #tpu.memory_space<vmem>>, vector<1x1x64xf32>
    %8 = vector.shape_cast %7 : vector<1x1x64xf32> to vector<1x64xf32>
    %9 = vector.broadcast %8 : vector<1x64xf32> to vector<128x64xf32>
    %10 = arith.addf %6, %9 : vector<128x64xf32>
    %c0_8 = arith.constant 0 : index
    %c0_9 = arith.constant 0 : index
    %c0_10 = arith.constant 0 : index
    %c0_11 = arith.constant 0 : index
    %11 = vector.load %arg11[%c0_8, %c0_9, %c0_10, %c0_11] : memref<2x8x1x64xf32, #tpu.memory_space<vmem>>, vector<1x1x1x64xf32>
    %12 = vector.shape_cast %11 : vector<1x1x1x64xf32> to vector<1x64xf32>
    %c0_12 = arith.constant 0 : index
    %c1_13 = arith.constant 1 : index
    %c0_14 = arith.constant 0 : index
    %c0_15 = arith.constant 0 : index
    %13 = vector.load %arg11[%c0_12, %c1_13, %c0_14, %c0_15] : memref<2x8x1x64xf32, #tpu.memory_space<vmem>>, vector<1x1x1x64xf32>
    %14 = vector.shape_cast %13 : vector<1x1x1x64xf32> to vector<1x64xf32>
    %c0_16 = arith.constant 0 : index
    %c2 = arith.constant 2 : index
    %c0_17 = arith.constant 0 : index
    %c0_18 = arith.constant 0 : index
    %15 = vector.load %arg11[%c0_16, %c2, %c0_17, %c0_18] : memref<2x8x1x64xf32, #tpu.memory_space<vmem>>, vector<1x1x1x64xf32>
    %16 = vector.shape_cast %15 : vector<1x1x1x64xf32> to vector<1x64xf32>
    %c0_19 = arith.constant 0 : index
    %c3 = arith.constant 3 : index
    %c0_20 = arith.constant 0 : index
    %c0_21 = arith.constant 0 : index
    %17 = vector.load %arg11[%c0_19, %c3, %c0_20, %c0_21] : memref<2x8x1x64xf32, #tpu.memory_space<vmem>>, vector<1x1x1x64xf32>
    %18 = vector.shape_cast %17 : vector<1x1x1x64xf32> to vector<1x64xf32>
    %c0_22 = arith.constant 0 : index
    %c4 = arith.constant 4 : index
    %c0_23 = arith.constant 0 : index
    %c0_24 = arith.constant 0 : index
    %19 = vector.load %arg11[%c0_22, %c4, %c0_23, %c0_24] : memref<2x8x1x64xf32, #tpu.memory_space<vmem>>, vector<1x1x1x64xf32>
    %20 = vector.shape_cast %19 : vector<1x1x1x64xf32> to vector<1x64xf32>
    %c0_25 = arith.constant 0 : index
    %c5 = arith.constant 5 : index
    %c0_26 = arith.constant 0 : index
    %c0_27 = arith.constant 0 : index
    %21 = vector.load %arg11[%c0_25, %c5, %c0_26, %c0_27] : memref<2x8x1x64xf32, #tpu.memory_space<vmem>>, vector<1x1x1x64xf32>
    %22 = vector.shape_cast %21 : vector<1x1x1x64xf32> to vector<1x64xf32>
    %c0_28 = arith.constant 0 : index
    %c6 = arith.constant 6 : index
    %c0_29 = arith.constant 0 : index
    %c0_30 = arith.constant 0 : index
    %23 = vector.load %arg11[%c0_28, %c6, %c0_29, %c0_30] : memref<2x8x1x64xf32, #tpu.memory_space<vmem>>, vector<1x1x1x64xf32>
    %24 = vector.shape_cast %23 : vector<1x1x1x64xf32> to vector<1x64xf32>
    %c0_31 = arith.constant 0 : index
    %c7 = arith.constant 7 : index
    %c0_32 = arith.constant 0 : index
    %c0_33 = arith.constant 0 : index
    %25 = vector.load %arg11[%c0_31, %c7, %c0_32, %c0_33] : memref<2x8x1x64xf32, #tpu.memory_space<vmem>>, vector<1x1x1x64xf32>
    %26 = vector.shape_cast %25 : vector<1x1x1x64xf32> to vector<1x64xf32>
    %c0_34 = arith.constant 0 : index
    %c0_35 = arith.constant 0 : index
    %c0_36 = arith.constant 0 : index
    %27 = vector.load %arg5[%c0_34, %c0_35, %c0_36] : memref<2x64x64xf32, #tpu.memory_space<vmem>>, vector<1x64x64xf32>
    %28 = vector.shape_cast %27 : vector<1x64x64xf32> to vector<64x64xf32>
    %cst = arith.constant dense<0.000000e+00> : vector<128x64xf32>
    %29 = tpu.matmul %10, %28, %cst {dimension_numbers = #tpu.dot_dimension_numbers<[1], [0], [0], [1], [0, 0, 1, 1], [], []>} : vector<128x64xf32>, vector<64x64xf32>, vector<128x64xf32> -> vector<128x64xf32>
    %30 = vector.broadcast %12 : vector<1x64xf32> to vector<128x64xf32>
    %31 = arith.addf %29, %30 : vector<128x64xf32>
    %c0_37 = arith.constant 0 : index
    %c0_38 = arith.constant 0 : index
    %c0_39 = arith.constant 0 : index
    %32 = vector.load %arg6[%c0_37, %c0_38, %c0_39] : memref<2x64x64xf32, #tpu.memory_space<vmem>>, vector<1x64x64xf32>
    %33 = vector.shape_cast %32 : vector<1x64x64xf32> to vector<64x64xf32>
    %cst_40 = arith.constant dense<0.000000e+00> : vector<128x64xf32>
    %34 = tpu.matmul %10, %33, %cst_40 {dimension_numbers = #tpu.dot_dimension_numbers<[1], [0], [0], [1], [0, 0, 1, 1], [], []>} : vector<128x64xf32>, vector<64x64xf32>, vector<128x64xf32> -> vector<128x64xf32>
    %35 = vector.broadcast %14 : vector<1x64xf32> to vector<128x64xf32>
    %36 = arith.addf %34, %35 : vector<128x64xf32>
    %c0_41 = arith.constant 0 : index
    %c0_42 = arith.constant 0 : index
    %c0_43 = arith.constant 0 : index
    %37 = vector.load %arg7[%c0_41, %c0_42, %c0_43] : memref<2x64x256xf32, #tpu.memory_space<vmem>>, vector<1x64x256xf32>
    %38 = vector.shape_cast %37 : vector<1x64x256xf32> to vector<64x256xf32>
    %cst_44 = arith.constant dense<0.000000e+00> : vector<128x256xf32>
    %39 = tpu.matmul %10, %38, %cst_44 {dimension_numbers = #tpu.dot_dimension_numbers<[1], [0], [0], [1], [0, 0, 1, 1], [], []>} : vector<128x64xf32>, vector<64x256xf32>, vector<128x256xf32> -> vector<128x256xf32>
    %40 = vector.extract_strided_slice %31 {offsets = [0, 0], sizes = [128, 16], strides = [1, 1]} : vector<128x64xf32> to vector<128x16xf32>
    %41 = vector.extract_strided_slice %36 {offsets = [0, 0], sizes = [128, 16], strides = [1, 1]} : vector<128x64xf32> to vector<128x16xf32>
    %42 = vector.extract_strided_slice %39 {offsets = [0, 0], sizes = [128, 64], strides = [1, 1]} : vector<128x256xf32> to vector<128x64xf32>
    %cst_45 = arith.constant dense<0.000000e+00> : vector<128x128xf32>
    %43 = tpu.matmul %40, %41, %cst_45 {dimension_numbers = #tpu.dot_dimension_numbers<[1], [1], [0], [0], [0, 0, 1, 0], [], []>} : vector<128x16xf32>, vector<128x16xf32>, vector<128x128xf32> -> vector<128x128xf32>
    %44 = arith.addf %43, %0 : vector<128x128xf32>
    %cst_46 = arith.constant dense<0xFF800000> : vector<128xf32>
    %45 = vector.multi_reduction <maximumf>, %44, %cst_46 [1] : vector<128x128xf32> to vector<128xf32>
    %46 = vector.shape_cast %45 : vector<128xf32> to vector<128x1xf32>
    %47 = vector.broadcast %46 : vector<128x1xf32> to vector<128x128xf32>
    %48 = arith.subf %44, %47 : vector<128x128xf32>
    %49 = math.exp %48 : vector<128x128xf32>
    %cst_47 = arith.constant dense<0.000000e+00> : vector<128xf32>
    %50 = vector.multi_reduction <add>, %49, %cst_47 [1] : vector<128x128xf32> to vector<128xf32>
    %51 = vector.shape_cast %50 : vector<128xf32> to vector<128x1xf32>
    %52 = tpu.reciprocal %51 {approx = true} : vector<128x1xf32> -> vector<128x1xf32>
    %53 = vector.broadcast %52 : vector<128x1xf32> to vector<128x128xf32>
    %54 = arith.mulf %49, %53 : vector<128x128xf32>
    %cst_48 = arith.constant dense<0.000000e+00> : vector<128x64xf32>
    %55 = tpu.matmul %54, %42, %cst_48 {dimension_numbers = #tpu.dot_dimension_numbers<[1], [0], [0], [1], [0, 0, 1, 1], [], []>} : vector<128x128xf32>, vector<128x64xf32>, vector<128x64xf32> -> vector<128x64xf32>
    %56 = vector.extract_strided_slice %31 {offsets = [0, 16], sizes = [128, 16], strides = [1, 1]} : vector<128x64xf32> to vector<128x16xf32>
    %57 = vector.extract_strided_slice %36 {offsets = [0, 16], sizes = [128, 16], strides = [1, 1]} : vector<128x64xf32> to vector<128x16xf32>
    %58 = vector.extract_strided_slice %39 {offsets = [0, 64], sizes = [128, 64], strides = [1, 1]} : vector<128x256xf32> to vector<128x64xf32>
    %cst_49 = arith.constant dense<0.000000e+00> : vector<128x128xf32>
    %59 = tpu.matmul %56, %57, %cst_49 {dimension_numbers = #tpu.dot_dimension_numbers<[1], [1], [0], [0], [0, 0, 1, 0], [], []>} : vector<128x16xf32>, vector<128x16xf32>, vector<128x128xf32> -> vector<128x128xf32>
    %60 = arith.addf %59, %0 : vector<128x128xf32>
    %cst_50 = arith.constant dense<0xFF800000> : vector<128xf32>
    %61 = vector.multi_reduction <maximumf>, %60, %cst_50 [1] : vector<128x128xf32> to vector<128xf32>
    %62 = vector.shape_cast %61 : vector<128xf32> to vector<128x1xf32>
    %63 = vector.broadcast %62 : vector<128x1xf32> to vector<128x128xf32>
    %64 = arith.subf %60, %63 : vector<128x128xf32>
    %65 = math.exp %64 : vector<128x128xf32>
    %cst_51 = arith.constant dense<0.000000e+00> : vector<128xf32>
    %66 = vector.multi_reduction <add>, %65, %cst_51 [1] : vector<128x128xf32> to vector<128xf32>
    %67 = vector.shape_cast %66 : vector<128xf32> to vector<128x1xf32>
    %68 = tpu.reciprocal %67 {approx = true} : vector<128x1xf32> -> vector<128x1xf32>
    %69 = vector.broadcast %68 : vector<128x1xf32> to vector<128x128xf32>
    %70 = arith.mulf %65, %69 : vector<128x128xf32>
    %cst_52 = arith.constant dense<0.000000e+00> : vector<128x64xf32>
    %71 = tpu.matmul %70, %58, %cst_52 {dimension_numbers = #tpu.dot_dimension_numbers<[1], [0], [0], [1], [0, 0, 1, 1], [], []>} : vector<128x128xf32>, vector<128x64xf32>, vector<128x64xf32> -> vector<128x64xf32>
    %72 = arith.addf %55, %71 : vector<128x64xf32>
    %73 = vector.extract_strided_slice %31 {offsets = [0, 32], sizes = [128, 16], strides = [1, 1]} : vector<128x64xf32> to vector<128x16xf32>
    %74 = vector.extract_strided_slice %36 {offsets = [0, 32], sizes = [128, 16], strides = [1, 1]} : vector<128x64xf32> to vector<128x16xf32>
    %75 = vector.extract_strided_slice %39 {offsets = [0, 128], sizes = [128, 64], strides = [1, 1]} : vector<128x256xf32> to vector<128x64xf32>
    %cst_53 = arith.constant dense<0.000000e+00> : vector<128x128xf32>
    %76 = tpu.matmul %73, %74, %cst_53 {dimension_numbers = #tpu.dot_dimension_numbers<[1], [1], [0], [0], [0, 0, 1, 0], [], []>} : vector<128x16xf32>, vector<128x16xf32>, vector<128x128xf32> -> vector<128x128xf32>
    %77 = arith.addf %76, %0 : vector<128x128xf32>
    %cst_54 = arith.constant dense<0xFF800000> : vector<128xf32>
    %78 = vector.multi_reduction <maximumf>, %77, %cst_54 [1] : vector<128x128xf32> to vector<128xf32>
    %79 = vector.shape_cast %78 : vector<128xf32> to vector<128x1xf32>
    %80 = vector.broadcast %79 : vector<128x1xf32> to vector<128x128xf32>
    %81 = arith.subf %77, %80 : vector<128x128xf32>
    %82 = math.exp %81 : vector<128x128xf32>
    %cst_55 = arith.constant dense<0.000000e+00> : vector<128xf32>
    %83 = vector.multi_reduction <add>, %82, %cst_55 [1] : vector<128x128xf32> to vector<128xf32>
    %84 = vector.shape_cast %83 : vector<128xf32> to vector<128x1xf32>
    %85 = tpu.reciprocal %84 {approx = true} : vector<128x1xf32> -> vector<128x1xf32>
    %86 = vector.broadcast %85 : vector<128x1xf32> to vector<128x128xf32>
    %87 = arith.mulf %82, %86 : vector<128x128xf32>
    %cst_56 = arith.constant dense<0.000000e+00> : vector<128x64xf32>
    %88 = tpu.matmul %87, %75, %cst_56 {dimension_numbers = #tpu.dot_dimension_numbers<[1], [0], [0], [1], [0, 0, 1, 1], [], []>} : vector<128x128xf32>, vector<128x64xf32>, vector<128x64xf32> -> vector<128x64xf32>
    %89 = arith.addf %72, %88 : vector<128x64xf32>
    %90 = vector.extract_strided_slice %31 {offsets = [0, 48], sizes = [128, 16], strides = [1, 1]} : vector<128x64xf32> to vector<128x16xf32>
    %91 = vector.extract_strided_slice %36 {offsets = [0, 48], sizes = [128, 16], strides = [1, 1]} : vector<128x64xf32> to vector<128x16xf32>
    %92 = vector.extract_strided_slice %39 {offsets = [0, 192], sizes = [128, 64], strides = [1, 1]} : vector<128x256xf32> to vector<128x64xf32>
    %cst_57 = arith.constant dense<0.000000e+00> : vector<128x128xf32>
    %93 = tpu.matmul %90, %91, %cst_57 {dimension_numbers = #tpu.dot_dimension_numbers<[1], [1], [0], [0], [0, 0, 1, 0], [], []>} : vector<128x16xf32>, vector<128x16xf32>, vector<128x128xf32> -> vector<128x128xf32>
    %94 = arith.addf %93, %0 : vector<128x128xf32>
    %cst_58 = arith.constant dense<0xFF800000> : vector<128xf32>
    %95 = vector.multi_reduction <maximumf>, %94, %cst_58 [1] : vector<128x128xf32> to vector<128xf32>
    %96 = vector.shape_cast %95 : vector<128xf32> to vector<128x1xf32>
    %97 = vector.broadcast %96 : vector<128x1xf32> to vector<128x128xf32>
    %98 = arith.subf %94, %97 : vector<128x128xf32>
    %99 = math.exp %98 : vector<128x128xf32>
    %cst_59 = arith.constant dense<0.000000e+00> : vector<128xf32>
    %100 = vector.multi_reduction <add>, %99, %cst_59 [1] : vector<128x128xf32> to vector<128xf32>
    %101 = vector.shape_cast %100 : vector<128xf32> to vector<128x1xf32>
    %102 = tpu.reciprocal %101 {approx = true} : vector<128x1xf32> -> vector<128x1xf32>
    %103 = vector.broadcast %102 : vector<128x1xf32> to vector<128x128xf32>
    %104 = arith.mulf %99, %103 : vector<128x128xf32>
    %cst_60 = arith.constant dense<0.000000e+00> : vector<128x64xf32>
    %105 = tpu.matmul %104, %92, %cst_60 {dimension_numbers = #tpu.dot_dimension_numbers<[1], [0], [0], [1], [0, 0, 1, 1], [], []>} : vector<128x128xf32>, vector<128x64xf32>, vector<128x64xf32> -> vector<128x64xf32>
    %106 = arith.addf %89, %105 : vector<128x64xf32>
    %107 = vector.broadcast %16 : vector<1x64xf32> to vector<128x64xf32>
    %108 = arith.addf %106, %107 : vector<128x64xf32>
    %109 = arith.addf %10, %108 : vector<128x64xf32>
    %cst_61 = arith.constant dense<0.000000e+00> : vector<128xf32>
    %110 = vector.multi_reduction <add>, %109, %cst_61 [1] : vector<128x64xf32> to vector<128xf32>
    %111 = vector.shape_cast %110 : vector<128xf32> to vector<128x1xf32>
    %cst_62 = arith.constant 6.400000e+01 : f32
    %112 = vector.broadcast %cst_62 : f32 to vector<128x1xf32>
    %113 = arith.divf %111, %112 : vector<128x1xf32>
    %114 = vector.broadcast %113 : vector<128x1xf32> to vector<128x64xf32>
    %115 = arith.subf %109, %114 : vector<128x64xf32>
    %116 = arith.mulf %115, %115 : vector<128x64xf32>
    %cst_63 = arith.constant dense<0.000000e+00> : vector<128xf32>
    %117 = vector.multi_reduction <add>, %116, %cst_63 [1] : vector<128x64xf32> to vector<128xf32>
    %118 = vector.shape_cast %117 : vector<128xf32> to vector<128x1xf32>
    %cst_64 = arith.constant 6.400000e+01 : f32
    %119 = vector.broadcast %cst_64 : f32 to vector<128x1xf32>
    %120 = arith.divf %118, %119 : vector<128x1xf32>
    %121 = vector.broadcast %113 : vector<128x1xf32> to vector<128x64xf32>
    %122 = arith.subf %109, %121 : vector<128x64xf32>
    %cst_65 = arith.constant 9.99999974E-6 : f32
    %123 = vector.broadcast %cst_65 : f32 to vector<128x1xf32>
    %124 = arith.addf %120, %123 : vector<128x1xf32>
    %125 = math.rsqrt %124 : vector<128x1xf32>
    %126 = vector.broadcast %125 : vector<128x1xf32> to vector<128x64xf32>
    %127 = arith.mulf %122, %126 : vector<128x64xf32>
    %128 = vector.broadcast %20 : vector<1x64xf32> to vector<128x64xf32>
    %129 = arith.mulf %127, %128 : vector<128x64xf32>
    %130 = vector.broadcast %22 : vector<1x64xf32> to vector<128x64xf32>
    %131 = arith.addf %129, %130 : vector<128x64xf32>
    %c0_66 = arith.constant 0 : index
    %c0_67 = arith.constant 0 : index
    %c0_68 = arith.constant 0 : index
    %132 = vector.load %arg8[%c0_66, %c0_67, %c0_68] : memref<2x64x128xf32, #tpu.memory_space<vmem>>, vector<1x64x128xf32>
    %133 = vector.shape_cast %132 : vector<1x64x128xf32> to vector<64x128xf32>
    %cst_69 = arith.constant dense<0.000000e+00> : vector<128x128xf32>
    %134 = tpu.matmul %131, %133, %cst_69 {dimension_numbers = #tpu.dot_dimension_numbers<[1], [0], [0], [1], [0, 0, 1, 1], [], []>} : vector<128x64xf32>, vector<64x128xf32>, vector<128x128xf32> -> vector<128x128xf32>
    %c0_70 = arith.constant 0 : index
    %c0_71 = arith.constant 0 : index
    %c0_72 = arith.constant 0 : index
    %135 = vector.load %arg9[%c0_70, %c0_71, %c0_72] : memref<2x1x128xf32, #tpu.memory_space<vmem>>, vector<1x1x128xf32>
    %136 = vector.shape_cast %135 : vector<1x1x128xf32> to vector<1x128xf32>
    %137 = vector.broadcast %136 : vector<1x128xf32> to vector<128x128xf32>
    %138 = arith.addf %134, %137 : vector<128x128xf32>
    %cst_73 = arith.constant 0.000000e+00 : f32
    %139 = vector.broadcast %cst_73 : f32 to vector<128x128xf32>
    %140 = arith.maximumf %138, %139 : vector<128x128xf32>
    %c0_74 = arith.constant 0 : index
    %c0_75 = arith.constant 0 : index
    %c0_76 = arith.constant 0 : index
    %141 = vector.load %arg10[%c0_74, %c0_75, %c0_76] : memref<2x128x64xf32, #tpu.memory_space<vmem>>, vector<1x128x64xf32>
    %142 = vector.shape_cast %141 : vector<1x128x64xf32> to vector<128x64xf32>
    %cst_77 = arith.constant dense<0.000000e+00> : vector<128x64xf32>
    %143 = tpu.matmul %140, %142, %cst_77 {dimension_numbers = #tpu.dot_dimension_numbers<[1], [0], [0], [1], [0, 0, 1, 1], [], []>} : vector<128x128xf32>, vector<128x64xf32>, vector<128x64xf32> -> vector<128x64xf32>
    %144 = vector.broadcast %18 : vector<1x64xf32> to vector<128x64xf32>
    %145 = arith.addf %143, %144 : vector<128x64xf32>
    %146 = arith.addf %131, %145 : vector<128x64xf32>
    %cst_78 = arith.constant dense<0.000000e+00> : vector<128xf32>
    %147 = vector.multi_reduction <add>, %146, %cst_78 [1] : vector<128x64xf32> to vector<128xf32>
    %148 = vector.shape_cast %147 : vector<128xf32> to vector<128x1xf32>
    %cst_79 = arith.constant 6.400000e+01 : f32
    %149 = vector.broadcast %cst_79 : f32 to vector<128x1xf32>
    %150 = arith.divf %148, %149 : vector<128x1xf32>
    %151 = vector.broadcast %150 : vector<128x1xf32> to vector<128x64xf32>
    %152 = arith.subf %146, %151 : vector<128x64xf32>
    %153 = arith.mulf %152, %152 : vector<128x64xf32>
    %cst_80 = arith.constant dense<0.000000e+00> : vector<128xf32>
    %154 = vector.multi_reduction <add>, %153, %cst_80 [1] : vector<128x64xf32> to vector<128xf32>
    %155 = vector.shape_cast %154 : vector<128xf32> to vector<128x1xf32>
    %cst_81 = arith.constant 6.400000e+01 : f32
    %156 = vector.broadcast %cst_81 : f32 to vector<128x1xf32>
    %157 = arith.divf %155, %156 : vector<128x1xf32>
    %158 = vector.broadcast %150 : vector<128x1xf32> to vector<128x64xf32>
    %159 = arith.subf %146, %158 : vector<128x64xf32>
    %cst_82 = arith.constant 9.99999974E-6 : f32
    %160 = vector.broadcast %cst_82 : f32 to vector<128x1xf32>
    %161 = arith.addf %157, %160 : vector<128x1xf32>
    %162 = math.rsqrt %161 : vector<128x1xf32>
    %163 = vector.broadcast %162 : vector<128x1xf32> to vector<128x64xf32>
    %164 = arith.mulf %159, %163 : vector<128x64xf32>
    %165 = vector.broadcast %24 : vector<1x64xf32> to vector<128x64xf32>
    %166 = arith.mulf %164, %165 : vector<128x64xf32>
    %167 = vector.broadcast %26 : vector<1x64xf32> to vector<128x64xf32>
    %168 = arith.addf %166, %167 : vector<128x64xf32>
    %c1_83 = arith.constant 1 : index
    %c0_84 = arith.constant 0 : index
    %c0_85 = arith.constant 0 : index
    %c0_86 = arith.constant 0 : index
    %169 = vector.load %arg11[%c1_83, %c0_84, %c0_85, %c0_86] : memref<2x8x1x64xf32, #tpu.memory_space<vmem>>, vector<1x1x1x64xf32>
    %170 = vector.shape_cast %169 : vector<1x1x1x64xf32> to vector<1x64xf32>
    %c1_87 = arith.constant 1 : index
    %c1_88 = arith.constant 1 : index
    %c0_89 = arith.constant 0 : index
    %c0_90 = arith.constant 0 : index
    %171 = vector.load %arg11[%c1_87, %c1_88, %c0_89, %c0_90] : memref<2x8x1x64xf32, #tpu.memory_space<vmem>>, vector<1x1x1x64xf32>
    %172 = vector.shape_cast %171 : vector<1x1x1x64xf32> to vector<1x64xf32>
    %c1_91 = arith.constant 1 : index
    %c2_92 = arith.constant 2 : index
    %c0_93 = arith.constant 0 : index
    %c0_94 = arith.constant 0 : index
    %173 = vector.load %arg11[%c1_91, %c2_92, %c0_93, %c0_94] : memref<2x8x1x64xf32, #tpu.memory_space<vmem>>, vector<1x1x1x64xf32>
    %174 = vector.shape_cast %173 : vector<1x1x1x64xf32> to vector<1x64xf32>
    %c1_95 = arith.constant 1 : index
    %c3_96 = arith.constant 3 : index
    %c0_97 = arith.constant 0 : index
    %c0_98 = arith.constant 0 : index
    %175 = vector.load %arg11[%c1_95, %c3_96, %c0_97, %c0_98] : memref<2x8x1x64xf32, #tpu.memory_space<vmem>>, vector<1x1x1x64xf32>
    %176 = vector.shape_cast %175 : vector<1x1x1x64xf32> to vector<1x64xf32>
    %c1_99 = arith.constant 1 : index
    %c4_100 = arith.constant 4 : index
    %c0_101 = arith.constant 0 : index
    %c0_102 = arith.constant 0 : index
    %177 = vector.load %arg11[%c1_99, %c4_100, %c0_101, %c0_102] : memref<2x8x1x64xf32, #tpu.memory_space<vmem>>, vector<1x1x1x64xf32>
    %178 = vector.shape_cast %177 : vector<1x1x1x64xf32> to vector<1x64xf32>
    %c1_103 = arith.constant 1 : index
    %c5_104 = arith.constant 5 : index
    %c0_105 = arith.constant 0 : index
    %c0_106 = arith.constant 0 : index
    %179 = vector.load %arg11[%c1_103, %c5_104, %c0_105, %c0_106] : memref<2x8x1x64xf32, #tpu.memory_space<vmem>>, vector<1x1x1x64xf32>
    %180 = vector.shape_cast %179 : vector<1x1x1x64xf32> to vector<1x64xf32>
    %c1_107 = arith.constant 1 : index
    %c6_108 = arith.constant 6 : index
    %c0_109 = arith.constant 0 : index
    %c0_110 = arith.constant 0 : index
    %181 = vector.load %arg11[%c1_107, %c6_108, %c0_109, %c0_110] : memref<2x8x1x64xf32, #tpu.memory_space<vmem>>, vector<1x1x1x64xf32>
    %182 = vector.shape_cast %181 : vector<1x1x1x64xf32> to vector<1x64xf32>
    %c1_111 = arith.constant 1 : index
    %c7_112 = arith.constant 7 : index
    %c0_113 = arith.constant 0 : index
    %c0_114 = arith.constant 0 : index
    %183 = vector.load %arg11[%c1_111, %c7_112, %c0_113, %c0_114] : memref<2x8x1x64xf32, #tpu.memory_space<vmem>>, vector<1x1x1x64xf32>
    %184 = vector.shape_cast %183 : vector<1x1x1x64xf32> to vector<1x64xf32>
    %c1_115 = arith.constant 1 : index
    %c0_116 = arith.constant 0 : index
    %c0_117 = arith.constant 0 : index
    %185 = vector.load %arg5[%c1_115, %c0_116, %c0_117] : memref<2x64x64xf32, #tpu.memory_space<vmem>>, vector<1x64x64xf32>
    %186 = vector.shape_cast %185 : vector<1x64x64xf32> to vector<64x64xf32>
    %cst_118 = arith.constant dense<0.000000e+00> : vector<128x64xf32>
    %187 = tpu.matmul %168, %186, %cst_118 {dimension_numbers = #tpu.dot_dimension_numbers<[1], [0], [0], [1], [0, 0, 1, 1], [], []>} : vector<128x64xf32>, vector<64x64xf32>, vector<128x64xf32> -> vector<128x64xf32>
    %188 = vector.broadcast %170 : vector<1x64xf32> to vector<128x64xf32>
    %189 = arith.addf %187, %188 : vector<128x64xf32>
    %c1_119 = arith.constant 1 : index
    %c0_120 = arith.constant 0 : index
    %c0_121 = arith.constant 0 : index
    %190 = vector.load %arg6[%c1_119, %c0_120, %c0_121] : memref<2x64x64xf32, #tpu.memory_space<vmem>>, vector<1x64x64xf32>
    %191 = vector.shape_cast %190 : vector<1x64x64xf32> to vector<64x64xf32>
    %cst_122 = arith.constant dense<0.000000e+00> : vector<128x64xf32>
    %192 = tpu.matmul %168, %191, %cst_122 {dimension_numbers = #tpu.dot_dimension_numbers<[1], [0], [0], [1], [0, 0, 1, 1], [], []>} : vector<128x64xf32>, vector<64x64xf32>, vector<128x64xf32> -> vector<128x64xf32>
    %193 = vector.broadcast %172 : vector<1x64xf32> to vector<128x64xf32>
    %194 = arith.addf %192, %193 : vector<128x64xf32>
    %c1_123 = arith.constant 1 : index
    %c0_124 = arith.constant 0 : index
    %c0_125 = arith.constant 0 : index
    %195 = vector.load %arg7[%c1_123, %c0_124, %c0_125] : memref<2x64x256xf32, #tpu.memory_space<vmem>>, vector<1x64x256xf32>
    %196 = vector.shape_cast %195 : vector<1x64x256xf32> to vector<64x256xf32>
    %cst_126 = arith.constant dense<0.000000e+00> : vector<128x256xf32>
    %197 = tpu.matmul %168, %196, %cst_126 {dimension_numbers = #tpu.dot_dimension_numbers<[1], [0], [0], [1], [0, 0, 1, 1], [], []>} : vector<128x64xf32>, vector<64x256xf32>, vector<128x256xf32> -> vector<128x256xf32>
    %198 = vector.extract_strided_slice %189 {offsets = [0, 0], sizes = [128, 16], strides = [1, 1]} : vector<128x64xf32> to vector<128x16xf32>
    %199 = vector.extract_strided_slice %194 {offsets = [0, 0], sizes = [128, 16], strides = [1, 1]} : vector<128x64xf32> to vector<128x16xf32>
    %200 = vector.extract_strided_slice %197 {offsets = [0, 0], sizes = [128, 64], strides = [1, 1]} : vector<128x256xf32> to vector<128x64xf32>
    %cst_127 = arith.constant dense<0.000000e+00> : vector<128x128xf32>
    %201 = tpu.matmul %198, %199, %cst_127 {dimension_numbers = #tpu.dot_dimension_numbers<[1], [1], [0], [0], [0, 0, 1, 0], [], []>} : vector<128x16xf32>, vector<128x16xf32>, vector<128x128xf32> -> vector<128x128xf32>
    %202 = arith.addf %201, %0 : vector<128x128xf32>
    %cst_128 = arith.constant dense<0xFF800000> : vector<128xf32>
    %203 = vector.multi_reduction <maximumf>, %202, %cst_128 [1] : vector<128x128xf32> to vector<128xf32>
    %204 = vector.shape_cast %203 : vector<128xf32> to vector<128x1xf32>
    %205 = vector.broadcast %204 : vector<128x1xf32> to vector<128x128xf32>
    %206 = arith.subf %202, %205 : vector<128x128xf32>
    %207 = math.exp %206 : vector<128x128xf32>
    %cst_129 = arith.constant dense<0.000000e+00> : vector<128xf32>
    %208 = vector.multi_reduction <add>, %207, %cst_129 [1] : vector<128x128xf32> to vector<128xf32>
    %209 = vector.shape_cast %208 : vector<128xf32> to vector<128x1xf32>
    %210 = tpu.reciprocal %209 {approx = true} : vector<128x1xf32> -> vector<128x1xf32>
    %211 = vector.broadcast %210 : vector<128x1xf32> to vector<128x128xf32>
    %212 = arith.mulf %207, %211 : vector<128x128xf32>
    %cst_130 = arith.constant dense<0.000000e+00> : vector<128x64xf32>
    %213 = tpu.matmul %212, %200, %cst_130 {dimension_numbers = #tpu.dot_dimension_numbers<[1], [0], [0], [1], [0, 0, 1, 1], [], []>} : vector<128x128xf32>, vector<128x64xf32>, vector<128x64xf32> -> vector<128x64xf32>
    %214 = vector.extract_strided_slice %189 {offsets = [0, 16], sizes = [128, 16], strides = [1, 1]} : vector<128x64xf32> to vector<128x16xf32>
    %215 = vector.extract_strided_slice %194 {offsets = [0, 16], sizes = [128, 16], strides = [1, 1]} : vector<128x64xf32> to vector<128x16xf32>
    %216 = vector.extract_strided_slice %197 {offsets = [0, 64], sizes = [128, 64], strides = [1, 1]} : vector<128x256xf32> to vector<128x64xf32>
    %cst_131 = arith.constant dense<0.000000e+00> : vector<128x128xf32>
    %217 = tpu.matmul %214, %215, %cst_131 {dimension_numbers = #tpu.dot_dimension_numbers<[1], [1], [0], [0], [0, 0, 1, 0], [], []>} : vector<128x16xf32>, vector<128x16xf32>, vector<128x128xf32> -> vector<128x128xf32>
    %218 = arith.addf %217, %0 : vector<128x128xf32>
    %cst_132 = arith.constant dense<0xFF800000> : vector<128xf32>
    %219 = vector.multi_reduction <maximumf>, %218, %cst_132 [1] : vector<128x128xf32> to vector<128xf32>
    %220 = vector.shape_cast %219 : vector<128xf32> to vector<128x1xf32>
    %221 = vector.broadcast %220 : vector<128x1xf32> to vector<128x128xf32>
    %222 = arith.subf %218, %221 : vector<128x128xf32>
    %223 = math.exp %222 : vector<128x128xf32>
    %cst_133 = arith.constant dense<0.000000e+00> : vector<128xf32>
    %224 = vector.multi_reduction <add>, %223, %cst_133 [1] : vector<128x128xf32> to vector<128xf32>
    %225 = vector.shape_cast %224 : vector<128xf32> to vector<128x1xf32>
    %226 = tpu.reciprocal %225 {approx = true} : vector<128x1xf32> -> vector<128x1xf32>
    %227 = vector.broadcast %226 : vector<128x1xf32> to vector<128x128xf32>
    %228 = arith.mulf %223, %227 : vector<128x128xf32>
    %cst_134 = arith.constant dense<0.000000e+00> : vector<128x64xf32>
    %229 = tpu.matmul %228, %216, %cst_134 {dimension_numbers = #tpu.dot_dimension_numbers<[1], [0], [0], [1], [0, 0, 1, 1], [], []>} : vector<128x128xf32>, vector<128x64xf32>, vector<128x64xf32> -> vector<128x64xf32>
    %230 = arith.addf %213, %229 : vector<128x64xf32>
    %231 = vector.extract_strided_slice %189 {offsets = [0, 32], sizes = [128, 16], strides = [1, 1]} : vector<128x64xf32> to vector<128x16xf32>
    %232 = vector.extract_strided_slice %194 {offsets = [0, 32], sizes = [128, 16], strides = [1, 1]} : vector<128x64xf32> to vector<128x16xf32>
    %233 = vector.extract_strided_slice %197 {offsets = [0, 128], sizes = [128, 64], strides = [1, 1]} : vector<128x256xf32> to vector<128x64xf32>
    %cst_135 = arith.constant dense<0.000000e+00> : vector<128x128xf32>
    %234 = tpu.matmul %231, %232, %cst_135 {dimension_numbers = #tpu.dot_dimension_numbers<[1], [1], [0], [0], [0, 0, 1, 0], [], []>} : vector<128x16xf32>, vector<128x16xf32>, vector<128x128xf32> -> vector<128x128xf32>
    %235 = arith.addf %234, %0 : vector<128x128xf32>
    %cst_136 = arith.constant dense<0xFF800000> : vector<128xf32>
    %236 = vector.multi_reduction <maximumf>, %235, %cst_136 [1] : vector<128x128xf32> to vector<128xf32>
    %237 = vector.shape_cast %236 : vector<128xf32> to vector<128x1xf32>
    %238 = vector.broadcast %237 : vector<128x1xf32> to vector<128x128xf32>
    %239 = arith.subf %235, %238 : vector<128x128xf32>
    %240 = math.exp %239 : vector<128x128xf32>
    %cst_137 = arith.constant dense<0.000000e+00> : vector<128xf32>
    %241 = vector.multi_reduction <add>, %240, %cst_137 [1] : vector<128x128xf32> to vector<128xf32>
    %242 = vector.shape_cast %241 : vector<128xf32> to vector<128x1xf32>
    %243 = tpu.reciprocal %242 {approx = true} : vector<128x1xf32> -> vector<128x1xf32>
    %244 = vector.broadcast %243 : vector<128x1xf32> to vector<128x128xf32>
    %245 = arith.mulf %240, %244 : vector<128x128xf32>
    %cst_138 = arith.constant dense<0.000000e+00> : vector<128x64xf32>
    %246 = tpu.matmul %245, %233, %cst_138 {dimension_numbers = #tpu.dot_dimension_numbers<[1], [0], [0], [1], [0, 0, 1, 1], [], []>} : vector<128x128xf32>, vector<128x64xf32>, vector<128x64xf32> -> vector<128x64xf32>
    %247 = arith.addf %230, %246 : vector<128x64xf32>
    %248 = vector.extract_strided_slice %189 {offsets = [0, 48], sizes = [128, 16], strides = [1, 1]} : vector<128x64xf32> to vector<128x16xf32>
    %249 = vector.extract_strided_slice %194 {offsets = [0, 48], sizes = [128, 16], strides = [1, 1]} : vector<128x64xf32> to vector<128x16xf32>
    %250 = vector.extract_strided_slice %197 {offsets = [0, 192], sizes = [128, 64], strides = [1, 1]} : vector<128x256xf32> to vector<128x64xf32>
    %cst_139 = arith.constant dense<0.000000e+00> : vector<128x128xf32>
    %251 = tpu.matmul %248, %249, %cst_139 {dimension_numbers = #tpu.dot_dimension_numbers<[1], [1], [0], [0], [0, 0, 1, 0], [], []>} : vector<128x16xf32>, vector<128x16xf32>, vector<128x128xf32> -> vector<128x128xf32>
    %252 = arith.addf %251, %0 : vector<128x128xf32>
    %cst_140 = arith.constant dense<0xFF800000> : vector<128xf32>
    %253 = vector.multi_reduction <maximumf>, %252, %cst_140 [1] : vector<128x128xf32> to vector<128xf32>
    %254 = vector.shape_cast %253 : vector<128xf32> to vector<128x1xf32>
    %255 = vector.broadcast %254 : vector<128x1xf32> to vector<128x128xf32>
    %256 = arith.subf %252, %255 : vector<128x128xf32>
    %257 = math.exp %256 : vector<128x128xf32>
    %cst_141 = arith.constant dense<0.000000e+00> : vector<128xf32>
    %258 = vector.multi_reduction <add>, %257, %cst_141 [1] : vector<128x128xf32> to vector<128xf32>
    %259 = vector.shape_cast %258 : vector<128xf32> to vector<128x1xf32>
    %260 = tpu.reciprocal %259 {approx = true} : vector<128x1xf32> -> vector<128x1xf32>
    %261 = vector.broadcast %260 : vector<128x1xf32> to vector<128x128xf32>
    %262 = arith.mulf %257, %261 : vector<128x128xf32>
    %cst_142 = arith.constant dense<0.000000e+00> : vector<128x64xf32>
    %263 = tpu.matmul %262, %250, %cst_142 {dimension_numbers = #tpu.dot_dimension_numbers<[1], [0], [0], [1], [0, 0, 1, 1], [], []>} : vector<128x128xf32>, vector<128x64xf32>, vector<128x64xf32> -> vector<128x64xf32>
    %264 = arith.addf %247, %263 : vector<128x64xf32>
    %265 = vector.broadcast %174 : vector<1x64xf32> to vector<128x64xf32>
    %266 = arith.addf %264, %265 : vector<128x64xf32>
    %267 = arith.addf %168, %266 : vector<128x64xf32>
    %cst_143 = arith.constant dense<0.000000e+00> : vector<128xf32>
    %268 = vector.multi_reduction <add>, %267, %cst_143 [1] : vector<128x64xf32> to vector<128xf32>
    %269 = vector.shape_cast %268 : vector<128xf32> to vector<128x1xf32>
    %cst_144 = arith.constant 6.400000e+01 : f32
    %270 = vector.broadcast %cst_144 : f32 to vector<128x1xf32>
    %271 = arith.divf %269, %270 : vector<128x1xf32>
    %272 = vector.broadcast %271 : vector<128x1xf32> to vector<128x64xf32>
    %273 = arith.subf %267, %272 : vector<128x64xf32>
    %274 = arith.mulf %273, %273 : vector<128x64xf32>
    %cst_145 = arith.constant dense<0.000000e+00> : vector<128xf32>
    %275 = vector.multi_reduction <add>, %274, %cst_145 [1] : vector<128x64xf32> to vector<128xf32>
    %276 = vector.shape_cast %275 : vector<128xf32> to vector<128x1xf32>
    %cst_146 = arith.constant 6.400000e+01 : f32
    %277 = vector.broadcast %cst_146 : f32 to vector<128x1xf32>
    %278 = arith.divf %276, %277 : vector<128x1xf32>
    %279 = vector.broadcast %271 : vector<128x1xf32> to vector<128x64xf32>
    %280 = arith.subf %267, %279 : vector<128x64xf32>
    %cst_147 = arith.constant 9.99999974E-6 : f32
    %281 = vector.broadcast %cst_147 : f32 to vector<128x1xf32>
    %282 = arith.addf %278, %281 : vector<128x1xf32>
    %283 = math.rsqrt %282 : vector<128x1xf32>
    %284 = vector.broadcast %283 : vector<128x1xf32> to vector<128x64xf32>
    %285 = arith.mulf %280, %284 : vector<128x64xf32>
    %286 = vector.broadcast %178 : vector<1x64xf32> to vector<128x64xf32>
    %287 = arith.mulf %285, %286 : vector<128x64xf32>
    %288 = vector.broadcast %180 : vector<1x64xf32> to vector<128x64xf32>
    %289 = arith.addf %287, %288 : vector<128x64xf32>
    %c1_148 = arith.constant 1 : index
    %c0_149 = arith.constant 0 : index
    %c0_150 = arith.constant 0 : index
    %290 = vector.load %arg8[%c1_148, %c0_149, %c0_150] : memref<2x64x128xf32, #tpu.memory_space<vmem>>, vector<1x64x128xf32>
    %291 = vector.shape_cast %290 : vector<1x64x128xf32> to vector<64x128xf32>
    %cst_151 = arith.constant dense<0.000000e+00> : vector<128x128xf32>
    %292 = tpu.matmul %289, %291, %cst_151 {dimension_numbers = #tpu.dot_dimension_numbers<[1], [0], [0], [1], [0, 0, 1, 1], [], []>} : vector<128x64xf32>, vector<64x128xf32>, vector<128x128xf32> -> vector<128x128xf32>
    %c1_152 = arith.constant 1 : index
    %c0_153 = arith.constant 0 : index
    %c0_154 = arith.constant 0 : index
    %293 = vector.load %arg9[%c1_152, %c0_153, %c0_154] : memref<2x1x128xf32, #tpu.memory_space<vmem>>, vector<1x1x128xf32>
    %294 = vector.shape_cast %293 : vector<1x1x128xf32> to vector<1x128xf32>
    %295 = vector.broadcast %294 : vector<1x128xf32> to vector<128x128xf32>
    %296 = arith.addf %292, %295 : vector<128x128xf32>
    %cst_155 = arith.constant 0.000000e+00 : f32
    %297 = vector.broadcast %cst_155 : f32 to vector<128x128xf32>
    %298 = arith.maximumf %296, %297 : vector<128x128xf32>
    %c1_156 = arith.constant 1 : index
    %c0_157 = arith.constant 0 : index
    %c0_158 = arith.constant 0 : index
    %299 = vector.load %arg10[%c1_156, %c0_157, %c0_158] : memref<2x128x64xf32, #tpu.memory_space<vmem>>, vector<1x128x64xf32>
    %300 = vector.shape_cast %299 : vector<1x128x64xf32> to vector<128x64xf32>
    %cst_159 = arith.constant dense<0.000000e+00> : vector<128x64xf32>
    %301 = tpu.matmul %298, %300, %cst_159 {dimension_numbers = #tpu.dot_dimension_numbers<[1], [0], [0], [1], [0, 0, 1, 1], [], []>} : vector<128x128xf32>, vector<128x64xf32>, vector<128x64xf32> -> vector<128x64xf32>
    %302 = vector.broadcast %176 : vector<1x64xf32> to vector<128x64xf32>
    %303 = arith.addf %301, %302 : vector<128x64xf32>
    %304 = arith.addf %289, %303 : vector<128x64xf32>
    %cst_160 = arith.constant dense<0.000000e+00> : vector<128xf32>
    %305 = vector.multi_reduction <add>, %304, %cst_160 [1] : vector<128x64xf32> to vector<128xf32>
    %306 = vector.shape_cast %305 : vector<128xf32> to vector<128x1xf32>
    %cst_161 = arith.constant 6.400000e+01 : f32
    %307 = vector.broadcast %cst_161 : f32 to vector<128x1xf32>
    %308 = arith.divf %306, %307 : vector<128x1xf32>
    %309 = vector.broadcast %308 : vector<128x1xf32> to vector<128x64xf32>
    %310 = arith.subf %304, %309 : vector<128x64xf32>
    %311 = arith.mulf %310, %310 : vector<128x64xf32>
    %cst_162 = arith.constant dense<0.000000e+00> : vector<128xf32>
    %312 = vector.multi_reduction <add>, %311, %cst_162 [1] : vector<128x64xf32> to vector<128xf32>
    %313 = vector.shape_cast %312 : vector<128xf32> to vector<128x1xf32>
    %cst_163 = arith.constant 6.400000e+01 : f32
    %314 = vector.broadcast %cst_163 : f32 to vector<128x1xf32>
    %315 = arith.divf %313, %314 : vector<128x1xf32>
    %316 = vector.broadcast %308 : vector<128x1xf32> to vector<128x64xf32>
    %317 = arith.subf %304, %316 : vector<128x64xf32>
    %cst_164 = arith.constant 9.99999974E-6 : f32
    %318 = vector.broadcast %cst_164 : f32 to vector<128x1xf32>
    %319 = arith.addf %315, %318 : vector<128x1xf32>
    %320 = math.rsqrt %319 : vector<128x1xf32>
    %321 = vector.broadcast %320 : vector<128x1xf32> to vector<128x64xf32>
    %322 = arith.mulf %317, %321 : vector<128x64xf32>
    %323 = vector.broadcast %182 : vector<1x64xf32> to vector<128x64xf32>
    %324 = arith.mulf %322, %323 : vector<128x64xf32>
    %325 = vector.broadcast %184 : vector<1x64xf32> to vector<128x64xf32>
    %326 = arith.addf %324, %325 : vector<128x64xf32>
    %c0_165 = arith.constant 0 : index
    %c0_166 = arith.constant 0 : index
    %327 = vector.load %arg2[%c0_165, %c0_166] : memref<8x128xf32, #tpu.memory_space<vmem>>, vector<8x128xf32>
    %cst_167 = arith.constant dense<0.000000e+00> : vector<8x64xf32>
    %328 = tpu.matmul %327, %326, %cst_167 {dimension_numbers = #tpu.dot_dimension_numbers<[1], [0], [0], [1], [0, 0, 1, 1], [], []>} : vector<8x128xf32>, vector<128x64xf32>, vector<8x64xf32> -> vector<8x64xf32>
    %c0_168 = arith.constant 0 : index
    %c0_169 = arith.constant 0 : index
    %329 = vector.load %arg12[%c0_168, %c0_169] : memref<64x64xf32, #tpu.memory_space<vmem>>, vector<64x64xf32>
    %cst_170 = arith.constant dense<0.000000e+00> : vector<8x64xf32>
    %330 = tpu.matmul %328, %329, %cst_170 {dimension_numbers = #tpu.dot_dimension_numbers<[1], [0], [0], [1], [0, 0, 1, 1], [], []>} : vector<8x64xf32>, vector<64x64xf32>, vector<8x64xf32> -> vector<8x64xf32>
    %c0_171 = arith.constant 0 : index
    %c0_172 = arith.constant 0 : index
    %331 = vector.load %arg13[%c0_171, %c0_172] : memref<1x64xf32, #tpu.memory_space<vmem>>, vector<1x64xf32>
    %332 = vector.broadcast %331 : vector<1x64xf32> to vector<8x64xf32>
    %333 = arith.addf %330, %332 : vector<8x64xf32>
    %cst_173 = arith.constant 0.000000e+00 : f32
    %334 = vector.broadcast %cst_173 : f32 to vector<8x64xf32>
    %335 = arith.maximumf %333, %334 : vector<8x64xf32>
    %c0_174 = arith.constant 0 : index
    %c0_175 = arith.constant 0 : index
    %336 = vector.load %arg14[%c0_174, %c0_175] : memref<64x128xf32, #tpu.memory_space<vmem>>, vector<64x128xf32>
    %cst_176 = arith.constant dense<0.000000e+00> : vector<8x128xf32>
    %337 = tpu.matmul %335, %336, %cst_176 {dimension_numbers = #tpu.dot_dimension_numbers<[1], [0], [0], [1], [0, 0, 1, 1], [], []>} : vector<8x64xf32>, vector<64x128xf32>, vector<8x128xf32> -> vector<8x128xf32>
    %c0_177 = arith.constant 0 : index
    %c0_178 = arith.constant 0 : index
    %338 = vector.load %arg15[%c0_177, %c0_178] : memref<1x128xf32, #tpu.memory_space<vmem>>, vector<1x128xf32>
    %339 = vector.broadcast %338 : vector<1x128xf32> to vector<8x128xf32>
    %340 = arith.addf %337, %339 : vector<8x128xf32>
    %c0_179 = arith.constant 0 : index
    %c0_180 = arith.constant 0 : index
    %341 = vector.load %arg16[%c0_179, %c0_180] : memref<8x128xf32, #tpu.memory_space<vmem>>, vector<8x128xf32>
    tpu.vector_store %arg16[%c0_179, %c0_180], %340 {strides = array<i32>} : memref<8x128xf32, #tpu.memory_space<vmem>>, vector<8x128xf32>,
    return
  }
  func.func @transform_0(%arg0: i32) -> (i32, i32) {
    %c0_i32 = arith.constant 0 : i32
    %c0_i32_0 = arith.constant 0 : i32
    return %arg0, %c0_i32 : i32, i32
  }
  func.func @transform_1(%arg0: i32) -> (i32, i32) {
    %c0_i32 = arith.constant 0 : i32
    %c0_i32_0 = arith.constant 0 : i32
    %c0_i32_1 = arith.constant 0 : i32
    return %c0_i32, %c0_i32_0 : i32, i32
  }
  func.func @transform_2(%arg0: i32) -> (i32, i32) {
    %c0_i32 = arith.constant 0 : i32
    %c0_i32_0 = arith.constant 0 : i32
    %c0_i32_1 = arith.constant 0 : i32
    return %c0_i32, %c0_i32_0 : i32, i32
  }
  func.func @transform_3(%arg0: i32) -> (i32, i32, i32) {
    %c0_i32 = arith.constant 0 : i32
    %c0_i32_0 = arith.constant 0 : i32
    %c0_i32_1 = arith.constant 0 : i32
    %c0_i32_2 = arith.constant 0 : i32
    return %c0_i32, %c0_i32_0, %c0_i32_1 : i32, i32, i32
  }
  func.func @transform_4(%arg0: i32) -> (i32, i32, i32) {
    %c0_i32 = arith.constant 0 : i32
    %c0_i32_0 = arith.constant 0 : i32
    %c0_i32_1 = arith.constant 0 : i32
    %c0_i32_2 = arith.constant 0 : i32
    return %c0_i32, %c0_i32_0, %c0_i32_1 : i32, i32, i32
  }
  func.func @transform_5(%arg0: i32) -> (i32, i32, i32) {
    %c0_i32 = arith.constant 0 : i32
    %c0_i32_0 = arith.constant 0 : i32
    %c0_i32_1 = arith.constant 0 : i32
    %c0_i32_2 = arith.constant 0 : i32
    return %c0_i32, %c0_i32_0, %c0_i32_1 : i32, i32, i32
  }
  func.func @transform_6(%arg0: i32) -> (i32, i32, i32) {
    %c0_i32 = arith.constant 0 : i32
    %c0_i32_0 = arith.constant 0 : i32
    %c0_i32_1 = arith.constant 0 : i32
    %c0_i32_2 = arith.constant 0 : i32
    return %c0_i32, %c0_i32_0, %c0_i32_1 : i32, i32, i32
  }
  func.func @transform_7(%arg0: i32) -> (i32, i32, i32) {
    %c0_i32 = arith.constant 0 : i32
    %c0_i32_0 = arith.constant 0 : i32
    %c0_i32_1 = arith.constant 0 : i32
    %c0_i32_2 = arith.constant 0 : i32
    return %c0_i32, %c0_i32_0, %c0_i32_1 : i32, i32, i32
  }
  func.func @transform_8(%arg0: i32) -> (i32, i32, i32) {
    %c0_i32 = arith.constant 0 : i32
    %c0_i32_0 = arith.constant 0 : i32
    %c0_i32_1 = arith.constant 0 : i32
    %c0_i32_2 = arith.constant 0 : i32
    return %c0_i32, %c0_i32_0, %c0_i32_1 : i32, i32, i32
  }
  func.func @transform_9(%arg0: i32) -> (i32, i32, i32) {
    %c0_i32 = arith.constant 0 : i32
    %c0_i32_0 = arith.constant 0 : i32
    %c0_i32_1 = arith.constant 0 : i32
    %c0_i32_2 = arith.constant 0 : i32
    return %c0_i32, %c0_i32_0, %c0_i32_1 : i32, i32, i32
  }
  func.func @transform_10(%arg0: i32) -> (i32, i32, i32, i32) {
    %c0_i32 = arith.constant 0 : i32
    %c0_i32_0 = arith.constant 0 : i32
    %c0_i32_1 = arith.constant 0 : i32
    %c0_i32_2 = arith.constant 0 : i32
    %c0_i32_3 = arith.constant 0 : i32
    return %c0_i32, %c0_i32_0, %c0_i32_1, %c0_i32_2 : i32, i32, i32, i32
  }
  func.func @transform_11(%arg0: i32) -> (i32, i32) {
    %c0_i32 = arith.constant 0 : i32
    %c0_i32_0 = arith.constant 0 : i32
    %c0_i32_1 = arith.constant 0 : i32
    return %c0_i32, %c0_i32_0 : i32, i32
  }
  func.func @transform_12(%arg0: i32) -> (i32, i32) {
    %c0_i32 = arith.constant 0 : i32
    %c0_i32_0 = arith.constant 0 : i32
    %c0_i32_1 = arith.constant 0 : i32
    return %c0_i32, %c0_i32_0 : i32, i32
  }
  func.func @transform_13(%arg0: i32) -> (i32, i32) {
    %c0_i32 = arith.constant 0 : i32
    %c0_i32_0 = arith.constant 0 : i32
    %c0_i32_1 = arith.constant 0 : i32
    return %c0_i32, %c0_i32_0 : i32, i32
  }
  func.func @transform_14(%arg0: i32) -> (i32, i32) {
    %c0_i32 = arith.constant 0 : i32
    %c0_i32_0 = arith.constant 0 : i32
    %c0_i32_1 = arith.constant 0 : i32
    return %c0_i32, %c0_i32_0 : i32, i32
  }
  func.func @transform_15(%arg0: i32) -> (i32, i32) {
    %c0_i32 = arith.constant 0 : i32
    %c0_i32_0 = arith.constant 0 : i32
    return %arg0, %c0_i32 : i32, i32
  }
}

</mosaic_0001>

<llo_original>
// kernel: tpu_custom_call.1
$region0: #{tpu_custom_call.1}
  #allocation0 [shape = 'u32[]', space=smem, size = 0x4, offset = 0x4, fixed_abs, tag = 'smem constant byte address 0x4 - core index']
  #allocation1 [shape = 'u32[144,128]{1,0:T(1,128)}', space=vmem, size = 0x12000, scoped, tag = 'internal scratch']
  %s0 = inlined_call_operand.vmem [shape: f32[256,1], index: 0, kind: input, shape index: {}]
  %s1 = inlined_call_operand.hbm [shape: f32[8,128], index: 1, kind: input, shape index: {}]
  %s2 = inlined_call_operand.vmem [shape: f32[128,128], index: 2, kind: input, shape index: {}]
  %s3 = inlined_call_operand.hbm [shape: f32[2,1,64], index: 3, kind: input, shape index: {}]
  %s4 = inlined_call_operand.vmem [shape: f32[2,64,64], index: 4, kind: input, shape index: {}]
  %s5 = inlined_call_operand.hbm [shape: f32[2,64,64], index: 5, kind: input, shape index: {}]
  %s6 = inlined_call_operand.vmem [shape: f32[2,64,256], index: 6, kind: input, shape index: {}]
  %s7 = inlined_call_operand.hbm [shape: f32[2,64,128], index: 7, kind: input, shape index: {}]
  %s8 = inlined_call_operand.vmem [shape: f32[2,1,128], index: 8, kind: input, shape index: {}]
  %s9 = inlined_call_operand.vmem [shape: f32[2,128,64], index: 9, kind: input, shape index: {}]
  %s10 = inlined_call_operand.vmem [shape: f32[2,8,1,64], index: 10, kind: input, shape index: {}]
  %s11 = inlined_call_operand.hbm [shape: f32[64,64], index: 11, kind: input, shape index: {}]
  %s12 = inlined_call_operand.vmem [shape: f32[1,64], index: 12, kind: input, shape index: {}]
  %s13 = inlined_call_operand.hbm [shape: f32[64,128], index: 13, kind: input, shape index: {}]
  %s14 = inlined_call_operand.vmem [shape: f32[1,128], index: 14, kind: input, shape index: {}]
  %s15 = inlined_call_operand.hbm [shape: f32[16,128], index: 15, kind: output, shape index: {}]
  %s16 = sld [smem:[#allocation0]]
  $region117: #{tpu_custom_call.1} parent=0
    _
  %s18 = ssub.s32 1, %s16
  %s19 = scalar_select 0, %s18, %s16
  $region1: #{tpu_custom_call.1} parent=0
    #allocation2 [shape = 'u8[4096]{0}', space=vmem, size = 0x1000, scoped, tag = 'input window, operand 1, single buffered']
    #allocation3 [shape = 's32[2]{0}', space=sflag, size = 0x8, scoped, tag = 'scoped memory for tpu_custom_call.1']
    #allocation4 [shape = 's32[2]{0}', space=sflag, size = 0x8, scoped, tag = 'scoped memory for tpu_custom_call.1']
    #allocation5 [shape = 'u8[1024]{0}', space=vmem, size = 0x400, scoped, tag = 'input window, operand 3, single buffered']
    #allocation6 [shape = 's32[1]{0}', space=sflag, size = 0x4, scoped, tag = 'scoped memory for tpu_custom_call.1']
    #allocation7 [shape = 'u8[65536]{0}', space=vmem, size = 0x10000, scoped, tag = 'input window, operand 5, single buffered']
    #allocation8 [shape = 'u8[65536]{0}', space=vmem, size = 0x10000, scoped, tag = 'input window, operand 7, single buffered']
    #allocation9 [shape = 's32[1]{0}', space=sflag, size = 0x4, scoped, tag = 'scoped memory for tpu_custom_call.1']
    #allocation10 [shape = 'u8[32768]{0}', space=vmem, size = 0x8000, scoped, tag = 'input window, operand 11, single buffered']
    #allocation11 [shape = 'u8[32768]{0}', space=vmem, size = 0x8000, scoped, tag = 'input window, operand 13, single buffered']
    #allocation12 [shape = 's32[1]{0}', space=sflag, size = 0x4, scoped, tag = 'scoped memory for tpu_custom_call.1']
    #allocation13 [shape = 'u8[8192]{0}', space=vmem, size = 0x2000, scoped, tag = 'output window, operand 0']
    %20 = vsyncpa [#allocation3], 0
    %21 = vsyncpa [#allocation6], 0
    %22 = vsyncpa [#allocation9], 0
    %23 = vsyncpa [#allocation12], 0
    %24 = vsyncpa [#allocation4], 0
    %s25 = scalar_lea.sflag [#allocation4], 1
    %26 = vsyncpa %s25, 0
    loop: start=0, step=1, limit=4
    $region2: #{tpu_custom_call.1} parent=1 // loop_pre_header
      _
    $region3: #{tpu_custom_call.1} parent=1 // loop_header
      %s28 = sphi 0, %s32
      %p29 = scmp.ge.s32.totalorder %s28, 4
      %s38 = sphi 0, %s40
      %s41 = sphi 0, %s38
      %s42 = sphi 0, %s41
      %s58 = sphi 0, %s42
      %s62 = sphi 0, %s62
      %s64 = sphi 0, %s62
      %s65 = sphi 0, %s64
      %s79 = sphi 0, %s65
      %s83 = sphi 0, %s83
      %s85 = sphi 0, %s83
      %s86 = sphi 0, %s85
      %s100 = sphi 0, %s86
      %s104 = sphi 0, %s104
      %s106 = sphi 0, %s104
      %s107 = sphi 0, %s106
      %s121 = sphi 0, %s107
      %s125 = sphi 0, %s125
      %s127 = sphi 0, %s125
      %s128 = sphi 0, %s127
      %s142 = sphi 0, %s128
      %s146 = sphi 0, %s146
      %s148 = sphi 0, %s146
      %s149 = sphi 0, %s148
      %s163 = sphi 0, %s149
      %s167 = sphi 0, %s167
      %s169 = sphi 0, %s167
      %s170 = sphi 0, %s169
      %s184 = sphi 0, %s170
      %s188 = sphi 0, %s188
      %s190 = sphi 0, %s188
      %s191 = sphi 0, %s190
      %s205 = sphi 0, %s191
      %s209 = sphi 0, %s209
      %s211 = sphi 0, %s209
      %s212 = sphi 0, %s211
      %s226 = sphi 0, %s212
      %s230 = sphi 0, %s230
      %s232 = sphi 0, %s230
      %s233 = sphi 0, %s232
      %s247 = sphi 0, %s233
      %s251 = sphi 0, %s251
      %s253 = sphi 0, %s251
      %s254 = sphi 0, %s253
      %s268 = sphi 0, %s254
      %s272 = sphi 0, %s272
      %s274 = sphi 0, %s272
      %s275 = sphi 0, %s274
      %s289 = sphi 0, %s275
      %s293 = sphi 0, %s293
      %s295 = sphi 0, %s293
      %s296 = sphi 0, %s295
      %s310 = sphi 0, %s296
      %s314 = sphi 0, %s314
      %s316 = sphi 0, %s314
      %s317 = sphi 0, %s316
      %s331 = sphi 0, %s317
      %s335 = sphi 0, %s335
      %s337 = sphi 0, %s335
      %s338 = sphi 0, %s337
      %s352 = sphi 0, %s338
      %s358 = sphi 0, %s360
      %s361 = sphi 0, %s358
      %s362 = sphi 0, %s361
      %s378 = sphi 0, %s362
    $region4: #{tpu_custom_call.1} parent=1 // loop_header_branch
      %31 = sbr.rel (%p29) target = $region8
    $region5: #{tpu_custom_call.1} parent=1 // loop_body
      %s33 = ssub.s32 %s28, 1
      %s34 = ssub.s32 %s28, 2
      %s35 = sadd.s32 %s28, 1
      %s36 = ssub.s32 %s28, %s35
      %p37 = scmp.eq.s32.totalorder %s36, 0
      %s39 = sadd.s32 %s38, 1
      %s40 = scalar_select %p37, %s38, %s39
      %p43 = pneg %p37
      %p44 = scmp.eq.s32.totalorder %s28, 1
      %p45 = por %p43, %p44
      %p46 = scmp.ne.s32.totalorder %s38, %s41
      %p47 = scmp.eq.s32.totalorder %s28, 0
      %p48 = por %p46, %p47
      %p49 = scmp.ne.s32.totalorder %s38, %s41
      %p50 = scmp.eq.s32.totalorder %s33, 1
      %p51 = por %p49, %p50
      %p52 = scmp.ne.s32.totalorder %s41, %s42
      %p53 = scmp.eq.s32.totalorder %s33, 0
      %p54 = por %p52, %p53
      %p55 = scmp.ne.s32.totalorder %s41, %s42
      %p56 = scmp.eq.s32.totalorder %s34, 1
      %p57 = por %p55, %p56
      %p59 = scmp.ne.s32.totalorder %s42, %s58
      %p60 = scmp.eq.s32.totalorder %s34, 0
      %p61 = por %p59, %p60
      %s63 = sadd.s32 %s62, 1
      %p66 = scmp.eq.s32.totalorder %s28, 1
      %p67 = scmp.ne.s32.totalorder %s62, %s64
      %p68 = scmp.eq.s32.totalorder %s28, 0
      %p69 = por %p67, %p68
      %p70 = scmp.ne.s32.totalorder %s62, %s64
      %p71 = scmp.eq.s32.totalorder %s33, 1
      %p72 = por %p70, %p71
      %p73 = scmp.ne.s32.totalorder %s64, %s65
      %p74 = scmp.eq.s32.totalorder %s33, 0
      %p75 = por %p73, %p74
      %p76 = scmp.ne.s32.totalorder %s64, %s65
      %p77 = scmp.eq.s32.totalorder %s34, 1
      %p78 = por %p76, %p77
      %p80 = scmp.ne.s32.totalorder %s65, %s79
      %p81 = scmp.eq.s32.totalorder %s34, 0
      %p82 = por %p80, %p81
      %s84 = sadd.s32 %s83, 1
      %p87 = scmp.eq.s32.totalorder %s28, 1
      %p88 = scmp.ne.s32.totalorder %s83, %s85
      %p89 = scmp.eq.s32.totalorder %s28, 0
      %p90 = por %p88, %p89
      %p91 = scmp.ne.s32.totalorder %s83, %s85
      %p92 = scmp.eq.s32.totalorder %s33, 1
      %p93 = por %p91, %p92
      %p94 = scmp.ne.s32.totalorder %s85, %s86
      %p95 = scmp.eq.s32.totalorder %s33, 0
      %p96 = por %p94, %p95
      %p97 = scmp.ne.s32.totalorder %s85, %s86
      %p98 = scmp.eq.s32.totalorder %s34, 1
      %p99 = por %p97, %p98
      %p101 = scmp.ne.s32.totalorder %s86, %s100
      %p102 = scmp.eq.s32.totalorder %s34, 0
      %p103 = por %p101, %p102
      %s105 = sadd.s32 %s104, 1
      %p108 = scmp.eq.s32.totalorder %s28, 1
      %p109 = scmp.ne.s32.totalorder %s104, %s106
      %p110 = scmp.eq.s32.totalorder %s28, 0
      %p111 = por %p109, %p110
      %p112 = scmp.ne.s32.totalorder %s104, %s106
      %p113 = scmp.eq.s32.totalorder %s33, 1
      %p114 = por %p112, %p113
      %p115 = scmp.ne.s32.totalorder %s106, %s107
      %p116 = scmp.eq.s32.totalorder %s33, 0
      %p117 = por %p115, %p116
      %p118 = scmp.ne.s32.totalorder %s106, %s107
      %p119 = scmp.eq.s32.totalorder %s34, 1
      %p120 = por %p118, %p119
      %p122 = scmp.ne.s32.totalorder %s107, %s121
      %p123 = scmp.eq.s32.totalorder %s34, 0
      %p124 = por %p122, %p123
      %s126 = sadd.s32 %s125, 1
      %p129 = scmp.eq.s32.totalorder %s28, 1
      %p130 = scmp.ne.s32.totalorder %s125, %s127
      %p131 = scmp.eq.s32.totalorder %s28, 0
      %p132 = por %p130, %p131
      %p133 = scmp.ne.s32.totalorder %s125, %s127
      %p134 = scmp.eq.s32.totalorder %s33, 1
      %p135 = por %p133, %p134
      %p136 = scmp.ne.s32.totalorder %s127, %s128
      %p137 = scmp.eq.s32.totalorder %s33, 0
      %p138 = por %p136, %p137
      %p139 = scmp.ne.s32.totalorder %s127, %s128
      %p140 = scmp.eq.s32.totalorder %s34, 1
      %p141 = por %p139, %p140
      %p143 = scmp.ne.s32.totalorder %s128, %s142
      %p144 = scmp.eq.s32.totalorder %s34, 0
      %p145 = por %p143, %p144
      %s147 = sadd.s32 %s146, 1
      %p150 = scmp.eq.s32.totalorder %s28, 1
      %p151 = scmp.ne.s32.totalorder %s146, %s148
      %p152 = scmp.eq.s32.totalorder %s28, 0
      %p153 = por %p151, %p152
      %p154 = scmp.ne.s32.totalorder %s146, %s148
      %p155 = scmp.eq.s32.totalorder %s33, 1
      %p156 = por %p154, %p155
      %p157 = scmp.ne.s32.totalorder %s148, %s149
      %p158 = scmp.eq.s32.totalorder %s33, 0
      %p159 = por %p157, %p158
      %p160 = scmp.ne.s32.totalorder %s148, %s149
      %p161 = scmp.eq.s32.totalorder %s34, 1
      %p162 = por %p160, %p161
      %p164 = scmp.ne.s32.totalorder %s149, %s163
      %p165 = scmp.eq.s32.totalorder %s34, 0
      %p166 = por %p164, %p165
      %s168 = sadd.s32 %s167, 1
      %p171 = scmp.eq.s32.totalorder %s28, 1
      %p172 = scmp.ne.s32.totalorder %s167, %s169
      %p173 = scmp.eq.s32.totalorder %s28, 0
      %p174 = por %p172, %p173
      %p175 = scmp.ne.s32.totalorder %s167, %s169
      %p176 = scmp.eq.s32.totalorder %s33, 1
      %p177 = por %p175, %p176
      %p178 = scmp.ne.s32.totalorder %s169, %s170
      %p179 = scmp.eq.s32.totalorder %s33, 0
      %p180 = por %p178, %p179
      %p181 = scmp.ne.s32.totalorder %s169, %s170
      %p182 = scmp.eq.s32.totalorder %s34, 1
      %p183 = por %p181, %p182
      %p185 = scmp.ne.s32.totalorder %s170, %s184
      %p186 = scmp.eq.s32.totalorder %s34, 0
      %p187 = por %p185, %p186
      %s189 = sadd.s32 %s188, 1
      %p192 = scmp.eq.s32.totalorder %s28, 1
      %p193 = scmp.ne.s32.totalorder %s188, %s190
      %p194 = scmp.eq.s32.totalorder %s28, 0
      %p195 = por %p193, %p194
      %p196 = scmp.ne.s32.totalorder %s188, %s190
      %p197 = scmp.eq.s32.totalorder %s33, 1
      %p198 = por %p196, %p197
      %p199 = scmp.ne.s32.totalorder %s190, %s191
      %p200 = scmp.eq.s32.totalorder %s33, 0
      %p201 = por %p199, %p200
      %p202 = scmp.ne.s32.totalorder %s190, %s191
      %p203 = scmp.eq.s32.totalorder %s34, 1
      %p204 = por %p202, %p203
      %p206 = scmp.ne.s32.totalorder %s191, %s205
      %p207 = scmp.eq.s32.totalorder %s34, 0
      %p208 = por %p206, %p207
      %s210 = sadd.s32 %s209, 1
      %p213 = scmp.eq.s32.totalorder %s28, 1
      %p214 = scmp.ne.s32.totalorder %s209, %s211
      %p215 = scmp.eq.s32.totalorder %s28, 0
      %p216 = por %p214, %p215
      %p217 = scmp.ne.s32.totalorder %s209, %s211
      %p218 = scmp.eq.s32.totalorder %s33, 1
      %p219 = por %p217, %p218
      %p220 = scmp.ne.s32.totalorder %s211, %s212
      %p221 = scmp.eq.s32.totalorder %s33, 0
      %p222 = por %p220, %p221
      %p223 = scmp.ne.s32.totalorder %s211, %s212
      %p224 = scmp.eq.s32.totalorder %s34, 1
      %p225 = por %p223, %p224
      %p227 = scmp.ne.s32.totalorder %s212, %s226
      %p228 = scmp.eq.s32.totalorder %s34, 0
      %p229 = por %p227, %p228
      %s231 = sadd.s32 %s230, 1
      %p234 = scmp.eq.s32.totalorder %s28, 1
      %p235 = scmp.ne.s32.totalorder %s230, %s232
      %p236 = scmp.eq.s32.totalorder %s28, 0
      %p237 = por %p235, %p236
      %p238 = scmp.ne.s32.totalorder %s230, %s232
      %p239 = scmp.eq.s32.totalorder %s33, 1
      %p240 = por %p238, %p239
      %p241 = scmp.ne.s32.totalorder %s232, %s233
      %p242 = scmp.eq.s32.totalorder %s33, 0
      %p243 = por %p241, %p242
      %p244 = scmp.ne.s32.totalorder %s232, %s233
      %p245 = scmp.eq.s32.totalorder %s34, 1
      %p246 = por %p244, %p245
      %p248 = scmp.ne.s32.totalorder %s233, %s247
      %p249 = scmp.eq.s32.totalorder %s34, 0
      %p250 = por %p248, %p249
      %s252 = sadd.s32 %s251, 1
      %p255 = scmp.eq.s32.totalorder %s28, 1
      %p256 = scmp.ne.s32.totalorder %s251, %s253
      %p257 = scmp.eq.s32.totalorder %s28, 0
      %p258 = por %p256, %p257
      %p259 = scmp.ne.s32.totalorder %s251, %s253
      %p260 = scmp.eq.s32.totalorder %s33, 1
      %p261 = por %p259, %p260
      %p262 = scmp.ne.s32.totalorder %s253, %s254
      %p263 = scmp.eq.s32.totalorder %s33, 0
      %p264 = por %p262, %p263
      %p265 = scmp.ne.s32.totalorder %s253, %s254
      %p266 = scmp.eq.s32.totalorder %s34, 1
      %p267 = por %p265, %p266
      %p269 = scmp.ne.s32.totalorder %s254, %s268
      %p270 = scmp.eq.s32.totalorder %s34, 0
      %p271 = por %p269, %p270
      %s273 = sadd.s32 %s272, 1
      %p276 = scmp.eq.s32.totalorder %s28, 1
      %p277 = scmp.ne.s32.totalorder %s272, %s274
      %p278 = scmp.eq.s32.totalorder %s28, 0
      %p279 = por %p277, %p278
      %p280 = scmp.ne.s32.totalorder %s272, %s274
      %p281 = scmp.eq.s32.totalorder %s33, 1
      %p282 = por %p280, %p281
      %p283 = scmp.ne.s32.totalorder %s274, %s275
      %p284 = scmp.eq.s32.totalorder %s33, 0
      %p285 = por %p283, %p284
      %p286 = scmp.ne.s32.totalorder %s274, %s275
      %p287 = scmp.eq.s32.totalorder %s34, 1
      %p288 = por %p286, %p287
      %p290 = scmp.ne.s32.totalorder %s275, %s289
      %p291 = scmp.eq.s32.totalorder %s34, 0
      %p292 = por %p290, %p291
      %s294 = sadd.s32 %s293, 1
      %p297 = scmp.eq.s32.totalorder %s28, 1
      %p298 = scmp.ne.s32.totalorder %s293, %s295
      %p299 = scmp.eq.s32.totalorder %s28, 0
      %p300 = por %p298, %p299
      %p301 = scmp.ne.s32.totalorder %s293, %s295
      %p302 = scmp.eq.s32.totalorder %s33, 1
      %p303 = por %p301, %p302
      %p304 = scmp.ne.s32.totalorder %s295, %s296
      %p305 = scmp.eq.s32.totalorder %s33, 0
      %p306 = por %p304, %p305
      %p307 = scmp.ne.s32.totalorder %s295, %s296
      %p308 = scmp.eq.s32.totalorder %s34, 1
      %p309 = por %p307, %p308
      %p311 = scmp.ne.s32.totalorder %s296, %s310
      %p312 = scmp.eq.s32.totalorder %s34, 0
      %p313 = por %p311, %p312
      %s315 = sadd.s32 %s314, 1
      %p318 = scmp.eq.s32.totalorder %s28, 1
      %p319 = scmp.ne.s32.totalorder %s314, %s316
      %p320 = scmp.eq.s32.totalorder %s28, 0
      %p321 = por %p319, %p320
      %p322 = scmp.ne.s32.totalorder %s314, %s316
      %p323 = scmp.eq.s32.totalorder %s33, 1
      %p324 = por %p322, %p323
      %p325 = scmp.ne.s32.totalorder %s316, %s317
      %p326 = scmp.eq.s32.totalorder %s33, 0
      %p327 = por %p325, %p326
      %p328 = scmp.ne.s32.totalorder %s316, %s317
      %p329 = scmp.eq.s32.totalorder %s34, 1
      %p330 = por %p328, %p329
      %p332 = scmp.ne.s32.totalorder %s317, %s331
      %p333 = scmp.eq.s32.totalorder %s34, 0
      %p334 = por %p332, %p333
      %s336 = sadd.s32 %s335, 1
      %p339 = scmp.eq.s32.totalorder %s28, 1
      %p340 = scmp.ne.s32.totalorder %s335, %s337
      %p341 = scmp.eq.s32.totalorder %s28, 0
      %p342 = por %p340, %p341
      %p343 = scmp.ne.s32.totalorder %s335, %s337
      %p344 = scmp.eq.s32.totalorder %s33, 1
      %p345 = por %p343, %p344
      %p346 = scmp.ne.s32.totalorder %s337, %s338
      %p347 = scmp.eq.s32.totalorder %s33, 0
      %p348 = por %p346, %p347
      %p349 = scmp.ne.s32.totalorder %s337, %s338
      %p350 = scmp.eq.s32.totalorder %s34, 1
      %p351 = por %p349, %p350
      %p353 = scmp.ne.s32.totalorder %s338, %s352
      %p354 = scmp.eq.s32.totalorder %s34, 0
      %p355 = por %p353, %p354
      %s356 = ssub.s32 %s28, %s35
      %p357 = scmp.eq.s32.totalorder %s356, 0
      %s359 = sadd.s32 %s358, 1
      %s360 = scalar_select %p357, %s358, %s359
      %p363 = pneg %p357
      %p364 = scmp.eq.s32.totalorder %s28, 1
      %p365 = por %p363, %p364
      %p366 = scmp.ne.s32.totalorder %s358, %s361
      %p367 = scmp.eq.s32.totalorder %s28, 0
      %p368 = por %p366, %p367
      %p369 = scmp.ne.s32.totalorder %s358, %s361
      %p370 = scmp.eq.s32.totalorder %s33, 1
      %p371 = por %p369, %p370
      %p372 = scmp.ne.s32.totalorder %s361, %s362
      %p373 = scmp.eq.s32.totalorder %s33, 0
      %p374 = por %p372, %p373
      %p375 = scmp.ne.s32.totalorder %s361, %s362
      %p376 = scmp.eq.s32.totalorder %s34, 1
      %p377 = por %p375, %p376
      %p379 = scmp.ne.s32.totalorder %s362, %s378
      %p380 = scmp.eq.s32.totalorder %s34, 0
      %p381 = por %p379, %p380
      %p382 = scmp.le.s32.totalorder 1, %s28
      %p383 = scmp.lt.s32.totalorder %s28, 3
      %p384 = pnand %p382, %p383
      %p385 = pneg %p384
      // Predicated region
      $region9: #{tpu_custom_call.1} parent=5 // pred_check
        _
      $region10: #{tpu_custom_call.1} parent=5 // pred_check_branch
        %387 = sbr.rel (%p384) target = $region12
      $region11: #{tpu_custom_call.1} parent=5 // pred_region
        %s388 = ssub.s32 %s28, 1
        // Predicated region
        $region13: #{tpu_custom_call.1} parent=11 // pred_check
          %p389 = pneg %p75
        $region14: #{tpu_custom_call.1} parent=11 // pred_check_branch
          %391 = sbr.rel (%p389) target = $region16
        $region15: #{tpu_custom_call.1} parent=11 // pred_region
          %s393 = ssub.s32 128, 128
          %394 = vsyncadd [#allocation3], %s393
          %s396 = sshll.u32 [#allocation2], 4
          %s397 = int_to_ptr.vmem [resolvable:$true] %s396
          %399 = dma.hbm_to_vmem [thread:$0]  %s1, 128, %s397, [#allocation3]
        $region16: #{tpu_custom_call.1} parent=11 // pred_fallthru
          _
        // Predicated region
        $region17: #{tpu_custom_call.1} parent=11 // pred_check
          %p400 = pneg %p96
        $region18: #{tpu_custom_call.1} parent=11 // pred_check_branch
          %402 = sbr.rel (%p400) target = $region20
        $region19: #{tpu_custom_call.1} parent=11 // pred_region
          _
        $region20: #{tpu_custom_call.1} parent=11 // pred_fallthru
          _
        // Predicated region
        $region21: #{tpu_custom_call.1} parent=11 // pred_check
          %p403 = pneg %p117
        $region22: #{tpu_custom_call.1} parent=11 // pred_check_branch
          %405 = sbr.rel (%p403) target = $region24
        $region23: #{tpu_custom_call.1} parent=11 // pred_region
          %s407 = ssub.s32 32, 32
          %408 = vsyncadd [#allocation6], %s407
          %s409 = sshll.u32 [#allocation5], 4
          %s410 = int_to_ptr.vmem [resolvable:$true] %s409
          %415 = dma.hbm_to_vmem [thread:$0]  %s3, 32, %s410, [#allocation6], 16, 16, 1
        $region24: #{tpu_custom_call.1} parent=11 // pred_fallthru
          _
        // Predicated region
        $region25: #{tpu_custom_call.1} parent=11 // pred_check
          %p416 = pneg %p138
        $region26: #{tpu_custom_call.1} parent=11 // pred_check_branch
          %418 = sbr.rel (%p416) target = $region28
        $region27: #{tpu_custom_call.1} parent=11 // pred_region
          _
        $region28: #{tpu_custom_call.1} parent=11 // pred_fallthru
          _
        // Predicated region
        $region29: #{tpu_custom_call.1} parent=11 // pred_check
          %p419 = pneg %p159
        $region30: #{tpu_custom_call.1} parent=11 // pred_check_branch
          %421 = sbr.rel (%p419) target = $region32
        $region31: #{tpu_custom_call.1} parent=11 // pred_region
          %s423 = ssub.s32 2048, 2048
          %424 = vsyncadd [#allocation6], %s423
          %s425 = sshll.u32 [#allocation7], 4
          %s426 = int_to_ptr.vmem [resolvable:$true] %s425
          %431 = dma.hbm_to_vmem [thread:$0]  %s5, 2048, %s426, [#allocation6], 128, 128, 8
        $region32: #{tpu_custom_call.1} parent=11 // pred_fallthru
          _
        // Predicated region
        $region33: #{tpu_custom_call.1} parent=11 // pred_check
          %p432 = pneg %p180
        $region34: #{tpu_custom_call.1} parent=11 // pred_check_branch
          %434 = sbr.rel (%p432) target = $region36
        $region35: #{tpu_custom_call.1} parent=11 // pred_region
          _
        $region36: #{tpu_custom_call.1} parent=11 // pred_fallthru
          _
        // Predicated region
        $region37: #{tpu_custom_call.1} parent=11 // pred_check
          %p435 = pneg %p201
        $region38: #{tpu_custom_call.1} parent=11 // pred_check_branch
          %437 = sbr.rel (%p435) target = $region40
        $region39: #{tpu_custom_call.1} parent=11 // pred_region
          %s439 = ssub.s32 2048, 2048
          %440 = vsyncadd [#allocation9], %s439
          %s441 = sshll.u32 [#allocation8], 4
          %s442 = int_to_ptr.vmem [resolvable:$true] %s441
          %447 = dma.hbm_to_vmem [thread:$0]  %s7, 2048, %s442, [#allocation9], 128, 128, 8
        $region40: #{tpu_custom_call.1} parent=11 // pred_fallthru
          _
        // Predicated region
        $region41: #{tpu_custom_call.1} parent=11 // pred_check
          %p448 = pneg %p222
        $region42: #{tpu_custom_call.1} parent=11 // pred_check_branch
          %450 = sbr.rel (%p448) target = $region44
        $region43: #{tpu_custom_call.1} parent=11 // pred_region
          _
        $region44: #{tpu_custom_call.1} parent=11 // pred_fallthru
          _
        // Predicated region
        $region45: #{tpu_custom_call.1} parent=11 // pred_check
          %p451 = pneg %p243
        $region46: #{tpu_custom_call.1} parent=11 // pred_check_branch
          %453 = sbr.rel (%p451) target = $region48
        $region47: #{tpu_custom_call.1} parent=11 // pred_region
          _
        $region48: #{tpu_custom_call.1} parent=11 // pred_fallthru
          _
        // Predicated region
        $region49: #{tpu_custom_call.1} parent=11 // pred_check
          %p454 = pneg %p264
        $region50: #{tpu_custom_call.1} parent=11 // pred_check_branch
          %456 = sbr.rel (%p454) target = $region52
        $region51: #{tpu_custom_call.1} parent=11 // pred_region
          _
        $region52: #{tpu_custom_call.1} parent=11 // pred_fallthru
          _
        // Predicated region
        $region53: #{tpu_custom_call.1} parent=11 // pred_check
          %p457 = pneg %p285
        $region54: #{tpu_custom_call.1} parent=11 // pred_check_branch
          %459 = sbr.rel (%p457) target = $region56
        $region55: #{tpu_custom_call.1} parent=11 // pred_region
          %s461 = ssub.s32 1024, 1024
          %462 = vsyncadd [#allocation9], %s461
          %s463 = sshll.u32 [#allocation10], 4
          %s464 = int_to_ptr.vmem [resolvable:$true] %s463
          %469 = dma.hbm_to_vmem [thread:$0]  %s11, 1024, %s464, [#allocation9], 128, 128, 8
        $region56: #{tpu_custom_call.1} parent=11 // pred_fallthru
          _
        // Predicated region
        $region57: #{tpu_custom_call.1} parent=11 // pred_check
          %p470 = pneg %p306
        $region58: #{tpu_custom_call.1} parent=11 // pred_check_branch
          %472 = sbr.rel (%p470) target = $region60
        $region59: #{tpu_custom_call.1} parent=11 // pred_region
          _
        $region60: #{tpu_custom_call.1} parent=11 // pred_fallthru
          _
        // Predicated region
        $region61: #{tpu_custom_call.1} parent=11 // pred_check
          %p473 = pneg %p327
        $region62: #{tpu_custom_call.1} parent=11 // pred_check_branch
          %475 = sbr.rel (%p473) target = $region64
        $region63: #{tpu_custom_call.1} parent=11 // pred_region
          %s477 = ssub.s32 1024, 1024
          %478 = vsyncadd [#allocation12], %s477
          %s479 = sshll.u32 [#allocation11], 4
          %s480 = int_to_ptr.vmem [resolvable:$true] %s479
          %485 = dma.hbm_to_vmem [thread:$0]  %s13, 1024, %s480, [#allocation12], 128, 128, 8
        $region64: #{tpu_custom_call.1} parent=11 // pred_fallthru
          _
        // Predicated region
        $region65: #{tpu_custom_call.1} parent=11 // pred_check
          %p486 = pneg %p348
        $region66: #{tpu_custom_call.1} parent=11 // pred_check_branch
          %488 = sbr.rel (%p486) target = $region68
        $region67: #{tpu_custom_call.1} parent=11 // pred_region
          _
        $region68: #{tpu_custom_call.1} parent=11 // pred_fallthru
          _
      $region12: #{tpu_custom_call.1} parent=5 // pred_fallthru
        _
      %p489 = scmp.lt.s32.totalorder %s28, 2
      // Predicated region
      $region69: #{tpu_custom_call.1} parent=5 // pred_check
        %p490 = pneg %p489
      $region70: #{tpu_custom_call.1} parent=5 // pred_check_branch
        %492 = sbr.rel (%p490) target = $region72
      $region71: #{tpu_custom_call.1} parent=5 // pred_region
        // Predicated region
        $region73: #{tpu_custom_call.1} parent=71 // pred_check
          %p493 = pneg %p48
        $region74: #{tpu_custom_call.1} parent=71 // pred_check_branch
          %495 = sbr.rel (%p493) target = $region76
        $region75: #{tpu_custom_call.1} parent=71 // pred_region
          %s496 = smul.u32 16, %s28
          %p497 = scmp.lt.s32.totalorder %s496, 31
          %s498 = scalar_select %p497, %s496, 31
          %s499 = smul.addr %s498, 8
          %s500 = scalar_lea.vmem %s0, %s499
          %s501 = smul.u32 16, %s28
        $region76: #{tpu_custom_call.1} parent=71 // pred_fallthru
          _
      $region72: #{tpu_custom_call.1} parent=5 // pred_fallthru
        _
      %p502 = scmp.le.s32.totalorder 1, %s28
      %p503 = scmp.lt.s32.totalorder %s28, 3
      %p504 = pnand %p502, %p503
      %p505 = pneg %p504
      // Predicated region
      $region77: #{tpu_custom_call.1} parent=5 // pred_check
        _
      $region78: #{tpu_custom_call.1} parent=5 // pred_check_branch
        %507 = sbr.rel (%p504) target = $region80
      $region79: #{tpu_custom_call.1} parent=5 // pred_region
        %s508 = ssub.s32 %s28, 1
        // Predicated region
        $region81: #{tpu_custom_call.1} parent=79 // pred_check
          %p509 = pneg %p75
        $region82: #{tpu_custom_call.1} parent=79 // pred_check_branch
          %511 = sbr.rel (%p509) target = $region84
        $region83: #{tpu_custom_call.1} parent=79 // pred_region
          %512 = dma.done [#allocation3], 128
        $region84: #{tpu_custom_call.1} parent=79 // pred_fallthru
          _
        // Predicated region
        $region85: #{tpu_custom_call.1} parent=79 // pred_check
          %p513 = pneg %p117
        $region86: #{tpu_custom_call.1} parent=79 // pred_check_branch
          %515 = sbr.rel (%p513) target = $region88
        $region87: #{tpu_custom_call.1} parent=79 // pred_region
          %516 = dma.done [#allocation6], 32
        $region88: #{tpu_custom_call.1} parent=79 // pred_fallthru
          _
        // Predicated region
        $region89: #{tpu_custom_call.1} parent=79 // pred_check
          %p517 = pneg %p159
        $region90: #{tpu_custom_call.1} parent=79 // pred_check_branch
          %519 = sbr.rel (%p517) target = $region92
        $region91: #{tpu_custom_call.1} parent=79 // pred_region
          %520 = dma.done [#allocation6], 2048
        $region92: #{tpu_custom_call.1} parent=79 // pred_fallthru
          _
        // Predicated region
        $region93: #{tpu_custom_call.1} parent=79 // pred_check
          %p521 = pneg %p201
        $region94: #{tpu_custom_call.1} parent=79 // pred_check_branch
          %523 = sbr.rel (%p521) target = $region96
        $region95: #{tpu_custom_call.1} parent=79 // pred_region
          %524 = dma.done [#allocation9], 2048
        $region96: #{tpu_custom_call.1} parent=79 // pred_fallthru
          _
        // Predicated region
        $region97: #{tpu_custom_call.1} parent=79 // pred_check
          %p525 = pneg %p285
        $region98: #{tpu_custom_call.1} parent=79 // pred_check_branch
          %527 = sbr.rel (%p525) target = $region100
        $region99: #{tpu_custom_call.1} parent=79 // pred_region
          %528 = dma.done [#allocation9], 1024
        $region100: #{tpu_custom_call.1} parent=79 // pred_fallthru
          _
        // Predicated region
        $region101: #{tpu_custom_call.1} parent=79 // pred_check
          %p529 = pneg %p327
        $region102: #{tpu_custom_call.1} parent=79 // pred_check_branch
          %531 = sbr.rel (%p529) target = $region104
        $region103: #{tpu_custom_call.1} parent=79 // pred_region
          %532 = dma.done [#allocation12], 1024
        $region104: #{tpu_custom_call.1} parent=79 // pred_fallthru
          _
        %s533 = smul.u32 16, %s33
        %p534 = scmp.lt.s32.totalorder %s533, 31
        %s535 = scalar_select %p534, %s533, 31
        %s536 = smul.addr %s535, 8
        %s537 = scalar_lea.vmem %s0, %s536
        %p538 = pneg %p54
        %p539 = pneg %p51
        %p540 = pneg %p75
        %p541 = pneg %p72
        %p542 = pneg %p96
        %p543 = pneg %p93
        %p544 = pneg %p117
        %p545 = pneg %p114
        %p546 = pneg %p138
        %p547 = pneg %p135
        %p548 = pneg %p159
        %p549 = pneg %p156
        %p550 = pneg %p180
        %p551 = pneg %p177
        %p552 = pneg %p201
        %p553 = pneg %p198
        %p554 = pneg %p222
        %p555 = pneg %p219
        %p556 = pneg %p243
        %p557 = pneg %p240
        %p558 = pneg %p264
        %p559 = pneg %p261
        %p560 = pneg %p285
        %p561 = pneg %p282
        %p562 = pneg %p306
        %p563 = pneg %p303
        %p564 = pneg %p327
        %p565 = pneg %p324
        %p566 = pneg %p348
        %p567 = pneg %p345
        %p568 = pneg %p374
        %p569 = pneg %p371
        %s570 = sand.u32 %s361, 1
        %s571 = scalar_lea.sflag [#allocation4], %s570
        %s572 = sand.u32 %s361, 1
        %s573 = smul.addr %s572, 8
        %s574 = scalar_lea.vmem [#allocation13], %s573
        %s575 = smul.u32 16, %s33
        %p576 = scmp.lt.s32.totalorder %s575, 31
        %s577 = scalar_select %p576, %s575, 31
        %s578 = smul.addr %s577, 8
        %s579 = scalar_lea.vmem %s0, %s578
        %s580 = smul.u32 16, %s33
        %v581 = vld [vmem:[%s2] sm:$0xff]
        %v582 = vld [vmem:[%s2 + $0x8] sm:$0xff]
        %v583 = vld [vmem:[%s2 + $0x10] sm:$0xff]
        %v584 = vld [vmem:[%s2 + $0x18] sm:$0xff]
        %v585 = vld [vmem:[%s2 + $0x20] sm:$0xff]
        %v586 = vld [vmem:[%s2 + $0x28] sm:$0xff]
        %v587 = vld [vmem:[%s2 + $0x30] sm:$0xff]
        %v588 = vld [vmem:[%s2 + $0x38] sm:$0xff]
        %v589 = vld [vmem:[%s2 + $0x40] sm:$0xff]
        %v590 = vld [vmem:[%s2 + $0x48] sm:$0xff]
        %v591 = vld [vmem:[%s2 + $0x50] sm:$0xff]
        %v592 = vld [vmem:[%s2 + $0x58] sm:$0xff]
        %v593 = vld [vmem:[%s2 + $0x60] sm:$0xff]
        %v594 = vld [vmem:[%s2 + $0x68] sm:$0xff]
        %v595 = vld [vmem:[%s2 + $0x70] sm:$0xff]
        %v596 = vld [vmem:[%s2 + $0x78] sm:$0xff]
        %v597 = vld [vmem:[%s579] sm:$0xff]
        %v598 = vld [vmem:[%s579 + $0x8] sm:$0xff]
        %v599 = vld [vmem:[%s579 + $0x10] sm:$0xff]
        %v600 = vld [vmem:[%s579 + $0x18] sm:$0xff]
        %v601 = vld [vmem:[%s579 + $0x20] sm:$0xff]
        %v602 = vld [vmem:[%s579 + $0x28] sm:$0xff]
        %v603 = vld [vmem:[%s579 + $0x30] sm:$0xff]
        %v604 = vld [vmem:[%s579 + $0x38] sm:$0xff]
        %v605 = vld [vmem:[%s579 + $0x40] sm:$0xff]
        %v606 = vld [vmem:[%s579 + $0x48] sm:$0xff]
        %v607 = vld [vmem:[%s579 + $0x50] sm:$0xff]
        %v608 = vld [vmem:[%s579 + $0x58] sm:$0xff]
        %v609 = vld [vmem:[%s579 + $0x60] sm:$0xff]
        %v610 = vld [vmem:[%s579 + $0x68] sm:$0xff]
        %v611 = vld [vmem:[%s579 + $0x70] sm:$0xff]
        %v612 = vld [vmem:[%s579 + $0x78] sm:$0xff]
        %v613 = vld [vmem:[#allocation5] sm:$0x1]
        %615 = vset.pattern.permute.xlu0 0
        %616 = vperm.xlu0 %615, %v597
        %v617 = vpop.permute.xlu0 %616
        %620 = vset.pattern.permute.xlu0 0
        %621 = vperm.xlu0 %620, %v598
        %v622 = vpop.permute.xlu0 %621
        %625 = vset.pattern.permute.xlu0 0
        %626 = vperm.xlu0 %625, %v599
        %v627 = vpop.permute.xlu0 %626
        %630 = vset.pattern.permute.xlu0 0
        %631 = vperm.xlu0 %630, %v600
        %v632 = vpop.permute.xlu0 %631
        %635 = vset.pattern.permute.xlu0 0
        %636 = vperm.xlu0 %635, %v601
        %v637 = vpop.permute.xlu0 %636
        %640 = vset.pattern.permute.xlu0 0
        %641 = vperm.xlu0 %640, %v602
        %v642 = vpop.permute.xlu0 %641
        %645 = vset.pattern.permute.xlu0 0
        %646 = vperm.xlu0 %645, %v603
        %v647 = vpop.permute.xlu0 %646
        %650 = vset.pattern.permute.xlu0 0
        %651 = vperm.xlu0 %650, %v604
        %v652 = vpop.permute.xlu0 %651
        %655 = vset.pattern.permute.xlu0 0
        %656 = vperm.xlu0 %655, %v605
        %v657 = vpop.permute.xlu0 %656
        %660 = vset.pattern.permute.xlu0 0
        %661 = vperm.xlu0 %660, %v606
        %v662 = vpop.permute.xlu0 %661
        %665 = vset.pattern.permute.xlu0 0
        %666 = vperm.xlu0 %665, %v607
        %v667 = vpop.permute.xlu0 %666
        %670 = vset.pattern.permute.xlu0 0
        %671 = vperm.xlu0 %670, %v608
        %v672 = vpop.permute.xlu0 %671
        %675 = vset.pattern.permute.xlu0 0
        %676 = vperm.xlu0 %675, %v609
        %v677 = vpop.permute.xlu0 %676
        %680 = vset.pattern.permute.xlu0 0
        %681 = vperm.xlu0 %680, %v610
        %v682 = vpop.permute.xlu0 %681
        %685 = vset.pattern.permute.xlu0 0
        %686 = vperm.xlu0 %685, %v611
        %v687 = vpop.permute.xlu0 %686
        %690 = vset.pattern.permute.xlu0 0
        %691 = vperm.xlu0 %690, %v612
        %v692 = vpop.permute.xlu0 %691
        %v695 = vlaneseq
        %v696 = vshrl.u32 %v695, 7
        %v697 = vsub.s32 0, %v696
        %v698 = vrot.slane %v613, %v697
        %v700 = vmul.f32 %v617, %v698
        %v701 = vmul.f32 %v622, %v698
        %v702 = vmul.f32 %v627, %v698
        %v703 = vmul.f32 %v632, %v698
        %v704 = vmul.f32 %v637, %v698
        %v705 = vmul.f32 %v642, %v698
        %v706 = vmul.f32 %v647, %v698
        %v707 = vmul.f32 %v652, %v698
        %v708 = vmul.f32 %v657, %v698
        %v709 = vmul.f32 %v662, %v698
        %v710 = vmul.f32 %v667, %v698
        %v711 = vmul.f32 %v672, %v698
        %v712 = vmul.f32 %v677, %v698
        %v713 = vmul.f32 %v682, %v698
        %v714 = vmul.f32 %v687, %v698
        %v715 = vmul.f32 %v692, %v698
        %s716 = scalar_lea.vmem [#allocation5], 1
        %v717 = vld [vmem:[%s716] sm:$0x1]
        %v719 = vlaneseq
        %v720 = vshrl.u32 %v719, 7
        %v721 = vsub.s32 0, %v720
        %v722 = vrot.slane %v717, %v721
        %v724 = vadd.f32 %v700, %v722
        %v725 = vadd.f32 %v701, %v722
        %v726 = vadd.f32 %v702, %v722
        %v727 = vadd.f32 %v703, %v722
        %v728 = vadd.f32 %v704, %v722
        %v729 = vadd.f32 %v705, %v722
        %v730 = vadd.f32 %v706, %v722
        %v731 = vadd.f32 %v707, %v722
        %v732 = vadd.f32 %v708, %v722
        %v733 = vadd.f32 %v709, %v722
        %v734 = vadd.f32 %v710, %v722
        %v735 = vadd.f32 %v711, %v722
        %v736 = vadd.f32 %v712, %v722
        %v737 = vadd.f32 %v713, %v722
        %v738 = vadd.f32 %v714, %v722
        %v739 = vadd.f32 %v715, %v722
        %v740 = vld [vmem:[%s10] sm:$0x1]
        %s741 = scalar_lea.vmem %s10, 1
        %v742 = vld [vmem:[%s741] sm:$0x1]
        %s743 = scalar_lea.vmem %s10, 2
        %v744 = vld [vmem:[%s743] sm:$0x1]
        %s745 = scalar_lea.vmem %s10, 3
        %v746 = vld [vmem:[%s745] sm:$0x1]
        %s747 = scalar_lea.vmem %s10, 4
        %v748 = vld [vmem:[%s747] sm:$0x1]
        %s749 = scalar_lea.vmem %s10, 5
        %v750 = vld [vmem:[%s749] sm:$0x1]
        %s751 = scalar_lea.vmem %s10, 6
        %v752 = vld [vmem:[%s751] sm:$0x1]
        %s753 = scalar_lea.vmem %s10, 7
        %v754 = vld [vmem:[%s753] sm:$0x1]
        %v755 = vld [vmem:[%s4] sm:$0xff]
        %v756 = vld [vmem:[%s4 + $0x8] sm:$0xff]
        %v757 = vld [vmem:[%s4 + $0x10] sm:$0xff]
        %v758 = vld [vmem:[%s4 + $0x18] sm:$0xff]
        %v759 = vld [vmem:[%s4 + $0x20] sm:$0xff]
        %v760 = vld [vmem:[%s4 + $0x28] sm:$0xff]
        %v761 = vld [vmem:[%s4 + $0x30] sm:$0xff]
        %v762 = vld [vmem:[%s4 + $0x38] sm:$0xff]
        %v764 = vlaneseq
        %v765 = vshrl.u32 %v764, 7
        %v766 = vsub.s32 0, %v765
        %v767 = vrot.slane %v740, %v766
        %vm769 = vcmask 523264
        %v771 = vsel %vm769, %v724, 0
        %v774 = vsel %vm769, %v725, 0
        %v777 = vsel %vm769, %v726, 0
        %v780 = vsel %vm769, %v727, 0
        %v783 = vsel %vm769, %v728, 0
        %v786 = vsel %vm769, %v729, 0
        %v789 = vsel %vm769, %v730, 0
        %v792 = vsel %vm769, %v731, 0
        %v795 = vsel %vm769, %v732, 0
        %v798 = vsel %vm769, %v733, 0
        %v801 = vsel %vm769, %v734, 0
        %v804 = vsel %vm769, %v735, 0
        %v807 = vsel %vm769, %v736, 0
        %v810 = vsel %vm769, %v737, 0
        %v813 = vsel %vm769, %v738, 0
        %v816 = vsel %vm769, %v739, 0
        %818 = vmatprep.subr.mxu0 0.0
        %819 = vmatpush1.msra.mxu0 %v755
        %820 = vmatprep.subr.mxu0 0.0
        %821 = vmatpush1.msra.mxu0 %v756
        %822 = vmatprep.subr.mxu0 0.0
        %823 = vmatpush1.msra.mxu0 %v757
        %824 = vmatprep.subr.mxu0 0.0
        %825 = vmatpush1.msra.mxu0 %v758
        %826 = vmatprep.subr.mxu0 0.0
        %827 = vmatpush1.msra.mxu0 %v759
        %828 = vmatprep.subr.mxu0 0.0
        %829 = vmatpush1.msra.mxu0 %v760
        %830 = vmatprep.subr.mxu0 0.0
        %831 = vmatpush1.msra.mxu0 %v761
        %832 = vmatprep.subr.mxu0 0.0
        %833 = vmatpush1.msra.mxu0 %v762
        %834 = vmatprep.subr.mxu0 0.0
        %835 = vmatpush1.msra.mxu0 0.0
        %836 = vmatprep.subr.mxu0 0.0
        %837 = vmatpush1.msra.mxu0 0.0
        %838 = vmatprep.subr.mxu0 0.0
        %839 = vmatpush1.msra.mxu0 0.0
        %840 = vmatprep.subr.mxu0 0.0
        %841 = vmatpush1.msra.mxu0 0.0
        %842 = vmatprep.subr.mxu0 0.0
        %843 = vmatpush1.msra.mxu0 0.0
        %844 = vmatprep.subr.mxu0 0.0
        %845 = vmatpush1.msra.mxu0 0.0
        %846 = vmatprep.subr.mxu0 0.0
        %847 = vmatpush1.msra.mxu0 0.0
        %848 = vmatprep.subr.mxu0 0.0
        %849 = vmatpush1.msra.mxu0 0.0
        %850 = vmatprep.subr.mxu0 0.0
        %851 = vmatpush1.msra.mxu0 0.0
        %852 = vmatprep.subr.mxu0 0.0
        %853 = vmatpush1.msra.mxu0 0.0
        %854 = vmatprep.subr.mxu0 0.0
        %855 = vmatpush1.msra.mxu0 0.0
        %856 = vmatprep.subr.mxu0 0.0
        %857 = vmatpush1.msra.mxu0 0.0
        %858 = vmatprep.subr.mxu0 0.0
        %859 = vmatpush1.msra.mxu0 0.0
        %860 = vmatprep.subr.mxu0 0.0
        %861 = vmatpush1.msra.mxu0 0.0
        %862 = vmatprep.subr.mxu0 0.0
        %863 = vmatpush1.msra.mxu0 0.0
        %864 = vmatprep.subr.mxu0 0.0
        %865 = vmatpush1.msra.mxu0 0.0
        %866 = vmatprep.subr.mxu0 0.0
        %867 = vmatpush1.msra.mxu0 0.0
        %868 = vmatprep.subr.mxu0 0.0
        %869 = vmatpush1.msra.mxu0 0.0
        %870 = vmatprep.subr.mxu0 0.0
        %871 = vmatpush1.msra.mxu0 0.0
        %872 = vmatprep.subr.mxu0 0.0
        %873 = vmatpush1.msra.mxu0 0.0
        %874 = vmatprep.subr.mxu0 0.0
        %875 = vmatpush1.msra.mxu0 0.0
        %876 = vmatprep.subr.mxu0 0.0
        %877 = vmatpush1.msra.mxu0 0.0
        %878 = vmatprep.subr.mxu0 0.0
        %879 = vmatpush1.msra.mxu0 0.0
        %880 = vmatprep.subr.mxu0 0.0
        %881 = vmatpush1.msra.mxu0 0.0
        %882 = vmatprep.mubr.f32.mxu0 0.0
        %883 = vmatmul.mubr.f32.gmra.mrb[0].mxu0 %v771
        %v884 = vpop.f32.mrb[0].mxu0
        %v885 = vadd.f32 %v767, %v884
        %v886 = vpop.f32.mrb[0].mxu0
        %887 = vmatprep.mubr.f32.mxu0 0.0
        %888 = vmatmul.mubr.f32.gmra.mrb[0].mxu0 %v774
        %v889 = vpop.f32.mrb[0].mxu0
        %v890 = vadd.f32 %v767, %v889
        %v891 = vpop.f32.mrb[0].mxu0
        %892 = vmatprep.mubr.f32.mxu0 0.0
        %893 = vmatmul.mubr.f32.gmra.mrb[0].mxu0 %v777
        %v894 = vpop.f32.mrb[0].mxu0
        %v895 = vadd.f32 %v767, %v894
        %v896 = vpop.f32.mrb[0].mxu0
        %897 = vmatprep.mubr.f32.mxu0 0.0
        %898 = vmatmul.mubr.f32.gmra.mrb[0].mxu0 %v780
        %v899 = vpop.f32.mrb[0].mxu0
        %v900 = vadd.f32 %v767, %v899
        %v901 = vpop.f32.mrb[0].mxu0
        %902 = vmatprep.mubr.f32.mxu0 0.0
        %903 = vmatmul.mubr.f32.gmra.mrb[0].mxu0 %v783
        %v904 = vpop.f32.mrb[0].mxu0
        %v905 = vadd.f32 %v767, %v904
        %v906 = vpop.f32.mrb[0].mxu0
        %907 = vmatprep.mubr.f32.mxu0 0.0
        %908 = vmatmul.mubr.f32.gmra.mrb[0].mxu0 %v786
        %v909 = vpop.f32.mrb[0].mxu0
        %v910 = vadd.f32 %v767, %v909
        %v911 = vpop.f32.mrb[0].mxu0
        %912 = vmatprep.mubr.f32.mxu0 0.0
        %913 = vmatmul.mubr.f32.gmra.mrb[0].mxu0 %v789
        %v914 = vpop.f32.mrb[0].mxu0
        %v915 = vadd.f32 %v767, %v914
        %v916 = vpop.f32.mrb[0].mxu0
        %917 = vmatprep.mubr.f32.mxu0 0.0
        %918 = vmatmul.mubr.f32.gmra.mrb[0].mxu0 %v792
        %v919 = vpop.f32.mrb[0].mxu0
        %v920 = vadd.f32 %v767, %v919
        %v921 = vpop.f32.mrb[0].mxu0
        %922 = vmatprep.mubr.f32.mxu0 0.0
        %923 = vmatmul.mubr.f32.gmra.mrb[0].mxu0 %v795
        %v924 = vpop.f32.mrb[0].mxu0
        %v925 = vadd.f32 %v767, %v924
        %v926 = vpop.f32.mrb[0].mxu0
        %927 = vmatprep.mubr.f32.mxu0 0.0
        %928 = vmatmul.mubr.f32.gmra.mrb[0].mxu0 %v798
        %v929 = vpop.f32.mrb[0].mxu0
        %v930 = vadd.f32 %v767, %v929
        %v931 = vpop.f32.mrb[0].mxu0
        %932 = vmatprep.mubr.f32.mxu0 0.0
        %933 = vmatmul.mubr.f32.gmra.mrb[0].mxu0 %v801
        %v934 = vpop.f32.mrb[0].mxu0
        %v935 = vadd.f32 %v767, %v934
        %v936 = vpop.f32.mrb[0].mxu0
        %937 = vmatprep.mubr.f32.mxu0 0.0
        %938 = vmatmul.mubr.f32.gmra.mrb[0].mxu0 %v804
        %v939 = vpop.f32.mrb[0].mxu0
        %v940 = vadd.f32 %v767, %v939
        %v941 = vpop.f32.mrb[0].mxu0
        %942 = vmatprep.mubr.f32.mxu0 0.0
        %943 = vmatmul.mubr.f32.gmra.mrb[0].mxu0 %v807
        %v944 = vpop.f32.mrb[0].mxu0
        %v945 = vadd.f32 %v767, %v944
        %v946 = vpop.f32.mrb[0].mxu0
        %947 = vmatprep.mubr.f32.mxu0 0.0
        %948 = vmatmul.mubr.f32.gmra.mrb[0].mxu0 %v810
        %v949 = vpop.f32.mrb[0].mxu0
        %v950 = vadd.f32 %v767, %v949
        %v951 = vpop.f32.mrb[0].mxu0
        %952 = vmatprep.mubr.f32.mxu0 0.0
        %953 = vmatmul.mubr.f32.gmra.mrb[0].mxu0 %v813
        %v954 = vpop.f32.mrb[0].mxu0
        %v955 = vadd.f32 %v767, %v954
        %v956 = vpop.f32.mrb[0].mxu0
        %957 = vmatprep.mubr.f32.mxu0 0.0
        %958 = vmatmul.mubr.f32.gmra.mrb[0].mxu0 %v816
        %v959 = vpop.f32.mrb[0].mxu0
        %v960 = vadd.f32 %v767, %v959
        %v961 = vpop.f32.mrb[0].mxu0
        %962 = vdwg.mxu0
        %v963 = vld [vmem:[#allocation7] sm:$0xff]
        %v964 = vld [vmem:[#allocation7 + $0x8] sm:$0xff]
        %v965 = vld [vmem:[#allocation7 + $0x10] sm:$0xff]
        %v966 = vld [vmem:[#allocation7 + $0x18] sm:$0xff]
        %v967 = vld [vmem:[#allocation7 + $0x20] sm:$0xff]
        %v968 = vld [vmem:[#allocation7 + $0x28] sm:$0xff]
        %v969 = vld [vmem:[#allocation7 + $0x30] sm:$0xff]
        %v970 = vld [vmem:[#allocation7 + $0x38] sm:$0xff]
        %v972 = vlaneseq
        %v973 = vshrl.u32 %v972, 7
        %v974 = vsub.s32 0, %v973
        %v975 = vrot.slane %v742, %v974
        %977 = vmatprep.subr.mxu0 0.0
        %978 = vmatpush1.msra.mxu0 %v963
        %979 = vmatprep.subr.mxu0 0.0
        %980 = vmatpush1.msra.mxu0 %v964
        %981 = vmatprep.subr.mxu0 0.0
        %982 = vmatpush1.msra.mxu0 %v965
        %983 = vmatprep.subr.mxu0 0.0
        %984 = vmatpush1.msra.mxu0 %v966
        %985 = vmatprep.subr.mxu0 0.0
        %986 = vmatpush1.msra.mxu0 %v967
        %987 = vmatprep.subr.mxu0 0.0
        %988 = vmatpush1.msra.mxu0 %v968
        %989 = vmatprep.subr.mxu0 0.0
        %990 = vmatpush1.msra.mxu0 %v969
        %991 = vmatprep.subr.mxu0 0.0
        %992 = vmatpush1.msra.mxu0 %v970
        %993 = vmatprep.subr.mxu0 0.0
        %994 = vmatpush1.msra.mxu0 0.0
        %995 = vmatprep.subr.mxu0 0.0
        %996 = vmatpush1.msra.mxu0 0.0
        %997 = vmatprep.subr.mxu0 0.0
        %998 = vmatpush1.msra.mxu0 0.0
        %999 = vmatprep.subr.mxu0 0.0
        %1000 = vmatpush1.msra.mxu0 0.0
        %1001 = vmatprep.subr.mxu0 0.0
        %1002 = vmatpush1.msra.mxu0 0.0
        %1003 = vmatprep.subr.mxu0 0.0
        %1004 = vmatpush1.msra.mxu0 0.0
        %1005 = vmatprep.subr.mxu0 0.0
        %1006 = vmatpush1.msra.mxu0 0.0
        %1007 = vmatprep.subr.mxu0 0.0
        %1008 = vmatpush1.msra.mxu0 0.0
        %1009 = vmatprep.subr.mxu0 0.0
        %1010 = vmatpush1.msra.mxu0 0.0
        %1011 = vmatprep.subr.mxu0 0.0
        %1012 = vmatpush1.msra.mxu0 0.0
        %1013 = vmatprep.subr.mxu0 0.0
        %1014 = vmatpush1.msra.mxu0 0.0
        %1015 = vmatprep.subr.mxu0 0.0
        %1016 = vmatpush1.msra.mxu0 0.0
        %1017 = vmatprep.subr.mxu0 0.0
        %1018 = vmatpush1.msra.mxu0 0.0
        %1019 = vmatprep.subr.mxu0 0.0
        %1020 = vmatpush1.msra.mxu0 0.0
        %1021 = vmatprep.subr.mxu0 0.0
        %1022 = vmatpush1.msra.mxu0 0.0
        %1023 = vmatprep.subr.mxu0 0.0
        %1024 = vmatpush1.msra.mxu0 0.0
        %1025 = vmatprep.subr.mxu0 0.0
        %1026 = vmatpush1.msra.mxu0 0.0
        %1027 = vmatprep.subr.mxu0 0.0
        %1028 = vmatpush1.msra.mxu0 0.0
        %1029 = vmatprep.subr.mxu0 0.0
        %1030 = vmatpush1.msra.mxu0 0.0
        %1031 = vmatprep.subr.mxu0 0.0
        %1032 = vmatpush1.msra.mxu0 0.0
        %1033 = vmatprep.subr.mxu0 0.0
        %1034 = vmatpush1.msra.mxu0 0.0
        %1035 = vmatprep.subr.mxu0 0.0
        %1036 = vmatpush1.msra.mxu0 0.0
        %1037 = vmatprep.subr.mxu0 0.0
        %1038 = vmatpush1.msra.mxu0 0.0
        %1039 = vmatprep.subr.mxu0 0.0
        %1040 = vmatpush1.msra.mxu0 0.0
        %1041 = vmatprep.mubr.f32.mxu0 0.0
        %1042 = vmatmul.mubr.f32.gmra.mrb[0].mxu0 %v771
        %v1043 = vpop.f32.mrb[0].mxu0
        %v1044 = vadd.f32 %v975, %v1043
        %v1045 = vpop.f32.mrb[0].mxu0
        %1046 = vmatprep.mubr.f32.mxu0 0.0
        %1047 = vmatmul.mubr.f32.gmra.mrb[0].mxu0 %v774
        %v1048 = vpop.f32.mrb[0].mxu0
        %v1049 = vadd.f32 %v975, %v1048
        %v1050 = vpop.f32.mrb[0].mxu0
        %1051 = vmatprep.mubr.f32.mxu0 0.0
        %1052 = vmatmul.mubr.f32.gmra.mrb[0].mxu0 %v777
        %v1053 = vpop.f32.mrb[0].mxu0
        %v1054 = vadd.f32 %v975, %v1053
        %v1055 = vpop.f32.mrb[0].mxu0
        %1056 = vmatprep.mubr.f32.mxu0 0.0
        %1057 = vmatmul.mubr.f32.gmra.mrb[0].mxu0 %v780
        %v1058 = vpop.f32.mrb[0].mxu0
        %v1059 = vadd.f32 %v975, %v1058
        %v1060 = vpop.f32.mrb[0].mxu0
        %1061 = vmatprep.mubr.f32.mxu0 0.0
        %1062 = vmatmul.mubr.f32.gmra.mrb[0].mxu0 %v783
        %v1063 = vpop.f32.mrb[0].mxu0
        %v1064 = vadd.f32 %v975, %v1063
        %v1065 = vpop.f32.mrb[0].mxu0
        %1066 = vmatprep.mubr.f32.mxu0 0.0
        %1067 = vmatmul.mubr.f32.gmra.mrb[0].mxu0 %v786
        %v1068 = vpop.f32.mrb[0].mxu0
        %v1069 = vadd.f32 %v975, %v1068
        %v1070 = vpop.f32.mrb[0].mxu0
        %1071 = vmatprep.mubr.f32.mxu0 0.0
        %1072 = vmatmul.mubr.f32.gmra.mrb[0].mxu0 %v789
        %v1073 = vpop.f32.mrb[0].mxu0
        %v1074 = vadd.f32 %v975, %v1073
        %v1075 = vpop.f32.mrb[0].mxu0
        %1076 = vmatprep.mubr.f32.mxu0 0.0
        %1077 = vmatmul.mubr.f32.gmra.mrb[0].mxu0 %v792
        %v1078 = vpop.f32.mrb[0].mxu0
        %v1079 = vadd.f32 %v975, %v1078
        %v1080 = vpop.f32.mrb[0].mxu0
        %1081 = vmatprep.mubr.f32.mxu0 0.0
        %1082 = vmatmul.mubr.f32.gmra.mrb[0].mxu0 %v795
        %v1083 = vpop.f32.mrb[0].mxu0
        %v1084 = vadd.f32 %v975, %v1083
        %v1085 = vpop.f32.mrb[0].mxu0
        %1086 = vmatprep.mubr.f32.mxu0 0.0
        %1087 = vmatmul.mubr.f32.gmra.mrb[0].mxu0 %v798
        %v1088 = vpop.f32.mrb[0].mxu0
        %v1089 = vadd.f32 %v975, %v1088
        %v1090 = vpop.f32.mrb[0].mxu0
        %1091 = vmatprep.mubr.f32.mxu0 0.0
        %1092 = vmatmul.mubr.f32.gmra.mrb[0].mxu0 %v801
        %v1093 = vpop.f32.mrb[0].mxu0
        %v1094 = vadd.f32 %v975, %v1093
        %v1095 = vpop.f32.mrb[0].mxu0
        %1096 = vmatprep.mubr.f32.mxu0 0.0
        %1097 = vmatmul.mubr.f32.gmra.mrb[0].mxu0 %v804
        %v1098 = vpop.f32.mrb[0].mxu0
        %v1099 = vadd.f32 %v975, %v1098
        %v1100 = vpop.f32.mrb[0].mxu0
        %1101 = vmatprep.mubr.f32.mxu0 0.0
        %1102 = vmatmul.mubr.f32.gmra.mrb[0].mxu0 %v807
        %v1103 = vpop.f32.mrb[0].mxu0
        %v1104 = vadd.f32 %v975, %v1103
        %v1105 = vpop.f32.mrb[0].mxu0
        %1106 = vmatprep.mubr.f32.mxu0 0.0
        %1107 = vmatmul.mubr.f32.gmra.mrb[0].mxu0 %v810
        %v1108 = vpop.f32.mrb[0].mxu0
        %v1109 = vadd.f32 %v975, %v1108
        %v1110 = vpop.f32.mrb[0].mxu0
        %1111 = vmatprep.mubr.f32.mxu0 0.0
        %1112 = vmatmul.mubr.f32.gmra.mrb[0].mxu0 %v813
        %v1113 = vpop.f32.mrb[0].mxu0
        %v1114 = vadd.f32 %v975, %v1113
        %v1115 = vpop.f32.mrb[0].mxu0
        %1116 = vmatprep.mubr.f32.mxu0 0.0
        %1117 = vmatmul.mubr.f32.gmra.mrb[0].mxu0 %v816
        %v1118 = vpop.f32.mrb[0].mxu0
        %v1119 = vadd.f32 %v975, %v1118
        %v1120 = vpop.f32.mrb[0].mxu0
        %1121 = vdwg.mxu0
        %v1122 = vld [vmem:[%s6] sm:$0xff]
        %v1123 = vld [vmem:[%s6 + $0x8] sm:$0xff]
        %v1124 = vld [vmem:[%s6 + $0x10] sm:$0xff]
        %v1125 = vld [vmem:[%s6 + $0x18] sm:$0xff]
        %v1126 = vld [vmem:[%s6 + $0x20] sm:$0xff]
        %v1127 = vld [vmem:[%s6 + $0x28] sm:$0xff]
        %v1128 = vld [vmem:[%s6 + $0x30] sm:$0xff]
        %v1129 = vld [vmem:[%s6 + $0x38] sm:$0xff]
        %v1130 = vld [vmem:[%s6 + $0x40] sm:$0xff]
        %v1131 = vld [vmem:[%s6 + $0x48] sm:$0xff]
        %v1132 = vld [vmem:[%s6 + $0x50] sm:$0xff]
        %v1133 = vld [vmem:[%s6 + $0x58] sm:$0xff]
        %v1134 = vld [vmem:[%s6 + $0x60] sm:$0xff]
        %v1135 = vld [vmem:[%s6 + $0x68] sm:$0xff]
        %v1136 = vld [vmem:[%s6 + $0x70] sm:$0xff]
        %v1137 = vld [vmem:[%s6 + $0x78] sm:$0xff]
        %1138 = vmatprep.subr.mxu0 %v1123
        %1139 = vmatpush1.msra.mxu0 %v1122
        %1140 = vmatprep.subr.mxu0 %v1125
        %1141 = vmatpush1.msra.mxu0 %v1124
        %1142 = vmatprep.subr.mxu0 %v1127
        %1143 = vmatpush1.msra.mxu0 %v1126
        %1144 = vmatprep.subr.mxu0 %v1129
        %1145 = vmatpush1.msra.mxu0 %v1128
        %1146 = vmatprep.subr.mxu0 %v1131
        %1147 = vmatpush1.msra.mxu0 %v1130
        %1148 = vmatprep.subr.mxu0 %v1133
        %1149 = vmatpush1.msra.mxu0 %v1132
        %1150 = vmatprep.subr.mxu0 %v1135
        %1151 = vmatpush1.msra.mxu0 %v1134
        %1152 = vmatprep.subr.mxu0 %v1137
        %1153 = vmatpush1.msra.mxu0 %v1136
        %1154 = vmatprep.subr.mxu0 0.0
        %1155 = vmatpush1.msra.mxu0 0.0
        %1156 = vmatprep.subr.mxu0 0.0
        %1157 = vmatpush1.msra.mxu0 0.0
        %1158 = vmatprep.subr.mxu0 0.0
        %1159 = vmatpush1.msra.mxu0 0.0
        %1160 = vmatprep.subr.mxu0 0.0
        %1161 = vmatpush1.msra.mxu0 0.0
        %1162 = vmatprep.subr.mxu0 0.0
        %1163 = vmatpush1.msra.mxu0 0.0
        %1164 = vmatprep.subr.mxu0 0.0
        %1165 = vmatpush1.msra.mxu0 0.0
        %1166 = vmatprep.subr.mxu0 0.0
        %1167 = vmatpush1.msra.mxu0 0.0
        %1168 = vmatprep.subr.mxu0 0.0
        %1169 = vmatpush1.msra.mxu0 0.0
        %1170 = vmatprep.subr.mxu0 0.0
        %1171 = vmatpush1.msra.mxu0 0.0
        %1172 = vmatprep.subr.mxu0 0.0
        %1173 = vmatpush1.msra.mxu0 0.0
        %1174 = vmatprep.subr.mxu0 0.0
        %1175 = vmatpush1.msra.mxu0 0.0
        %1176 = vmatprep.subr.mxu0 0.0
        %1177 = vmatpush1.msra.mxu0 0.0
        %1178 = vmatprep.subr.mxu0 0.0
        %1179 = vmatpush1.msra.mxu0 0.0
        %1180 = vmatprep.subr.mxu0 0.0
        %1181 = vmatpush1.msra.mxu0 0.0
        %1182 = vmatprep.subr.mxu0 0.0
        %1183 = vmatpush1.msra.mxu0 0.0
        %1184 = vmatprep.subr.mxu0 0.0
        %1185 = vmatpush1.msra.mxu0 0.0
        %1186 = vmatprep.subr.mxu0 0.0
        %1187 = vmatpush1.msra.mxu0 0.0
        %1188 = vmatprep.subr.mxu0 0.0
        %1189 = vmatpush1.msra.mxu0 0.0
        %1190 = vmatprep.subr.mxu0 0.0
        %1191 = vmatpush1.msra.mxu0 0.0
        %1192 = vmatprep.subr.mxu0 0.0
        %1193 = vmatpush1.msra.mxu0 0.0
        %1194 = vmatprep.subr.mxu0 0.0
        %1195 = vmatpush1.msra.mxu0 0.0
        %1196 = vmatprep.subr.mxu0 0.0
        %1197 = vmatpush1.msra.mxu0 0.0
        %1198 = vmatprep.subr.mxu0 0.0
        %1199 = vmatpush1.msra.mxu0 0.0
        %1200 = vmatprep.subr.mxu0 0.0
        %1201 = vmatpush1.msra.mxu0 0.0
        %1202 = vmatprep.mubr.f32.mxu0 0.0
        %1203 = vmatmul.mubr.f32.gmra.mrb[0].mxu0 %v771
        %v1204 = vpop.f32.mrb[0].mxu0
        %v1205 = vadd.f32 0.0, %v1204
        %v1206 = vpop.f32.mrb[0].mxu0
        %v1207 = vadd.f32 0.0, %v1206
        %1208 = vmatprep.mubr.f32.mxu0 0.0
        %1209 = vmatmul.mubr.f32.gmra.mrb[0].mxu0 %v774
        %v1210 = vpop.f32.mrb[0].mxu0
        %v1211 = vadd.f32 0.0, %v1210
        %v1212 = vpop.f32.mrb[0].mxu0
        %v1213 = vadd.f32 0.0, %v1212
        %1214 = vmatprep.mubr.f32.mxu0 0.0
        %1215 = vmatmul.mubr.f32.gmra.mrb[0].mxu0 %v777
        %v1216 = vpop.f32.mrb[0].mxu0
        %v1217 = vadd.f32 0.0, %v1216
        %v1218 = vpop.f32.mrb[0].mxu0
        %v1219 = vadd.f32 0.0, %v1218
        %1220 = vmatprep.mubr.f32.mxu0 0.0
        %1221 = vmatmul.mubr.f32.gmra.mrb[0].mxu0 %v780
        %v1222 = vpop.f32.mrb[0].mxu0
        %v1223 = vadd.f32 0.0, %v1222
        %v1224 = vpop.f32.mrb[0].mxu0
        %v1225 = vadd.f32 0.0, %v1224
        %1226 = vmatprep.mubr.f32.mxu0 0.0
        %1227 = vmatmul.mubr.f32.gmra.mrb[0].mxu0 %v783
        %v1228 = vpop.f32.mrb[0].mxu0
        %v1229 = vadd.f32 0.0, %v1228
        %v1230 = vpop.f32.mrb[0].mxu0
        %v1231 = vadd.f32 0.0, %v1230
        %1232 = vmatprep.mubr.f32.mxu0 0.0
        %1233 = vmatmul.mubr.f32.gmra.mrb[0].mxu0 %v786
        %v1234 = vpop.f32.mrb[0].mxu0
        %v1235 = vadd.f32 0.0, %v1234
        %v1236 = vpop.f32.mrb[0].mxu0
        %v1237 = vadd.f32 0.0, %v1236
        %1238 = vmatprep.mubr.f32.mxu0 0.0
        %1239 = vmatmul.mubr.f32.gmra.mrb[0].mxu0 %v789
        %v1240 = vpop.f32.mrb[0].mxu0
        %v1241 = vadd.f32 0.0, %v1240
        %v1242 = vpop.f32.mrb[0].mxu0
        %v1243 = vadd.f32 0.0, %v1242
        %1244 = vmatprep.mubr.f32.mxu0 0.0
        %1245 = vmatmul.mubr.f32.gmra.mrb[0].mxu0 %v792
        %v1246 = vpop.f32.mrb[0].mxu0
        %v1247 = vadd.f32 0.0, %v1246
        %v1248 = vpop.f32.mrb[0].mxu0
        %v1249 = vadd.f32 0.0, %v1248
        %1250 = vmatprep.mubr.f32.mxu0 0.0
        %1251 = vmatmul.mubr.f32.gmra.mrb[0].mxu0 %v795
        %v1252 = vpop.f32.mrb[0].mxu0
        %v1253 = vadd.f32 0.0, %v1252
        %v1254 = vpop.f32.mrb[0].mxu0
        %v1255 = vadd.f32 0.0, %v1254
        %1256 = vmatprep.mubr.f32.mxu0 0.0
        %1257 = vmatmul.mubr.f32.gmra.mrb[0].mxu0 %v798
        %v1258 = vpop.f32.mrb[0].mxu0
        %v1259 = vadd.f32 0.0, %v1258
        %v1260 = vpop.f32.mrb[0].mxu0
        %v1261 = vadd.f32 0.0, %v1260
        %1262 = vmatprep.mubr.f32.mxu0 0.0
        %1263 = vmatmul.mubr.f32.gmra.mrb[0].mxu0 %v801
        %v1264 = vpop.f32.mrb[0].mxu0
        %v1265 = vadd.f32 0.0, %v1264
        %v1266 = vpop.f32.mrb[0].mxu0
        %v1267 = vadd.f32 0.0, %v1266
        %1268 = vmatprep.mubr.f32.mxu0 0.0
        %1269 = vmatmul.mubr.f32.gmra.mrb[0].mxu0 %v804
        %v1270 = vpop.f32.mrb[0].mxu0
        %v1271 = vadd.f32 0.0, %v1270
        %v1272 = vpop.f32.mrb[0].mxu0
        %v1273 = vadd.f32 0.0, %v1272
        %1274 = vmatprep.mubr.f32.mxu0 0.0
        %1275 = vmatmul.mubr.f32.gmra.mrb[0].mxu0 %v807
        %v1276 = vpop.f32.mrb[0].mxu0
        %v1277 = vadd.f32 0.0, %v1276
        %v1278 = vpop.f32.mrb[0].mxu0
        %v1279 = vadd.f32 0.0, %v1278
        %1280 = vmatprep.mubr.f32.mxu0 0.0
        %1281 = vmatmul.mubr.f32.gmra.mrb[0].mxu0 %v810
        %v1282 = vpop.f32.mrb[0].mxu0
        %v1283 = vadd.f32 0.0, %v1282
        %v1284 = vpop.f32.mrb[0].mxu0
        %v1285 = vadd.f32 0.0, %v1284
        %1286 = vmatprep.mubr.f32.mxu0 0.0
        %1287 = vmatmul.mubr.f32.gmra.mrb[0].mxu0 %v813
        %v1288 = vpop.f32.mrb[0].mxu0
        %v1289 = vadd.f32 0.0, %v1288
        %v1290 = vpop.f32.mrb[0].mxu0
        %v1291 = vadd.f32 0.0, %v1290
        %1292 = vmatprep.mubr.f32.mxu0 0.0
        %1293 = vmatmul.mubr.f32.gmra.mrb[0].mxu0 %v816
        %v1294 = vpop.f32.mrb[0].mxu0
        %v1295 = vadd.f32 0.0, %v1294
        %v1296 = vpop.f32.mrb[0].mxu0
        %v1297 = vadd.f32 0.0, %v1296
        %1298 = vdwg.mxu0
        %vm1299 = vcmask 130048
        %v1301 = vsel %vm1299, %v885, 0
        %v1304 = vsel %vm1299, %v890, 0
        %v1307 = vsel %vm1299, %v895, 0
        %v1310 = vsel %vm1299, %v900, 0
        %v1313 = vsel %vm1299, %v905, 0
        %v1316 = vsel %vm1299, %v910, 0
        %v1319 = vsel %vm1299, %v915, 0
        %v1322 = vsel %vm1299, %v920, 0
        %v1325 = vsel %vm1299, %v925, 0
        %v1328 = vsel %vm1299, %v930, 0
        %v1331 = vsel %vm1299, %v935, 0
        %v1334 = vsel %vm1299, %v940, 0
        %v1337 = vsel %vm1299, %v945, 0
        %v1340 = vsel %vm1299, %v950, 0
        %v1343 = vsel %vm1299, %v955, 0
        %v1346 = vsel %vm1299, %v960, 0
        %v1349 = vsel %vm1299, %v1044, 0
        %v1352 = vsel %vm1299, %v1049, 0
        %v1355 = vsel %vm1299, %v1054, 0
        %v1358 = vsel %vm1299, %v1059, 0
        %v1361 = vsel %vm1299, %v1064, 0
        %v1364 = vsel %vm1299, %v1069, 0
        %v1367 = vsel %vm1299, %v1074, 0
        %v1370 = vsel %vm1299, %v1079, 0
        %v1373 = vsel %vm1299, %v1084, 0
        %v1376 = vsel %vm1299, %v1089, 0
        %v1379 = vsel %vm1299, %v1094, 0
        %v1382 = vsel %vm1299, %v1099, 0
        %v1385 = vsel %vm1299, %v1104, 0
        %v1388 = vsel %vm1299, %v1109, 0
        %v1391 = vsel %vm1299, %v1114, 0
        %v1394 = vsel %vm1299, %v1119, 0
        %1396 = vmatprep.subr.mxu0 0.0
        %1397 = vmatpush1.xpose.msra.mxu0 %v1349
        %1398 = vmatprep.subr.mxu0 0.0
        %1399 = vmatpush1.xpose.msra.mxu0 %v1352
        %1400 = vmatprep.subr.mxu0 0.0
        %1401 = vmatpush1.xpose.msra.mxu0 %v1355
        %1402 = vmatprep.subr.mxu0 0.0
        %1403 = vmatpush1.xpose.msra.mxu0 %v1358
        %1404 = vmatprep.subr.mxu0 0.0
        %1405 = vmatpush1.xpose.msra.mxu0 %v1361
        %1406 = vmatprep.subr.mxu0 0.0
        %1407 = vmatpush1.xpose.msra.mxu0 %v1364
        %1408 = vmatprep.subr.mxu0 0.0
        %1409 = vmatpush1.xpose.msra.mxu0 %v1367
        %1410 = vmatprep.subr.mxu0 0.0
        %1411 = vmatpush1.xpose.msra.mxu0 %v1370
        %1412 = vmatprep.subr.mxu0 0.0
        %1413 = vmatpush1.xpose.msra.mxu0 %v1373
        %1414 = vmatprep.subr.mxu0 0.0
        %1415 = vmatpush1.xpose.msra.mxu0 %v1376
        %1416 = vmatprep.subr.mxu0 0.0
        %1417 = vmatpush1.xpose.msra.mxu0 %v1379
        %1418 = vmatprep.subr.mxu0 0.0
        %1419 = vmatpush1.xpose.msra.mxu0 %v1382
        %1420 = vmatprep.subr.mxu0 0.0
        %1421 = vmatpush1.xpose.msra.mxu0 %v1385
        %1422 = vmatprep.subr.mxu0 0.0
        %1423 = vmatpush1.xpose.msra.mxu0 %v1388
        %1424 = vmatprep.subr.mxu0 0.0
        %1425 = vmatpush1.xpose.msra.mxu0 %v1391
        %1426 = vmatprep.subr.mxu0 0.0
        %1427 = vmatpush1.xpose.msra.mxu0 %v1394
        %1428 = vmatprep.subr.mxu0 0.0
        %1429 = vmatpush1.xpose.msra.mxu0 0.0
        %1430 = vmatprep.subr.mxu0 0.0
        %1431 = vmatpush1.xpose.msra.mxu0 0.0
        %1432 = vmatprep.subr.mxu0 0.0
        %1433 = vmatpush1.xpose.msra.mxu0 0.0
        %1434 = vmatprep.subr.mxu0 0.0
        %1435 = vmatpush1.xpose.msra.mxu0 0.0
        %1436 = vmatprep.subr.mxu0 0.0
        %1437 = vmatpush1.xpose.msra.mxu0 0.0
        %1438 = vmatprep.subr.mxu0 0.0
        %1439 = vmatpush1.xpose.msra.mxu0 0.0
        %1440 = vmatprep.subr.mxu0 0.0
        %1441 = vmatpush1.xpose.msra.mxu0 0.0
        %1442 = vmatprep.subr.mxu0 0.0
        %1443 = vmatpush1.xpose.msra.mxu0 0.0
        %1444 = vmatprep.subr.mxu0 0.0
        %1445 = vmatpush1.xpose.msra.mxu0 0.0
        %1446 = vmatprep.subr.mxu0 0.0
        %1447 = vmatpush1.xpose.msra.mxu0 0.0
        %1448 = vmatprep.subr.mxu0 0.0
        %1449 = vmatpush1.xpose.msra.mxu0 0.0
        %1450 = vmatprep.subr.mxu0 0.0
        %1451 = vmatpush1.xpose.msra.mxu0 0.0
        %1452 = vmatprep.subr.mxu0 0.0
        %1453 = vmatpush1.xpose.msra.mxu0 0.0
        %1454 = vmatprep.subr.mxu0 0.0
        %1455 = vmatpush1.xpose.msra.mxu0 0.0
        %1456 = vmatprep.subr.mxu0 0.0
        %1457 = vmatpush1.xpose.msra.mxu0 0.0
        %1458 = vmatprep.subr.mxu0 0.0
        %1459 = vmatpush1.xpose.msra.mxu0 0.0
        %1460 = vmatprep.mubr.f32.mxu0 0.0
        %1461 = vmatmul.mubr.f32.gmra.mrb[0].mxu0 %v1301
        %v1462 = vpop.f32.mrb[0].mxu0
        %v1463 = vadd.f32 %v581, %v1462
        %v1464 = vpop.f32.mrb[0].mxu0
        %1465 = vmatprep.mubr.f32.mxu0 0.0
        %1466 = vmatmul.mubr.f32.gmra.mrb[0].mxu0 %v1304
        %v1467 = vpop.f32.mrb[0].mxu0
        %v1468 = vadd.f32 %v582, %v1467
        %v1469 = vpop.f32.mrb[0].mxu0
        %1470 = vmatprep.mubr.f32.mxu0 0.0
        %1471 = vmatmul.mubr.f32.gmra.mrb[0].mxu0 %v1307
        %v1472 = vpop.f32.mrb[0].mxu0
        %v1473 = vadd.f32 %v583, %v1472
        %v1474 = vpop.f32.mrb[0].mxu0
        %1475 = vmatprep.mubr.f32.mxu0 0.0
        %1476 = vmatmul.mubr.f32.gmra.mrb[0].mxu0 %v1310
        %v1477 = vpop.f32.mrb[0].mxu0
        %v1478 = vadd.f32 %v584, %v1477
        %v1479 = vpop.f32.mrb[0].mxu0
        %1480 = vmatprep.mubr.f32.mxu0 0.0
        %1481 = vmatmul.mubr.f32.gmra.mrb[0].mxu0 %v1313
        %v1482 = vpop.f32.mrb[0].mxu0
        %v1483 = vadd.f32 %v585, %v1482
        %v1484 = vpop.f32.mrb[0].mxu0
        %1485 = vmatprep.mubr.f32.mxu0 0.0
        %1486 = vmatmul.mubr.f32.gmra.mrb[0].mxu0 %v1316
        %v1487 = vpop.f32.mrb[0].mxu0
        %v1488 = vadd.f32 %v586, %v1487
        %v1489 = vpop.f32.mrb[0].mxu0
        %1490 = vmatprep.mubr.f32.mxu0 0.0
        %1491 = vmatmul.mubr.f32.gmra.mrb[0].mxu0 %v1319
        %v1492 = vpop.f32.mrb[0].mxu0
        %v1493 = vadd.f32 %v587, %v1492
        %v1494 = vpop.f32.mrb[0].mxu0
        %1495 = vmatprep.mubr.f32.mxu0 0.0
        %1496 = vmatmul.mubr.f32.gmra.mrb[0].mxu0 %v1322
        %v1497 = vpop.f32.mrb[0].mxu0
        %v1498 = vadd.f32 %v588, %v1497
        %v1499 = vpop.f32.mrb[0].mxu0
        %1500 = vmatprep.mubr.f32.mxu0 0.0
        %1501 = vmatmul.mubr.f32.gmra.mrb[0].mxu0 %v1325
        %v1502 = vpop.f32.mrb[0].mxu0
        %v1503 = vadd.f32 %v589, %v1502
        %v1504 = vpop.f32.mrb[0].mxu0
        %1505 = vmatprep.mubr.f32.mxu0 0.0
        %1506 = vmatmul.mubr.f32.gmra.mrb[0].mxu0 %v1328
        %v1507 = vpop.f32.mrb[0].mxu0
        %v1508 = vadd.f32 %v590, %v1507
        %v1509 = vpop.f32.mrb[0].mxu0
        %1510 = vmatprep.mubr.f32.mxu0 0.0
        %1511 = vmatmul.mubr.f32.gmra.mrb[0].mxu0 %v1331
        %v1512 = vpop.f32.mrb[0].mxu0
        %v1513 = vadd.f32 %v591, %v1512
        %v1514 = vpop.f32.mrb[0].mxu0
        %1515 = vmatprep.mubr.f32.mxu0 0.0
        %1516 = vmatmul.mubr.f32.gmra.mrb[0].mxu0 %v1334
        %v1517 = vpop.f32.mrb[0].mxu0
        %v1518 = vadd.f32 %v592, %v1517
        %v1519 = vpop.f32.mrb[0].mxu0
        %1520 = vmatprep.mubr.f32.mxu0 0.0
        %1521 = vmatmul.mubr.f32.gmra.mrb[0].mxu0 %v1337
        %v1522 = vpop.f32.mrb[0].mxu0
        %v1523 = vadd.f32 %v593, %v1522
        %v1524 = vpop.f32.mrb[0].mxu0
        %1525 = vmatprep.mubr.f32.mxu0 0.0
        %1526 = vmatmul.mubr.f32.gmra.mrb[0].mxu0 %v1340
        %v1527 = vpop.f32.mrb[0].mxu0
        %v1528 = vadd.f32 %v594, %v1527
        %v1529 = vpop.f32.mrb[0].mxu0
        %1530 = vmatprep.mubr.f32.mxu0 0.0
        %1531 = vmatmul.mubr.f32.gmra.mrb[0].mxu0 %v1343
        %v1532 = vpop.f32.mrb[0].mxu0
        %v1533 = vadd.f32 %v595, %v1532
        %v1534 = vpop.f32.mrb[0].mxu0
        %1535 = vmatprep.mubr.f32.mxu0 0.0
        %1536 = vmatmul.mubr.f32.gmra.mrb[0].mxu0 %v1346
        %v1537 = vpop.f32.mrb[0].mxu0
        %v1538 = vadd.f32 %v596, %v1537
        %v1539 = vpop.f32.mrb[0].mxu0
        %1540 = vdwg.mxu0
        %1541 = vmax.xlane.f32.xlu0 %v1463
        %v1542 = vpop.xlane.xlu0 %1541
        %1543 = vmax.xlane.f32.xlu0 %v1468
        %v1544 = vpop.xlane.xlu0 %1543
        %1545 = vmax.xlane.f32.xlu0 %v1473
        %v1546 = vpop.xlane.xlu0 %1545
        %1547 = vmax.xlane.f32.xlu0 %v1478
        %v1548 = vpop.xlane.xlu0 %1547
        %1549 = vmax.xlane.f32.xlu0 %v1483
        %v1550 = vpop.xlane.xlu0 %1549
        %1551 = vmax.xlane.f32.xlu0 %v1488
        %v1552 = vpop.xlane.xlu0 %1551
        %1553 = vmax.xlane.f32.xlu0 %v1493
        %v1554 = vpop.xlane.xlu0 %1553
        %1555 = vmax.xlane.f32.xlu0 %v1498
        %v1556 = vpop.xlane.xlu0 %1555
        %1557 = vmax.xlane.f32.xlu0 %v1503
        %v1558 = vpop.xlane.xlu0 %1557
        %1559 = vmax.xlane.f32.xlu0 %v1508
        %v1560 = vpop.xlane.xlu0 %1559
        %1561 = vmax.xlane.f32.xlu0 %v1513
        %v1562 = vpop.xlane.xlu0 %1561
        %1563 = vmax.xlane.f32.xlu0 %v1518
        %v1564 = vpop.xlane.xlu0 %1563
        %1565 = vmax.xlane.f32.xlu0 %v1523
        %v1566 = vpop.xlane.xlu0 %1565
        %1567 = vmax.xlane.f32.xlu0 %v1528
        %v1568 = vpop.xlane.xlu0 %1567
        %1569 = vmax.xlane.f32.xlu0 %v1533
        %v1570 = vpop.xlane.xlu0 %1569
        %1571 = vmax.xlane.f32.xlu0 %v1538
        %v1572 = vpop.xlane.xlu0 %1571
        %v1573 = vsub.f32 %v1463, %v1542
        %v1574 = vsub.f32 %v1468, %v1544
        %v1575 = vsub.f32 %v1473, %v1546
        %v1576 = vsub.f32 %v1478, %v1548
        %v1577 = vsub.f32 %v1483, %v1550
        %v1578 = vsub.f32 %v1488, %v1552
        %v1579 = vsub.f32 %v1493, %v1554
        %v1580 = vsub.f32 %v1498, %v1556
        %v1581 = vsub.f32 %v1503, %v1558
        %v1582 = vsub.f32 %v1508, %v1560
        %v1583 = vsub.f32 %v1513, %v1562
        %v1584 = vsub.f32 %v1518, %v1564
        %v1585 = vsub.f32 %v1523, %v1566
        %v1586 = vsub.f32 %v1528, %v1568
        %v1587 = vsub.f32 %v1533, %v1570
        %v1588 = vsub.f32 %v1538, %v1572
        %v1589 = vmul.f32 %v1573, 1.442695
        %v1590 = vpow.pop %v1589
        %v1591 = vmul.f32 %v1574, 1.442695
        %v1592 = vpow.pop %v1591
        %v1593 = vmul.f32 %v1575, 1.442695
        %v1594 = vpow.pop %v1593
        %v1595 = vmul.f32 %v1576, 1.442695
        %v1596 = vpow.pop %v1595
        %v1597 = vmul.f32 %v1577, 1.442695
        %v1598 = vpow.pop %v1597
        %v1599 = vmul.f32 %v1578, 1.442695
        %v1600 = vpow.pop %v1599
        %v1601 = vmul.f32 %v1579, 1.442695
        %v1602 = vpow.pop %v1601
        %v1603 = vmul.f32 %v1580, 1.442695
        %v1604 = vpow.pop %v1603
        %v1605 = vmul.f32 %v1581, 1.442695
        %v1606 = vpow.pop %v1605
        %v1607 = vmul.f32 %v1582, 1.442695
        %v1608 = vpow.pop %v1607
        %v1609 = vmul.f32 %v1583, 1.442695
        %v1610 = vpow.pop %v1609
        %v1611 = vmul.f32 %v1584, 1.442695
        %v1612 = vpow.pop %v1611
        %v1613 = vmul.f32 %v1585, 1.442695
        %v1614 = vpow.pop %v1613
        %v1615 = vmul.f32 %v1586, 1.442695
        %v1616 = vpow.pop %v1615
        %v1617 = vmul.f32 %v1587, 1.442695
        %v1618 = vpow.pop %v1617
        %v1619 = vmul.f32 %v1588, 1.442695
        %v1620 = vpow.pop %v1619
        %1621 = vadd.xlane.f32.xlu0 %v1590
        %v1622 = vpop.xlane.xlu0 %1621
        %1623 = vadd.xlane.f32.xlu0 %v1592
        %v1624 = vpop.xlane.xlu0 %1623
        %1625 = vadd.xlane.f32.xlu0 %v1594
        %v1626 = vpop.xlane.xlu0 %1625
        %1627 = vadd.xlane.f32.xlu0 %v1596
        %v1628 = vpop.xlane.xlu0 %1627
        %1629 = vadd.xlane.f32.xlu0 %v1598
        %v1630 = vpop.xlane.xlu0 %1629
        %1631 = vadd.xlane.f32.xlu0 %v1600
        %v1632 = vpop.xlane.xlu0 %1631
        %1633 = vadd.xlane.f32.xlu0 %v1602
        %v1634 = vpop.xlane.xlu0 %1633
        %1635 = vadd.xlane.f32.xlu0 %v1604
        %v1636 = vpop.xlane.xlu0 %1635
        %1637 = vadd.xlane.f32.xlu0 %v1606
        %v1638 = vpop.xlane.xlu0 %1637
        %1639 = vadd.xlane.f32.xlu0 %v1608
        %v1640 = vpop.xlane.xlu0 %1639
        %1641 = vadd.xlane.f32.xlu0 %v1610
        %v1642 = vpop.xlane.xlu0 %1641
        %1643 = vadd.xlane.f32.xlu0 %v1612
        %v1644 = vpop.xlane.xlu0 %1643
        %1645 = vadd.xlane.f32.xlu0 %v1614
        %v1646 = vpop.xlane.xlu0 %1645
        %1647 = vadd.xlane.f32.xlu0 %v1616
        %v1648 = vpop.xlane.xlu0 %1647
        %1649 = vadd.xlane.f32.xlu0 %v1618
        %v1650 = vpop.xlane.xlu0 %1649
        %1651 = vadd.xlane.f32.xlu0 %v1620
        %v1652 = vpop.xlane.xlu0 %1651
        %v1653 = vrcp.pop %v1622
        %v1654 = vrcp.pop %v1624
        %v1655 = vrcp.pop %v1626
        %v1656 = vrcp.pop %v1628
        %v1657 = vrcp.pop %v1630
        %v1658 = vrcp.pop %v1632
        %v1659 = vrcp.pop %v1634
        %v1660 = vrcp.pop %v1636
        %v1661 = vrcp.pop %v1638
        %v1662 = vrcp.pop %v1640
        %v1663 = vrcp.pop %v1642
        %v1664 = vrcp.pop %v1644
        %v1665 = vrcp.pop %v1646
        %v1666 = vrcp.pop %v1648
        %v1667 = vrcp.pop %v1650
        %v1668 = vrcp.pop %v1652
        %v1669 = vmul.f32 %v1590, %v1653
        %v1670 = vmul.f32 %v1592, %v1654
        %v1671 = vmul.f32 %v1594, %v1655
        %v1672 = vmul.f32 %v1596, %v1656
        %v1673 = vmul.f32 %v1598, %v1657
        %v1674 = vmul.f32 %v1600, %v1658
        %v1675 = vmul.f32 %v1602, %v1659
        %v1676 = vmul.f32 %v1604, %v1660
        %v1677 = vmul.f32 %v1606, %v1661
        %v1678 = vmul.f32 %v1608, %v1662
        %v1679 = vmul.f32 %v1610, %v1663
        %v1680 = vmul.f32 %v1612, %v1664
        %v1681 = vmul.f32 %v1614, %v1665
        %v1682 = vmul.f32 %v1616, %v1666
        %v1683 = vmul.f32 %v1618, %v1667
        %v1684 = vmul.f32 %v1620, %v1668
        %1685 = vrot.lane.b32.xlu0 %v885, 112
        %v1686 = vpop.permute.xlu0 %1685
        %1687 = vrot.lane.b32.xlu0 %v890, 112
        %v1688 = vpop.permute.xlu0 %1687
        %1689 = vrot.lane.b32.xlu0 %v895, 112
        %v1690 = vpop.permute.xlu0 %1689
        %1691 = vrot.lane.b32.xlu0 %v900, 112
        %v1692 = vpop.permute.xlu0 %1691
        %1693 = vrot.lane.b32.xlu0 %v905, 112
        %v1694 = vpop.permute.xlu0 %1693
        %1695 = vrot.lane.b32.xlu0 %v910, 112
        %v1696 = vpop.permute.xlu0 %1695
        %1697 = vrot.lane.b32.xlu0 %v915, 112
        %v1698 = vpop.permute.xlu0 %1697
        %1699 = vrot.lane.b32.xlu0 %v920, 112
        %v1700 = vpop.permute.xlu0 %1699
        %1701 = vrot.lane.b32.xlu0 %v925, 112
        %v1702 = vpop.permute.xlu0 %1701
        %1703 = vrot.lane.b32.xlu0 %v930, 112
        %v1704 = vpop.permute.xlu0 %1703
        %1705 = vrot.lane.b32.xlu0 %v935, 112
        %v1706 = vpop.permute.xlu0 %1705
        %1707 = vrot.lane.b32.xlu0 %v940, 112
        %v1708 = vpop.permute.xlu0 %1707
        %1709 = vrot.lane.b32.xlu0 %v945, 112
        %v1710 = vpop.permute.xlu0 %1709
        %1711 = vrot.lane.b32.xlu0 %v950, 112
        %v1712 = vpop.permute.xlu0 %1711
        %1713 = vrot.lane.b32.xlu0 %v955, 112
        %v1714 = vpop.permute.xlu0 %1713
        %1715 = vrot.lane.b32.xlu0 %v960, 112
        %v1716 = vpop.permute.xlu0 %1715
        %1717 = vrot.lane.b32.xlu0 %v1044, 112
        %v1718 = vpop.permute.xlu0 %1717
        %1719 = vrot.lane.b32.xlu0 %v1049, 112
        %v1720 = vpop.permute.xlu0 %1719
        %1721 = vrot.lane.b32.xlu0 %v1054, 112
        %v1722 = vpop.permute.xlu0 %1721
        %1723 = vrot.lane.b32.xlu0 %v1059, 112
        %v1724 = vpop.permute.xlu0 %1723
        %1725 = vrot.lane.b32.xlu0 %v1064, 112
        %v1726 = vpop.permute.xlu0 %1725
        %1727 = vrot.lane.b32.xlu0 %v1069, 112
        %v1728 = vpop.permute.xlu0 %1727
        %1729 = vrot.lane.b32.xlu0 %v1074, 112
        %v1730 = vpop.permute.xlu0 %1729
        %1731 = vrot.lane.b32.xlu0 %v1079, 112
        %v1732 = vpop.permute.xlu0 %1731
        %1733 = vrot.lane.b32.xlu0 %v1084, 112
        %v1734 = vpop.permute.xlu0 %1733
        %1735 = vrot.lane.b32.xlu0 %v1089, 112
        %v1736 = vpop.permute.xlu0 %1735
        %1737 = vrot.lane.b32.xlu0 %v1094, 112
        %v1738 = vpop.permute.xlu0 %1737
        %1739 = vrot.lane.b32.xlu0 %v1099, 112
        %v1740 = vpop.permute.xlu0 %1739
        %1741 = vrot.lane.b32.xlu0 %v1104, 112
        %v1742 = vpop.permute.xlu0 %1741
        %1743 = vrot.lane.b32.xlu0 %v1109, 112
        %v1744 = vpop.permute.xlu0 %1743
        %1745 = vrot.lane.b32.xlu0 %v1114, 112
        %v1746 = vpop.permute.xlu0 %1745
        %1747 = vrot.lane.b32.xlu0 %v1119, 112
        %v1748 = vpop.permute.xlu0 %1747
        %v1749 = vsel %vm1299, %v1686, 0
        %v1751 = vsel %vm1299, %v1688, 0
        %v1753 = vsel %vm1299, %v1690, 0
        %v1755 = vsel %vm1299, %v1692, 0
        %v1757 = vsel %vm1299, %v1694, 0
        %v1759 = vsel %vm1299, %v1696, 0
        %v1761 = vsel %vm1299, %v1698, 0
        %v1763 = vsel %vm1299, %v1700, 0
        %v1765 = vsel %vm1299, %v1702, 0
        %v1767 = vsel %vm1299, %v1704, 0
        %v1769 = vsel %vm1299, %v1706, 0
        %v1771 = vsel %vm1299, %v1708, 0
        %v1773 = vsel %vm1299, %v1710, 0
        %v1775 = vsel %vm1299, %v1712, 0
        %v1777 = vsel %vm1299, %v1714, 0
        %v1779 = vsel %vm1299, %v1716, 0
        %v1781 = vsel %vm1299, %v1718, 0
        %v1783 = vsel %vm1299, %v1720, 0
        %v1785 = vsel %vm1299, %v1722, 0
        %v1787 = vsel %vm1299, %v1724, 0
        %v1789 = vsel %vm1299, %v1726, 0
        %v1791 = vsel %vm1299, %v1728, 0
        %v1793 = vsel %vm1299, %v1730, 0
        %v1795 = vsel %vm1299, %v1732, 0
        %v1797 = vsel %vm1299, %v1734, 0
        %v1799 = vsel %vm1299, %v1736, 0
        %v1801 = vsel %vm1299, %v1738, 0
        %v1803 = vsel %vm1299, %v1740, 0
        %v1805 = vsel %vm1299, %v1742, 0
        %v1807 = vsel %vm1299, %v1744, 0
        %v1809 = vsel %vm1299, %v1746, 0
        %v1811 = vsel %vm1299, %v1748, 0
        %1813 = vmatprep.subr.mxu0 0.0
        %1814 = vmatpush1.xpose.msra.mxu0 %v1781
        %1815 = vmatprep.subr.mxu0 0.0
        %1816 = vmatpush1.xpose.msra.mxu0 %v1783
        %1817 = vmatprep.subr.mxu0 0.0
        %1818 = vmatpush1.xpose.msra.mxu0 %v1785
        %1819 = vmatprep.subr.mxu0 0.0
        %1820 = vmatpush1.xpose.msra.mxu0 %v1787
        %1821 = vmatprep.subr.mxu0 0.0
        %1822 = vmatpush1.xpose.msra.mxu0 %v1789
        %1823 = vmatprep.subr.mxu0 0.0
        %1824 = vmatpush1.xpose.msra.mxu0 %v1791
        %1825 = vmatprep.subr.mxu0 0.0
        %1826 = vmatpush1.xpose.msra.mxu0 %v1793
        %1827 = vmatprep.subr.mxu0 0.0
        %1828 = vmatpush1.xpose.msra.mxu0 %v1795
        %1829 = vmatprep.subr.mxu0 0.0
        %1830 = vmatpush1.xpose.msra.mxu0 %v1797
        %1831 = vmatprep.subr.mxu0 0.0
        %1832 = vmatpush1.xpose.msra.mxu0 %v1799
        %1833 = vmatprep.subr.mxu0 0.0
        %1834 = vmatpush1.xpose.msra.mxu0 %v1801
        %1835 = vmatprep.subr.mxu0 0.0
        %1836 = vmatpush1.xpose.msra.mxu0 %v1803
        %1837 = vmatprep.subr.mxu0 0.0
        %1838 = vmatpush1.xpose.msra.mxu0 %v1805
        %1839 = vmatprep.subr.mxu0 0.0
        %1840 = vmatpush1.xpose.msra.mxu0 %v1807
        %1841 = vmatprep.subr.mxu0 0.0
        %1842 = vmatpush1.xpose.msra.mxu0 %v1809
        %1843 = vmatprep.subr.mxu0 0.0
        %1844 = vmatpush1.xpose.msra.mxu0 %v1811
        %1845 = vmatprep.subr.mxu0 0.0
        %1846 = vmatpush1.xpose.msra.mxu0 0.0
        %1847 = vmatprep.subr.mxu0 0.0
        %1848 = vmatpush1.xpose.msra.mxu0 0.0
        %1849 = vmatprep.subr.mxu0 0.0
        %1850 = vmatpush1.xpose.msra.mxu0 0.0
        %1851 = vmatprep.subr.mxu0 0.0
        %1852 = vmatpush1.xpose.msra.mxu0 0.0
        %1853 = vmatprep.subr.mxu0 0.0
        %1854 = vmatpush1.xpose.msra.mxu0 0.0
        %1855 = vmatprep.subr.mxu0 0.0
        %1856 = vmatpush1.xpose.msra.mxu0 0.0
        %1857 = vmatprep.subr.mxu0 0.0
        %1858 = vmatpush1.xpose.msra.mxu0 0.0
        %1859 = vmatprep.subr.mxu0 0.0
        %1860 = vmatpush1.xpose.msra.mxu0 0.0
        %1861 = vmatprep.subr.mxu0 0.0
        %1862 = vmatpush1.xpose.msra.mxu0 0.0
        %1863 = vmatprep.subr.mxu0 0.0
        %1864 = vmatpush1.xpose.msra.mxu0 0.0
        %1865 = vmatprep.subr.mxu0 0.0
        %1866 = vmatpush1.xpose.msra.mxu0 0.0
        %1867 = vmatprep.subr.mxu0 0.0
        %1868 = vmatpush1.xpose.msra.mxu0 0.0
        %1869 = vmatprep.subr.mxu0 0.0
        %1870 = vmatpush1.xpose.msra.mxu0 0.0
        %1871 = vmatprep.subr.mxu0 0.0
        %1872 = vmatpush1.xpose.msra.mxu0 0.0
        %1873 = vmatprep.subr.mxu0 0.0
        %1874 = vmatpush1.xpose.msra.mxu0 0.0
        %1875 = vmatprep.subr.mxu0 0.0
        %1876 = vmatpush1.xpose.msra.mxu0 0.0
        %1877 = vmatprep.mubr.f32.mxu0 0.0
        %1878 = vmatmul.mubr.f32.gmra.mrb[0].mxu0 %v1749
        %v1879 = vpop.f32.mrb[0].mxu0
        %v1880 = vadd.f32 %v581, %v1879
        %v1881 = vpop.f32.mrb[0].mxu0
        %1882 = vmatprep.mubr.f32.mxu0 0.0
        %1883 = vmatmul.mubr.f32.gmra.mrb[0].mxu0 %v1751
        %v1884 = vpop.f32.mrb[0].mxu0
        %v1885 = vadd.f32 %v582, %v1884
        %v1886 = vpop.f32.mrb[0].mxu0
        %1887 = vmatprep.mubr.f32.mxu0 0.0
        %1888 = vmatmul.mubr.f32.gmra.mrb[0].mxu0 %v1753
        %v1889 = vpop.f32.mrb[0].mxu0
        %v1890 = vadd.f32 %v583, %v1889
        %v1891 = vpop.f32.mrb[0].mxu0
        %1892 = vmatprep.mubr.f32.mxu0 0.0
        %1893 = vmatmul.mubr.f32.gmra.mrb[0].mxu0 %v1755
        %v1894 = vpop.f32.mrb[0].mxu0
        %v1895 = vadd.f32 %v584, %v1894
        %v1896 = vpop.f32.mrb[0].mxu0
        %1897 = vmatprep.mubr.f32.mxu0 0.0
        %1898 = vmatmul.mubr.f32.gmra.mrb[0].mxu0 %v1757
        %v1899 = vpop.f32.mrb[0].mxu0
        %v1900 = vadd.f32 %v585, %v1899
        %v1901 = vpop.f32.mrb[0].mxu0
        %1902 = vmatprep.mubr.f32.mxu0 0.0
        %1903 = vmatmul.mubr.f32.gmra.mrb[0].mxu0 %v1759
        %v1904 = vpop.f32.mrb[0].mxu0
        %v1905 = vadd.f32 %v586, %v1904
        %v1906 = vpop.f32.mrb[0].mxu0
        %1907 = vmatprep.mubr.f32.mxu0 0.0
        %1908 = vmatmul.mubr.f32.gmra.mrb[0].mxu0 %v1761
        %v1909 = vpop.f32.mrb[0].mxu0
        %v1910 = vadd.f32 %v587, %v1909
        %v1911 = vpop.f32.mrb[0].mxu0
        %1912 = vmatprep.mubr.f32.mxu0 0.0
        %1913 = vmatmul.mubr.f32.gmra.mrb[0].mxu0 %v1763
        %v1914 = vpop.f32.mrb[0].mxu0
        %v1915 = vadd.f32 %v588, %v1914
        %v1916 = vpop.f32.mrb[0].mxu0
        %1917 = vmatprep.mubr.f32.mxu0 0.0
        %1918 = vmatmul.mubr.f32.gmra.mrb[0].mxu0 %v1765
        %v1919 = vpop.f32.mrb[0].mxu0
        %v1920 = vadd.f32 %v589, %v1919
        %v1921 = vpop.f32.mrb[0].mxu0
        %1922 = vmatprep.mubr.f32.mxu0 0.0
        %1923 = vmatmul.mubr.f32.gmra.mrb[0].mxu0 %v1767
        %v1924 = vpop.f32.mrb[0].mxu0
        %v1925 = vadd.f32 %v590, %v1924
        %v1926 = vpop.f32.mrb[0].mxu0
        %1927 = vmatprep.mubr.f32.mxu0 0.0
        %1928 = vmatmul.mubr.f32.gmra.mrb[0].mxu0 %v1769
        %v1929 = vpop.f32.mrb[0].mxu0
        %v1930 = vadd.f32 %v591, %v1929
        %v1931 = vpop.f32.mrb[0].mxu0
        %1932 = vmatprep.mubr.f32.mxu0 0.0
        %1933 = vmatmul.mubr.f32.gmra.mrb[0].mxu0 %v1771
        %v1934 = vpop.f32.mrb[0].mxu0
        %v1935 = vadd.f32 %v592, %v1934
        %v1936 = vpop.f32.mrb[0].mxu0
        %1937 = vmatprep.mubr.f32.mxu0 0.0
        %1938 = vmatmul.mubr.f32.gmra.mrb[0].mxu0 %v1773
        %v1939 = vpop.f32.mrb[0].mxu0
        %v1940 = vadd.f32 %v593, %v1939
        %v1941 = vpop.f32.mrb[0].mxu0
        %1942 = vmatprep.mubr.f32.mxu0 0.0
        %1943 = vmatmul.mubr.f32.gmra.mrb[0].mxu0 %v1775
        %v1944 = vpop.f32.mrb[0].mxu0
        %v1945 = vadd.f32 %v594, %v1944
        %v1946 = vpop.f32.mrb[0].mxu0
        %1947 = vmatprep.mubr.f32.mxu0 0.0
        %1948 = vmatmul.mubr.f32.gmra.mrb[0].mxu0 %v1777
        %v1949 = vpop.f32.mrb[0].mxu0
        %v1950 = vadd.f32 %v595, %v1949
        %v1951 = vpop.f32.mrb[0].mxu0
        %1952 = vmatprep.mubr.f32.mxu0 0.0
        %1953 = vmatmul.mubr.f32.gmra.mrb[0].mxu0 %v1779
        %v1954 = vpop.f32.mrb[0].mxu0
        %v1955 = vadd.f32 %v596, %v1954
        %v1956 = vpop.f32.mrb[0].mxu0
        %1957 = vdwg.mxu0
        %1958 = vmax.xlane.f32.xlu0 %v1880
        %v1959 = vpop.xlane.xlu0 %1958
        %1960 = vmax.xlane.f32.xlu0 %v1885
        %v1961 = vpop.xlane.xlu0 %1960
        %1962 = vmax.xlane.f32.xlu0 %v1890
        %v1963 = vpop.xlane.xlu0 %1962
        %1964 = vmax.xlane.f32.xlu0 %v1895
        %v1965 = vpop.xlane.xlu0 %1964
        %1966 = vmax.xlane.f32.xlu0 %v1900
        %v1967 = vpop.xlane.xlu0 %1966
        %1968 = vmax.xlane.f32.xlu0 %v1905
        %v1969 = vpop.xlane.xlu0 %1968
        %1970 = vmax.xlane.f32.xlu0 %v1910
        %v1971 = vpop.xlane.xlu0 %1970
        %1972 = vmax.xlane.f32.xlu0 %v1915
        %v1973 = vpop.xlane.xlu0 %1972
        %1974 = vmax.xlane.f32.xlu0 %v1920
        %v1975 = vpop.xlane.xlu0 %1974
        %1976 = vmax.xlane.f32.xlu0 %v1925
        %v1977 = vpop.xlane.xlu0 %1976
        %1978 = vmax.xlane.f32.xlu0 %v1930
        %v1979 = vpop.xlane.xlu0 %1978
        %1980 = vmax.xlane.f32.xlu0 %v1935
        %v1981 = vpop.xlane.xlu0 %1980
        %1982 = vmax.xlane.f32.xlu0 %v1940
        %v1983 = vpop.xlane.xlu0 %1982
        %1984 = vmax.xlane.f32.xlu0 %v1945
        %v1985 = vpop.xlane.xlu0 %1984
        %1986 = vmax.xlane.f32.xlu0 %v1950
        %v1987 = vpop.xlane.xlu0 %1986
        %1988 = vmax.xlane.f32.xlu0 %v1955
        %v1989 = vpop.xlane.xlu0 %1988
        %v1990 = vsub.f32 %v1880, %v1959
        %v1991 = vsub.f32 %v1885, %v1961
        %v1992 = vsub.f32 %v1890, %v1963
        %v1993 = vsub.f32 %v1895, %v1965
        %v1994 = vsub.f32 %v1900, %v1967
        %v1995 = vsub.f32 %v1905, %v1969
        %v1996 = vsub.f32 %v1910, %v1971
        %v1997 = vsub.f32 %v1915, %v1973
        %v1998 = vsub.f32 %v1920, %v1975
        %v1999 = vsub.f32 %v1925, %v1977
        %v2000 = vsub.f32 %v1930, %v1979
        %v2001 = vsub.f32 %v1935, %v1981
        %v2002 = vsub.f32 %v1940, %v1983
        %v2003 = vsub.f32 %v1945, %v1985
        %v2004 = vsub.f32 %v1950, %v1987
        %v2005 = vsub.f32 %v1955, %v1989
        %v2006 = vmul.f32 %v1990, 1.442695
        %v2007 = vpow.pop %v2006
        %v2008 = vmul.f32 %v1991, 1.442695
        %v2009 = vpow.pop %v2008
        %v2010 = vmul.f32 %v1992, 1.442695
        %v2011 = vpow.pop %v2010
        %v2012 = vmul.f32 %v1993, 1.442695
        %v2013 = vpow.pop %v2012
        %v2014 = vmul.f32 %v1994, 1.442695
        %v2015 = vpow.pop %v2014
        %v2016 = vmul.f32 %v1995, 1.442695
        %v2017 = vpow.pop %v2016
        %v2018 = vmul.f32 %v1996, 1.442695
        %v2019 = vpow.pop %v2018
        %v2020 = vmul.f32 %v1997, 1.442695
        %v2021 = vpow.pop %v2020
        %v2022 = vmul.f32 %v1998, 1.442695
        %v2023 = vpow.pop %v2022
        %v2024 = vmul.f32 %v1999, 1.442695
        %v2025 = vpow.pop %v2024
        %v2026 = vmul.f32 %v2000, 1.442695
        %v2027 = vpow.pop %v2026
        %v2028 = vmul.f32 %v2001, 1.442695
        %v2029 = vpow.pop %v2028
        %v2030 = vmul.f32 %v2002, 1.442695
        %v2031 = vpow.pop %v2030
        %v2032 = vmul.f32 %v2003, 1.442695
        %v2033 = vpow.pop %v2032
        %v2034 = vmul.f32 %v2004, 1.442695
        %v2035 = vpow.pop %v2034
        %v2036 = vmul.f32 %v2005, 1.442695
        %v2037 = vpow.pop %v2036
        %2038 = vadd.xlane.f32.xlu0 %v2007
        %v2039 = vpop.xlane.xlu0 %2038
        %2040 = vadd.xlane.f32.xlu0 %v2009
        %v2041 = vpop.xlane.xlu0 %2040
        %2042 = vadd.xlane.f32.xlu0 %v2011
        %v2043 = vpop.xlane.xlu0 %2042
        %2044 = vadd.xlane.f32.xlu0 %v2013
        %v2045 = vpop.xlane.xlu0 %2044
        %2046 = vadd.xlane.f32.xlu0 %v2015
        %v2047 = vpop.xlane.xlu0 %2046
        %2048 = vadd.xlane.f32.xlu0 %v2017
        %v2049 = vpop.xlane.xlu0 %2048
        %2050 = vadd.xlane.f32.xlu0 %v2019
        %v2051 = vpop.xlane.xlu0 %2050
        %2052 = vadd.xlane.f32.xlu0 %v2021
        %v2053 = vpop.xlane.xlu0 %2052
        %2054 = vadd.xlane.f32.xlu0 %v2023
        %v2055 = vpop.xlane.xlu0 %2054
        %2056 = vadd.xlane.f32.xlu0 %v2025
        %v2057 = vpop.xlane.xlu0 %2056
        %2058 = vadd.xlane.f32.xlu0 %v2027
        %v2059 = vpop.xlane.xlu0 %2058
        %2060 = vadd.xlane.f32.xlu0 %v2029
        %v2061 = vpop.xlane.xlu0 %2060
        %2062 = vadd.xlane.f32.xlu0 %v2031
        %v2063 = vpop.xlane.xlu0 %2062
        %2064 = vadd.xlane.f32.xlu0 %v2033
        %v2065 = vpop.xlane.xlu0 %2064
        %2066 = vadd.xlane.f32.xlu0 %v2035
        %v2067 = vpop.xlane.xlu0 %2066
        %2068 = vadd.xlane.f32.xlu0 %v2037
        %v2069 = vpop.xlane.xlu0 %2068
        %v2070 = vrcp.pop %v2039
        %v2071 = vrcp.pop %v2041
        %v2072 = vrcp.pop %v2043
        %v2073 = vrcp.pop %v2045
        %v2074 = vrcp.pop %v2047
        %v2075 = vrcp.pop %v2049
        %v2076 = vrcp.pop %v2051
        %v2077 = vrcp.pop %v2053
        %v2078 = vrcp.pop %v2055
        %v2079 = vrcp.pop %v2057
        %v2080 = vrcp.pop %v2059
        %v2081 = vrcp.pop %v2061
        %v2082 = vrcp.pop %v2063
        %v2083 = vrcp.pop %v2065
        %v2084 = vrcp.pop %v2067
        %v2085 = vrcp.pop %v2069
        %v2086 = vmul.f32 %v2007, %v2070
        %v2087 = vmul.f32 %v2009, %v2071
        %v2088 = vmul.f32 %v2011, %v2072
        %v2089 = vmul.f32 %v2013, %v2073
        %v2090 = vmul.f32 %v2015, %v2074
        %v2091 = vmul.f32 %v2017, %v2075
        %v2092 = vmul.f32 %v2019, %v2076
        %v2093 = vmul.f32 %v2021, %v2077
        %v2094 = vmul.f32 %v2023, %v2078
        %v2095 = vmul.f32 %v2025, %v2079
        %v2096 = vmul.f32 %v2027, %v2080
        %v2097 = vmul.f32 %v2029, %v2081
        %v2098 = vmul.f32 %v2031, %v2082
        %v2099 = vmul.f32 %v2033, %v2083
        %v2100 = vmul.f32 %v2035, %v2084
        %v2101 = vmul.f32 %v2037, %v2085
        %2118 = vrot.lane.b32.xlu0 %v1205, 64
        %v2119 = vpop.permute.xlu0 %2118
        %2120 = vrot.lane.b32.xlu0 %v1211, 64
        %v2121 = vpop.permute.xlu0 %2120
        %2122 = vrot.lane.b32.xlu0 %v1217, 64
        %v2123 = vpop.permute.xlu0 %2122
        %2124 = vrot.lane.b32.xlu0 %v1223, 64
        %v2125 = vpop.permute.xlu0 %2124
        %2126 = vrot.lane.b32.xlu0 %v1229, 64
        %v2127 = vpop.permute.xlu0 %2126
        %2128 = vrot.lane.b32.xlu0 %v1235, 64
        %v2129 = vpop.permute.xlu0 %2128
        %2130 = vrot.lane.b32.xlu0 %v1241, 64
        %v2131 = vpop.permute.xlu0 %2130
        %2132 = vrot.lane.b32.xlu0 %v1247, 64
        %v2133 = vpop.permute.xlu0 %2132
        %2134 = vrot.lane.b32.xlu0 %v1253, 64
        %v2135 = vpop.permute.xlu0 %2134
        %2136 = vrot.lane.b32.xlu0 %v1259, 64
        %v2137 = vpop.permute.xlu0 %2136
        %2138 = vrot.lane.b32.xlu0 %v1265, 64
        %v2139 = vpop.permute.xlu0 %2138
        %2140 = vrot.lane.b32.xlu0 %v1271, 64
        %v2141 = vpop.permute.xlu0 %2140
        %2142 = vrot.lane.b32.xlu0 %v1277, 64
        %v2143 = vpop.permute.xlu0 %2142
        %2144 = vrot.lane.b32.xlu0 %v1283, 64
        %v2145 = vpop.permute.xlu0 %2144
        %2146 = vrot.lane.b32.xlu0 %v1289, 64
        %v2147 = vpop.permute.xlu0 %2146
        %2148 = vrot.lane.b32.xlu0 %v1295, 64
        %v2149 = vpop.permute.xlu0 %2148
        %2166 = vmatprep.subr.mxu0 0.0
        %2167 = vmatpush1.msra.mxu0 %v2119
        %2168 = vmatprep.subr.mxu0 0.0
        %2169 = vmatpush1.msra.mxu0 %v2121
        %2170 = vmatprep.subr.mxu0 0.0
        %2171 = vmatpush1.msra.mxu0 %v2123
        %2172 = vmatprep.subr.mxu0 0.0
        %2173 = vmatpush1.msra.mxu0 %v2125
        %2174 = vmatprep.subr.mxu0 0.0
        %2175 = vmatpush1.msra.mxu0 %v2127
        %2176 = vmatprep.subr.mxu0 0.0
        %2177 = vmatpush1.msra.mxu0 %v2129
        %2178 = vmatprep.subr.mxu0 0.0
        %2179 = vmatpush1.msra.mxu0 %v2131
        %2180 = vmatprep.subr.mxu0 0.0
        %2181 = vmatpush1.msra.mxu0 %v2133
        %2182 = vmatprep.subr.mxu0 0.0
        %2183 = vmatpush1.msra.mxu0 %v2135
        %2184 = vmatprep.subr.mxu0 0.0
        %2185 = vmatpush1.msra.mxu0 %v2137
        %2186 = vmatprep.subr.mxu0 0.0
        %2187 = vmatpush1.msra.mxu0 %v2139
        %2188 = vmatprep.subr.mxu0 0.0
        %2189 = vmatpush1.msra.mxu0 %v2141
        %2190 = vmatprep.subr.mxu0 0.0
        %2191 = vmatpush1.msra.mxu0 %v2143
        %2192 = vmatprep.subr.mxu0 0.0
        %2193 = vmatpush1.msra.mxu0 %v2145
        %2194 = vmatprep.subr.mxu0 0.0
        %2195 = vmatpush1.msra.mxu0 %v2147
        %2196 = vmatprep.subr.mxu0 0.0
        %2197 = vmatpush1.msra.mxu0 %v2149
        %2198 = vmatprep.subr.mxu0 0.0
        %2199 = vmatpush1.msra.mxu0 0.0
        %2200 = vmatprep.subr.mxu0 0.0
        %2201 = vmatpush1.msra.mxu0 0.0
        %2202 = vmatprep.subr.mxu0 0.0
        %2203 = vmatpush1.msra.mxu0 0.0
        %2204 = vmatprep.subr.mxu0 0.0
        %2205 = vmatpush1.msra.mxu0 0.0
        %2206 = vmatprep.subr.mxu0 0.0
        %2207 = vmatpush1.msra.mxu0 0.0
        %2208 = vmatprep.subr.mxu0 0.0
        %2209 = vmatpush1.msra.mxu0 0.0
        %2210 = vmatprep.subr.mxu0 0.0
        %2211 = vmatpush1.msra.mxu0 0.0
        %2212 = vmatprep.subr.mxu0 0.0
        %2213 = vmatpush1.msra.mxu0 0.0
        %2214 = vmatprep.subr.mxu0 0.0
        %2215 = vmatpush1.msra.mxu0 0.0
        %2216 = vmatprep.subr.mxu0 0.0
        %2217 = vmatpush1.msra.mxu0 0.0
        %2218 = vmatprep.subr.mxu0 0.0
        %2219 = vmatpush1.msra.mxu0 0.0
        %2220 = vmatprep.subr.mxu0 0.0
        %2221 = vmatpush1.msra.mxu0 0.0
        %2222 = vmatprep.subr.mxu0 0.0
        %2223 = vmatpush1.msra.mxu0 0.0
        %2224 = vmatprep.subr.mxu0 0.0
        %2225 = vmatpush1.msra.mxu0 0.0
        %2226 = vmatprep.subr.mxu0 0.0
        %2227 = vmatpush1.msra.mxu0 0.0
        %2228 = vmatprep.subr.mxu0 0.0
        %2229 = vmatpush1.msra.mxu0 0.0
        %2230 = vmatprep.mubr.f32.mxu0 0.0
        %2231 = vmatmul.mubr.f32.gmra.mrb[0].mxu0 %v2086
        %v2232 = vpop.f32.mrb[0].mxu0
        %v2233 = vadd.f32 0.0, %v2232
        %v2234 = vpop.f32.mrb[0].mxu0
        %2235 = vmatprep.mubr.f32.mxu0 0.0
        %2236 = vmatmul.mubr.f32.gmra.mrb[0].mxu0 %v2087
        %v2237 = vpop.f32.mrb[0].mxu0
        %v2238 = vadd.f32 0.0, %v2237
        %v2239 = vpop.f32.mrb[0].mxu0
        %2240 = vmatprep.mubr.f32.mxu0 0.0
        %2241 = vmatmul.mubr.f32.gmra.mrb[0].mxu0 %v2088
        %v2242 = vpop.f32.mrb[0].mxu0
        %v2243 = vadd.f32 0.0, %v2242
        %v2244 = vpop.f32.mrb[0].mxu0
        %2245 = vmatprep.mubr.f32.mxu0 0.0
        %2246 = vmatmul.mubr.f32.gmra.mrb[0].mxu0 %v2089
        %v2247 = vpop.f32.mrb[0].mxu0
        %v2248 = vadd.f32 0.0, %v2247
        %v2249 = vpop.f32.mrb[0].mxu0
        %2250 = vmatprep.mubr.f32.mxu0 0.0
        %2251 = vmatmul.mubr.f32.gmra.mrb[0].mxu0 %v2090
        %v2252 = vpop.f32.mrb[0].mxu0
        %v2253 = vadd.f32 0.0, %v2252
        %v2254 = vpop.f32.mrb[0].mxu0
        %2255 = vmatprep.mubr.f32.mxu0 0.0
        %2256 = vmatmul.mubr.f32.gmra.mrb[0].mxu0 %v2091
        %v2257 = vpop.f32.mrb[0].mxu0
        %v2258 = vadd.f32 0.0, %v2257
        %v2259 = vpop.f32.mrb[0].mxu0
        %2260 = vmatprep.mubr.f32.mxu0 0.0
        %2261 = vmatmul.mubr.f32.gmra.mrb[0].mxu0 %v2092
        %v2262 = vpop.f32.mrb[0].mxu0
        %v2263 = vadd.f32 0.0, %v2262
        %v2264 = vpop.f32.mrb[0].mxu0
        %2265 = vmatprep.mubr.f32.mxu0 0.0
        %2266 = vmatmul.mubr.f32.gmra.mrb[0].mxu0 %v2093
        %v2267 = vpop.f32.mrb[0].mxu0
        %v2268 = vadd.f32 0.0, %v2267
        %v2269 = vpop.f32.mrb[0].mxu0
        %2270 = vmatprep.mubr.f32.mxu0 0.0
        %2271 = vmatmul.mubr.f32.gmra.mrb[0].mxu0 %v2094
        %v2272 = vpop.f32.mrb[0].mxu0
        %v2273 = vadd.f32 0.0, %v2272
        %v2274 = vpop.f32.mrb[0].mxu0
        %2275 = vmatprep.mubr.f32.mxu0 0.0
        %2276 = vmatmul.mubr.f32.gmra.mrb[0].mxu0 %v2095
        %v2277 = vpop.f32.mrb[0].mxu0
        %v2278 = vadd.f32 0.0, %v2277
        %v2279 = vpop.f32.mrb[0].mxu0
        %2280 = vmatprep.mubr.f32.mxu0 0.0
        %2281 = vmatmul.mubr.f32.gmra.mrb[0].mxu0 %v2096
        %v2282 = vpop.f32.mrb[0].mxu0
        %v2283 = vadd.f32 0.0, %v2282
        %v2284 = vpop.f32.mrb[0].mxu0
        %2285 = vmatprep.mubr.f32.mxu0 0.0
        %2286 = vmatmul.mubr.f32.gmra.mrb[0].mxu0 %v2097
        %v2287 = vpop.f32.mrb[0].mxu0
        %v2288 = vadd.f32 0.0, %v2287
        %v2289 = vpop.f32.mrb[0].mxu0
        %2290 = vmatprep.mubr.f32.mxu0 0.0
        %2291 = vmatmul.mubr.f32.gmra.mrb[0].mxu0 %v2098
        %v2292 = vpop.f32.mrb[0].mxu0
        %v2293 = vadd.f32 0.0, %v2292
        %v2294 = vpop.f32.mrb[0].mxu0
        %2295 = vmatprep.mubr.f32.mxu0 0.0
        %2296 = vmatmul.mubr.f32.gmra.mrb[0].mxu0 %v2099
        %v2297 = vpop.f32.mrb[0].mxu0
        %v2298 = vadd.f32 0.0, %v2297
        %v2299 = vpop.f32.mrb[0].mxu0
        %2300 = vmatprep.mubr.f32.mxu0 0.0
        %2301 = vmatmul.mubr.f32.gmra.mrb[0].mxu0 %v2100
        %v2302 = vpop.f32.mrb[0].mxu0
        %v2303 = vadd.f32 0.0, %v2302
        %v2304 = vpop.f32.mrb[0].mxu0
        %2305 = vmatprep.mubr.f32.mxu0 0.0
        %2306 = vmatmul.mubr.f32.gmra.mrb[0].mxu0 %v2101
        %v2307 = vpop.f32.mrb[0].mxu0
        %v2308 = vadd.f32 0.0, %v2307
        %v2309 = vpop.f32.mrb[0].mxu0
        %2310 = vdwg.mxu0
        %2311 = vmatprep.subr.mxu0 0.0
        %2312 = vmatpush1.msra.mxu0 %v1205
        %2313 = vmatprep.subr.mxu0 0.0
        %2314 = vmatpush1.msra.mxu0 %v1211
        %2315 = vmatprep.subr.mxu0 0.0
        %2316 = vmatpush1.msra.mxu0 %v1217
        %2317 = vmatprep.subr.mxu0 0.0
        %2318 = vmatpush1.msra.mxu0 %v1223
        %2319 = vmatprep.subr.mxu0 0.0
        %2320 = vmatpush1.msra.mxu0 %v1229
        %2321 = vmatprep.subr.mxu0 0.0
        %2322 = vmatpush1.msra.mxu0 %v1235
        %2323 = vmatprep.subr.mxu0 0.0
        %2324 = vmatpush1.msra.mxu0 %v1241
        %2325 = vmatprep.subr.mxu0 0.0
        %2326 = vmatpush1.msra.mxu0 %v1247
        %2327 = vmatprep.subr.mxu0 0.0
        %2328 = vmatpush1.msra.mxu0 %v1253
        %2329 = vmatprep.subr.mxu0 0.0
        %2330 = vmatpush1.msra.mxu0 %v1259
        %2331 = vmatprep.subr.mxu0 0.0
        %2332 = vmatpush1.msra.mxu0 %v1265
        %2333 = vmatprep.subr.mxu0 0.0
        %2334 = vmatpush1.msra.mxu0 %v1271
        %2335 = vmatprep.subr.mxu0 0.0
        %2336 = vmatpush1.msra.mxu0 %v1277
        %2337 = vmatprep.subr.mxu0 0.0
        %2338 = vmatpush1.msra.mxu0 %v1283
        %2339 = vmatprep.subr.mxu0 0.0
        %2340 = vmatpush1.msra.mxu0 %v1289
        %2341 = vmatprep.subr.mxu0 0.0
        %2342 = vmatpush1.msra.mxu0 %v1295
        %2343 = vmatprep.subr.mxu0 0.0
        %2344 = vmatpush1.msra.mxu0 0.0
        %2345 = vmatprep.subr.mxu0 0.0
        %2346 = vmatpush1.msra.mxu0 0.0
        %2347 = vmatprep.subr.mxu0 0.0
        %2348 = vmatpush1.msra.mxu0 0.0
        %2349 = vmatprep.subr.mxu0 0.0
        %2350 = vmatpush1.msra.mxu0 0.0
        %2351 = vmatprep.subr.mxu0 0.0
        %2352 = vmatpush1.msra.mxu0 0.0
        %2353 = vmatprep.subr.mxu0 0.0
        %2354 = vmatpush1.msra.mxu0 0.0
        %2355 = vmatprep.subr.mxu0 0.0
        %2356 = vmatpush1.msra.mxu0 0.0
        %2357 = vmatprep.subr.mxu0 0.0
        %2358 = vmatpush1.msra.mxu0 0.0
        %2359 = vmatprep.subr.mxu0 0.0
        %2360 = vmatpush1.msra.mxu0 0.0
        %2361 = vmatprep.subr.mxu0 0.0
        %2362 = vmatpush1.msra.mxu0 0.0
        %2363 = vmatprep.subr.mxu0 0.0
        %2364 = vmatpush1.msra.mxu0 0.0
        %2365 = vmatprep.subr.mxu0 0.0
        %2366 = vmatpush1.msra.mxu0 0.0
        %2367 = vmatprep.subr.mxu0 0.0
        %2368 = vmatpush1.msra.mxu0 0.0
        %2369 = vmatprep.subr.mxu0 0.0
        %2370 = vmatpush1.msra.mxu0 0.0
        %2371 = vmatprep.subr.mxu0 0.0
        %2372 = vmatpush1.msra.mxu0 0.0
        %2373 = vmatprep.subr.mxu0 0.0
        %2374 = vmatpush1.msra.mxu0 0.0
        %2375 = vmatprep.mubr.f32.mxu0 0.0
        %2376 = vmatmul.mubr.f32.gmra.mrb[0].mxu0 %v1669
        %v2377 = vpop.f32.mrb[0].mxu0
        %v2378 = vadd.f32 %v2233, %v2377
        %v2379 = vpop.f32.mrb[0].mxu0
        %2380 = vmatprep.mubr.f32.mxu0 0.0
        %2381 = vmatmul.mubr.f32.gmra.mrb[0].mxu0 %v1670
        %v2382 = vpop.f32.mrb[0].mxu0
        %v2383 = vadd.f32 %v2238, %v2382
        %v2384 = vpop.f32.mrb[0].mxu0
        %2385 = vmatprep.mubr.f32.mxu0 0.0
        %2386 = vmatmul.mubr.f32.gmra.mrb[0].mxu0 %v1671
        %v2387 = vpop.f32.mrb[0].mxu0
        %v2388 = vadd.f32 %v2243, %v2387
        %v2389 = vpop.f32.mrb[0].mxu0
        %2390 = vmatprep.mubr.f32.mxu0 0.0
        %2391 = vmatmul.mubr.f32.gmra.mrb[0].mxu0 %v1672
        %v2392 = vpop.f32.mrb[0].mxu0
        %v2393 = vadd.f32 %v2248, %v2392
        %v2394 = vpop.f32.mrb[0].mxu0
        %2395 = vmatprep.mubr.f32.mxu0 0.0
        %2396 = vmatmul.mubr.f32.gmra.mrb[0].mxu0 %v1673
        %v2397 = vpop.f32.mrb[0].mxu0
        %v2398 = vadd.f32 %v2253, %v2397
        %v2399 = vpop.f32.mrb[0].mxu0
        %2400 = vmatprep.mubr.f32.mxu0 0.0
        %2401 = vmatmul.mubr.f32.gmra.mrb[0].mxu0 %v1674
        %v2402 = vpop.f32.mrb[0].mxu0
        %v2403 = vadd.f32 %v2258, %v2402
        %v2404 = vpop.f32.mrb[0].mxu0
        %2405 = vmatprep.mubr.f32.mxu0 0.0
        %2406 = vmatmul.mubr.f32.gmra.mrb[0].mxu0 %v1675
        %v2407 = vpop.f32.mrb[0].mxu0
        %v2408 = vadd.f32 %v2263, %v2407
        %v2409 = vpop.f32.mrb[0].mxu0
        %2410 = vmatprep.mubr.f32.mxu0 0.0
        %2411 = vmatmul.mubr.f32.gmra.mrb[0].mxu0 %v1676
        %v2412 = vpop.f32.mrb[0].mxu0
        %v2413 = vadd.f32 %v2268, %v2412
        %v2414 = vpop.f32.mrb[0].mxu0
        %2415 = vmatprep.mubr.f32.mxu0 0.0
        %2416 = vmatmul.mubr.f32.gmra.mrb[0].mxu0 %v1677
        %v2417 = vpop.f32.mrb[0].mxu0
        %v2418 = vadd.f32 %v2273, %v2417
        %v2419 = vpop.f32.mrb[0].mxu0
        %2420 = vmatprep.mubr.f32.mxu0 0.0
        %2421 = vmatmul.mubr.f32.gmra.mrb[0].mxu0 %v1678
        %v2422 = vpop.f32.mrb[0].mxu0
        %v2423 = vadd.f32 %v2278, %v2422
        %v2424 = vpop.f32.mrb[0].mxu0
        %2425 = vmatprep.mubr.f32.mxu0 0.0
        %2426 = vmatmul.mubr.f32.gmra.mrb[0].mxu0 %v1679
        %v2427 = vpop.f32.mrb[0].mxu0
        %v2428 = vadd.f32 %v2283, %v2427
        %v2429 = vpop.f32.mrb[0].mxu0
        %2430 = vmatprep.mubr.f32.mxu0 0.0
        %2431 = vmatmul.mubr.f32.gmra.mrb[0].mxu0 %v1680
        %v2432 = vpop.f32.mrb[0].mxu0
        %v2433 = vadd.f32 %v2288, %v2432
        %v2434 = vpop.f32.mrb[0].mxu0
        %2435 = vmatprep.mubr.f32.mxu0 0.0
        %2436 = vmatmul.mubr.f32.gmra.mrb[0].mxu0 %v1681
        %v2437 = vpop.f32.mrb[0].mxu0
        %v2438 = vadd.f32 %v2293, %v2437
        %v2439 = vpop.f32.mrb[0].mxu0
        %2440 = vmatprep.mubr.f32.mxu0 0.0
        %2441 = vmatmul.mubr.f32.gmra.mrb[0].mxu0 %v1682
        %v2442 = vpop.f32.mrb[0].mxu0
        %v2443 = vadd.f32 %v2298, %v2442
        %v2444 = vpop.f32.mrb[0].mxu0
        %2445 = vmatprep.mubr.f32.mxu0 0.0
        %2446 = vmatmul.mubr.f32.gmra.mrb[0].mxu0 %v1683
        %v2447 = vpop.f32.mrb[0].mxu0
        %v2448 = vadd.f32 %v2303, %v2447
        %v2449 = vpop.f32.mrb[0].mxu0
        %2450 = vmatprep.mubr.f32.mxu0 0.0
        %2451 = vmatmul.mubr.f32.gmra.mrb[0].mxu0 %v1684
        %v2452 = vpop.f32.mrb[0].mxu0
        %v2453 = vadd.f32 %v2308, %v2452
        %v2454 = vpop.f32.mrb[0].mxu0
        %2455 = vdwg.mxu0
        %2456 = vrot.lane.b32.xlu0 %v885, 96
        %v2457 = vpop.permute.xlu0 %2456
        %2458 = vrot.lane.b32.xlu0 %v890, 96
        %v2459 = vpop.permute.xlu0 %2458
        %2460 = vrot.lane.b32.xlu0 %v895, 96
        %v2461 = vpop.permute.xlu0 %2460
        %2462 = vrot.lane.b32.xlu0 %v900, 96
        %v2463 = vpop.permute.xlu0 %2462
        %2464 = vrot.lane.b32.xlu0 %v905, 96
        %v2465 = vpop.permute.xlu0 %2464
        %2466 = vrot.lane.b32.xlu0 %v910, 96
        %v2467 = vpop.permute.xlu0 %2466
        %2468 = vrot.lane.b32.xlu0 %v915, 96
        %v2469 = vpop.permute.xlu0 %2468
        %2470 = vrot.lane.b32.xlu0 %v920, 96
        %v2471 = vpop.permute.xlu0 %2470
        %2472 = vrot.lane.b32.xlu0 %v925, 96
        %v2473 = vpop.permute.xlu0 %2472
        %2474 = vrot.lane.b32.xlu0 %v930, 96
        %v2475 = vpop.permute.xlu0 %2474
        %2476 = vrot.lane.b32.xlu0 %v935, 96
        %v2477 = vpop.permute.xlu0 %2476
        %2478 = vrot.lane.b32.xlu0 %v940, 96
        %v2479 = vpop.permute.xlu0 %2478
        %2480 = vrot.lane.b32.xlu0 %v945, 96
        %v2481 = vpop.permute.xlu0 %2480
        %2482 = vrot.lane.b32.xlu0 %v950, 96
        %v2483 = vpop.permute.xlu0 %2482
        %2484 = vrot.lane.b32.xlu0 %v955, 96
        %v2485 = vpop.permute.xlu0 %2484
        %2486 = vrot.lane.b32.xlu0 %v960, 96
        %v2487 = vpop.permute.xlu0 %2486
        %2488 = vrot.lane.b32.xlu0 %v1044, 96
        %v2489 = vpop.permute.xlu0 %2488
        %2490 = vrot.lane.b32.xlu0 %v1049, 96
        %v2491 = vpop.permute.xlu0 %2490
        %2492 = vrot.lane.b32.xlu0 %v1054, 96
        %v2493 = vpop.permute.xlu0 %2492
        %2494 = vrot.lane.b32.xlu0 %v1059, 96
        %v2495 = vpop.permute.xlu0 %2494
        %2496 = vrot.lane.b32.xlu0 %v1064, 96
        %v2497 = vpop.permute.xlu0 %2496
        %2498 = vrot.lane.b32.xlu0 %v1069, 96
        %v2499 = vpop.permute.xlu0 %2498
        %2500 = vrot.lane.b32.xlu0 %v1074, 96
        %v2501 = vpop.permute.xlu0 %2500
        %2502 = vrot.lane.b32.xlu0 %v1079, 96
        %v2503 = vpop.permute.xlu0 %2502
        %2504 = vrot.lane.b32.xlu0 %v1084, 96
        %v2505 = vpop.permute.xlu0 %2504
        %2506 = vrot.lane.b32.xlu0 %v1089, 96
        %v2507 = vpop.permute.xlu0 %2506
        %2508 = vrot.lane.b32.xlu0 %v1094, 96
        %v2509 = vpop.permute.xlu0 %2508
        %2510 = vrot.lane.b32.xlu0 %v1099, 96
        %v2511 = vpop.permute.xlu0 %2510
        %2512 = vrot.lane.b32.xlu0 %v1104, 96
        %v2513 = vpop.permute.xlu0 %2512
        %2514 = vrot.lane.b32.xlu0 %v1109, 96
        %v2515 = vpop.permute.xlu0 %2514
        %2516 = vrot.lane.b32.xlu0 %v1114, 96
        %v2517 = vpop.permute.xlu0 %2516
        %2518 = vrot.lane.b32.xlu0 %v1119, 96
        %v2519 = vpop.permute.xlu0 %2518
        %v2520 = vsel %vm1299, %v2457, 0
        %v2522 = vsel %vm1299, %v2459, 0
        %v2524 = vsel %vm1299, %v2461, 0
        %v2526 = vsel %vm1299, %v2463, 0
        %v2528 = vsel %vm1299, %v2465, 0
        %v2530 = vsel %vm1299, %v2467, 0
        %v2532 = vsel %vm1299, %v2469, 0
        %v2534 = vsel %vm1299, %v2471, 0
        %v2536 = vsel %vm1299, %v2473, 0
        %v2538 = vsel %vm1299, %v2475, 0
        %v2540 = vsel %vm1299, %v2477, 0
        %v2542 = vsel %vm1299, %v2479, 0
        %v2544 = vsel %vm1299, %v2481, 0
        %v2546 = vsel %vm1299, %v2483, 0
        %v2548 = vsel %vm1299, %v2485, 0
        %v2550 = vsel %vm1299, %v2487, 0
        %v2552 = vsel %vm1299, %v2489, 0
        %v2554 = vsel %vm1299, %v2491, 0
        %v2556 = vsel %vm1299, %v2493, 0
        %v2558 = vsel %vm1299, %v2495, 0
        %v2560 = vsel %vm1299, %v2497, 0
        %v2562 = vsel %vm1299, %v2499, 0
        %v2564 = vsel %vm1299, %v2501, 0
        %v2566 = vsel %vm1299, %v2503, 0
        %v2568 = vsel %vm1299, %v2505, 0
        %v2570 = vsel %vm1299, %v2507, 0
        %v2572 = vsel %vm1299, %v2509, 0
        %v2574 = vsel %vm1299, %v2511, 0
        %v2576 = vsel %vm1299, %v2513, 0
        %v2578 = vsel %vm1299, %v2515, 0
        %v2580 = vsel %vm1299, %v2517, 0
        %v2582 = vsel %vm1299, %v2519, 0
        %2584 = vmatprep.subr.mxu0 0.0
        %2585 = vmatpush1.xpose.msra.mxu0 %v2552
        %2586 = vmatprep.subr.mxu0 0.0
        %2587 = vmatpush1.xpose.msra.mxu0 %v2554
        %2588 = vmatprep.subr.mxu0 0.0
        %2589 = vmatpush1.xpose.msra.mxu0 %v2556
        %2590 = vmatprep.subr.mxu0 0.0
        %2591 = vmatpush1.xpose.msra.mxu0 %v2558
        %2592 = vmatprep.subr.mxu0 0.0
        %2593 = vmatpush1.xpose.msra.mxu0 %v2560
        %2594 = vmatprep.subr.mxu0 0.0
        %2595 = vmatpush1.xpose.msra.mxu0 %v2562
        %2596 = vmatprep.subr.mxu0 0.0
        %2597 = vmatpush1.xpose.msra.mxu0 %v2564
        %2598 = vmatprep.subr.mxu0 0.0
        %2599 = vmatpush1.xpose.msra.mxu0 %v2566
        %2600 = vmatprep.subr.mxu0 0.0
        %2601 = vmatpush1.xpose.msra.mxu0 %v2568
        %2602 = vmatprep.subr.mxu0 0.0
        %2603 = vmatpush1.xpose.msra.mxu0 %v2570
        %2604 = vmatprep.subr.mxu0 0.0
        %2605 = vmatpush1.xpose.msra.mxu0 %v2572
        %2606 = vmatprep.subr.mxu0 0.0
        %2607 = vmatpush1.xpose.msra.mxu0 %v2574
        %2608 = vmatprep.subr.mxu0 0.0
        %2609 = vmatpush1.xpose.msra.mxu0 %v2576
        %2610 = vmatprep.subr.mxu0 0.0
        %2611 = vmatpush1.xpose.msra.mxu0 %v2578
        %2612 = vmatprep.subr.mxu0 0.0
        %2613 = vmatpush1.xpose.msra.mxu0 %v2580
        %2614 = vmatprep.subr.mxu0 0.0
        %2615 = vmatpush1.xpose.msra.mxu0 %v2582
        %2616 = vmatprep.subr.mxu0 0.0
        %2617 = vmatpush1.xpose.msra.mxu0 0.0
        %2618 = vmatprep.subr.mxu0 0.0
        %2619 = vmatpush1.xpose.msra.mxu0 0.0
        %2620 = vmatprep.subr.mxu0 0.0
        %2621 = vmatpush1.xpose.msra.mxu0 0.0
        %2622 = vmatprep.subr.mxu0 0.0
        %2623 = vmatpush1.xpose.msra.mxu0 0.0
        %2624 = vmatprep.subr.mxu0 0.0
        %2625 = vmatpush1.xpose.msra.mxu0 0.0
        %2626 = vmatprep.subr.mxu0 0.0
        %2627 = vmatpush1.xpose.msra.mxu0 0.0
        %2628 = vmatprep.subr.mxu0 0.0
        %2629 = vmatpush1.xpose.msra.mxu0 0.0
        %2630 = vmatprep.subr.mxu0 0.0
        %2631 = vmatpush1.xpose.msra.mxu0 0.0
        %2632 = vmatprep.subr.mxu0 0.0
        %2633 = vmatpush1.xpose.msra.mxu0 0.0
        %2634 = vmatprep.subr.mxu0 0.0
        %2635 = vmatpush1.xpose.msra.mxu0 0.0
        %2636 = vmatprep.subr.mxu0 0.0
        %2637 = vmatpush1.xpose.msra.mxu0 0.0
        %2638 = vmatprep.subr.mxu0 0.0
        %2639 = vmatpush1.xpose.msra.mxu0 0.0
        %2640 = vmatprep.subr.mxu0 0.0
        %2641 = vmatpush1.xpose.msra.mxu0 0.0
        %2642 = vmatprep.subr.mxu0 0.0
        %2643 = vmatpush1.xpose.msra.mxu0 0.0
        %2644 = vmatprep.subr.mxu0 0.0
        %2645 = vmatpush1.xpose.msra.mxu0 0.0
        %2646 = vmatprep.subr.mxu0 0.0
        %2647 = vmatpush1.xpose.msra.mxu0 0.0
        %2648 = vmatprep.mubr.f32.mxu0 0.0
        %2649 = vmatmul.mubr.f32.gmra.mrb[0].mxu0 %v2520
        %v2650 = vpop.f32.mrb[0].mxu0
        %v2651 = vadd.f32 %v581, %v2650
        %v2652 = vpop.f32.mrb[0].mxu0
        %2653 = vmatprep.mubr.f32.mxu0 0.0
        %2654 = vmatmul.mubr.f32.gmra.mrb[0].mxu0 %v2522
        %v2655 = vpop.f32.mrb[0].mxu0
        %v2656 = vadd.f32 %v582, %v2655
        %v2657 = vpop.f32.mrb[0].mxu0
        %2658 = vmatprep.mubr.f32.mxu0 0.0
        %2659 = vmatmul.mubr.f32.gmra.mrb[0].mxu0 %v2524
        %v2660 = vpop.f32.mrb[0].mxu0
        %v2661 = vadd.f32 %v583, %v2660
        %v2662 = vpop.f32.mrb[0].mxu0
        %2663 = vmatprep.mubr.f32.mxu0 0.0
        %2664 = vmatmul.mubr.f32.gmra.mrb[0].mxu0 %v2526
        %v2665 = vpop.f32.mrb[0].mxu0
        %v2666 = vadd.f32 %v584, %v2665
        %v2667 = vpop.f32.mrb[0].mxu0
        %2668 = vmatprep.mubr.f32.mxu0 0.0
        %2669 = vmatmul.mubr.f32.gmra.mrb[0].mxu0 %v2528
        %v2670 = vpop.f32.mrb[0].mxu0
        %v2671 = vadd.f32 %v585, %v2670
        %v2672 = vpop.f32.mrb[0].mxu0
        %2673 = vmatprep.mubr.f32.mxu0 0.0
        %2674 = vmatmul.mubr.f32.gmra.mrb[0].mxu0 %v2530
        %v2675 = vpop.f32.mrb[0].mxu0
        %v2676 = vadd.f32 %v586, %v2675
        %v2677 = vpop.f32.mrb[0].mxu0
        %2678 = vmatprep.mubr.f32.mxu0 0.0
        %2679 = vmatmul.mubr.f32.gmra.mrb[0].mxu0 %v2532
        %v2680 = vpop.f32.mrb[0].mxu0
        %v2681 = vadd.f32 %v587, %v2680
        %v2682 = vpop.f32.mrb[0].mxu0
        %2683 = vmatprep.mubr.f32.mxu0 0.0
        %2684 = vmatmul.mubr.f32.gmra.mrb[0].mxu0 %v2534
        %v2685 = vpop.f32.mrb[0].mxu0
        %v2686 = vadd.f32 %v588, %v2685
        %v2687 = vpop.f32.mrb[0].mxu0
        %2688 = vmatprep.mubr.f32.mxu0 0.0
        %2689 = vmatmul.mubr.f32.gmra.mrb[0].mxu0 %v2536
        %v2690 = vpop.f32.mrb[0].mxu0
        %v2691 = vadd.f32 %v589, %v2690
        %v2692 = vpop.f32.mrb[0].mxu0
        %2693 = vmatprep.mubr.f32.mxu0 0.0
        %2694 = vmatmul.mubr.f32.gmra.mrb[0].mxu0 %v2538
        %v2695 = vpop.f32.mrb[0].mxu0
        %v2696 = vadd.f32 %v590, %v2695
        %v2697 = vpop.f32.mrb[0].mxu0
        %2698 = vmatprep.mubr.f32.mxu0 0.0
        %2699 = vmatmul.mubr.f32.gmra.mrb[0].mxu0 %v2540
        %v2700 = vpop.f32.mrb[0].mxu0
        %v2701 = vadd.f32 %v591, %v2700
        %v2702 = vpop.f32.mrb[0].mxu0
        %2703 = vmatprep.mubr.f32.mxu0 0.0
        %2704 = vmatmul.mubr.f32.gmra.mrb[0].mxu0 %v2542
        %v2705 = vpop.f32.mrb[0].mxu0
        %v2706 = vadd.f32 %v592, %v2705
        %v2707 = vpop.f32.mrb[0].mxu0
        %2708 = vmatprep.mubr.f32.mxu0 0.0
        %2709 = vmatmul.mubr.f32.gmra.mrb[0].mxu0 %v2544
        %v2710 = vpop.f32.mrb[0].mxu0
        %v2711 = vadd.f32 %v593, %v2710
        %v2712 = vpop.f32.mrb[0].mxu0
        %2713 = vmatprep.mubr.f32.mxu0 0.0
        %2714 = vmatmul.mubr.f32.gmra.mrb[0].mxu0 %v2546
        %v2715 = vpop.f32.mrb[0].mxu0
        %v2716 = vadd.f32 %v594, %v2715
        %v2717 = vpop.f32.mrb[0].mxu0
        %2718 = vmatprep.mubr.f32.mxu0 0.0
        %2719 = vmatmul.mubr.f32.gmra.mrb[0].mxu0 %v2548
        %v2720 = vpop.f32.mrb[0].mxu0
        %v2721 = vadd.f32 %v595, %v2720
        %v2722 = vpop.f32.mrb[0].mxu0
        %2723 = vmatprep.mubr.f32.mxu0 0.0
        %2724 = vmatmul.mubr.f32.gmra.mrb[0].mxu0 %v2550
        %v2725 = vpop.f32.mrb[0].mxu0
        %v2726 = vadd.f32 %v596, %v2725
        %v2727 = vpop.f32.mrb[0].mxu0
        %2728 = vdwg.mxu0
        %2729 = vmax.xlane.f32.xlu0 %v2651
        %v2730 = vpop.xlane.xlu0 %2729
        %2731 = vmax.xlane.f32.xlu0 %v2656
        %v2732 = vpop.xlane.xlu0 %2731
        %2733 = vmax.xlane.f32.xlu0 %v2661
        %v2734 = vpop.xlane.xlu0 %2733
        %2735 = vmax.xlane.f32.xlu0 %v2666
        %v2736 = vpop.xlane.xlu0 %2735
        %2737 = vmax.xlane.f32.xlu0 %v2671
        %v2738 = vpop.xlane.xlu0 %2737
        %2739 = vmax.xlane.f32.xlu0 %v2676
        %v2740 = vpop.xlane.xlu0 %2739
        %2741 = vmax.xlane.f32.xlu0 %v2681
        %v2742 = vpop.xlane.xlu0 %2741
        %2743 = vmax.xlane.f32.xlu0 %v2686
        %v2744 = vpop.xlane.xlu0 %2743
        %2745 = vmax.xlane.f32.xlu0 %v2691
        %v2746 = vpop.xlane.xlu0 %2745
        %2747 = vmax.xlane.f32.xlu0 %v2696
        %v2748 = vpop.xlane.xlu0 %2747
        %2749 = vmax.xlane.f32.xlu0 %v2701
        %v2750 = vpop.xlane.xlu0 %2749
        %2751 = vmax.xlane.f32.xlu0 %v2706
        %v2752 = vpop.xlane.xlu0 %2751
        %2753 = vmax.xlane.f32.xlu0 %v2711
        %v2754 = vpop.xlane.xlu0 %2753
        %2755 = vmax.xlane.f32.xlu0 %v2716
        %v2756 = vpop.xlane.xlu0 %2755
        %2757 = vmax.xlane.f32.xlu0 %v2721
        %v2758 = vpop.xlane.xlu0 %2757
        %2759 = vmax.xlane.f32.xlu0 %v2726
        %v2760 = vpop.xlane.xlu0 %2759
        %v2761 = vsub.f32 %v2651, %v2730
        %v2762 = vsub.f32 %v2656, %v2732
        %v2763 = vsub.f32 %v2661, %v2734
        %v2764 = vsub.f32 %v2666, %v2736
        %v2765 = vsub.f32 %v2671, %v2738
        %v2766 = vsub.f32 %v2676, %v2740
        %v2767 = vsub.f32 %v2681, %v2742
        %v2768 = vsub.f32 %v2686, %v2744
        %v2769 = vsub.f32 %v2691, %v2746
        %v2770 = vsub.f32 %v2696, %v2748
        %v2771 = vsub.f32 %v2701, %v2750
        %v2772 = vsub.f32 %v2706, %v2752
        %v2773 = vsub.f32 %v2711, %v2754
        %v2774 = vsub.f32 %v2716, %v2756
        %v2775 = vsub.f32 %v2721, %v2758
        %v2776 = vsub.f32 %v2726, %v2760
        %v2777 = vmul.f32 %v2761, 1.442695
        %v2778 = vpow.pop %v2777
        %v2779 = vmul.f32 %v2762, 1.442695
        %v2780 = vpow.pop %v2779
        %v2781 = vmul.f32 %v2763, 1.442695
        %v2782 = vpow.pop %v2781
        %v2783 = vmul.f32 %v2764, 1.442695
        %v2784 = vpow.pop %v2783
        %v2785 = vmul.f32 %v2765, 1.442695
        %v2786 = vpow.pop %v2785
        %v2787 = vmul.f32 %v2766, 1.442695
        %v2788 = vpow.pop %v2787
        %v2789 = vmul.f32 %v2767, 1.442695
        %v2790 = vpow.pop %v2789
        %v2791 = vmul.f32 %v2768, 1.442695
        %v2792 = vpow.pop %v2791
        %v2793 = vmul.f32 %v2769, 1.442695
        %v2794 = vpow.pop %v2793
        %v2795 = vmul.f32 %v2770, 1.442695
        %v2796 = vpow.pop %v2795
        %v2797 = vmul.f32 %v2771, 1.442695
        %v2798 = vpow.pop %v2797
        %v2799 = vmul.f32 %v2772, 1.442695
        %v2800 = vpow.pop %v2799
        %v2801 = vmul.f32 %v2773, 1.442695
        %v2802 = vpow.pop %v2801
        %v2803 = vmul.f32 %v2774, 1.442695
        %v2804 = vpow.pop %v2803
        %v2805 = vmul.f32 %v2775, 1.442695
        %v2806 = vpow.pop %v2805
        %v2807 = vmul.f32 %v2776, 1.442695
        %v2808 = vpow.pop %v2807
        %2809 = vadd.xlane.f32.xlu0 %v2778
        %v2810 = vpop.xlane.xlu0 %2809
        %2811 = vadd.xlane.f32.xlu0 %v2780
        %v2812 = vpop.xlane.xlu0 %2811
        %2813 = vadd.xlane.f32.xlu0 %v2782
        %v2814 = vpop.xlane.xlu0 %2813
        %2815 = vadd.xlane.f32.xlu0 %v2784
        %v2816 = vpop.xlane.xlu0 %2815
        %2817 = vadd.xlane.f32.xlu0 %v2786
        %v2818 = vpop.xlane.xlu0 %2817
        %2819 = vadd.xlane.f32.xlu0 %v2788
        %v2820 = vpop.xlane.xlu0 %2819
        %2821 = vadd.xlane.f32.xlu0 %v2790
        %v2822 = vpop.xlane.xlu0 %2821
        %2823 = vadd.xlane.f32.xlu0 %v2792
        %v2824 = vpop.xlane.xlu0 %2823
        %2825 = vadd.xlane.f32.xlu0 %v2794
        %v2826 = vpop.xlane.xlu0 %2825
        %2827 = vadd.xlane.f32.xlu0 %v2796
        %v2828 = vpop.xlane.xlu0 %2827
        %2829 = vadd.xlane.f32.xlu0 %v2798
        %v2830 = vpop.xlane.xlu0 %2829
        %2831 = vadd.xlane.f32.xlu0 %v2800
        %v2832 = vpop.xlane.xlu0 %2831
        %2833 = vadd.xlane.f32.xlu0 %v2802
        %v2834 = vpop.xlane.xlu0 %2833
        %2835 = vadd.xlane.f32.xlu0 %v2804
        %v2836 = vpop.xlane.xlu0 %2835
        %2837 = vadd.xlane.f32.xlu0 %v2806
        %v2838 = vpop.xlane.xlu0 %2837
        %2839 = vadd.xlane.f32.xlu0 %v2808
        %v2840 = vpop.xlane.xlu0 %2839
        %v2841 = vrcp.pop %v2810
        %v2842 = vrcp.pop %v2812
        %v2843 = vrcp.pop %v2814
        %v2844 = vrcp.pop %v2816
        %v2845 = vrcp.pop %v2818
        %v2846 = vrcp.pop %v2820
        %v2847 = vrcp.pop %v2822
        %v2848 = vrcp.pop %v2824
        %v2849 = vrcp.pop %v2826
        %v2850 = vrcp.pop %v2828
        %v2851 = vrcp.pop %v2830
        %v2852 = vrcp.pop %v2832
        %v2853 = vrcp.pop %v2834
        %v2854 = vrcp.pop %v2836
        %v2855 = vrcp.pop %v2838
        %v2856 = vrcp.pop %v2840
        %v2857 = vmul.f32 %v2778, %v2841
        %v2858 = vmul.f32 %v2780, %v2842
        %v2859 = vmul.f32 %v2782, %v2843
        %v2860 = vmul.f32 %v2784, %v2844
        %v2861 = vmul.f32 %v2786, %v2845
        %v2862 = vmul.f32 %v2788, %v2846
        %v2863 = vmul.f32 %v2790, %v2847
        %v2864 = vmul.f32 %v2792, %v2848
        %v2865 = vmul.f32 %v2794, %v2849
        %v2866 = vmul.f32 %v2796, %v2850
        %v2867 = vmul.f32 %v2798, %v2851
        %v2868 = vmul.f32 %v2800, %v2852
        %v2869 = vmul.f32 %v2802, %v2853
        %v2870 = vmul.f32 %v2804, %v2854
        %v2871 = vmul.f32 %v2806, %v2855
        %v2872 = vmul.f32 %v2808, %v2856
        %2873 = vmatprep.subr.mxu0 0.0
        %2874 = vmatpush1.msra.mxu0 %v1207
        %2875 = vmatprep.subr.mxu0 0.0
        %2876 = vmatpush1.msra.mxu0 %v1213
        %2877 = vmatprep.subr.mxu0 0.0
        %2878 = vmatpush1.msra.mxu0 %v1219
        %2879 = vmatprep.subr.mxu0 0.0
        %2880 = vmatpush1.msra.mxu0 %v1225
        %2881 = vmatprep.subr.mxu0 0.0
        %2882 = vmatpush1.msra.mxu0 %v1231
        %2883 = vmatprep.subr.mxu0 0.0
        %2884 = vmatpush1.msra.mxu0 %v1237
        %2885 = vmatprep.subr.mxu0 0.0
        %2886 = vmatpush1.msra.mxu0 %v1243
        %2887 = vmatprep.subr.mxu0 0.0
        %2888 = vmatpush1.msra.mxu0 %v1249
        %2889 = vmatprep.subr.mxu0 0.0
        %2890 = vmatpush1.msra.mxu0 %v1255
        %2891 = vmatprep.subr.mxu0 0.0
        %2892 = vmatpush1.msra.mxu0 %v1261
        %2893 = vmatprep.subr.mxu0 0.0
        %2894 = vmatpush1.msra.mxu0 %v1267
        %2895 = vmatprep.subr.mxu0 0.0
        %2896 = vmatpush1.msra.mxu0 %v1273
        %2897 = vmatprep.subr.mxu0 0.0
        %2898 = vmatpush1.msra.mxu0 %v1279
        %2899 = vmatprep.subr.mxu0 0.0
        %2900 = vmatpush1.msra.mxu0 %v1285
        %2901 = vmatprep.subr.mxu0 0.0
        %2902 = vmatpush1.msra.mxu0 %v1291
        %2903 = vmatprep.subr.mxu0 0.0
        %2904 = vmatpush1.msra.mxu0 %v1297
        %2905 = vmatprep.subr.mxu0 0.0
        %2906 = vmatpush1.msra.mxu0 0.0
        %2907 = vmatprep.subr.mxu0 0.0
        %2908 = vmatpush1.msra.mxu0 0.0
        %2909 = vmatprep.subr.mxu0 0.0
        %2910 = vmatpush1.msra.mxu0 0.0
        %2911 = vmatprep.subr.mxu0 0.0
        %2912 = vmatpush1.msra.mxu0 0.0
        %2913 = vmatprep.subr.mxu0 0.0
        %2914 = vmatpush1.msra.mxu0 0.0
        %2915 = vmatprep.subr.mxu0 0.0
        %2916 = vmatpush1.msra.mxu0 0.0
        %2917 = vmatprep.subr.mxu0 0.0
        %2918 = vmatpush1.msra.mxu0 0.0
        %2919 = vmatprep.subr.mxu0 0.0
        %2920 = vmatpush1.msra.mxu0 0.0
        %2921 = vmatprep.subr.mxu0 0.0
        %2922 = vmatpush1.msra.mxu0 0.0
        %2923 = vmatprep.subr.mxu0 0.0
        %2924 = vmatpush1.msra.mxu0 0.0
        %2925 = vmatprep.subr.mxu0 0.0
        %2926 = vmatpush1.msra.mxu0 0.0
        %2927 = vmatprep.subr.mxu0 0.0
        %2928 = vmatpush1.msra.mxu0 0.0
        %2929 = vmatprep.subr.mxu0 0.0
        %2930 = vmatpush1.msra.mxu0 0.0
        %2931 = vmatprep.subr.mxu0 0.0
        %2932 = vmatpush1.msra.mxu0 0.0
        %2933 = vmatprep.subr.mxu0 0.0
        %2934 = vmatpush1.msra.mxu0 0.0
        %2935 = vmatprep.subr.mxu0 0.0
        %2936 = vmatpush1.msra.mxu0 0.0
        %2937 = vmatprep.mubr.f32.mxu0 0.0
        %2938 = vmatmul.mubr.f32.gmra.mrb[0].mxu0 %v2857
        %v2939 = vpop.f32.mrb[0].mxu0
        %v2940 = vadd.f32 0.0, %v2939
        %v2941 = vpop.f32.mrb[0].mxu0
        %2942 = vmatprep.mubr.f32.mxu0 0.0
        %2943 = vmatmul.mubr.f32.gmra.mrb[0].mxu0 %v2858
        %v2944 = vpop.f32.mrb[0].mxu0
        %v2945 = vadd.f32 0.0, %v2944
        %v2946 = vpop.f32.mrb[0].mxu0
        %2947 = vmatprep.mubr.f32.mxu0 0.0
        %2948 = vmatmul.mubr.f32.gmra.mrb[0].mxu0 %v2859
        %v2949 = vpop.f32.mrb[0].mxu0
        %v2950 = vadd.f32 0.0, %v2949
        %v2951 = vpop.f32.mrb[0].mxu0
        %2952 = vmatprep.mubr.f32.mxu0 0.0
        %2953 = vmatmul.mubr.f32.gmra.mrb[0].mxu0 %v2860
        %v2954 = vpop.f32.mrb[0].mxu0
        %v2955 = vadd.f32 0.0, %v2954
        %v2956 = vpop.f32.mrb[0].mxu0
        %2957 = vmatprep.mubr.f32.mxu0 0.0
        %2958 = vmatmul.mubr.f32.gmra.mrb[0].mxu0 %v2861
        %v2959 = vpop.f32.mrb[0].mxu0
        %v2960 = vadd.f32 0.0, %v2959
        %v2961 = vpop.f32.mrb[0].mxu0
        %2962 = vmatprep.mubr.f32.mxu0 0.0
        %2963 = vmatmul.mubr.f32.gmra.mrb[0].mxu0 %v2862
        %v2964 = vpop.f32.mrb[0].mxu0
        %v2965 = vadd.f32 0.0, %v2964
        %v2966 = vpop.f32.mrb[0].mxu0
        %2967 = vmatprep.mubr.f32.mxu0 0.0
        %2968 = vmatmul.mubr.f32.gmra.mrb[0].mxu0 %v2863
        %v2969 = vpop.f32.mrb[0].mxu0
        %v2970 = vadd.f32 0.0, %v2969
        %v2971 = vpop.f32.mrb[0].mxu0
        %2972 = vmatprep.mubr.f32.mxu0 0.0
        %2973 = vmatmul.mubr.f32.gmra.mrb[0].mxu0 %v2864
        %v2974 = vpop.f32.mrb[0].mxu0
        %v2975 = vadd.f32 0.0, %v2974
        %v2976 = vpop.f32.mrb[0].mxu0
        %2977 = vmatprep.mubr.f32.mxu0 0.0
        %2978 = vmatmul.mubr.f32.gmra.mrb[0].mxu0 %v2865
        %v2979 = vpop.f32.mrb[0].mxu0
        %v2980 = vadd.f32 0.0, %v2979
        %v2981 = vpop.f32.mrb[0].mxu0
        %2982 = vmatprep.mubr.f32.mxu0 0.0
        %2983 = vmatmul.mubr.f32.gmra.mrb[0].mxu0 %v2866
        %v2984 = vpop.f32.mrb[0].mxu0
        %v2985 = vadd.f32 0.0, %v2984
        %v2986 = vpop.f32.mrb[0].mxu0
        %2987 = vmatprep.mubr.f32.mxu0 0.0
        %2988 = vmatmul.mubr.f32.gmra.mrb[0].mxu0 %v2867
        %v2989 = vpop.f32.mrb[0].mxu0
        %v2990 = vadd.f32 0.0, %v2989
        %v2991 = vpop.f32.mrb[0].mxu0
        %2992 = vmatprep.mubr.f32.mxu0 0.0
        %2993 = vmatmul.mubr.f32.gmra.mrb[0].mxu0 %v2868
        %v2994 = vpop.f32.mrb[0].mxu0
        %v2995 = vadd.f32 0.0, %v2994
        %v2996 = vpop.f32.mrb[0].mxu0
        %2997 = vmatprep.mubr.f32.mxu0 0.0
        %2998 = vmatmul.mubr.f32.gmra.mrb[0].mxu0 %v2869
        %v2999 = vpop.f32.mrb[0].mxu0
        %v3000 = vadd.f32 0.0, %v2999
        %v3001 = vpop.f32.mrb[0].mxu0
        %3002 = vmatprep.mubr.f32.mxu0 0.0
        %3003 = vmatmul.mubr.f32.gmra.mrb[0].mxu0 %v2870
        %v3004 = vpop.f32.mrb[0].mxu0
        %v3005 = vadd.f32 0.0, %v3004
        %v3006 = vpop.f32.mrb[0].mxu0
        %3007 = vmatprep.mubr.f32.mxu0 0.0
        %3008 = vmatmul.mubr.f32.gmra.mrb[0].mxu0 %v2871
        %v3009 = vpop.f32.mrb[0].mxu0
        %v3010 = vadd.f32 0.0, %v3009
        %v3011 = vpop.f32.mrb[0].mxu0
        %3012 = vmatprep.mubr.f32.mxu0 0.0
        %3013 = vmatmul.mubr.f32.gmra.mrb[0].mxu0 %v2872
        %v3014 = vpop.f32.mrb[0].mxu0
        %v3015 = vadd.f32 0.0, %v3014
        %v3016 = vpop.f32.mrb[0].mxu0
        %3017 = vdwg.mxu0
        %v3018 = vadd.f32 %v2378, %v2940
        %v3019 = vadd.f32 %v2383, %v2945
        %v3020 = vadd.f32 %v2388, %v2950
        %v3021 = vadd.f32 %v2393, %v2955
        %v3022 = vadd.f32 %v2398, %v2960
        %v3023 = vadd.f32 %v2403, %v2965
        %v3024 = vadd.f32 %v2408, %v2970
        %v3025 = vadd.f32 %v2413, %v2975
        %v3026 = vadd.f32 %v2418, %v2980
        %v3027 = vadd.f32 %v2423, %v2985
        %v3028 = vadd.f32 %v2428, %v2990
        %v3029 = vadd.f32 %v2433, %v2995
        %v3030 = vadd.f32 %v2438, %v3000
        %v3031 = vadd.f32 %v2443, %v3005
        %v3032 = vadd.f32 %v2448, %v3010
        %v3033 = vadd.f32 %v2453, %v3015
        %3034 = vrot.lane.b32.xlu0 %v885, 80
        %v3035 = vpop.permute.xlu0 %3034
        %3036 = vrot.lane.b32.xlu0 %v890, 80
        %v3037 = vpop.permute.xlu0 %3036
        %3038 = vrot.lane.b32.xlu0 %v895, 80
        %v3039 = vpop.permute.xlu0 %3038
        %3040 = vrot.lane.b32.xlu0 %v900, 80
        %v3041 = vpop.permute.xlu0 %3040
        %3042 = vrot.lane.b32.xlu0 %v905, 80
        %v3043 = vpop.permute.xlu0 %3042
        %3044 = vrot.lane.b32.xlu0 %v910, 80
        %v3045 = vpop.permute.xlu0 %3044
        %3046 = vrot.lane.b32.xlu0 %v915, 80
        %v3047 = vpop.permute.xlu0 %3046
        %3048 = vrot.lane.b32.xlu0 %v920, 80
        %v3049 = vpop.permute.xlu0 %3048
        %3050 = vrot.lane.b32.xlu0 %v925, 80
        %v3051 = vpop.permute.xlu0 %3050
        %3052 = vrot.lane.b32.xlu0 %v930, 80
        %v3053 = vpop.permute.xlu0 %3052
        %3054 = vrot.lane.b32.xlu0 %v935, 80
        %v3055 = vpop.permute.xlu0 %3054
        %3056 = vrot.lane.b32.xlu0 %v940, 80
        %v3057 = vpop.permute.xlu0 %3056
        %3058 = vrot.lane.b32.xlu0 %v945, 80
        %v3059 = vpop.permute.xlu0 %3058
        %3060 = vrot.lane.b32.xlu0 %v950, 80
        %v3061 = vpop.permute.xlu0 %3060
        %3062 = vrot.lane.b32.xlu0 %v955, 80
        %v3063 = vpop.permute.xlu0 %3062
        %3064 = vrot.lane.b32.xlu0 %v960, 80
        %v3065 = vpop.permute.xlu0 %3064
        %3066 = vrot.lane.b32.xlu0 %v1044, 80
        %v3067 = vpop.permute.xlu0 %3066
        %3068 = vrot.lane.b32.xlu0 %v1049, 80
        %v3069 = vpop.permute.xlu0 %3068
        %3070 = vrot.lane.b32.xlu0 %v1054, 80
        %v3071 = vpop.permute.xlu0 %3070
        %3072 = vrot.lane.b32.xlu0 %v1059, 80
        %v3073 = vpop.permute.xlu0 %3072
        %3074 = vrot.lane.b32.xlu0 %v1064, 80
        %v3075 = vpop.permute.xlu0 %3074
        %3076 = vrot.lane.b32.xlu0 %v1069, 80
        %v3077 = vpop.permute.xlu0 %3076
        %3078 = vrot.lane.b32.xlu0 %v1074, 80
        %v3079 = vpop.permute.xlu0 %3078
        %3080 = vrot.lane.b32.xlu0 %v1079, 80
        %v3081 = vpop.permute.xlu0 %3080
        %3082 = vrot.lane.b32.xlu0 %v1084, 80
        %v3083 = vpop.permute.xlu0 %3082
        %3084 = vrot.lane.b32.xlu0 %v1089, 80
        %v3085 = vpop.permute.xlu0 %3084
        %3086 = vrot.lane.b32.xlu0 %v1094, 80
        %v3087 = vpop.permute.xlu0 %3086
        %3088 = vrot.lane.b32.xlu0 %v1099, 80
        %v3089 = vpop.permute.xlu0 %3088
        %3090 = vrot.lane.b32.xlu0 %v1104, 80
        %v3091 = vpop.permute.xlu0 %3090
        %3092 = vrot.lane.b32.xlu0 %v1109, 80
        %v3093 = vpop.permute.xlu0 %3092
        %3094 = vrot.lane.b32.xlu0 %v1114, 80
        %v3095 = vpop.permute.xlu0 %3094
        %3096 = vrot.lane.b32.xlu0 %v1119, 80
        %v3097 = vpop.permute.xlu0 %3096
        %v3098 = vsel %vm1299, %v3035, 0
        %v3100 = vsel %vm1299, %v3037, 0
        %v3102 = vsel %vm1299, %v3039, 0
        %v3104 = vsel %vm1299, %v3041, 0
        %v3106 = vsel %vm1299, %v3043, 0
        %v3108 = vsel %vm1299, %v3045, 0
        %v3110 = vsel %vm1299, %v3047, 0
        %v3112 = vsel %vm1299, %v3049, 0
        %v3114 = vsel %vm1299, %v3051, 0
        %v3116 = vsel %vm1299, %v3053, 0
        %v3118 = vsel %vm1299, %v3055, 0
        %v3120 = vsel %vm1299, %v3057, 0
        %v3122 = vsel %vm1299, %v3059, 0
        %v3124 = vsel %vm1299, %v3061, 0
        %v3126 = vsel %vm1299, %v3063, 0
        %v3128 = vsel %vm1299, %v3065, 0
        %v3130 = vsel %vm1299, %v3067, 0
        %v3132 = vsel %vm1299, %v3069, 0
        %v3134 = vsel %vm1299, %v3071, 0
        %v3136 = vsel %vm1299, %v3073, 0
        %v3138 = vsel %vm1299, %v3075, 0
        %v3140 = vsel %vm1299, %v3077, 0
        %v3142 = vsel %vm1299, %v3079, 0
        %v3144 = vsel %vm1299, %v3081, 0
        %v3146 = vsel %vm1299, %v3083, 0
        %v3148 = vsel %vm1299, %v3085, 0
        %v3150 = vsel %vm1299, %v3087, 0
        %v3152 = vsel %vm1299, %v3089, 0
        %v3154 = vsel %vm1299, %v3091, 0
        %v3156 = vsel %vm1299, %v3093, 0
        %v3158 = vsel %vm1299, %v3095, 0
        %v3160 = vsel %vm1299, %v3097, 0
        %3162 = vmatprep.subr.mxu0 0.0
        %3163 = vmatpush1.xpose.msra.mxu0 %v3130
        %3164 = vmatprep.subr.mxu0 0.0
        %3165 = vmatpush1.xpose.msra.mxu0 %v3132
        %3166 = vmatprep.subr.mxu0 0.0
        %3167 = vmatpush1.xpose.msra.mxu0 %v3134
        %3168 = vmatprep.subr.mxu0 0.0
        %3169 = vmatpush1.xpose.msra.mxu0 %v3136
        %3170 = vmatprep.subr.mxu0 0.0
        %3171 = vmatpush1.xpose.msra.mxu0 %v3138
        %3172 = vmatprep.subr.mxu0 0.0
        %3173 = vmatpush1.xpose.msra.mxu0 %v3140
        %3174 = vmatprep.subr.mxu0 0.0
        %3175 = vmatpush1.xpose.msra.mxu0 %v3142
        %3176 = vmatprep.subr.mxu0 0.0
        %3177 = vmatpush1.xpose.msra.mxu0 %v3144
        %3178 = vmatprep.subr.mxu0 0.0
        %3179 = vmatpush1.xpose.msra.mxu0 %v3146
        %3180 = vmatprep.subr.mxu0 0.0
        %3181 = vmatpush1.xpose.msra.mxu0 %v3148
        %3182 = vmatprep.subr.mxu0 0.0
        %3183 = vmatpush1.xpose.msra.mxu0 %v3150
        %3184 = vmatprep.subr.mxu0 0.0
        %3185 = vmatpush1.xpose.msra.mxu0 %v3152
        %3186 = vmatprep.subr.mxu0 0.0
        %3187 = vmatpush1.xpose.msra.mxu0 %v3154
        %3188 = vmatprep.subr.mxu0 0.0
        %3189 = vmatpush1.xpose.msra.mxu0 %v3156
        %3190 = vmatprep.subr.mxu0 0.0
        %3191 = vmatpush1.xpose.msra.mxu0 %v3158
        %3192 = vmatprep.subr.mxu0 0.0
        %3193 = vmatpush1.xpose.msra.mxu0 %v3160
        %3194 = vmatprep.subr.mxu0 0.0
        %3195 = vmatpush1.xpose.msra.mxu0 0.0
        %3196 = vmatprep.subr.mxu0 0.0
        %3197 = vmatpush1.xpose.msra.mxu0 0.0
        %3198 = vmatprep.subr.mxu0 0.0
        %3199 = vmatpush1.xpose.msra.mxu0 0.0
        %3200 = vmatprep.subr.mxu0 0.0
        %3201 = vmatpush1.xpose.msra.mxu0 0.0
        %3202 = vmatprep.subr.mxu0 0.0
        %3203 = vmatpush1.xpose.msra.mxu0 0.0
        %3204 = vmatprep.subr.mxu0 0.0
        %3205 = vmatpush1.xpose.msra.mxu0 0.0
        %3206 = vmatprep.subr.mxu0 0.0
        %3207 = vmatpush1.xpose.msra.mxu0 0.0
        %3208 = vmatprep.subr.mxu0 0.0
        %3209 = vmatpush1.xpose.msra.mxu0 0.0
        %3210 = vmatprep.subr.mxu0 0.0
        %3211 = vmatpush1.xpose.msra.mxu0 0.0
        %3212 = vmatprep.subr.mxu0 0.0
        %3213 = vmatpush1.xpose.msra.mxu0 0.0
        %3214 = vmatprep.subr.mxu0 0.0
        %3215 = vmatpush1.xpose.msra.mxu0 0.0
        %3216 = vmatprep.subr.mxu0 0.0
        %3217 = vmatpush1.xpose.msra.mxu0 0.0
        %3218 = vmatprep.subr.mxu0 0.0
        %3219 = vmatpush1.xpose.msra.mxu0 0.0
        %3220 = vmatprep.subr.mxu0 0.0
        %3221 = vmatpush1.xpose.msra.mxu0 0.0
        %3222 = vmatprep.subr.mxu0 0.0
        %3223 = vmatpush1.xpose.msra.mxu0 0.0
        %3224 = vmatprep.subr.mxu0 0.0
        %3225 = vmatpush1.xpose.msra.mxu0 0.0
        %3226 = vmatprep.mubr.f32.mxu0 0.0
        %3227 = vmatmul.mubr.f32.gmra.mrb[0].mxu0 %v3098
        %v3228 = vpop.f32.mrb[0].mxu0
        %v3229 = vadd.f32 %v581, %v3228
        %v3230 = vpop.f32.mrb[0].mxu0
        %3231 = vmatprep.mubr.f32.mxu0 0.0
        %3232 = vmatmul.mubr.f32.gmra.mrb[0].mxu0 %v3100
        %v3233 = vpop.f32.mrb[0].mxu0
        %v3234 = vadd.f32 %v582, %v3233
        %v3235 = vpop.f32.mrb[0].mxu0
        %3236 = vmatprep.mubr.f32.mxu0 0.0
        %3237 = vmatmul.mubr.f32.gmra.mrb[0].mxu0 %v3102
        %v3238 = vpop.f32.mrb[0].mxu0
        %v3239 = vadd.f32 %v583, %v3238
        %v3240 = vpop.f32.mrb[0].mxu0
        %3241 = vmatprep.mubr.f32.mxu0 0.0
        %3242 = vmatmul.mubr.f32.gmra.mrb[0].mxu0 %v3104
        %v3243 = vpop.f32.mrb[0].mxu0
        %v3244 = vadd.f32 %v584, %v3243
        %v3245 = vpop.f32.mrb[0].mxu0
        %3246 = vmatprep.mubr.f32.mxu0 0.0
        %3247 = vmatmul.mubr.f32.gmra.mrb[0].mxu0 %v3106
        %v3248 = vpop.f32.mrb[0].mxu0
        %v3249 = vadd.f32 %v585, %v3248
        %v3250 = vpop.f32.mrb[0].mxu0
        %3251 = vmatprep.mubr.f32.mxu0 0.0
        %3252 = vmatmul.mubr.f32.gmra.mrb[0].mxu0 %v3108
        %v3253 = vpop.f32.mrb[0].mxu0
        %v3254 = vadd.f32 %v586, %v3253
        %v3255 = vpop.f32.mrb[0].mxu0
        %3256 = vmatprep.mubr.f32.mxu0 0.0
        %3257 = vmatmul.mubr.f32.gmra.mrb[0].mxu0 %v3110
        %v3258 = vpop.f32.mrb[0].mxu0
        %v3259 = vadd.f32 %v587, %v3258
        %v3260 = vpop.f32.mrb[0].mxu0
        %3261 = vmatprep.mubr.f32.mxu0 0.0
        %3262 = vmatmul.mubr.f32.gmra.mrb[0].mxu0 %v3112
        %v3263 = vpop.f32.mrb[0].mxu0
        %v3264 = vadd.f32 %v588, %v3263
        %v3265 = vpop.f32.mrb[0].mxu0
        %3266 = vmatprep.mubr.f32.mxu0 0.0
        %3267 = vmatmul.mubr.f32.gmra.mrb[0].mxu0 %v3114
        %v3268 = vpop.f32.mrb[0].mxu0
        %v3269 = vadd.f32 %v589, %v3268
        %v3270 = vpop.f32.mrb[0].mxu0
        %3271 = vmatprep.mubr.f32.mxu0 0.0
        %3272 = vmatmul.mubr.f32.gmra.mrb[0].mxu0 %v3116
        %v3273 = vpop.f32.mrb[0].mxu0
        %v3274 = vadd.f32 %v590, %v3273
        %v3275 = vpop.f32.mrb[0].mxu0
        %3276 = vmatprep.mubr.f32.mxu0 0.0
        %3277 = vmatmul.mubr.f32.gmra.mrb[0].mxu0 %v3118
        %v3278 = vpop.f32.mrb[0].mxu0
        %v3279 = vadd.f32 %v591, %v3278
        %v3280 = vpop.f32.mrb[0].mxu0
        %3281 = vmatprep.mubr.f32.mxu0 0.0
        %3282 = vmatmul.mubr.f32.gmra.mrb[0].mxu0 %v3120
        %v3283 = vpop.f32.mrb[0].mxu0
        %v3284 = vadd.f32 %v592, %v3283
        %v3285 = vpop.f32.mrb[0].mxu0
        %3286 = vmatprep.mubr.f32.mxu0 0.0
        %3287 = vmatmul.mubr.f32.gmra.mrb[0].mxu0 %v3122
        %v3288 = vpop.f32.mrb[0].mxu0
        %v3289 = vadd.f32 %v593, %v3288
        %v3290 = vpop.f32.mrb[0].mxu0
        %3291 = vmatprep.mubr.f32.mxu0 0.0
        %3292 = vmatmul.mubr.f32.gmra.mrb[0].mxu0 %v3124
        %v3293 = vpop.f32.mrb[0].mxu0
        %v3294 = vadd.f32 %v594, %v3293
        %v3295 = vpop.f32.mrb[0].mxu0
        %3296 = vmatprep.mubr.f32.mxu0 0.0
        %3297 = vmatmul.mubr.f32.gmra.mrb[0].mxu0 %v3126
        %v3298 = vpop.f32.mrb[0].mxu0
        %v3299 = vadd.f32 %v595, %v3298
        %v3300 = vpop.f32.mrb[0].mxu0
        %3301 = vmatprep.mubr.f32.mxu0 0.0
        %3302 = vmatmul.mubr.f32.gmra.mrb[0].mxu0 %v3128
        %v3303 = vpop.f32.mrb[0].mxu0
        %v3304 = vadd.f32 %v596, %v3303
        %v3305 = vpop.f32.mrb[0].mxu0
        %3306 = vdwg.mxu0
        %3307 = vmax.xlane.f32.xlu0 %v3229
        %v3308 = vpop.xlane.xlu0 %3307
        %3309 = vmax.xlane.f32.xlu0 %v3234
        %v3310 = vpop.xlane.xlu0 %3309
        %3311 = vmax.xlane.f32.xlu0 %v3239
        %v3312 = vpop.xlane.xlu0 %3311
        %3313 = vmax.xlane.f32.xlu0 %v3244
        %v3314 = vpop.xlane.xlu0 %3313
        %3315 = vmax.xlane.f32.xlu0 %v3249
        %v3316 = vpop.xlane.xlu0 %3315
        %3317 = vmax.xlane.f32.xlu0 %v3254
        %v3318 = vpop.xlane.xlu0 %3317
        %3319 = vmax.xlane.f32.xlu0 %v3259
        %v3320 = vpop.xlane.xlu0 %3319
        %3321 = vmax.xlane.f32.xlu0 %v3264
        %v3322 = vpop.xlane.xlu0 %3321
        %3323 = vmax.xlane.f32.xlu0 %v3269
        %v3324 = vpop.xlane.xlu0 %3323
        %3325 = vmax.xlane.f32.xlu0 %v3274
        %v3326 = vpop.xlane.xlu0 %3325
        %3327 = vmax.xlane.f32.xlu0 %v3279
        %v3328 = vpop.xlane.xlu0 %3327
        %3329 = vmax.xlane.f32.xlu0 %v3284
        %v3330 = vpop.xlane.xlu0 %3329
        %3331 = vmax.xlane.f32.xlu0 %v3289
        %v3332 = vpop.xlane.xlu0 %3331
        %3333 = vmax.xlane.f32.xlu0 %v3294
        %v3334 = vpop.xlane.xlu0 %3333
        %3335 = vmax.xlane.f32.xlu0 %v3299
        %v3336 = vpop.xlane.xlu0 %3335
        %3337 = vmax.xlane.f32.xlu0 %v3304
        %v3338 = vpop.xlane.xlu0 %3337
        %v3339 = vsub.f32 %v3229, %v3308
        %v3340 = vsub.f32 %v3234, %v3310
        %v3341 = vsub.f32 %v3239, %v3312
        %v3342 = vsub.f32 %v3244, %v3314
        %v3343 = vsub.f32 %v3249, %v3316
        %v3344 = vsub.f32 %v3254, %v3318
        %v3345 = vsub.f32 %v3259, %v3320
        %v3346 = vsub.f32 %v3264, %v3322
        %v3347 = vsub.f32 %v3269, %v3324
        %v3348 = vsub.f32 %v3274, %v3326
        %v3349 = vsub.f32 %v3279, %v3328
        %v3350 = vsub.f32 %v3284, %v3330
        %v3351 = vsub.f32 %v3289, %v3332
        %v3352 = vsub.f32 %v3294, %v3334
        %v3353 = vsub.f32 %v3299, %v3336
        %v3354 = vsub.f32 %v3304, %v3338
        %v3355 = vmul.f32 %v3339, 1.442695
        %v3356 = vpow.pop %v3355
        %v3357 = vmul.f32 %v3340, 1.442695
        %v3358 = vpow.pop %v3357
        %v3359 = vmul.f32 %v3341, 1.442695
        %v3360 = vpow.pop %v3359
        %v3361 = vmul.f32 %v3342, 1.442695
        %v3362 = vpow.pop %v3361
        %v3363 = vmul.f32 %v3343, 1.442695
        %v3364 = vpow.pop %v3363
        %v3365 = vmul.f32 %v3344, 1.442695
        %v3366 = vpow.pop %v3365
        %v3367 = vmul.f32 %v3345, 1.442695
        %v3368 = vpow.pop %v3367
        %v3369 = vmul.f32 %v3346, 1.442695
        %v3370 = vpow.pop %v3369
        %v3371 = vmul.f32 %v3347, 1.442695
        %v3372 = vpow.pop %v3371
        %v3373 = vmul.f32 %v3348, 1.442695
        %v3374 = vpow.pop %v3373
        %v3375 = vmul.f32 %v3349, 1.442695
        %v3376 = vpow.pop %v3375
        %v3377 = vmul.f32 %v3350, 1.442695
        %v3378 = vpow.pop %v3377
        %v3379 = vmul.f32 %v3351, 1.442695
        %v3380 = vpow.pop %v3379
        %v3381 = vmul.f32 %v3352, 1.442695
        %v3382 = vpow.pop %v3381
        %v3383 = vmul.f32 %v3353, 1.442695
        %v3384 = vpow.pop %v3383
        %v3385 = vmul.f32 %v3354, 1.442695
        %v3386 = vpow.pop %v3385
        %3387 = vadd.xlane.f32.xlu0 %v3356
        %v3388 = vpop.xlane.xlu0 %3387
        %3389 = vadd.xlane.f32.xlu0 %v3358
        %v3390 = vpop.xlane.xlu0 %3389
        %3391 = vadd.xlane.f32.xlu0 %v3360
        %v3392 = vpop.xlane.xlu0 %3391
        %3393 = vadd.xlane.f32.xlu0 %v3362
        %v3394 = vpop.xlane.xlu0 %3393
        %3395 = vadd.xlane.f32.xlu0 %v3364
        %v3396 = vpop.xlane.xlu0 %3395
        %3397 = vadd.xlane.f32.xlu0 %v3366
        %v3398 = vpop.xlane.xlu0 %3397
        %3399 = vadd.xlane.f32.xlu0 %v3368
        %v3400 = vpop.xlane.xlu0 %3399
        %3401 = vadd.xlane.f32.xlu0 %v3370
        %v3402 = vpop.xlane.xlu0 %3401
        %3403 = vadd.xlane.f32.xlu0 %v3372
        %v3404 = vpop.xlane.xlu0 %3403
        %3405 = vadd.xlane.f32.xlu0 %v3374
        %v3406 = vpop.xlane.xlu0 %3405
        %3407 = vadd.xlane.f32.xlu0 %v3376
        %v3408 = vpop.xlane.xlu0 %3407
        %3409 = vadd.xlane.f32.xlu0 %v3378
        %v3410 = vpop.xlane.xlu0 %3409
        %3411 = vadd.xlane.f32.xlu0 %v3380
        %v3412 = vpop.xlane.xlu0 %3411
        %3413 = vadd.xlane.f32.xlu0 %v3382
        %v3414 = vpop.xlane.xlu0 %3413
        %3415 = vadd.xlane.f32.xlu0 %v3384
        %v3416 = vpop.xlane.xlu0 %3415
        %3417 = vadd.xlane.f32.xlu0 %v3386
        %v3418 = vpop.xlane.xlu0 %3417
        %v3419 = vrcp.pop %v3388
        %v3420 = vrcp.pop %v3390
        %v3421 = vrcp.pop %v3392
        %v3422 = vrcp.pop %v3394
        %v3423 = vrcp.pop %v3396
        %v3424 = vrcp.pop %v3398
        %v3425 = vrcp.pop %v3400
        %v3426 = vrcp.pop %v3402
        %v3427 = vrcp.pop %v3404
        %v3428 = vrcp.pop %v3406
        %v3429 = vrcp.pop %v3408
        %v3430 = vrcp.pop %v3410
        %v3431 = vrcp.pop %v3412
        %v3432 = vrcp.pop %v3414
        %v3433 = vrcp.pop %v3416
        %v3434 = vrcp.pop %v3418
        %v3435 = vmul.f32 %v3356, %v3419
        %v3436 = vmul.f32 %v3358, %v3420
        %v3437 = vmul.f32 %v3360, %v3421
        %v3438 = vmul.f32 %v3362, %v3422
        %v3439 = vmul.f32 %v3364, %v3423
        %v3440 = vmul.f32 %v3366, %v3424
        %v3441 = vmul.f32 %v3368, %v3425
        %v3442 = vmul.f32 %v3370, %v3426
        %v3443 = vmul.f32 %v3372, %v3427
        %v3444 = vmul.f32 %v3374, %v3428
        %v3445 = vmul.f32 %v3376, %v3429
        %v3446 = vmul.f32 %v3378, %v3430
        %v3447 = vmul.f32 %v3380, %v3431
        %v3448 = vmul.f32 %v3382, %v3432
        %v3449 = vmul.f32 %v3384, %v3433
        %v3450 = vmul.f32 %v3386, %v3434
        %3467 = vrot.lane.b32.xlu0 %v1207, 64
        %v3468 = vpop.permute.xlu0 %3467
        %3469 = vrot.lane.b32.xlu0 %v1213, 64
        %v3470 = vpop.permute.xlu0 %3469
        %3471 = vrot.lane.b32.xlu0 %v1219, 64
        %v3472 = vpop.permute.xlu0 %3471
        %3473 = vrot.lane.b32.xlu0 %v1225, 64
        %v3474 = vpop.permute.xlu0 %3473
        %3475 = vrot.lane.b32.xlu0 %v1231, 64
        %v3476 = vpop.permute.xlu0 %3475
        %3477 = vrot.lane.b32.xlu0 %v1237, 64
        %v3478 = vpop.permute.xlu0 %3477
        %3479 = vrot.lane.b32.xlu0 %v1243, 64
        %v3480 = vpop.permute.xlu0 %3479
        %3481 = vrot.lane.b32.xlu0 %v1249, 64
        %v3482 = vpop.permute.xlu0 %3481
        %3483 = vrot.lane.b32.xlu0 %v1255, 64
        %v3484 = vpop.permute.xlu0 %3483
        %3485 = vrot.lane.b32.xlu0 %v1261, 64
        %v3486 = vpop.permute.xlu0 %3485
        %3487 = vrot.lane.b32.xlu0 %v1267, 64
        %v3488 = vpop.permute.xlu0 %3487
        %3489 = vrot.lane.b32.xlu0 %v1273, 64
        %v3490 = vpop.permute.xlu0 %3489
        %3491 = vrot.lane.b32.xlu0 %v1279, 64
        %v3492 = vpop.permute.xlu0 %3491
        %3493 = vrot.lane.b32.xlu0 %v1285, 64
        %v3494 = vpop.permute.xlu0 %3493
        %3495 = vrot.lane.b32.xlu0 %v1291, 64
        %v3496 = vpop.permute.xlu0 %3495
        %3497 = vrot.lane.b32.xlu0 %v1297, 64
        %v3498 = vpop.permute.xlu0 %3497
        %3515 = vmatprep.subr.mxu0 0.0
        %3516 = vmatpush1.msra.mxu0 %v3468
        %3517 = vmatprep.subr.mxu0 0.0
        %3518 = vmatpush1.msra.mxu0 %v3470
        %3519 = vmatprep.subr.mxu0 0.0
        %3520 = vmatpush1.msra.mxu0 %v3472
        %3521 = vmatprep.subr.mxu0 0.0
        %3522 = vmatpush1.msra.mxu0 %v3474
        %3523 = vmatprep.subr.mxu0 0.0
        %3524 = vmatpush1.msra.mxu0 %v3476
        %3525 = vmatprep.subr.mxu0 0.0
        %3526 = vmatpush1.msra.mxu0 %v3478
        %3527 = vmatprep.subr.mxu0 0.0
        %3528 = vmatpush1.msra.mxu0 %v3480
        %3529 = vmatprep.subr.mxu0 0.0
        %3530 = vmatpush1.msra.mxu0 %v3482
        %3531 = vmatprep.subr.mxu0 0.0
        %3532 = vmatpush1.msra.mxu0 %v3484
        %3533 = vmatprep.subr.mxu0 0.0
        %3534 = vmatpush1.msra.mxu0 %v3486
        %3535 = vmatprep.subr.mxu0 0.0
        %3536 = vmatpush1.msra.mxu0 %v3488
        %3537 = vmatprep.subr.mxu0 0.0
        %3538 = vmatpush1.msra.mxu0 %v3490
        %3539 = vmatprep.subr.mxu0 0.0
        %3540 = vmatpush1.msra.mxu0 %v3492
        %3541 = vmatprep.subr.mxu0 0.0
        %3542 = vmatpush1.msra.mxu0 %v3494
        %3543 = vmatprep.subr.mxu0 0.0
        %3544 = vmatpush1.msra.mxu0 %v3496
        %3545 = vmatprep.subr.mxu0 0.0
        %3546 = vmatpush1.msra.mxu0 %v3498
        %3547 = vmatprep.subr.mxu0 0.0
        %3548 = vmatpush1.msra.mxu0 0.0
        %3549 = vmatprep.subr.mxu0 0.0
        %3550 = vmatpush1.msra.mxu0 0.0
        %3551 = vmatprep.subr.mxu0 0.0
        %3552 = vmatpush1.msra.mxu0 0.0
        %3553 = vmatprep.subr.mxu0 0.0
        %3554 = vmatpush1.msra.mxu0 0.0
        %3555 = vmatprep.subr.mxu0 0.0
        %3556 = vmatpush1.msra.mxu0 0.0
        %3557 = vmatprep.subr.mxu0 0.0
        %3558 = vmatpush1.msra.mxu0 0.0
        %3559 = vmatprep.subr.mxu0 0.0
        %3560 = vmatpush1.msra.mxu0 0.0
        %3561 = vmatprep.subr.mxu0 0.0
        %3562 = vmatpush1.msra.mxu0 0.0
        %3563 = vmatprep.subr.mxu0 0.0
        %3564 = vmatpush1.msra.mxu0 0.0
        %3565 = vmatprep.subr.mxu0 0.0
        %3566 = vmatpush1.msra.mxu0 0.0
        %3567 = vmatprep.subr.mxu0 0.0
        %3568 = vmatpush1.msra.mxu0 0.0
        %3569 = vmatprep.subr.mxu0 0.0
        %3570 = vmatpush1.msra.mxu0 0.0
        %3571 = vmatprep.subr.mxu0 0.0
        %3572 = vmatpush1.msra.mxu0 0.0
        %3573 = vmatprep.subr.mxu0 0.0
        %3574 = vmatpush1.msra.mxu0 0.0
        %3575 = vmatprep.subr.mxu0 0.0
        %3576 = vmatpush1.msra.mxu0 0.0
        %3577 = vmatprep.subr.mxu0 0.0
        %3578 = vmatpush1.msra.mxu0 0.0
        %3579 = vmatprep.mubr.f32.mxu0 0.0
        %3580 = vmatmul.mubr.f32.gmra.mrb[0].mxu0 %v3435
        %v3581 = vpop.f32.mrb[0].mxu0
        %v3582 = vadd.f32 0.0, %v3581
        %v3583 = vpop.f32.mrb[0].mxu0
        %3584 = vmatprep.mubr.f32.mxu0 0.0
        %3585 = vmatmul.mubr.f32.gmra.mrb[0].mxu0 %v3436
        %v3586 = vpop.f32.mrb[0].mxu0
        %v3587 = vadd.f32 0.0, %v3586
        %v3588 = vpop.f32.mrb[0].mxu0
        %3589 = vmatprep.mubr.f32.mxu0 0.0
        %3590 = vmatmul.mubr.f32.gmra.mrb[0].mxu0 %v3437
        %v3591 = vpop.f32.mrb[0].mxu0
        %v3592 = vadd.f32 0.0, %v3591
        %v3593 = vpop.f32.mrb[0].mxu0
        %3594 = vmatprep.mubr.f32.mxu0 0.0
        %3595 = vmatmul.mubr.f32.gmra.mrb[0].mxu0 %v3438
        %v3596 = vpop.f32.mrb[0].mxu0
        %v3597 = vadd.f32 0.0, %v3596
        %v3598 = vpop.f32.mrb[0].mxu0
        %3599 = vmatprep.mubr.f32.mxu0 0.0
        %3600 = vmatmul.mubr.f32.gmra.mrb[0].mxu0 %v3439
        %v3601 = vpop.f32.mrb[0].mxu0
        %v3602 = vadd.f32 0.0, %v3601
        %v3603 = vpop.f32.mrb[0].mxu0
        %3604 = vmatprep.mubr.f32.mxu0 0.0
        %3605 = vmatmul.mubr.f32.gmra.mrb[0].mxu0 %v3440
        %v3606 = vpop.f32.mrb[0].mxu0
        %v3607 = vadd.f32 0.0, %v3606
        %v3608 = vpop.f32.mrb[0].mxu0
        %3609 = vmatprep.mubr.f32.mxu0 0.0
        %3610 = vmatmul.mubr.f32.gmra.mrb[0].mxu0 %v3441
        %v3611 = vpop.f32.mrb[0].mxu0
        %v3612 = vadd.f32 0.0, %v3611
        %v3613 = vpop.f32.mrb[0].mxu0
        %3614 = vmatprep.mubr.f32.mxu0 0.0
        %3615 = vmatmul.mubr.f32.gmra.mrb[0].mxu0 %v3442
        %v3616 = vpop.f32.mrb[0].mxu0
        %v3617 = vadd.f32 0.0, %v3616
        %v3618 = vpop.f32.mrb[0].mxu0
        %3619 = vmatprep.mubr.f32.mxu0 0.0
        %3620 = vmatmul.mubr.f32.gmra.mrb[0].mxu0 %v3443
        %v3621 = vpop.f32.mrb[0].mxu0
        %v3622 = vadd.f32 0.0, %v3621
        %v3623 = vpop.f32.mrb[0].mxu0
        %3624 = vmatprep.mubr.f32.mxu0 0.0
        %3625 = vmatmul.mubr.f32.gmra.mrb[0].mxu0 %v3444
        %v3626 = vpop.f32.mrb[0].mxu0
        %v3627 = vadd.f32 0.0, %v3626
        %v3628 = vpop.f32.mrb[0].mxu0
        %3629 = vmatprep.mubr.f32.mxu0 0.0
        %3630 = vmatmul.mubr.f32.gmra.mrb[0].mxu0 %v3445
        %v3631 = vpop.f32.mrb[0].mxu0
        %v3632 = vadd.f32 0.0, %v3631
        %v3633 = vpop.f32.mrb[0].mxu0
        %3634 = vmatprep.mubr.f32.mxu0 0.0
        %3635 = vmatmul.mubr.f32.gmra.mrb[0].mxu0 %v3446
        %v3636 = vpop.f32.mrb[0].mxu0
        %v3637 = vadd.f32 0.0, %v3636
        %v3638 = vpop.f32.mrb[0].mxu0
        %3639 = vmatprep.mubr.f32.mxu0 0.0
        %3640 = vmatmul.mubr.f32.gmra.mrb[0].mxu0 %v3447
        %v3641 = vpop.f32.mrb[0].mxu0
        %v3642 = vadd.f32 0.0, %v3641
        %v3643 = vpop.f32.mrb[0].mxu0
        %3644 = vmatprep.mubr.f32.mxu0 0.0
        %3645 = vmatmul.mubr.f32.gmra.mrb[0].mxu0 %v3448
        %v3646 = vpop.f32.mrb[0].mxu0
        %v3647 = vadd.f32 0.0, %v3646
        %v3648 = vpop.f32.mrb[0].mxu0
        %3649 = vmatprep.mubr.f32.mxu0 0.0
        %3650 = vmatmul.mubr.f32.gmra.mrb[0].mxu0 %v3449
        %v3651 = vpop.f32.mrb[0].mxu0
        %v3652 = vadd.f32 0.0, %v3651
        %v3653 = vpop.f32.mrb[0].mxu0
        %3654 = vmatprep.mubr.f32.mxu0 0.0
        %3655 = vmatmul.mubr.f32.gmra.mrb[0].mxu0 %v3450
        %v3656 = vpop.f32.mrb[0].mxu0
        %v3657 = vadd.f32 0.0, %v3656
        %v3658 = vpop.f32.mrb[0].mxu0
        %3659 = vdwg.mxu0
        %v3660 = vadd.f32 %v3018, %v3582
        %v3661 = vadd.f32 %v3019, %v3587
        %v3662 = vadd.f32 %v3020, %v3592
        %v3663 = vadd.f32 %v3021, %v3597
        %v3664 = vadd.f32 %v3022, %v3602
        %v3665 = vadd.f32 %v3023, %v3607
        %v3666 = vadd.f32 %v3024, %v3612
        %v3667 = vadd.f32 %v3025, %v3617
        %v3668 = vadd.f32 %v3026, %v3622
        %v3669 = vadd.f32 %v3027, %v3627
        %v3670 = vadd.f32 %v3028, %v3632
        %v3671 = vadd.f32 %v3029, %v3637
        %v3672 = vadd.f32 %v3030, %v3642
        %v3673 = vadd.f32 %v3031, %v3647
        %v3674 = vadd.f32 %v3032, %v3652
        %v3675 = vadd.f32 %v3033, %v3657
        %v3677 = vlaneseq
        %v3678 = vshrl.u32 %v3677, 7
        %v3679 = vsub.s32 0, %v3678
        %v3680 = vrot.slane %v744, %v3679
        %v3682 = vadd.f32 %v3660, %v3680
        %v3683 = vadd.f32 %v3661, %v3680
        %v3684 = vadd.f32 %v3662, %v3680
        %v3685 = vadd.f32 %v3663, %v3680
        %v3686 = vadd.f32 %v3664, %v3680
        %v3687 = vadd.f32 %v3665, %v3680
        %v3688 = vadd.f32 %v3666, %v3680
        %v3689 = vadd.f32 %v3667, %v3680
        %v3690 = vadd.f32 %v3668, %v3680
        %v3691 = vadd.f32 %v3669, %v3680
        %v3692 = vadd.f32 %v3670, %v3680
        %v3693 = vadd.f32 %v3671, %v3680
        %v3694 = vadd.f32 %v3672, %v3680
        %v3695 = vadd.f32 %v3673, %v3680
        %v3696 = vadd.f32 %v3674, %v3680
        %v3697 = vadd.f32 %v3675, %v3680
        %v3698 = vadd.f32 %v724, %v3682
        %v3699 = vadd.f32 %v725, %v3683
        %v3700 = vadd.f32 %v726, %v3684
        %v3701 = vadd.f32 %v727, %v3685
        %v3702 = vadd.f32 %v728, %v3686
        %v3703 = vadd.f32 %v729, %v3687
        %v3704 = vadd.f32 %v730, %v3688
        %v3705 = vadd.f32 %v731, %v3689
        %v3706 = vadd.f32 %v732, %v3690
        %v3707 = vadd.f32 %v733, %v3691
        %v3708 = vadd.f32 %v734, %v3692
        %v3709 = vadd.f32 %v735, %v3693
        %v3710 = vadd.f32 %v736, %v3694
        %v3711 = vadd.f32 %v737, %v3695
        %v3712 = vadd.f32 %v738, %v3696
        %v3713 = vadd.f32 %v739, %v3697
        %v3714 = vsel %vm769, %v3698, 0.0
        %3715 = vadd.xlane.f32.xlu0 %v3714
        %v3716 = vpop.xlane.xlu0 %3715
        %v3717 = vsel %vm769, %v3699, 0.0
        %3718 = vadd.xlane.f32.xlu0 %v3717
        %v3719 = vpop.xlane.xlu0 %3718
        %v3720 = vsel %vm769, %v3700, 0.0
        %3721 = vadd.xlane.f32.xlu0 %v3720
        %v3722 = vpop.xlane.xlu0 %3721
        %v3723 = vsel %vm769, %v3701, 0.0
        %3724 = vadd.xlane.f32.xlu0 %v3723
        %v3725 = vpop.xlane.xlu0 %3724
        %v3726 = vsel %vm769, %v3702, 0.0
        %3727 = vadd.xlane.f32.xlu0 %v3726
        %v3728 = vpop.xlane.xlu0 %3727
        %v3729 = vsel %vm769, %v3703, 0.0
        %3730 = vadd.xlane.f32.xlu0 %v3729
        %v3731 = vpop.xlane.xlu0 %3730
        %v3732 = vsel %vm769, %v3704, 0.0
        %3733 = vadd.xlane.f32.xlu0 %v3732
        %v3734 = vpop.xlane.xlu0 %3733
        %v3735 = vsel %vm769, %v3705, 0.0
        %3736 = vadd.xlane.f32.xlu0 %v3735
        %v3737 = vpop.xlane.xlu0 %3736
        %v3738 = vsel %vm769, %v3706, 0.0
        %3739 = vadd.xlane.f32.xlu0 %v3738
        %v3740 = vpop.xlane.xlu0 %3739
        %v3741 = vsel %vm769, %v3707, 0.0
        %3742 = vadd.xlane.f32.xlu0 %v3741
        %v3743 = vpop.xlane.xlu0 %3742
        %v3744 = vsel %vm769, %v3708, 0.0
        %3745 = vadd.xlane.f32.xlu0 %v3744
        %v3746 = vpop.xlane.xlu0 %3745
        %v3747 = vsel %vm769, %v3709, 0.0
        %3748 = vadd.xlane.f32.xlu0 %v3747
        %v3749 = vpop.xlane.xlu0 %3748
        %v3750 = vsel %vm769, %v3710, 0.0
        %3751 = vadd.xlane.f32.xlu0 %v3750
        %v3752 = vpop.xlane.xlu0 %3751
        %v3753 = vsel %vm769, %v3711, 0.0
        %3754 = vadd.xlane.f32.xlu0 %v3753
        %v3755 = vpop.xlane.xlu0 %3754
        %v3756 = vsel %vm769, %v3712, 0.0
        %3757 = vadd.xlane.f32.xlu0 %v3756
        %v3758 = vpop.xlane.xlu0 %3757
        %v3759 = vsel %vm769, %v3713, 0.0
        %3760 = vadd.xlane.f32.xlu0 %v3759
        %v3761 = vpop.xlane.xlu0 %3760
        %v3762 = vrcp.pop 64.0
        %v3763 = vmul.f32 %v3716, %v3762
        %v3764 = vmul.f32 %v3719, %v3762
        %v3765 = vmul.f32 %v3722, %v3762
        %v3766 = vmul.f32 %v3725, %v3762
        %v3767 = vmul.f32 %v3728, %v3762
        %v3768 = vmul.f32 %v3731, %v3762
        %v3769 = vmul.f32 %v3734, %v3762
        %v3770 = vmul.f32 %v3737, %v3762
        %v3771 = vmul.f32 %v3740, %v3762
        %v3772 = vmul.f32 %v3743, %v3762
        %v3773 = vmul.f32 %v3746, %v3762
        %v3774 = vmul.f32 %v3749, %v3762
        %v3775 = vmul.f32 %v3752, %v3762
        %v3776 = vmul.f32 %v3755, %v3762
        %v3777 = vmul.f32 %v3758, %v3762
        %v3778 = vmul.f32 %v3761, %v3762
        %v3779 = vsub.f32 %v3698, %v3763
        %v3780 = vsub.f32 %v3699, %v3764
        %v3781 = vsub.f32 %v3700, %v3765
        %v3782 = vsub.f32 %v3701, %v3766
        %v3783 = vsub.f32 %v3702, %v3767
        %v3784 = vsub.f32 %v3703, %v3768
        %v3785 = vsub.f32 %v3704, %v3769
        %v3786 = vsub.f32 %v3705, %v3770
        %v3787 = vsub.f32 %v3706, %v3771
        %v3788 = vsub.f32 %v3707, %v3772
        %v3789 = vsub.f32 %v3708, %v3773
        %v3790 = vsub.f32 %v3709, %v3774
        %v3791 = vsub.f32 %v3710, %v3775
        %v3792 = vsub.f32 %v3711, %v3776
        %v3793 = vsub.f32 %v3712, %v3777
        %v3794 = vsub.f32 %v3713, %v3778
        %v3795 = vmul.f32 %v3779, %v3779
        %v3796 = vmul.f32 %v3780, %v3780
        %v3797 = vmul.f32 %v3781, %v3781
        %v3798 = vmul.f32 %v3782, %v3782
        %v3799 = vmul.f32 %v3783, %v3783
        %v3800 = vmul.f32 %v3784, %v3784
        %v3801 = vmul.f32 %v3785, %v3785
        %v3802 = vmul.f32 %v3786, %v3786
        %v3803 = vmul.f32 %v3787, %v3787
        %v3804 = vmul.f32 %v3788, %v3788
        %v3805 = vmul.f32 %v3789, %v3789
        %v3806 = vmul.f32 %v3790, %v3790
        %v3807 = vmul.f32 %v3791, %v3791
        %v3808 = vmul.f32 %v3792, %v3792
        %v3809 = vmul.f32 %v3793, %v3793
        %v3810 = vmul.f32 %v3794, %v3794
        %v3811 = vsel %vm769, %v3795, 0.0
        %3812 = vadd.xlane.f32.xlu0 %v3811
        %v3813 = vpop.xlane.xlu0 %3812
        %v3814 = vsel %vm769, %v3796, 0.0
        %3815 = vadd.xlane.f32.xlu0 %v3814
        %v3816 = vpop.xlane.xlu0 %3815
        %v3817 = vsel %vm769, %v3797, 0.0
        %3818 = vadd.xlane.f32.xlu0 %v3817
        %v3819 = vpop.xlane.xlu0 %3818
        %v3820 = vsel %vm769, %v3798, 0.0
        %3821 = vadd.xlane.f32.xlu0 %v3820
        %v3822 = vpop.xlane.xlu0 %3821
        %v3823 = vsel %vm769, %v3799, 0.0
        %3824 = vadd.xlane.f32.xlu0 %v3823
        %v3825 = vpop.xlane.xlu0 %3824
        %v3826 = vsel %vm769, %v3800, 0.0
        %3827 = vadd.xlane.f32.xlu0 %v3826
        %v3828 = vpop.xlane.xlu0 %3827
        %v3829 = vsel %vm769, %v3801, 0.0
        %3830 = vadd.xlane.f32.xlu0 %v3829
        %v3831 = vpop.xlane.xlu0 %3830
        %v3832 = vsel %vm769, %v3802, 0.0
        %3833 = vadd.xlane.f32.xlu0 %v3832
        %v3834 = vpop.xlane.xlu0 %3833
        %v3835 = vsel %vm769, %v3803, 0.0
        %3836 = vadd.xlane.f32.xlu0 %v3835
        %v3837 = vpop.xlane.xlu0 %3836
        %v3838 = vsel %vm769, %v3804, 0.0
        %3839 = vadd.xlane.f32.xlu0 %v3838
        %v3840 = vpop.xlane.xlu0 %3839
        %v3841 = vsel %vm769, %v3805, 0.0
        %3842 = vadd.xlane.f32.xlu0 %v3841
        %v3843 = vpop.xlane.xlu0 %3842
        %v3844 = vsel %vm769, %v3806, 0.0
        %3845 = vadd.xlane.f32.xlu0 %v3844
        %v3846 = vpop.xlane.xlu0 %3845
        %v3847 = vsel %vm769, %v3807, 0.0
        %3848 = vadd.xlane.f32.xlu0 %v3847
        %v3849 = vpop.xlane.xlu0 %3848
        %v3850 = vsel %vm769, %v3808, 0.0
        %3851 = vadd.xlane.f32.xlu0 %v3850
        %v3852 = vpop.xlane.xlu0 %3851
        %v3853 = vsel %vm769, %v3809, 0.0
        %3854 = vadd.xlane.f32.xlu0 %v3853
        %v3855 = vpop.xlane.xlu0 %3854
        %v3856 = vsel %vm769, %v3810, 0.0
        %3857 = vadd.xlane.f32.xlu0 %v3856
        %v3858 = vpop.xlane.xlu0 %3857
        %v3859 = vmul.f32 %v3813, %v3762
        %v3860 = vmul.f32 %v3816, %v3762
        %v3861 = vmul.f32 %v3819, %v3762
        %v3862 = vmul.f32 %v3822, %v3762
        %v3863 = vmul.f32 %v3825, %v3762
        %v3864 = vmul.f32 %v3828, %v3762
        %v3865 = vmul.f32 %v3831, %v3762
        %v3866 = vmul.f32 %v3834, %v3762
        %v3867 = vmul.f32 %v3837, %v3762
        %v3868 = vmul.f32 %v3840, %v3762
        %v3869 = vmul.f32 %v3843, %v3762
        %v3870 = vmul.f32 %v3846, %v3762
        %v3871 = vmul.f32 %v3849, %v3762
        %v3872 = vmul.f32 %v3852, %v3762
        %v3873 = vmul.f32 %v3855, %v3762
        %v3874 = vmul.f32 %v3858, %v3762
        %v3875 = vadd.f32 %v3859, 1e-05
        %v3876 = vadd.f32 %v3860, 1e-05
        %v3877 = vadd.f32 %v3861, 1e-05
        %v3878 = vadd.f32 %v3862, 1e-05
        %v3879 = vadd.f32 %v3863, 1e-05
        %v3880 = vadd.f32 %v3864, 1e-05
        %v3881 = vadd.f32 %v3865, 1e-05
        %v3882 = vadd.f32 %v3866, 1e-05
        %v3883 = vadd.f32 %v3867, 1e-05
        %v3884 = vadd.f32 %v3868, 1e-05
        %v3885 = vadd.f32 %v3869, 1e-05
        %v3886 = vadd.f32 %v3870, 1e-05
        %v3887 = vadd.f32 %v3871, 1e-05
        %v3888 = vadd.f32 %v3872, 1e-05
        %v3889 = vadd.f32 %v3873, 1e-05
        %v3890 = vadd.f32 %v3874, 1e-05
        %v3891 = vrsqrt.pop %v3875
        %v3892 = vrsqrt.pop %v3876
        %v3893 = vrsqrt.pop %v3877
        %v3894 = vrsqrt.pop %v3878
        %v3895 = vrsqrt.pop %v3879
        %v3896 = vrsqrt.pop %v3880
        %v3897 = vrsqrt.pop %v3881
        %v3898 = vrsqrt.pop %v3882
        %v3899 = vrsqrt.pop %v3883
        %v3900 = vrsqrt.pop %v3884
        %v3901 = vrsqrt.pop %v3885
        %v3902 = vrsqrt.pop %v3886
        %v3903 = vrsqrt.pop %v3887
        %v3904 = vrsqrt.pop %v3888
        %v3905 = vrsqrt.pop %v3889
        %v3906 = vrsqrt.pop %v3890
        %v3907 = vmul.f32 %v3779, %v3891
        %v3908 = vmul.f32 %v3780, %v3892
        %v3909 = vmul.f32 %v3781, %v3893
        %v3910 = vmul.f32 %v3782, %v3894
        %v3911 = vmul.f32 %v3783, %v3895
        %v3912 = vmul.f32 %v3784, %v3896
        %v3913 = vmul.f32 %v3785, %v3897
        %v3914 = vmul.f32 %v3786, %v3898
        %v3915 = vmul.f32 %v3787, %v3899
        %v3916 = vmul.f32 %v3788, %v3900
        %v3917 = vmul.f32 %v3789, %v3901
        %v3918 = vmul.f32 %v3790, %v3902
        %v3919 = vmul.f32 %v3791, %v3903
        %v3920 = vmul.f32 %v3792, %v3904
        %v3921 = vmul.f32 %v3793, %v3905
        %v3922 = vmul.f32 %v3794, %v3906
        %v3924 = vlaneseq
        %v3925 = vshrl.u32 %v3924, 7
        %v3926 = vsub.s32 0, %v3925
        %v3927 = vrot.slane %v748, %v3926
        %v3929 = vmul.f32 %v3907, %v3927
        %v3930 = vmul.f32 %v3908, %v3927
        %v3931 = vmul.f32 %v3909, %v3927
        %v3932 = vmul.f32 %v3910, %v3927
        %v3933 = vmul.f32 %v3911, %v3927
        %v3934 = vmul.f32 %v3912, %v3927
        %v3935 = vmul.f32 %v3913, %v3927
        %v3936 = vmul.f32 %v3914, %v3927
        %v3937 = vmul.f32 %v3915, %v3927
        %v3938 = vmul.f32 %v3916, %v3927
        %v3939 = vmul.f32 %v3917, %v3927
        %v3940 = vmul.f32 %v3918, %v3927
        %v3941 = vmul.f32 %v3919, %v3927
        %v3942 = vmul.f32 %v3920, %v3927
        %v3943 = vmul.f32 %v3921, %v3927
        %v3944 = vmul.f32 %v3922, %v3927
        %v3946 = vlaneseq
        %v3947 = vshrl.u32 %v3946, 7
        %v3948 = vsub.s32 0, %v3947
        %v3949 = vrot.slane %v750, %v3948
        %v3951 = vadd.f32 %v3929, %v3949
        %v3952 = vadd.f32 %v3930, %v3949
        %v3953 = vadd.f32 %v3931, %v3949
        %v3954 = vadd.f32 %v3932, %v3949
        %v3955 = vadd.f32 %v3933, %v3949
        %v3956 = vadd.f32 %v3934, %v3949
        %v3957 = vadd.f32 %v3935, %v3949
        %v3958 = vadd.f32 %v3936, %v3949
        %v3959 = vadd.f32 %v3937, %v3949
        %v3960 = vadd.f32 %v3938, %v3949
        %v3961 = vadd.f32 %v3939, %v3949
        %v3962 = vadd.f32 %v3940, %v3949
        %v3963 = vadd.f32 %v3941, %v3949
        %v3964 = vadd.f32 %v3942, %v3949
        %v3965 = vadd.f32 %v3943, %v3949
        %v3966 = vadd.f32 %v3944, %v3949
        %v3967 = vld [vmem:[#allocation8] sm:$0xff]
        %v3968 = vld [vmem:[#allocation8 + $0x8] sm:$0xff]
        %v3969 = vld [vmem:[#allocation8 + $0x10] sm:$0xff]
        %v3970 = vld [vmem:[#allocation8 + $0x18] sm:$0xff]
        %v3971 = vld [vmem:[#allocation8 + $0x20] sm:$0xff]
        %v3972 = vld [vmem:[#allocation8 + $0x28] sm:$0xff]
        %v3973 = vld [vmem:[#allocation8 + $0x30] sm:$0xff]
        %v3974 = vld [vmem:[#allocation8 + $0x38] sm:$0xff]
        %v3975 = vld [vmem:[%s8] sm:$0x1]
        %v3977 = vlaneseq
        %v3978 = vshrl.u32 %v3977, 7
        %v3979 = vsub.s32 0, %v3978
        %v3980 = vrot.slane %v3975, %v3979
        %v3983 = vsel %vm769, %v3951, 0
        %v3986 = vsel %vm769, %v3952, 0
        %v3989 = vsel %vm769, %v3953, 0
        %v3992 = vsel %vm769, %v3954, 0
        %v3995 = vsel %vm769, %v3955, 0
        %v3998 = vsel %vm769, %v3956, 0
        %v4001 = vsel %vm769, %v3957, 0
        %v4004 = vsel %vm769, %v3958, 0
        %v4007 = vsel %vm769, %v3959, 0
        %v4010 = vsel %vm769, %v3960, 0
        %v4013 = vsel %vm769, %v3961, 0
        %v4016 = vsel %vm769, %v3962, 0
        %v4019 = vsel %vm769, %v3963, 0
        %v4022 = vsel %vm769, %v3964, 0
        %v4025 = vsel %vm769, %v3965, 0
        %v4028 = vsel %vm769, %v3966, 0
        %4030 = vmatprep.subr.mxu0 0.0
        %4031 = vmatpush1.msra.mxu0 %v3967
        %4032 = vmatprep.subr.mxu0 0.0
        %4033 = vmatpush1.msra.mxu0 %v3968
        %4034 = vmatprep.subr.mxu0 0.0
        %4035 = vmatpush1.msra.mxu0 %v3969
        %4036 = vmatprep.subr.mxu0 0.0
        %4037 = vmatpush1.msra.mxu0 %v3970
        %4038 = vmatprep.subr.mxu0 0.0
        %4039 = vmatpush1.msra.mxu0 %v3971
        %4040 = vmatprep.subr.mxu0 0.0
        %4041 = vmatpush1.msra.mxu0 %v3972
        %4042 = vmatprep.subr.mxu0 0.0
        %4043 = vmatpush1.msra.mxu0 %v3973
        %4044 = vmatprep.subr.mxu0 0.0
        %4045 = vmatpush1.msra.mxu0 %v3974
        %4046 = vmatprep.subr.mxu0 0.0
        %4047 = vmatpush1.msra.mxu0 0.0
        %4048 = vmatprep.subr.mxu0 0.0
        %4049 = vmatpush1.msra.mxu0 0.0
        %4050 = vmatprep.subr.mxu0 0.0
        %4051 = vmatpush1.msra.mxu0 0.0
        %4052 = vmatprep.subr.mxu0 0.0
        %4053 = vmatpush1.msra.mxu0 0.0
        %4054 = vmatprep.subr.mxu0 0.0
        %4055 = vmatpush1.msra.mxu0 0.0
        %4056 = vmatprep.subr.mxu0 0.0
        %4057 = vmatpush1.msra.mxu0 0.0
        %4058 = vmatprep.subr.mxu0 0.0
        %4059 = vmatpush1.msra.mxu0 0.0
        %4060 = vmatprep.subr.mxu0 0.0
        %4061 = vmatpush1.msra.mxu0 0.0
        %4062 = vmatprep.subr.mxu0 0.0
        %4063 = vmatpush1.msra.mxu0 0.0
        %4064 = vmatprep.subr.mxu0 0.0
        %4065 = vmatpush1.msra.mxu0 0.0
        %4066 = vmatprep.subr.mxu0 0.0
        %4067 = vmatpush1.msra.mxu0 0.0
        %4068 = vmatprep.subr.mxu0 0.0
        %4069 = vmatpush1.msra.mxu0 0.0
        %4070 = vmatprep.subr.mxu0 0.0
        %4071 = vmatpush1.msra.mxu0 0.0
        %4072 = vmatprep.subr.mxu0 0.0
        %4073 = vmatpush1.msra.mxu0 0.0
        %4074 = vmatprep.subr.mxu0 0.0
        %4075 = vmatpush1.msra.mxu0 0.0
        %4076 = vmatprep.subr.mxu0 0.0
        %4077 = vmatpush1.msra.mxu0 0.0
        %4078 = vmatprep.subr.mxu0 0.0
        %4079 = vmatpush1.msra.mxu0 0.0
        %4080 = vmatprep.subr.mxu0 0.0
        %4081 = vmatpush1.msra.mxu0 0.0
        %4082 = vmatprep.subr.mxu0 0.0
        %4083 = vmatpush1.msra.mxu0 0.0
        %4084 = vmatprep.subr.mxu0 0.0
        %4085 = vmatpush1.msra.mxu0 0.0
        %4086 = vmatprep.subr.mxu0 0.0
        %4087 = vmatpush1.msra.mxu0 0.0
        %4088 = vmatprep.subr.mxu0 0.0
        %4089 = vmatpush1.msra.mxu0 0.0
        %4090 = vmatprep.subr.mxu0 0.0
        %4091 = vmatpush1.msra.mxu0 0.0
        %4092 = vmatprep.subr.mxu0 0.0
        %4093 = vmatpush1.msra.mxu0 0.0
        %4094 = vmatprep.mubr.f32.mxu0 0.0
        %4095 = vmatmul.mubr.f32.gmra.mrb[0].mxu0 %v3983
        %v4096 = vpop.f32.mrb[0].mxu0
        %v4097 = vadd.f32 %v3980, %v4096
        %v4098 = vpop.f32.mrb[0].mxu0
        %4099 = vmatprep.mubr.f32.mxu0 0.0
        %4100 = vmatmul.mubr.f32.gmra.mrb[0].mxu0 %v3986
        %v4101 = vpop.f32.mrb[0].mxu0
        %v4102 = vadd.f32 %v3980, %v4101
        %v4103 = vpop.f32.mrb[0].mxu0
        %4104 = vmatprep.mubr.f32.mxu0 0.0
        %4105 = vmatmul.mubr.f32.gmra.mrb[0].mxu0 %v3989
        %v4106 = vpop.f32.mrb[0].mxu0
        %v4107 = vadd.f32 %v3980, %v4106
        %v4108 = vpop.f32.mrb[0].mxu0
        %4109 = vmatprep.mubr.f32.mxu0 0.0
        %4110 = vmatmul.mubr.f32.gmra.mrb[0].mxu0 %v3992
        %v4111 = vpop.f32.mrb[0].mxu0
        %v4112 = vadd.f32 %v3980, %v4111
        %v4113 = vpop.f32.mrb[0].mxu0
        %4114 = vmatprep.mubr.f32.mxu0 0.0
        %4115 = vmatmul.mubr.f32.gmra.mrb[0].mxu0 %v3995
        %v4116 = vpop.f32.mrb[0].mxu0
        %v4117 = vadd.f32 %v3980, %v4116
        %v4118 = vpop.f32.mrb[0].mxu0
        %4119 = vmatprep.mubr.f32.mxu0 0.0
        %4120 = vmatmul.mubr.f32.gmra.mrb[0].mxu0 %v3998
        %v4121 = vpop.f32.mrb[0].mxu0
        %v4122 = vadd.f32 %v3980, %v4121
        %v4123 = vpop.f32.mrb[0].mxu0
        %4124 = vmatprep.mubr.f32.mxu0 0.0
        %4125 = vmatmul.mubr.f32.gmra.mrb[0].mxu0 %v4001
        %v4126 = vpop.f32.mrb[0].mxu0
        %v4127 = vadd.f32 %v3980, %v4126
        %v4128 = vpop.f32.mrb[0].mxu0
        %4129 = vmatprep.mubr.f32.mxu0 0.0
        %4130 = vmatmul.mubr.f32.gmra.mrb[0].mxu0 %v4004
        %v4131 = vpop.f32.mrb[0].mxu0
        %v4132 = vadd.f32 %v3980, %v4131
        %v4133 = vpop.f32.mrb[0].mxu0
        %4134 = vmatprep.mubr.f32.mxu0 0.0
        %4135 = vmatmul.mubr.f32.gmra.mrb[0].mxu0 %v4007
        %v4136 = vpop.f32.mrb[0].mxu0
        %v4137 = vadd.f32 %v3980, %v4136
        %v4138 = vpop.f32.mrb[0].mxu0
        %4139 = vmatprep.mubr.f32.mxu0 0.0
        %4140 = vmatmul.mubr.f32.gmra.mrb[0].mxu0 %v4010
        %v4141 = vpop.f32.mrb[0].mxu0
        %v4142 = vadd.f32 %v3980, %v4141
        %v4143 = vpop.f32.mrb[0].mxu0
        %4144 = vmatprep.mubr.f32.mxu0 0.0
        %4145 = vmatmul.mubr.f32.gmra.mrb[0].mxu0 %v4013
        %v4146 = vpop.f32.mrb[0].mxu0
        %v4147 = vadd.f32 %v3980, %v4146
        %v4148 = vpop.f32.mrb[0].mxu0
        %4149 = vmatprep.mubr.f32.mxu0 0.0
        %4150 = vmatmul.mubr.f32.gmra.mrb[0].mxu0 %v4016
        %v4151 = vpop.f32.mrb[0].mxu0
        %v4152 = vadd.f32 %v3980, %v4151
        %v4153 = vpop.f32.mrb[0].mxu0
        %4154 = vmatprep.mubr.f32.mxu0 0.0
        %4155 = vmatmul.mubr.f32.gmra.mrb[0].mxu0 %v4019
        %v4156 = vpop.f32.mrb[0].mxu0
        %v4157 = vadd.f32 %v3980, %v4156
        %v4158 = vpop.f32.mrb[0].mxu0
        %4159 = vmatprep.mubr.f32.mxu0 0.0
        %4160 = vmatmul.mubr.f32.gmra.mrb[0].mxu0 %v4022
        %v4161 = vpop.f32.mrb[0].mxu0
        %v4162 = vadd.f32 %v3980, %v4161
        %v4163 = vpop.f32.mrb[0].mxu0
        %4164 = vmatprep.mubr.f32.mxu0 0.0
        %4165 = vmatmul.mubr.f32.gmra.mrb[0].mxu0 %v4025
        %v4166 = vpop.f32.mrb[0].mxu0
        %v4167 = vadd.f32 %v3980, %v4166
        %v4168 = vpop.f32.mrb[0].mxu0
        %4169 = vmatprep.mubr.f32.mxu0 0.0
        %4170 = vmatmul.mubr.f32.gmra.mrb[0].mxu0 %v4028
        %v4171 = vpop.f32.mrb[0].mxu0
        %v4172 = vadd.f32 %v3980, %v4171
        %v4173 = vpop.f32.mrb[0].mxu0
        %4174 = vdwg.mxu0
        %v4175 = vmax.f32 %v4097, 0.0
        %v4176 = vmax.f32 %v4102, 0.0
        %v4177 = vmax.f32 %v4107, 0.0
        %v4178 = vmax.f32 %v4112, 0.0
        %v4179 = vmax.f32 %v4117, 0.0
        %v4180 = vmax.f32 %v4122, 0.0
        %v4181 = vmax.f32 %v4127, 0.0
        %v4182 = vmax.f32 %v4132, 0.0
        %v4183 = vmax.f32 %v4137, 0.0
        %v4184 = vmax.f32 %v4142, 0.0
        %v4185 = vmax.f32 %v4147, 0.0
        %v4186 = vmax.f32 %v4152, 0.0
        %v4187 = vmax.f32 %v4157, 0.0
        %v4188 = vmax.f32 %v4162, 0.0
        %v4189 = vmax.f32 %v4167, 0.0
        %v4190 = vmax.f32 %v4172, 0.0
        %v4191 = vld [vmem:[%s9] sm:$0xff]
        %v4192 = vld [vmem:[%s9 + $0x8] sm:$0xff]
        %v4193 = vld [vmem:[%s9 + $0x10] sm:$0xff]
        %v4194 = vld [vmem:[%s9 + $0x18] sm:$0xff]
        %v4195 = vld [vmem:[%s9 + $0x20] sm:$0xff]
        %v4196 = vld [vmem:[%s9 + $0x28] sm:$0xff]
        %v4197 = vld [vmem:[%s9 + $0x30] sm:$0xff]
        %v4198 = vld [vmem:[%s9 + $0x38] sm:$0xff]
        %v4199 = vld [vmem:[%s9 + $0x40] sm:$0xff]
        %v4200 = vld [vmem:[%s9 + $0x48] sm:$0xff]
        %v4201 = vld [vmem:[%s9 + $0x50] sm:$0xff]
        %v4202 = vld [vmem:[%s9 + $0x58] sm:$0xff]
        %v4203 = vld [vmem:[%s9 + $0x60] sm:$0xff]
        %v4204 = vld [vmem:[%s9 + $0x68] sm:$0xff]
        %v4205 = vld [vmem:[%s9 + $0x70] sm:$0xff]
        %v4206 = vld [vmem:[%s9 + $0x78] sm:$0xff]
        %v4208 = vlaneseq
        %v4209 = vshrl.u32 %v4208, 7
        %v4210 = vsub.s32 0, %v4209
        %v4211 = vrot.slane %v746, %v4210
        %4213 = vmatprep.subr.mxu0 0.0
        %4214 = vmatpush1.msra.mxu0 %v4191
        %4215 = vmatprep.subr.mxu0 0.0
        %4216 = vmatpush1.msra.mxu0 %v4192
        %4217 = vmatprep.subr.mxu0 0.0
        %4218 = vmatpush1.msra.mxu0 %v4193
        %4219 = vmatprep.subr.mxu0 0.0
        %4220 = vmatpush1.msra.mxu0 %v4194
        %4221 = vmatprep.subr.mxu0 0.0
        %4222 = vmatpush1.msra.mxu0 %v4195
        %4223 = vmatprep.subr.mxu0 0.0
        %4224 = vmatpush1.msra.mxu0 %v4196
        %4225 = vmatprep.subr.mxu0 0.0
        %4226 = vmatpush1.msra.mxu0 %v4197
        %4227 = vmatprep.subr.mxu0 0.0
        %4228 = vmatpush1.msra.mxu0 %v4198
        %4229 = vmatprep.subr.mxu0 0.0
        %4230 = vmatpush1.msra.mxu0 %v4199
        %4231 = vmatprep.subr.mxu0 0.0
        %4232 = vmatpush1.msra.mxu0 %v4200
        %4233 = vmatprep.subr.mxu0 0.0
        %4234 = vmatpush1.msra.mxu0 %v4201
        %4235 = vmatprep.subr.mxu0 0.0
        %4236 = vmatpush1.msra.mxu0 %v4202
        %4237 = vmatprep.subr.mxu0 0.0
        %4238 = vmatpush1.msra.mxu0 %v4203
        %4239 = vmatprep.subr.mxu0 0.0
        %4240 = vmatpush1.msra.mxu0 %v4204
        %4241 = vmatprep.subr.mxu0 0.0
        %4242 = vmatpush1.msra.mxu0 %v4205
        %4243 = vmatprep.subr.mxu0 0.0
        %4244 = vmatpush1.msra.mxu0 %v4206
        %4245 = vmatprep.subr.mxu0 0.0
        %4246 = vmatpush1.msra.mxu0 0.0
        %4247 = vmatprep.subr.mxu0 0.0
        %4248 = vmatpush1.msra.mxu0 0.0
        %4249 = vmatprep.subr.mxu0 0.0
        %4250 = vmatpush1.msra.mxu0 0.0
        %4251 = vmatprep.subr.mxu0 0.0
        %4252 = vmatpush1.msra.mxu0 0.0
        %4253 = vmatprep.subr.mxu0 0.0
        %4254 = vmatpush1.msra.mxu0 0.0
        %4255 = vmatprep.subr.mxu0 0.0
        %4256 = vmatpush1.msra.mxu0 0.0
        %4257 = vmatprep.subr.mxu0 0.0
        %4258 = vmatpush1.msra.mxu0 0.0
        %4259 = vmatprep.subr.mxu0 0.0
        %4260 = vmatpush1.msra.mxu0 0.0
        %4261 = vmatprep.subr.mxu0 0.0
        %4262 = vmatpush1.msra.mxu0 0.0
        %4263 = vmatprep.subr.mxu0 0.0
        %4264 = vmatpush1.msra.mxu0 0.0
        %4265 = vmatprep.subr.mxu0 0.0
        %4266 = vmatpush1.msra.mxu0 0.0
        %4267 = vmatprep.subr.mxu0 0.0
        %4268 = vmatpush1.msra.mxu0 0.0
        %4269 = vmatprep.subr.mxu0 0.0
        %4270 = vmatpush1.msra.mxu0 0.0
        %4271 = vmatprep.subr.mxu0 0.0
        %4272 = vmatpush1.msra.mxu0 0.0
        %4273 = vmatprep.subr.mxu0 0.0
        %4274 = vmatpush1.msra.mxu0 0.0
        %4275 = vmatprep.subr.mxu0 0.0
        %4276 = vmatpush1.msra.mxu0 0.0
        %4277 = vmatprep.mubr.f32.mxu0 0.0
        %4278 = vmatmul.mubr.f32.gmra.mrb[0].mxu0 %v4175
        %v4279 = vpop.f32.mrb[0].mxu0
        %v4280 = vadd.f32 %v4211, %v4279
        %v4281 = vpop.f32.mrb[0].mxu0
        %4282 = vmatprep.mubr.f32.mxu0 0.0
        %4283 = vmatmul.mubr.f32.gmra.mrb[0].mxu0 %v4176
        %v4284 = vpop.f32.mrb[0].mxu0
        %v4285 = vadd.f32 %v4211, %v4284
        %v4286 = vpop.f32.mrb[0].mxu0
        %4287 = vmatprep.mubr.f32.mxu0 0.0
        %4288 = vmatmul.mubr.f32.gmra.mrb[0].mxu0 %v4177
        %v4289 = vpop.f32.mrb[0].mxu0
        %v4290 = vadd.f32 %v4211, %v4289
        %v4291 = vpop.f32.mrb[0].mxu0
        %4292 = vmatprep.mubr.f32.mxu0 0.0
        %4293 = vmatmul.mubr.f32.gmra.mrb[0].mxu0 %v4178
        %v4294 = vpop.f32.mrb[0].mxu0
        %v4295 = vadd.f32 %v4211, %v4294
        %v4296 = vpop.f32.mrb[0].mxu0
        %4297 = vmatprep.mubr.f32.mxu0 0.0
        %4298 = vmatmul.mubr.f32.gmra.mrb[0].mxu0 %v4179
        %v4299 = vpop.f32.mrb[0].mxu0
        %v4300 = vadd.f32 %v4211, %v4299
        %v4301 = vpop.f32.mrb[0].mxu0
        %4302 = vmatprep.mubr.f32.mxu0 0.0
        %4303 = vmatmul.mubr.f32.gmra.mrb[0].mxu0 %v4180
        %v4304 = vpop.f32.mrb[0].mxu0
        %v4305 = vadd.f32 %v4211, %v4304
        %v4306 = vpop.f32.mrb[0].mxu0
        %4307 = vmatprep.mubr.f32.mxu0 0.0
        %4308 = vmatmul.mubr.f32.gmra.mrb[0].mxu0 %v4181
        %v4309 = vpop.f32.mrb[0].mxu0
        %v4310 = vadd.f32 %v4211, %v4309
        %v4311 = vpop.f32.mrb[0].mxu0
        %4312 = vmatprep.mubr.f32.mxu0 0.0
        %4313 = vmatmul.mubr.f32.gmra.mrb[0].mxu0 %v4182
        %v4314 = vpop.f32.mrb[0].mxu0
        %v4315 = vadd.f32 %v4211, %v4314
        %v4316 = vpop.f32.mrb[0].mxu0
        %4317 = vmatprep.mubr.f32.mxu0 0.0
        %4318 = vmatmul.mubr.f32.gmra.mrb[0].mxu0 %v4183
        %v4319 = vpop.f32.mrb[0].mxu0
        %v4320 = vadd.f32 %v4211, %v4319
        %v4321 = vpop.f32.mrb[0].mxu0
        %4322 = vmatprep.mubr.f32.mxu0 0.0
        %4323 = vmatmul.mubr.f32.gmra.mrb[0].mxu0 %v4184
        %v4324 = vpop.f32.mrb[0].mxu0
        %v4325 = vadd.f32 %v4211, %v4324
        %v4326 = vpop.f32.mrb[0].mxu0
        %4327 = vmatprep.mubr.f32.mxu0 0.0
        %4328 = vmatmul.mubr.f32.gmra.mrb[0].mxu0 %v4185
        %v4329 = vpop.f32.mrb[0].mxu0
        %v4330 = vadd.f32 %v4211, %v4329
        %v4331 = vpop.f32.mrb[0].mxu0
        %4332 = vmatprep.mubr.f32.mxu0 0.0
        %4333 = vmatmul.mubr.f32.gmra.mrb[0].mxu0 %v4186
        %v4334 = vpop.f32.mrb[0].mxu0
        %v4335 = vadd.f32 %v4211, %v4334
        %v4336 = vpop.f32.mrb[0].mxu0
        %4337 = vmatprep.mubr.f32.mxu0 0.0
        %4338 = vmatmul.mubr.f32.gmra.mrb[0].mxu0 %v4187
        %v4339 = vpop.f32.mrb[0].mxu0
        %v4340 = vadd.f32 %v4211, %v4339
        %v4341 = vpop.f32.mrb[0].mxu0
        %4342 = vmatprep.mubr.f32.mxu0 0.0
        %4343 = vmatmul.mubr.f32.gmra.mrb[0].mxu0 %v4188
        %v4344 = vpop.f32.mrb[0].mxu0
        %v4345 = vadd.f32 %v4211, %v4344
        %v4346 = vpop.f32.mrb[0].mxu0
        %4347 = vmatprep.mubr.f32.mxu0 0.0
        %4348 = vmatmul.mubr.f32.gmra.mrb[0].mxu0 %v4189
        %v4349 = vpop.f32.mrb[0].mxu0
        %v4350 = vadd.f32 %v4211, %v4349
        %v4351 = vpop.f32.mrb[0].mxu0
        %4352 = vmatprep.mubr.f32.mxu0 0.0
        %4353 = vmatmul.mubr.f32.gmra.mrb[0].mxu0 %v4190
        %v4354 = vpop.f32.mrb[0].mxu0
        %v4355 = vadd.f32 %v4211, %v4354
        %v4356 = vpop.f32.mrb[0].mxu0
        %4357 = vdwg.mxu0
        %v4358 = vadd.f32 %v3951, %v4280
        %v4359 = vadd.f32 %v3952, %v4285
        %v4360 = vadd.f32 %v3953, %v4290
        %v4361 = vadd.f32 %v3954, %v4295
        %v4362 = vadd.f32 %v3955, %v4300
        %v4363 = vadd.f32 %v3956, %v4305
        %v4364 = vadd.f32 %v3957, %v4310
        %v4365 = vadd.f32 %v3958, %v4315
        %v4366 = vadd.f32 %v3959, %v4320
        %v4367 = vadd.f32 %v3960, %v4325
        %v4368 = vadd.f32 %v3961, %v4330
        %v4369 = vadd.f32 %v3962, %v4335
        %v4370 = vadd.f32 %v3963, %v4340
        %v4371 = vadd.f32 %v3964, %v4345
        %v4372 = vadd.f32 %v3965, %v4350
        %v4373 = vadd.f32 %v3966, %v4355
        %v4374 = vsel %vm769, %v4358, 0.0
        %4375 = vadd.xlane.f32.xlu0 %v4374
        %v4376 = vpop.xlane.xlu0 %4375
        %v4377 = vsel %vm769, %v4359, 0.0
        %4378 = vadd.xlane.f32.xlu0 %v4377
        %v4379 = vpop.xlane.xlu0 %4378
        %v4380 = vsel %vm769, %v4360, 0.0
        %4381 = vadd.xlane.f32.xlu0 %v4380
        %v4382 = vpop.xlane.xlu0 %4381
        %v4383 = vsel %vm769, %v4361, 0.0
        %4384 = vadd.xlane.f32.xlu0 %v4383
        %v4385 = vpop.xlane.xlu0 %4384
        %v4386 = vsel %vm769, %v4362, 0.0
        %4387 = vadd.xlane.f32.xlu0 %v4386
        %v4388 = vpop.xlane.xlu0 %4387
        %v4389 = vsel %vm769, %v4363, 0.0
        %4390 = vadd.xlane.f32.xlu0 %v4389
        %v4391 = vpop.xlane.xlu0 %4390
        %v4392 = vsel %vm769, %v4364, 0.0
        %4393 = vadd.xlane.f32.xlu0 %v4392
        %v4394 = vpop.xlane.xlu0 %4393
        %v4395 = vsel %vm769, %v4365, 0.0
        %4396 = vadd.xlane.f32.xlu0 %v4395
        %v4397 = vpop.xlane.xlu0 %4396
        %v4398 = vsel %vm769, %v4366, 0.0
        %4399 = vadd.xlane.f32.xlu0 %v4398
        %v4400 = vpop.xlane.xlu0 %4399
        %v4401 = vsel %vm769, %v4367, 0.0
        %4402 = vadd.xlane.f32.xlu0 %v4401
        %v4403 = vpop.xlane.xlu0 %4402
        %v4404 = vsel %vm769, %v4368, 0.0
        %4405 = vadd.xlane.f32.xlu0 %v4404
        %v4406 = vpop.xlane.xlu0 %4405
        %v4407 = vsel %vm769, %v4369, 0.0
        %4408 = vadd.xlane.f32.xlu0 %v4407
        %v4409 = vpop.xlane.xlu0 %4408
        %v4410 = vsel %vm769, %v4370, 0.0
        %4411 = vadd.xlane.f32.xlu0 %v4410
        %v4412 = vpop.xlane.xlu0 %4411
        %v4413 = vsel %vm769, %v4371, 0.0
        %4414 = vadd.xlane.f32.xlu0 %v4413
        %v4415 = vpop.xlane.xlu0 %4414
        %v4416 = vsel %vm769, %v4372, 0.0
        %4417 = vadd.xlane.f32.xlu0 %v4416
        %v4418 = vpop.xlane.xlu0 %4417
        %v4419 = vsel %vm769, %v4373, 0.0
        %4420 = vadd.xlane.f32.xlu0 %v4419
        %v4421 = vpop.xlane.xlu0 %4420
        %v4422 = vmul.f32 %v4376, %v3762
        %v4423 = vmul.f32 %v4379, %v3762
        %v4424 = vmul.f32 %v4382, %v3762
        %v4425 = vmul.f32 %v4385, %v3762
        %v4426 = vmul.f32 %v4388, %v3762
        %v4427 = vmul.f32 %v4391, %v3762
        %v4428 = vmul.f32 %v4394, %v3762
        %v4429 = vmul.f32 %v4397, %v3762
        %v4430 = vmul.f32 %v4400, %v3762
        %v4431 = vmul.f32 %v4403, %v3762
        %v4432 = vmul.f32 %v4406, %v3762
        %v4433 = vmul.f32 %v4409, %v3762
        %v4434 = vmul.f32 %v4412, %v3762
        %v4435 = vmul.f32 %v4415, %v3762
        %v4436 = vmul.f32 %v4418, %v3762
        %v4437 = vmul.f32 %v4421, %v3762
        %v4438 = vsub.f32 %v4358, %v4422
        %v4439 = vsub.f32 %v4359, %v4423
        %v4440 = vsub.f32 %v4360, %v4424
        %v4441 = vsub.f32 %v4361, %v4425
        %v4442 = vsub.f32 %v4362, %v4426
        %v4443 = vsub.f32 %v4363, %v4427
        %v4444 = vsub.f32 %v4364, %v4428
        %v4445 = vsub.f32 %v4365, %v4429
        %v4446 = vsub.f32 %v4366, %v4430
        %v4447 = vsub.f32 %v4367, %v4431
        %v4448 = vsub.f32 %v4368, %v4432
        %v4449 = vsub.f32 %v4369, %v4433
        %v4450 = vsub.f32 %v4370, %v4434
        %v4451 = vsub.f32 %v4371, %v4435
        %v4452 = vsub.f32 %v4372, %v4436
        %v4453 = vsub.f32 %v4373, %v4437
        %v4454 = vmul.f32 %v4438, %v4438
        %v4455 = vmul.f32 %v4439, %v4439
        %v4456 = vmul.f32 %v4440, %v4440
        %v4457 = vmul.f32 %v4441, %v4441
        %v4458 = vmul.f32 %v4442, %v4442
        %v4459 = vmul.f32 %v4443, %v4443
        %v4460 = vmul.f32 %v4444, %v4444
        %v4461 = vmul.f32 %v4445, %v4445
        %v4462 = vmul.f32 %v4446, %v4446
        %v4463 = vmul.f32 %v4447, %v4447
        %v4464 = vmul.f32 %v4448, %v4448
        %v4465 = vmul.f32 %v4449, %v4449
        %v4466 = vmul.f32 %v4450, %v4450
        %v4467 = vmul.f32 %v4451, %v4451
        %v4468 = vmul.f32 %v4452, %v4452
        %v4469 = vmul.f32 %v4453, %v4453
        %v4470 = vsel %vm769, %v4454, 0.0
        %4471 = vadd.xlane.f32.xlu0 %v4470
        %v4472 = vpop.xlane.xlu0 %4471
        %v4473 = vsel %vm769, %v4455, 0.0
        %4474 = vadd.xlane.f32.xlu0 %v4473
        %v4475 = vpop.xlane.xlu0 %4474
        %v4476 = vsel %vm769, %v4456, 0.0
        %4477 = vadd.xlane.f32.xlu0 %v4476
        %v4478 = vpop.xlane.xlu0 %4477
        %v4479 = vsel %vm769, %v4457, 0.0
        %4480 = vadd.xlane.f32.xlu0 %v4479
        %v4481 = vpop.xlane.xlu0 %4480
        %v4482 = vsel %vm769, %v4458, 0.0
        %4483 = vadd.xlane.f32.xlu0 %v4482
        %v4484 = vpop.xlane.xlu0 %4483
        %v4485 = vsel %vm769, %v4459, 0.0
        %4486 = vadd.xlane.f32.xlu0 %v4485
        %v4487 = vpop.xlane.xlu0 %4486
        %v4488 = vsel %vm769, %v4460, 0.0
        %4489 = vadd.xlane.f32.xlu0 %v4488
        %v4490 = vpop.xlane.xlu0 %4489
        %v4491 = vsel %vm769, %v4461, 0.0
        %4492 = vadd.xlane.f32.xlu0 %v4491
        %v4493 = vpop.xlane.xlu0 %4492
        %v4494 = vsel %vm769, %v4462, 0.0
        %4495 = vadd.xlane.f32.xlu0 %v4494
        %v4496 = vpop.xlane.xlu0 %4495
        %v4497 = vsel %vm769, %v4463, 0.0
        %4498 = vadd.xlane.f32.xlu0 %v4497
        %v4499 = vpop.xlane.xlu0 %4498
        %v4500 = vsel %vm769, %v4464, 0.0
        %4501 = vadd.xlane.f32.xlu0 %v4500
        %v4502 = vpop.xlane.xlu0 %4501
        %v4503 = vsel %vm769, %v4465, 0.0
        %4504 = vadd.xlane.f32.xlu0 %v4503
        %v4505 = vpop.xlane.xlu0 %4504
        %v4506 = vsel %vm769, %v4466, 0.0
        %4507 = vadd.xlane.f32.xlu0 %v4506
        %v4508 = vpop.xlane.xlu0 %4507
        %v4509 = vsel %vm769, %v4467, 0.0
        %4510 = vadd.xlane.f32.xlu0 %v4509
        %v4511 = vpop.xlane.xlu0 %4510
        %v4512 = vsel %vm769, %v4468, 0.0
        %4513 = vadd.xlane.f32.xlu0 %v4512
        %v4514 = vpop.xlane.xlu0 %4513
        %v4515 = vsel %vm769, %v4469, 0.0
        %4516 = vadd.xlane.f32.xlu0 %v4515
        %v4517 = vpop.xlane.xlu0 %4516
        %v4518 = vmul.f32 %v4472, %v3762
        %v4519 = vmul.f32 %v4475, %v3762
        %v4520 = vmul.f32 %v4478, %v3762
        %v4521 = vmul.f32 %v4481, %v3762
        %v4522 = vmul.f32 %v4484, %v3762
        %v4523 = vmul.f32 %v4487, %v3762
        %v4524 = vmul.f32 %v4490, %v3762
        %v4525 = vmul.f32 %v4493, %v3762
        %v4526 = vmul.f32 %v4496, %v3762
        %v4527 = vmul.f32 %v4499, %v3762
        %v4528 = vmul.f32 %v4502, %v3762
        %v4529 = vmul.f32 %v4505, %v3762
        %v4530 = vmul.f32 %v4508, %v3762
        %v4531 = vmul.f32 %v4511, %v3762
        %v4532 = vmul.f32 %v4514, %v3762
        %v4533 = vmul.f32 %v4517, %v3762
        %v4534 = vadd.f32 %v4518, 1e-05
        %v4535 = vadd.f32 %v4519, 1e-05
        %v4536 = vadd.f32 %v4520, 1e-05
        %v4537 = vadd.f32 %v4521, 1e-05
        %v4538 = vadd.f32 %v4522, 1e-05
        %v4539 = vadd.f32 %v4523, 1e-05
        %v4540 = vadd.f32 %v4524, 1e-05
        %v4541 = vadd.f32 %v4525, 1e-05
        %v4542 = vadd.f32 %v4526, 1e-05
        %v4543 = vadd.f32 %v4527, 1e-05
        %v4544 = vadd.f32 %v4528, 1e-05
        %v4545 = vadd.f32 %v4529, 1e-05
        %v4546 = vadd.f32 %v4530, 1e-05
        %v4547 = vadd.f32 %v4531, 1e-05
        %v4548 = vadd.f32 %v4532, 1e-05
        %v4549 = vadd.f32 %v4533, 1e-05
        %v4550 = vrsqrt.pop %v4534
        %v4551 = vrsqrt.pop %v4535
        %v4552 = vrsqrt.pop %v4536
        %v4553 = vrsqrt.pop %v4537
        %v4554 = vrsqrt.pop %v4538
        %v4555 = vrsqrt.pop %v4539
        %v4556 = vrsqrt.pop %v4540
        %v4557 = vrsqrt.pop %v4541
        %v4558 = vrsqrt.pop %v4542
        %v4559 = vrsqrt.pop %v4543
        %v4560 = vrsqrt.pop %v4544
        %v4561 = vrsqrt.pop %v4545
        %v4562 = vrsqrt.pop %v4546
        %v4563 = vrsqrt.pop %v4547
        %v4564 = vrsqrt.pop %v4548
        %v4565 = vrsqrt.pop %v4549
        %v4566 = vmul.f32 %v4438, %v4550
        %v4567 = vmul.f32 %v4439, %v4551
        %v4568 = vmul.f32 %v4440, %v4552
        %v4569 = vmul.f32 %v4441, %v4553
        %v4570 = vmul.f32 %v4442, %v4554
        %v4571 = vmul.f32 %v4443, %v4555
        %v4572 = vmul.f32 %v4444, %v4556
        %v4573 = vmul.f32 %v4445, %v4557
        %v4574 = vmul.f32 %v4446, %v4558
        %v4575 = vmul.f32 %v4447, %v4559
        %v4576 = vmul.f32 %v4448, %v4560
        %v4577 = vmul.f32 %v4449, %v4561
        %v4578 = vmul.f32 %v4450, %v4562
        %v4579 = vmul.f32 %v4451, %v4563
        %v4580 = vmul.f32 %v4452, %v4564
        %v4581 = vmul.f32 %v4453, %v4565
        %v4583 = vlaneseq
        %v4584 = vshrl.u32 %v4583, 7
        %v4585 = vsub.s32 0, %v4584
        %v4586 = vrot.slane %v752, %v4585
        %v4588 = vmul.f32 %v4566, %v4586
        %v4589 = vmul.f32 %v4567, %v4586
        %v4590 = vmul.f32 %v4568, %v4586
        %v4591 = vmul.f32 %v4569, %v4586
        %v4592 = vmul.f32 %v4570, %v4586
        %v4593 = vmul.f32 %v4571, %v4586
        %v4594 = vmul.f32 %v4572, %v4586
        %v4595 = vmul.f32 %v4573, %v4586
        %v4596 = vmul.f32 %v4574, %v4586
        %v4597 = vmul.f32 %v4575, %v4586
        %v4598 = vmul.f32 %v4576, %v4586
        %v4599 = vmul.f32 %v4577, %v4586
        %v4600 = vmul.f32 %v4578, %v4586
        %v4601 = vmul.f32 %v4579, %v4586
        %v4602 = vmul.f32 %v4580, %v4586
        %v4603 = vmul.f32 %v4581, %v4586
        %v4605 = vlaneseq
        %v4606 = vshrl.u32 %v4605, 7
        %v4607 = vsub.s32 0, %v4606
        %v4608 = vrot.slane %v754, %v4607
        %v4610 = vadd.f32 %v4588, %v4608
        %v4611 = vadd.f32 %v4589, %v4608
        %v4612 = vadd.f32 %v4590, %v4608
        %v4613 = vadd.f32 %v4591, %v4608
        %v4614 = vadd.f32 %v4592, %v4608
        %v4615 = vadd.f32 %v4593, %v4608
        %v4616 = vadd.f32 %v4594, %v4608
        %v4617 = vadd.f32 %v4595, %v4608
        %v4618 = vadd.f32 %v4596, %v4608
        %v4619 = vadd.f32 %v4597, %v4608
        %v4620 = vadd.f32 %v4598, %v4608
        %v4621 = vadd.f32 %v4599, %v4608
        %v4622 = vadd.f32 %v4600, %v4608
        %v4623 = vadd.f32 %v4601, %v4608
        %v4624 = vadd.f32 %v4602, %v4608
        %v4625 = vadd.f32 %v4603, %v4608
        %s4626 = scalar_lea.vmem %s10, 8
        %v4627 = vld [vmem:[%s4626] sm:$0x1]
        %s4628 = scalar_lea.vmem %s10, 9
        %v4629 = vld [vmem:[%s4628] sm:$0x1]
        %s4630 = scalar_lea.vmem %s10, 10
        %v4631 = vld [vmem:[%s4630] sm:$0x1]
        %s4632 = scalar_lea.vmem %s10, 11
        %v4633 = vld [vmem:[%s4632] sm:$0x1]
        %s4634 = scalar_lea.vmem %s10, 12
        %v4635 = vld [vmem:[%s4634] sm:$0x1]
        %s4636 = scalar_lea.vmem %s10, 13
        %v4637 = vld [vmem:[%s4636] sm:$0x1]
        %s4638 = scalar_lea.vmem %s10, 14
        %v4639 = vld [vmem:[%s4638] sm:$0x1]
        %s4640 = scalar_lea.vmem %s10, 15
        %v4641 = vld [vmem:[%s4640] sm:$0x1]
        %s4642 = scalar_lea.vmem %s4, 64
        %v4643 = vld [vmem:[%s4642] sm:$0xff]
        %v4644 = vld [vmem:[%s4642 + $0x8] sm:$0xff]
        %v4645 = vld [vmem:[%s4642 + $0x10] sm:$0xff]
        %v4646 = vld [vmem:[%s4642 + $0x18] sm:$0xff]
        %v4647 = vld [vmem:[%s4642 + $0x20] sm:$0xff]
        %v4648 = vld [vmem:[%s4642 + $0x28] sm:$0xff]
        %v4649 = vld [vmem:[%s4642 + $0x30] sm:$0xff]
        %v4650 = vld [vmem:[%s4642 + $0x38] sm:$0xff]
        %v4652 = vlaneseq
        %v4653 = vshrl.u32 %v4652, 7
        %v4654 = vsub.s32 0, %v4653
        %v4655 = vrot.slane %v4627, %v4654
        %v4658 = vsel %vm769, %v4610, 0
        %v4661 = vsel %vm769, %v4611, 0
        %v4664 = vsel %vm769, %v4612, 0
        %v4667 = vsel %vm769, %v4613, 0
        %v4670 = vsel %vm769, %v4614, 0
        %v4673 = vsel %vm769, %v4615, 0
        %v4676 = vsel %vm769, %v4616, 0
        %v4679 = vsel %vm769, %v4617, 0
        %v4682 = vsel %vm769, %v4618, 0
        %v4685 = vsel %vm769, %v4619, 0
        %v4688 = vsel %vm769, %v4620, 0
        %v4691 = vsel %vm769, %v4621, 0
        %v4694 = vsel %vm769, %v4622, 0
        %v4697 = vsel %vm769, %v4623, 0
        %v4700 = vsel %vm769, %v4624, 0
        %v4703 = vsel %vm769, %v4625, 0
        %4705 = vmatprep.subr.mxu0 0.0
        %4706 = vmatpush1.msra.mxu0 %v4643
        %4707 = vmatprep.subr.mxu0 0.0
        %4708 = vmatpush1.msra.mxu0 %v4644
        %4709 = vmatprep.subr.mxu0 0.0
        %4710 = vmatpush1.msra.mxu0 %v4645
        %4711 = vmatprep.subr.mxu0 0.0
        %4712 = vmatpush1.msra.mxu0 %v4646
        %4713 = vmatprep.subr.mxu0 0.0
        %4714 = vmatpush1.msra.mxu0 %v4647
        %4715 = vmatprep.subr.mxu0 0.0
        %4716 = vmatpush1.msra.mxu0 %v4648
        %4717 = vmatprep.subr.mxu0 0.0
        %4718 = vmatpush1.msra.mxu0 %v4649
        %4719 = vmatprep.subr.mxu0 0.0
        %4720 = vmatpush1.msra.mxu0 %v4650
        %4721 = vmatprep.subr.mxu0 0.0
        %4722 = vmatpush1.msra.mxu0 0.0
        %4723 = vmatprep.subr.mxu0 0.0
        %4724 = vmatpush1.msra.mxu0 0.0
        %4725 = vmatprep.subr.mxu0 0.0
        %4726 = vmatpush1.msra.mxu0 0.0
        %4727 = vmatprep.subr.mxu0 0.0
        %4728 = vmatpush1.msra.mxu0 0.0
        %4729 = vmatprep.subr.mxu0 0.0
        %4730 = vmatpush1.msra.mxu0 0.0
        %4731 = vmatprep.subr.mxu0 0.0
        %4732 = vmatpush1.msra.mxu0 0.0
        %4733 = vmatprep.subr.mxu0 0.0
        %4734 = vmatpush1.msra.mxu0 0.0
        %4735 = vmatprep.subr.mxu0 0.0
        %4736 = vmatpush1.msra.mxu0 0.0
        %4737 = vmatprep.subr.mxu0 0.0
        %4738 = vmatpush1.msra.mxu0 0.0
        %4739 = vmatprep.subr.mxu0 0.0
        %4740 = vmatpush1.msra.mxu0 0.0
        %4741 = vmatprep.subr.mxu0 0.0
        %4742 = vmatpush1.msra.mxu0 0.0
        %4743 = vmatprep.subr.mxu0 0.0
        %4744 = vmatpush1.msra.mxu0 0.0
        %4745 = vmatprep.subr.mxu0 0.0
        %4746 = vmatpush1.msra.mxu0 0.0
        %4747 = vmatprep.subr.mxu0 0.0
        %4748 = vmatpush1.msra.mxu0 0.0
        %4749 = vmatprep.subr.mxu0 0.0
        %4750 = vmatpush1.msra.mxu0 0.0
        %4751 = vmatprep.subr.mxu0 0.0
        %4752 = vmatpush1.msra.mxu0 0.0
        %4753 = vmatprep.subr.mxu0 0.0
        %4754 = vmatpush1.msra.mxu0 0.0
        %4755 = vmatprep.subr.mxu0 0.0
        %4756 = vmatpush1.msra.mxu0 0.0
        %4757 = vmatprep.subr.mxu0 0.0
        %4758 = vmatpush1.msra.mxu0 0.0
        %4759 = vmatprep.subr.mxu0 0.0
        %4760 = vmatpush1.msra.mxu0 0.0
        %4761 = vmatprep.subr.mxu0 0.0
        %4762 = vmatpush1.msra.mxu0 0.0
        %4763 = vmatprep.subr.mxu0 0.0
        %4764 = vmatpush1.msra.mxu0 0.0
        %4765 = vmatprep.subr.mxu0 0.0
        %4766 = vmatpush1.msra.mxu0 0.0
        %4767 = vmatprep.subr.mxu0 0.0
        %4768 = vmatpush1.msra.mxu0 0.0
        %4769 = vmatprep.mubr.f32.mxu0 0.0
        %4770 = vmatmul.mubr.f32.gmra.mrb[0].mxu0 %v4658
        %v4771 = vpop.f32.mrb[0].mxu0
        %v4772 = vadd.f32 %v4655, %v4771
        %v4773 = vpop.f32.mrb[0].mxu0
        %4774 = vmatprep.mubr.f32.mxu0 0.0
        %4775 = vmatmul.mubr.f32.gmra.mrb[0].mxu0 %v4661
        %v4776 = vpop.f32.mrb[0].mxu0
        %v4777 = vadd.f32 %v4655, %v4776
        %v4778 = vpop.f32.mrb[0].mxu0
        %4779 = vmatprep.mubr.f32.mxu0 0.0
        %4780 = vmatmul.mubr.f32.gmra.mrb[0].mxu0 %v4664
        %v4781 = vpop.f32.mrb[0].mxu0
        %v4782 = vadd.f32 %v4655, %v4781
        %v4783 = vpop.f32.mrb[0].mxu0
        %4784 = vmatprep.mubr.f32.mxu0 0.0
        %4785 = vmatmul.mubr.f32.gmra.mrb[0].mxu0 %v4667
        %v4786 = vpop.f32.mrb[0].mxu0
        %v4787 = vadd.f32 %v4655, %v4786
        %v4788 = vpop.f32.mrb[0].mxu0
        %4789 = vmatprep.mubr.f32.mxu0 0.0
        %4790 = vmatmul.mubr.f32.gmra.mrb[0].mxu0 %v4670
        %v4791 = vpop.f32.mrb[0].mxu0
        %v4792 = vadd.f32 %v4655, %v4791
        %v4793 = vpop.f32.mrb[0].mxu0
        %4794 = vmatprep.mubr.f32.mxu0 0.0
        %4795 = vmatmul.mubr.f32.gmra.mrb[0].mxu0 %v4673
        %v4796 = vpop.f32.mrb[0].mxu0
        %v4797 = vadd.f32 %v4655, %v4796
        %v4798 = vpop.f32.mrb[0].mxu0
        %4799 = vmatprep.mubr.f32.mxu0 0.0
        %4800 = vmatmul.mubr.f32.gmra.mrb[0].mxu0 %v4676
        %v4801 = vpop.f32.mrb[0].mxu0
        %v4802 = vadd.f32 %v4655, %v4801
        %v4803 = vpop.f32.mrb[0].mxu0
        %4804 = vmatprep.mubr.f32.mxu0 0.0
        %4805 = vmatmul.mubr.f32.gmra.mrb[0].mxu0 %v4679
        %v4806 = vpop.f32.mrb[0].mxu0
        %v4807 = vadd.f32 %v4655, %v4806
        %v4808 = vpop.f32.mrb[0].mxu0
        %4809 = vmatprep.mubr.f32.mxu0 0.0
        %4810 = vmatmul.mubr.f32.gmra.mrb[0].mxu0 %v4682
        %v4811 = vpop.f32.mrb[0].mxu0
        %v4812 = vadd.f32 %v4655, %v4811
        %v4813 = vpop.f32.mrb[0].mxu0
        %4814 = vmatprep.mubr.f32.mxu0 0.0
        %4815 = vmatmul.mubr.f32.gmra.mrb[0].mxu0 %v4685
        %v4816 = vpop.f32.mrb[0].mxu0
        %v4817 = vadd.f32 %v4655, %v4816
        %v4818 = vpop.f32.mrb[0].mxu0
        %4819 = vmatprep.mubr.f32.mxu0 0.0
        %4820 = vmatmul.mubr.f32.gmra.mrb[0].mxu0 %v4688
        %v4821 = vpop.f32.mrb[0].mxu0
        %v4822 = vadd.f32 %v4655, %v4821
        %v4823 = vpop.f32.mrb[0].mxu0
        %4824 = vmatprep.mubr.f32.mxu0 0.0
        %4825 = vmatmul.mubr.f32.gmra.mrb[0].mxu0 %v4691
        %v4826 = vpop.f32.mrb[0].mxu0
        %v4827 = vadd.f32 %v4655, %v4826
        %v4828 = vpop.f32.mrb[0].mxu0
        %4829 = vmatprep.mubr.f32.mxu0 0.0
        %4830 = vmatmul.mubr.f32.gmra.mrb[0].mxu0 %v4694
        %v4831 = vpop.f32.mrb[0].mxu0
        %v4832 = vadd.f32 %v4655, %v4831
        %v4833 = vpop.f32.mrb[0].mxu0
        %4834 = vmatprep.mubr.f32.mxu0 0.0
        %4835 = vmatmul.mubr.f32.gmra.mrb[0].mxu0 %v4697
        %v4836 = vpop.f32.mrb[0].mxu0
        %v4837 = vadd.f32 %v4655, %v4836
        %v4838 = vpop.f32.mrb[0].mxu0
        %4839 = vmatprep.mubr.f32.mxu0 0.0
        %4840 = vmatmul.mubr.f32.gmra.mrb[0].mxu0 %v4700
        %v4841 = vpop.f32.mrb[0].mxu0
        %v4842 = vadd.f32 %v4655, %v4841
        %v4843 = vpop.f32.mrb[0].mxu0
        %4844 = vmatprep.mubr.f32.mxu0 0.0
        %4845 = vmatmul.mubr.f32.gmra.mrb[0].mxu0 %v4703
        %v4846 = vpop.f32.mrb[0].mxu0
        %v4847 = vadd.f32 %v4655, %v4846
        %v4848 = vpop.f32.mrb[0].mxu0
        %4849 = vdwg.mxu0
        %s4850 = scalar_lea.vmem [#allocation7], 64
        %v4851 = vld [vmem:[%s4850] sm:$0xff]
        %v4852 = vld [vmem:[%s4850 + $0x8] sm:$0xff]
        %v4853 = vld [vmem:[%s4850 + $0x10] sm:$0xff]
        %v4854 = vld [vmem:[%s4850 + $0x18] sm:$0xff]
        %v4855 = vld [vmem:[%s4850 + $0x20] sm:$0xff]
        %v4856 = vld [vmem:[%s4850 + $0x28] sm:$0xff]
        %v4857 = vld [vmem:[%s4850 + $0x30] sm:$0xff]
        %v4858 = vld [vmem:[%s4850 + $0x38] sm:$0xff]
        %v4860 = vlaneseq
        %v4861 = vshrl.u32 %v4860, 7
        %v4862 = vsub.s32 0, %v4861
        %v4863 = vrot.slane %v4629, %v4862
        %4865 = vmatprep.subr.mxu0 0.0
        %4866 = vmatpush1.msra.mxu0 %v4851
        %4867 = vmatprep.subr.mxu0 0.0
        %4868 = vmatpush1.msra.mxu0 %v4852
        %4869 = vmatprep.subr.mxu0 0.0
        %4870 = vmatpush1.msra.mxu0 %v4853
        %4871 = vmatprep.subr.mxu0 0.0
        %4872 = vmatpush1.msra.mxu0 %v4854
        %4873 = vmatprep.subr.mxu0 0.0
        %4874 = vmatpush1.msra.mxu0 %v4855
        %4875 = vmatprep.subr.mxu0 0.0
        %4876 = vmatpush1.msra.mxu0 %v4856
        %4877 = vmatprep.subr.mxu0 0.0
        %4878 = vmatpush1.msra.mxu0 %v4857
        %4879 = vmatprep.subr.mxu0 0.0
        %4880 = vmatpush1.msra.mxu0 %v4858
        %4881 = vmatprep.subr.mxu0 0.0
        %4882 = vmatpush1.msra.mxu0 0.0
        %4883 = vmatprep.subr.mxu0 0.0
        %4884 = vmatpush1.msra.mxu0 0.0
        %4885 = vmatprep.subr.mxu0 0.0
        %4886 = vmatpush1.msra.mxu0 0.0
        %4887 = vmatprep.subr.mxu0 0.0
        %4888 = vmatpush1.msra.mxu0 0.0
        %4889 = vmatprep.subr.mxu0 0.0
        %4890 = vmatpush1.msra.mxu0 0.0
        %4891 = vmatprep.subr.mxu0 0.0
        %4892 = vmatpush1.msra.mxu0 0.0
        %4893 = vmatprep.subr.mxu0 0.0
        %4894 = vmatpush1.msra.mxu0 0.0
        %4895 = vmatprep.subr.mxu0 0.0
        %4896 = vmatpush1.msra.mxu0 0.0
        %4897 = vmatprep.subr.mxu0 0.0
        %4898 = vmatpush1.msra.mxu0 0.0
        %4899 = vmatprep.subr.mxu0 0.0
        %4900 = vmatpush1.msra.mxu0 0.0
        %4901 = vmatprep.subr.mxu0 0.0
        %4902 = vmatpush1.msra.mxu0 0.0
        %4903 = vmatprep.subr.mxu0 0.0
        %4904 = vmatpush1.msra.mxu0 0.0
        %4905 = vmatprep.subr.mxu0 0.0
        %4906 = vmatpush1.msra.mxu0 0.0
        %4907 = vmatprep.subr.mxu0 0.0
        %4908 = vmatpush1.msra.mxu0 0.0
        %4909 = vmatprep.subr.mxu0 0.0
        %4910 = vmatpush1.msra.mxu0 0.0
        %4911 = vmatprep.subr.mxu0 0.0
        %4912 = vmatpush1.msra.mxu0 0.0
        %4913 = vmatprep.subr.mxu0 0.0
        %4914 = vmatpush1.msra.mxu0 0.0
        %4915 = vmatprep.subr.mxu0 0.0
        %4916 = vmatpush1.msra.mxu0 0.0
        %4917 = vmatprep.subr.mxu0 0.0
        %4918 = vmatpush1.msra.mxu0 0.0
        %4919 = vmatprep.subr.mxu0 0.0
        %4920 = vmatpush1.msra.mxu0 0.0
        %4921 = vmatprep.subr.mxu0 0.0
        %4922 = vmatpush1.msra.mxu0 0.0
        %4923 = vmatprep.subr.mxu0 0.0
        %4924 = vmatpush1.msra.mxu0 0.0
        %4925 = vmatprep.subr.mxu0 0.0
        %4926 = vmatpush1.msra.mxu0 0.0
        %4927 = vmatprep.subr.mxu0 0.0
        %4928 = vmatpush1.msra.mxu0 0.0
        %4929 = vmatprep.mubr.f32.mxu0 0.0
        %4930 = vmatmul.mubr.f32.gmra.mrb[0].mxu0 %v4658
        %v4931 = vpop.f32.mrb[0].mxu0
        %v4932 = vadd.f32 %v4863, %v4931
        %v4933 = vpop.f32.mrb[0].mxu0
        %4934 = vmatprep.mubr.f32.mxu0 0.0
        %4935 = vmatmul.mubr.f32.gmra.mrb[0].mxu0 %v4661
        %v4936 = vpop.f32.mrb[0].mxu0
        %v4937 = vadd.f32 %v4863, %v4936
        %v4938 = vpop.f32.mrb[0].mxu0
        %4939 = vmatprep.mubr.f32.mxu0 0.0
        %4940 = vmatmul.mubr.f32.gmra.mrb[0].mxu0 %v4664
        %v4941 = vpop.f32.mrb[0].mxu0
        %v4942 = vadd.f32 %v4863, %v4941
        %v4943 = vpop.f32.mrb[0].mxu0
        %4944 = vmatprep.mubr.f32.mxu0 0.0
        %4945 = vmatmul.mubr.f32.gmra.mrb[0].mxu0 %v4667
        %v4946 = vpop.f32.mrb[0].mxu0
        %v4947 = vadd.f32 %v4863, %v4946
        %v4948 = vpop.f32.mrb[0].mxu0
        %4949 = vmatprep.mubr.f32.mxu0 0.0
        %4950 = vmatmul.mubr.f32.gmra.mrb[0].mxu0 %v4670
        %v4951 = vpop.f32.mrb[0].mxu0
        %v4952 = vadd.f32 %v4863, %v4951
        %v4953 = vpop.f32.mrb[0].mxu0
        %4954 = vmatprep.mubr.f32.mxu0 0.0
        %4955 = vmatmul.mubr.f32.gmra.mrb[0].mxu0 %v4673
        %v4956 = vpop.f32.mrb[0].mxu0
        %v4957 = vadd.f32 %v4863, %v4956
        %v4958 = vpop.f32.mrb[0].mxu0
        %4959 = vmatprep.mubr.f32.mxu0 0.0
        %4960 = vmatmul.mubr.f32.gmra.mrb[0].mxu0 %v4676
        %v4961 = vpop.f32.mrb[0].mxu0
        %v4962 = vadd.f32 %v4863, %v4961
        %v4963 = vpop.f32.mrb[0].mxu0
        %4964 = vmatprep.mubr.f32.mxu0 0.0
        %4965 = vmatmul.mubr.f32.gmra.mrb[0].mxu0 %v4679
        %v4966 = vpop.f32.mrb[0].mxu0
        %v4967 = vadd.f32 %v4863, %v4966
        %v4968 = vpop.f32.mrb[0].mxu0
        %4969 = vmatprep.mubr.f32.mxu0 0.0
        %4970 = vmatmul.mubr.f32.gmra.mrb[0].mxu0 %v4682
        %v4971 = vpop.f32.mrb[0].mxu0
        %v4972 = vadd.f32 %v4863, %v4971
        %v4973 = vpop.f32.mrb[0].mxu0
        %4974 = vmatprep.mubr.f32.mxu0 0.0
        %4975 = vmatmul.mubr.f32.gmra.mrb[0].mxu0 %v4685
        %v4976 = vpop.f32.mrb[0].mxu0
        %v4977 = vadd.f32 %v4863, %v4976
        %v4978 = vpop.f32.mrb[0].mxu0
        %4979 = vmatprep.mubr.f32.mxu0 0.0
        %4980 = vmatmul.mubr.f32.gmra.mrb[0].mxu0 %v4688
        %v4981 = vpop.f32.mrb[0].mxu0
        %v4982 = vadd.f32 %v4863, %v4981
        %v4983 = vpop.f32.mrb[0].mxu0
        %4984 = vmatprep.mubr.f32.mxu0 0.0
        %4985 = vmatmul.mubr.f32.gmra.mrb[0].mxu0 %v4691
        %v4986 = vpop.f32.mrb[0].mxu0
        %v4987 = vadd.f32 %v4863, %v4986
        %v4988 = vpop.f32.mrb[0].mxu0
        %4989 = vmatprep.mubr.f32.mxu0 0.0
        %4990 = vmatmul.mubr.f32.gmra.mrb[0].mxu0 %v4694
        %v4991 = vpop.f32.mrb[0].mxu0
        %v4992 = vadd.f32 %v4863, %v4991
        %v4993 = vpop.f32.mrb[0].mxu0
        %4994 = vmatprep.mubr.f32.mxu0 0.0
        %4995 = vmatmul.mubr.f32.gmra.mrb[0].mxu0 %v4697
        %v4996 = vpop.f32.mrb[0].mxu0
        %v4997 = vadd.f32 %v4863, %v4996
        %v4998 = vpop.f32.mrb[0].mxu0
        %4999 = vmatprep.mubr.f32.mxu0 0.0
        %5000 = vmatmul.mubr.f32.gmra.mrb[0].mxu0 %v4700
        %v5001 = vpop.f32.mrb[0].mxu0
        %v5002 = vadd.f32 %v4863, %v5001
        %v5003 = vpop.f32.mrb[0].mxu0
        %5004 = vmatprep.mubr.f32.mxu0 0.0
        %5005 = vmatmul.mubr.f32.gmra.mrb[0].mxu0 %v4703
        %v5006 = vpop.f32.mrb[0].mxu0
        %v5007 = vadd.f32 %v4863, %v5006
        %v5008 = vpop.f32.mrb[0].mxu0
        %5009 = vdwg.mxu0
        %s5010 = scalar_lea.vmem %s6, 128
        %v5011 = vld [vmem:[%s5010] sm:$0xff]
        %v5012 = vld [vmem:[%s5010 + $0x8] sm:$0xff]
        %v5013 = vld [vmem:[%s5010 + $0x10] sm:$0xff]
        %v5014 = vld [vmem:[%s5010 + $0x18] sm:$0xff]
        %v5015 = vld [vmem:[%s5010 + $0x20] sm:$0xff]
        %v5016 = vld [vmem:[%s5010 + $0x28] sm:$0xff]
        %v5017 = vld [vmem:[%s5010 + $0x30] sm:$0xff]
        %v5018 = vld [vmem:[%s5010 + $0x38] sm:$0xff]
        %v5019 = vld [vmem:[%s5010 + $0x40] sm:$0xff]
        %v5020 = vld [vmem:[%s5010 + $0x48] sm:$0xff]
        %v5021 = vld [vmem:[%s5010 + $0x50] sm:$0xff]
        %v5022 = vld [vmem:[%s5010 + $0x58] sm:$0xff]
        %v5023 = vld [vmem:[%s5010 + $0x60] sm:$0xff]
        %v5024 = vld [vmem:[%s5010 + $0x68] sm:$0xff]
        %v5025 = vld [vmem:[%s5010 + $0x70] sm:$0xff]
        %v5026 = vld [vmem:[%s5010 + $0x78] sm:$0xff]
        %5027 = vmatprep.subr.mxu0 %v5012
        %5028 = vmatpush1.msra.mxu0 %v5011
        %5029 = vmatprep.subr.mxu0 %v5014
        %5030 = vmatpush1.msra.mxu0 %v5013
        %5031 = vmatprep.subr.mxu0 %v5016
        %5032 = vmatpush1.msra.mxu0 %v5015
        %5033 = vmatprep.subr.mxu0 %v5018
        %5034 = vmatpush1.msra.mxu0 %v5017
        %5035 = vmatprep.subr.mxu0 %v5020
        %5036 = vmatpush1.msra.mxu0 %v5019
        %5037 = vmatprep.subr.mxu0 %v5022
        %5038 = vmatpush1.msra.mxu0 %v5021
        %5039 = vmatprep.subr.mxu0 %v5024
        %5040 = vmatpush1.msra.mxu0 %v5023
        %5041 = vmatprep.subr.mxu0 %v5026
        %5042 = vmatpush1.msra.mxu0 %v5025
        %5043 = vmatprep.subr.mxu0 0.0
        %5044 = vmatpush1.msra.mxu0 0.0
        %5045 = vmatprep.subr.mxu0 0.0
        %5046 = vmatpush1.msra.mxu0 0.0
        %5047 = vmatprep.subr.mxu0 0.0
        %5048 = vmatpush1.msra.mxu0 0.0
        %5049 = vmatprep.subr.mxu0 0.0
        %5050 = vmatpush1.msra.mxu0 0.0
        %5051 = vmatprep.subr.mxu0 0.0
        %5052 = vmatpush1.msra.mxu0 0.0
        %5053 = vmatprep.subr.mxu0 0.0
        %5054 = vmatpush1.msra.mxu0 0.0
        %5055 = vmatprep.subr.mxu0 0.0
        %5056 = vmatpush1.msra.mxu0 0.0
        %5057 = vmatprep.subr.mxu0 0.0
        %5058 = vmatpush1.msra.mxu0 0.0
        %5059 = vmatprep.subr.mxu0 0.0
        %5060 = vmatpush1.msra.mxu0 0.0
        %5061 = vmatprep.subr.mxu0 0.0
        %5062 = vmatpush1.msra.mxu0 0.0
        %5063 = vmatprep.subr.mxu0 0.0
        %5064 = vmatpush1.msra.mxu0 0.0
        %5065 = vmatprep.subr.mxu0 0.0
        %5066 = vmatpush1.msra.mxu0 0.0
        %5067 = vmatprep.subr.mxu0 0.0
        %5068 = vmatpush1.msra.mxu0 0.0
        %5069 = vmatprep.subr.mxu0 0.0
        %5070 = vmatpush1.msra.mxu0 0.0
        %5071 = vmatprep.subr.mxu0 0.0
        %5072 = vmatpush1.msra.mxu0 0.0
        %5073 = vmatprep.subr.mxu0 0.0
        %5074 = vmatpush1.msra.mxu0 0.0
        %5075 = vmatprep.subr.mxu0 0.0
        %5076 = vmatpush1.msra.mxu0 0.0
        %5077 = vmatprep.subr.mxu0 0.0
        %5078 = vmatpush1.msra.mxu0 0.0
        %5079 = vmatprep.subr.mxu0 0.0
        %5080 = vmatpush1.msra.mxu0 0.0
        %5081 = vmatprep.subr.mxu0 0.0
        %5082 = vmatpush1.msra.mxu0 0.0
        %5083 = vmatprep.subr.mxu0 0.0
        %5084 = vmatpush1.msra.mxu0 0.0
        %5085 = vmatprep.subr.mxu0 0.0
        %5086 = vmatpush1.msra.mxu0 0.0
        %5087 = vmatprep.subr.mxu0 0.0
        %5088 = vmatpush1.msra.mxu0 0.0
        %5089 = vmatprep.subr.mxu0 0.0
        %5090 = vmatpush1.msra.mxu0 0.0
        %5091 = vmatprep.mubr.f32.mxu0 0.0
        %5092 = vmatmul.mubr.f32.gmra.mrb[0].mxu0 %v4658
        %v5093 = vpop.f32.mrb[0].mxu0
        %v5094 = vadd.f32 0.0, %v5093
        %v5095 = vpop.f32.mrb[0].mxu0
        %v5096 = vadd.f32 0.0, %v5095
        %5097 = vmatprep.mubr.f32.mxu0 0.0
        %5098 = vmatmul.mubr.f32.gmra.mrb[0].mxu0 %v4661
        %v5099 = vpop.f32.mrb[0].mxu0
        %v5100 = vadd.f32 0.0, %v5099
        %v5101 = vpop.f32.mrb[0].mxu0
        %v5102 = vadd.f32 0.0, %v5101
        %5103 = vmatprep.mubr.f32.mxu0 0.0
        %5104 = vmatmul.mubr.f32.gmra.mrb[0].mxu0 %v4664
        %v5105 = vpop.f32.mrb[0].mxu0
        %v5106 = vadd.f32 0.0, %v5105
        %v5107 = vpop.f32.mrb[0].mxu0
        %v5108 = vadd.f32 0.0, %v5107
        %5109 = vmatprep.mubr.f32.mxu0 0.0
        %5110 = vmatmul.mubr.f32.gmra.mrb[0].mxu0 %v4667
        %v5111 = vpop.f32.mrb[0].mxu0
        %v5112 = vadd.f32 0.0, %v5111
        %v5113 = vpop.f32.mrb[0].mxu0
        %v5114 = vadd.f32 0.0, %v5113
        %5115 = vmatprep.mubr.f32.mxu0 0.0
        %5116 = vmatmul.mubr.f32.gmra.mrb[0].mxu0 %v4670
        %v5117 = vpop.f32.mrb[0].mxu0
        %v5118 = vadd.f32 0.0, %v5117
        %v5119 = vpop.f32.mrb[0].mxu0
        %v5120 = vadd.f32 0.0, %v5119
        %5121 = vmatprep.mubr.f32.mxu0 0.0
        %5122 = vmatmul.mubr.f32.gmra.mrb[0].mxu0 %v4673
        %v5123 = vpop.f32.mrb[0].mxu0
        %v5124 = vadd.f32 0.0, %v5123
        %v5125 = vpop.f32.mrb[0].mxu0
        %v5126 = vadd.f32 0.0, %v5125
        %5127 = vmatprep.mubr.f32.mxu0 0.0
        %5128 = vmatmul.mubr.f32.gmra.mrb[0].mxu0 %v4676
        %v5129 = vpop.f32.mrb[0].mxu0
        %v5130 = vadd.f32 0.0, %v5129
        %v5131 = vpop.f32.mrb[0].mxu0
        %v5132 = vadd.f32 0.0, %v5131
        %5133 = vmatprep.mubr.f32.mxu0 0.0
        %5134 = vmatmul.mubr.f32.gmra.mrb[0].mxu0 %v4679
        %v5135 = vpop.f32.mrb[0].mxu0
        %v5136 = vadd.f32 0.0, %v5135
        %v5137 = vpop.f32.mrb[0].mxu0
        %v5138 = vadd.f32 0.0, %v5137
        %5139 = vmatprep.mubr.f32.mxu0 0.0
        %5140 = vmatmul.mubr.f32.gmra.mrb[0].mxu0 %v4682
        %v5141 = vpop.f32.mrb[0].mxu0
        %v5142 = vadd.f32 0.0, %v5141
        %v5143 = vpop.f32.mrb[0].mxu0
        %v5144 = vadd.f32 0.0, %v5143
        %5145 = vmatprep.mubr.f32.mxu0 0.0
        %5146 = vmatmul.mubr.f32.gmra.mrb[0].mxu0 %v4685
        %v5147 = vpop.f32.mrb[0].mxu0
        %v5148 = vadd.f32 0.0, %v5147
        %v5149 = vpop.f32.mrb[0].mxu0
        %v5150 = vadd.f32 0.0, %v5149
        %5151 = vmatprep.mubr.f32.mxu0 0.0
        %5152 = vmatmul.mubr.f32.gmra.mrb[0].mxu0 %v4688
        %v5153 = vpop.f32.mrb[0].mxu0
        %v5154 = vadd.f32 0.0, %v5153
        %v5155 = vpop.f32.mrb[0].mxu0
        %v5156 = vadd.f32 0.0, %v5155
        %5157 = vmatprep.mubr.f32.mxu0 0.0
        %5158 = vmatmul.mubr.f32.gmra.mrb[0].mxu0 %v4691
        %v5159 = vpop.f32.mrb[0].mxu0
        %v5160 = vadd.f32 0.0, %v5159
        %v5161 = vpop.f32.mrb[0].mxu0
        %v5162 = vadd.f32 0.0, %v5161
        %5163 = vmatprep.mubr.f32.mxu0 0.0
        %5164 = vmatmul.mubr.f32.gmra.mrb[0].mxu0 %v4694
        %v5165 = vpop.f32.mrb[0].mxu0
        %v5166 = vadd.f32 0.0, %v5165
        %v5167 = vpop.f32.mrb[0].mxu0
        %v5168 = vadd.f32 0.0, %v5167
        %5169 = vmatprep.mubr.f32.mxu0 0.0
        %5170 = vmatmul.mubr.f32.gmra.mrb[0].mxu0 %v4697
        %v5171 = vpop.f32.mrb[0].mxu0
        %v5172 = vadd.f32 0.0, %v5171
        %v5173 = vpop.f32.mrb[0].mxu0
        %v5174 = vadd.f32 0.0, %v5173
        %5175 = vmatprep.mubr.f32.mxu0 0.0
        %5176 = vmatmul.mubr.f32.gmra.mrb[0].mxu0 %v4700
        %v5177 = vpop.f32.mrb[0].mxu0
        %v5178 = vadd.f32 0.0, %v5177
        %v5179 = vpop.f32.mrb[0].mxu0
        %v5180 = vadd.f32 0.0, %v5179
        %5181 = vmatprep.mubr.f32.mxu0 0.0
        %5182 = vmatmul.mubr.f32.gmra.mrb[0].mxu0 %v4703
        %v5183 = vpop.f32.mrb[0].mxu0
        %v5184 = vadd.f32 0.0, %v5183
        %v5185 = vpop.f32.mrb[0].mxu0
        %v5186 = vadd.f32 0.0, %v5185
        %5187 = vdwg.mxu0
        %v5189 = vsel %vm1299, %v4772, 0
        %v5192 = vsel %vm1299, %v4777, 0
        %v5195 = vsel %vm1299, %v4782, 0
        %v5198 = vsel %vm1299, %v4787, 0
        %v5201 = vsel %vm1299, %v4792, 0
        %v5204 = vsel %vm1299, %v4797, 0
        %v5207 = vsel %vm1299, %v4802, 0
        %v5210 = vsel %vm1299, %v4807, 0
        %v5213 = vsel %vm1299, %v4812, 0
        %v5216 = vsel %vm1299, %v4817, 0
        %v5219 = vsel %vm1299, %v4822, 0
        %v5222 = vsel %vm1299, %v4827, 0
        %v5225 = vsel %vm1299, %v4832, 0
        %v5228 = vsel %vm1299, %v4837, 0
        %v5231 = vsel %vm1299, %v4842, 0
        %v5234 = vsel %vm1299, %v4847, 0
        %v5237 = vsel %vm1299, %v4932, 0
        %v5240 = vsel %vm1299, %v4937, 0
        %v5243 = vsel %vm1299, %v4942, 0
        %v5246 = vsel %vm1299, %v4947, 0
        %v5249 = vsel %vm1299, %v4952, 0
        %v5252 = vsel %vm1299, %v4957, 0
        %v5255 = vsel %vm1299, %v4962, 0
        %v5258 = vsel %vm1299, %v4967, 0
        %v5261 = vsel %vm1299, %v4972, 0
        %v5264 = vsel %vm1299, %v4977, 0
        %v5267 = vsel %vm1299, %v4982, 0
        %v5270 = vsel %vm1299, %v4987, 0
        %v5273 = vsel %vm1299, %v4992, 0
        %v5276 = vsel %vm1299, %v4997, 0
        %v5279 = vsel %vm1299, %v5002, 0
        %v5282 = vsel %vm1299, %v5007, 0
        %5284 = vmatprep.subr.mxu0 0.0
        %5285 = vmatpush1.xpose.msra.mxu0 %v5237
        %5286 = vmatprep.subr.mxu0 0.0
        %5287 = vmatpush1.xpose.msra.mxu0 %v5240
        %5288 = vmatprep.subr.mxu0 0.0
        %5289 = vmatpush1.xpose.msra.mxu0 %v5243
        %5290 = vmatprep.subr.mxu0 0.0
        %5291 = vmatpush1.xpose.msra.mxu0 %v5246
        %5292 = vmatprep.subr.mxu0 0.0
        %5293 = vmatpush1.xpose.msra.mxu0 %v5249
        %5294 = vmatprep.subr.mxu0 0.0
        %5295 = vmatpush1.xpose.msra.mxu0 %v5252
        %5296 = vmatprep.subr.mxu0 0.0
        %5297 = vmatpush1.xpose.msra.mxu0 %v5255
        %5298 = vmatprep.subr.mxu0 0.0
        %5299 = vmatpush1.xpose.msra.mxu0 %v5258
        %5300 = vmatprep.subr.mxu0 0.0
        %5301 = vmatpush1.xpose.msra.mxu0 %v5261
        %5302 = vmatprep.subr.mxu0 0.0
        %5303 = vmatpush1.xpose.msra.mxu0 %v5264
        %5304 = vmatprep.subr.mxu0 0.0
        %5305 = vmatpush1.xpose.msra.mxu0 %v5267
        %5306 = vmatprep.subr.mxu0 0.0
        %5307 = vmatpush1.xpose.msra.mxu0 %v5270
        %5308 = vmatprep.subr.mxu0 0.0
        %5309 = vmatpush1.xpose.msra.mxu0 %v5273
        %5310 = vmatprep.subr.mxu0 0.0
        %5311 = vmatpush1.xpose.msra.mxu0 %v5276
        %5312 = vmatprep.subr.mxu0 0.0
        %5313 = vmatpush1.xpose.msra.mxu0 %v5279
        %5314 = vmatprep.subr.mxu0 0.0
        %5315 = vmatpush1.xpose.msra.mxu0 %v5282
        %5316 = vmatprep.subr.mxu0 0.0
        %5317 = vmatpush1.xpose.msra.mxu0 0.0
        %5318 = vmatprep.subr.mxu0 0.0
        %5319 = vmatpush1.xpose.msra.mxu0 0.0
        %5320 = vmatprep.subr.mxu0 0.0
        %5321 = vmatpush1.xpose.msra.mxu0 0.0
        %5322 = vmatprep.subr.mxu0 0.0
        %5323 = vmatpush1.xpose.msra.mxu0 0.0
        %5324 = vmatprep.subr.mxu0 0.0
        %5325 = vmatpush1.xpose.msra.mxu0 0.0
        %5326 = vmatprep.subr.mxu0 0.0
        %5327 = vmatpush1.xpose.msra.mxu0 0.0
        %5328 = vmatprep.subr.mxu0 0.0
        %5329 = vmatpush1.xpose.msra.mxu0 0.0
        %5330 = vmatprep.subr.mxu0 0.0
        %5331 = vmatpush1.xpose.msra.mxu0 0.0
        %5332 = vmatprep.subr.mxu0 0.0
        %5333 = vmatpush1.xpose.msra.mxu0 0.0
        %5334 = vmatprep.subr.mxu0 0.0
        %5335 = vmatpush1.xpose.msra.mxu0 0.0
        %5336 = vmatprep.subr.mxu0 0.0
        %5337 = vmatpush1.xpose.msra.mxu0 0.0
        %5338 = vmatprep.subr.mxu0 0.0
        %5339 = vmatpush1.xpose.msra.mxu0 0.0
        %5340 = vmatprep.subr.mxu0 0.0
        %5341 = vmatpush1.xpose.msra.mxu0 0.0
        %5342 = vmatprep.subr.mxu0 0.0
        %5343 = vmatpush1.xpose.msra.mxu0 0.0
        %5344 = vmatprep.subr.mxu0 0.0
        %5345 = vmatpush1.xpose.msra.mxu0 0.0
        %5346 = vmatprep.subr.mxu0 0.0
        %5347 = vmatpush1.xpose.msra.mxu0 0.0
        %5348 = vmatprep.mubr.f32.mxu0 0.0
        %5349 = vmatmul.mubr.f32.gmra.mrb[0].mxu0 %v5189
        %v5350 = vpop.f32.mrb[0].mxu0
        %v5351 = vadd.f32 %v581, %v5350
        %v5352 = vpop.f32.mrb[0].mxu0
        %5353 = vmatprep.mubr.f32.mxu0 0.0
        %5354 = vmatmul.mubr.f32.gmra.mrb[0].mxu0 %v5192
        %v5355 = vpop.f32.mrb[0].mxu0
        %v5356 = vadd.f32 %v582, %v5355
        %v5357 = vpop.f32.mrb[0].mxu0
        %5358 = vmatprep.mubr.f32.mxu0 0.0
        %5359 = vmatmul.mubr.f32.gmra.mrb[0].mxu0 %v5195
        %v5360 = vpop.f32.mrb[0].mxu0
        %v5361 = vadd.f32 %v583, %v5360
        %v5362 = vpop.f32.mrb[0].mxu0
        %5363 = vmatprep.mubr.f32.mxu0 0.0
        %5364 = vmatmul.mubr.f32.gmra.mrb[0].mxu0 %v5198
        %v5365 = vpop.f32.mrb[0].mxu0
        %v5366 = vadd.f32 %v584, %v5365
        %v5367 = vpop.f32.mrb[0].mxu0
        %5368 = vmatprep.mubr.f32.mxu0 0.0
        %5369 = vmatmul.mubr.f32.gmra.mrb[0].mxu0 %v5201
        %v5370 = vpop.f32.mrb[0].mxu0
        %v5371 = vadd.f32 %v585, %v5370
        %v5372 = vpop.f32.mrb[0].mxu0
        %5373 = vmatprep.mubr.f32.mxu0 0.0
        %5374 = vmatmul.mubr.f32.gmra.mrb[0].mxu0 %v5204
        %v5375 = vpop.f32.mrb[0].mxu0
        %v5376 = vadd.f32 %v586, %v5375
        %v5377 = vpop.f32.mrb[0].mxu0
        %5378 = vmatprep.mubr.f32.mxu0 0.0
        %5379 = vmatmul.mubr.f32.gmra.mrb[0].mxu0 %v5207
        %v5380 = vpop.f32.mrb[0].mxu0
        %v5381 = vadd.f32 %v587, %v5380
        %v5382 = vpop.f32.mrb[0].mxu0
        %5383 = vmatprep.mubr.f32.mxu0 0.0
        %5384 = vmatmul.mubr.f32.gmra.mrb[0].mxu0 %v5210
        %v5385 = vpop.f32.mrb[0].mxu0
        %v5386 = vadd.f32 %v588, %v5385
        %v5387 = vpop.f32.mrb[0].mxu0
        %5388 = vmatprep.mubr.f32.mxu0 0.0
        %5389 = vmatmul.mubr.f32.gmra.mrb[0].mxu0 %v5213
        %v5390 = vpop.f32.mrb[0].mxu0
        %v5391 = vadd.f32 %v589, %v5390
        %v5392 = vpop.f32.mrb[0].mxu0
        %5393 = vmatprep.mubr.f32.mxu0 0.0
        %5394 = vmatmul.mubr.f32.gmra.mrb[0].mxu0 %v5216
        %v5395 = vpop.f32.mrb[0].mxu0
        %v5396 = vadd.f32 %v590, %v5395
        %v5397 = vpop.f32.mrb[0].mxu0
        %5398 = vmatprep.mubr.f32.mxu0 0.0
        %5399 = vmatmul.mubr.f32.gmra.mrb[0].mxu0 %v5219
        %v5400 = vpop.f32.mrb[0].mxu0
        %v5401 = vadd.f32 %v591, %v5400
        %v5402 = vpop.f32.mrb[0].mxu0
        %5403 = vmatprep.mubr.f32.mxu0 0.0
        %5404 = vmatmul.mubr.f32.gmra.mrb[0].mxu0 %v5222
        %v5405 = vpop.f32.mrb[0].mxu0
        %v5406 = vadd.f32 %v592, %v5405
        %v5407 = vpop.f32.mrb[0].mxu0
        %5408 = vmatprep.mubr.f32.mxu0 0.0
        %5409 = vmatmul.mubr.f32.gmra.mrb[0].mxu0 %v5225
        %v5410 = vpop.f32.mrb[0].mxu0
        %v5411 = vadd.f32 %v593, %v5410
        %v5412 = vpop.f32.mrb[0].mxu0
        %5413 = vmatprep.mubr.f32.mxu0 0.0
        %5414 = vmatmul.mubr.f32.gmra.mrb[0].mxu0 %v5228
        %v5415 = vpop.f32.mrb[0].mxu0
        %v5416 = vadd.f32 %v594, %v5415
        %v5417 = vpop.f32.mrb[0].mxu0
        %5418 = vmatprep.mubr.f32.mxu0 0.0
        %5419 = vmatmul.mubr.f32.gmra.mrb[0].mxu0 %v5231
        %v5420 = vpop.f32.mrb[0].mxu0
        %v5421 = vadd.f32 %v595, %v5420
        %v5422 = vpop.f32.mrb[0].mxu0
        %5423 = vmatprep.mubr.f32.mxu0 0.0
        %5424 = vmatmul.mubr.f32.gmra.mrb[0].mxu0 %v5234
        %v5425 = vpop.f32.mrb[0].mxu0
        %v5426 = vadd.f32 %v596, %v5425
        %v5427 = vpop.f32.mrb[0].mxu0
        %5428 = vdwg.mxu0
        %5429 = vmax.xlane.f32.xlu0 %v5351
        %v5430 = vpop.xlane.xlu0 %5429
        %5431 = vmax.xlane.f32.xlu0 %v5356
        %v5432 = vpop.xlane.xlu0 %5431
        %5433 = vmax.xlane.f32.xlu0 %v5361
        %v5434 = vpop.xlane.xlu0 %5433
        %5435 = vmax.xlane.f32.xlu0 %v5366
        %v5436 = vpop.xlane.xlu0 %5435
        %5437 = vmax.xlane.f32.xlu0 %v5371
        %v5438 = vpop.xlane.xlu0 %5437
        %5439 = vmax.xlane.f32.xlu0 %v5376
        %v5440 = vpop.xlane.xlu0 %5439
        %5441 = vmax.xlane.f32.xlu0 %v5381
        %v5442 = vpop.xlane.xlu0 %5441
        %5443 = vmax.xlane.f32.xlu0 %v5386
        %v5444 = vpop.xlane.xlu0 %5443
        %5445 = vmax.xlane.f32.xlu0 %v5391
        %v5446 = vpop.xlane.xlu0 %5445
        %5447 = vmax.xlane.f32.xlu0 %v5396
        %v5448 = vpop.xlane.xlu0 %5447
        %5449 = vmax.xlane.f32.xlu0 %v5401
        %v5450 = vpop.xlane.xlu0 %5449
        %5451 = vmax.xlane.f32.xlu0 %v5406
        %v5452 = vpop.xlane.xlu0 %5451
        %5453 = vmax.xlane.f32.xlu0 %v5411
        %v5454 = vpop.xlane.xlu0 %5453
        %5455 = vmax.xlane.f32.xlu0 %v5416
        %v5456 = vpop.xlane.xlu0 %5455
        %5457 = vmax.xlane.f32.xlu0 %v5421
        %v5458 = vpop.xlane.xlu0 %5457
        %5459 = vmax.xlane.f32.xlu0 %v5426
        %v5460 = vpop.xlane.xlu0 %5459
        %v5461 = vsub.f32 %v5351, %v5430
        %v5462 = vsub.f32 %v5356, %v5432
        %v5463 = vsub.f32 %v5361, %v5434
        %v5464 = vsub.f32 %v5366, %v5436
        %v5465 = vsub.f32 %v5371, %v5438
        %v5466 = vsub.f32 %v5376, %v5440
        %v5467 = vsub.f32 %v5381, %v5442
        %v5468 = vsub.f32 %v5386, %v5444
        %v5469 = vsub.f32 %v5391, %v5446
        %v5470 = vsub.f32 %v5396, %v5448
        %v5471 = vsub.f32 %v5401, %v5450
        %v5472 = vsub.f32 %v5406, %v5452
        %v5473 = vsub.f32 %v5411, %v5454
        %v5474 = vsub.f32 %v5416, %v5456
        %v5475 = vsub.f32 %v5421, %v5458
        %v5476 = vsub.f32 %v5426, %v5460
        %v5477 = vmul.f32 %v5461, 1.442695
        %v5478 = vpow.pop %v5477
        %v5479 = vmul.f32 %v5462, 1.442695
        %v5480 = vpow.pop %v5479
        %v5481 = vmul.f32 %v5463, 1.442695
        %v5482 = vpow.pop %v5481
        %v5483 = vmul.f32 %v5464, 1.442695
        %v5484 = vpow.pop %v5483
        %v5485 = vmul.f32 %v5465, 1.442695
        %v5486 = vpow.pop %v5485
        %v5487 = vmul.f32 %v5466, 1.442695
        %v5488 = vpow.pop %v5487
        %v5489 = vmul.f32 %v5467, 1.442695
        %v5490 = vpow.pop %v5489
        %v5491 = vmul.f32 %v5468, 1.442695
        %v5492 = vpow.pop %v5491
        %v5493 = vmul.f32 %v5469, 1.442695
        %v5494 = vpow.pop %v5493
        %v5495 = vmul.f32 %v5470, 1.442695
        %v5496 = vpow.pop %v5495
        %v5497 = vmul.f32 %v5471, 1.442695
        %v5498 = vpow.pop %v5497
        %v5499 = vmul.f32 %v5472, 1.442695
        %v5500 = vpow.pop %v5499
        %v5501 = vmul.f32 %v5473, 1.442695
        %v5502 = vpow.pop %v5501
        %v5503 = vmul.f32 %v5474, 1.442695
        %v5504 = vpow.pop %v5503
        %v5505 = vmul.f32 %v5475, 1.442695
        %v5506 = vpow.pop %v5505
        %v5507 = vmul.f32 %v5476, 1.442695
        %v5508 = vpow.pop %v5507
        %5509 = vadd.xlane.f32.xlu0 %v5478
        %v5510 = vpop.xlane.xlu0 %5509
        %5511 = vadd.xlane.f32.xlu0 %v5480
        %v5512 = vpop.xlane.xlu0 %5511
        %5513 = vadd.xlane.f32.xlu0 %v5482
        %v5514 = vpop.xlane.xlu0 %5513
        %5515 = vadd.xlane.f32.xlu0 %v5484
        %v5516 = vpop.xlane.xlu0 %5515
        %5517 = vadd.xlane.f32.xlu0 %v5486
        %v5518 = vpop.xlane.xlu0 %5517
        %5519 = vadd.xlane.f32.xlu0 %v5488
        %v5520 = vpop.xlane.xlu0 %5519
        %5521 = vadd.xlane.f32.xlu0 %v5490
        %v5522 = vpop.xlane.xlu0 %5521
        %5523 = vadd.xlane.f32.xlu0 %v5492
        %v5524 = vpop.xlane.xlu0 %5523
        %5525 = vadd.xlane.f32.xlu0 %v5494
        %v5526 = vpop.xlane.xlu0 %5525
        %5527 = vadd.xlane.f32.xlu0 %v5496
        %v5528 = vpop.xlane.xlu0 %5527
        %5529 = vadd.xlane.f32.xlu0 %v5498
        %v5530 = vpop.xlane.xlu0 %5529
        %5531 = vadd.xlane.f32.xlu0 %v5500
        %v5532 = vpop.xlane.xlu0 %5531
        %5533 = vadd.xlane.f32.xlu0 %v5502
        %v5534 = vpop.xlane.xlu0 %5533
        %5535 = vadd.xlane.f32.xlu0 %v5504
        %v5536 = vpop.xlane.xlu0 %5535
        %5537 = vadd.xlane.f32.xlu0 %v5506
        %v5538 = vpop.xlane.xlu0 %5537
        %5539 = vadd.xlane.f32.xlu0 %v5508
        %v5540 = vpop.xlane.xlu0 %5539
        %v5541 = vrcp.pop %v5510
        %v5542 = vrcp.pop %v5512
        %v5543 = vrcp.pop %v5514
        %v5544 = vrcp.pop %v5516
        %v5545 = vrcp.pop %v5518
        %v5546 = vrcp.pop %v5520
        %v5547 = vrcp.pop %v5522
        %v5548 = vrcp.pop %v5524
        %v5549 = vrcp.pop %v5526
        %v5550 = vrcp.pop %v5528
        %v5551 = vrcp.pop %v5530
        %v5552 = vrcp.pop %v5532
        %v5553 = vrcp.pop %v5534
        %v5554 = vrcp.pop %v5536
        %v5555 = vrcp.pop %v5538
        %v5556 = vrcp.pop %v5540
        %v5557 = vmul.f32 %v5478, %v5541
        %v5558 = vmul.f32 %v5480, %v5542
        %v5559 = vmul.f32 %v5482, %v5543
        %v5560 = vmul.f32 %v5484, %v5544
        %v5561 = vmul.f32 %v5486, %v5545
        %v5562 = vmul.f32 %v5488, %v5546
        %v5563 = vmul.f32 %v5490, %v5547
        %v5564 = vmul.f32 %v5492, %v5548
        %v5565 = vmul.f32 %v5494, %v5549
        %v5566 = vmul.f32 %v5496, %v5550
        %v5567 = vmul.f32 %v5498, %v5551
        %v5568 = vmul.f32 %v5500, %v5552
        %v5569 = vmul.f32 %v5502, %v5553
        %v5570 = vmul.f32 %v5504, %v5554
        %v5571 = vmul.f32 %v5506, %v5555
        %v5572 = vmul.f32 %v5508, %v5556
        %5573 = vrot.lane.b32.xlu0 %v4772, 112
        %v5574 = vpop.permute.xlu0 %5573
        %5575 = vrot.lane.b32.xlu0 %v4777, 112
        %v5576 = vpop.permute.xlu0 %5575
        %5577 = vrot.lane.b32.xlu0 %v4782, 112
        %v5578 = vpop.permute.xlu0 %5577
        %5579 = vrot.lane.b32.xlu0 %v4787, 112
        %v5580 = vpop.permute.xlu0 %5579
        %5581 = vrot.lane.b32.xlu0 %v4792, 112
        %v5582 = vpop.permute.xlu0 %5581
        %5583 = vrot.lane.b32.xlu0 %v4797, 112
        %v5584 = vpop.permute.xlu0 %5583
        %5585 = vrot.lane.b32.xlu0 %v4802, 112
        %v5586 = vpop.permute.xlu0 %5585
        %5587 = vrot.lane.b32.xlu0 %v4807, 112
        %v5588 = vpop.permute.xlu0 %5587
        %5589 = vrot.lane.b32.xlu0 %v4812, 112
        %v5590 = vpop.permute.xlu0 %5589
        %5591 = vrot.lane.b32.xlu0 %v4817, 112
        %v5592 = vpop.permute.xlu0 %5591
        %5593 = vrot.lane.b32.xlu0 %v4822, 112
        %v5594 = vpop.permute.xlu0 %5593
        %5595 = vrot.lane.b32.xlu0 %v4827, 112
        %v5596 = vpop.permute.xlu0 %5595
        %5597 = vrot.lane.b32.xlu0 %v4832, 112
        %v5598 = vpop.permute.xlu0 %5597
        %5599 = vrot.lane.b32.xlu0 %v4837, 112
        %v5600 = vpop.permute.xlu0 %5599
        %5601 = vrot.lane.b32.xlu0 %v4842, 112
        %v5602 = vpop.permute.xlu0 %5601
        %5603 = vrot.lane.b32.xlu0 %v4847, 112
        %v5604 = vpop.permute.xlu0 %5603
        %5605 = vrot.lane.b32.xlu0 %v4932, 112
        %v5606 = vpop.permute.xlu0 %5605
        %5607 = vrot.lane.b32.xlu0 %v4937, 112
        %v5608 = vpop.permute.xlu0 %5607
        %5609 = vrot.lane.b32.xlu0 %v4942, 112
        %v5610 = vpop.permute.xlu0 %5609
        %5611 = vrot.lane.b32.xlu0 %v4947, 112
        %v5612 = vpop.permute.xlu0 %5611
        %5613 = vrot.lane.b32.xlu0 %v4952, 112
        %v5614 = vpop.permute.xlu0 %5613
        %5615 = vrot.lane.b32.xlu0 %v4957, 112
        %v5616 = vpop.permute.xlu0 %5615
        %5617 = vrot.lane.b32.xlu0 %v4962, 112
        %v5618 = vpop.permute.xlu0 %5617
        %5619 = vrot.lane.b32.xlu0 %v4967, 112
        %v5620 = vpop.permute.xlu0 %5619
        %5621 = vrot.lane.b32.xlu0 %v4972, 112
        %v5622 = vpop.permute.xlu0 %5621
        %5623 = vrot.lane.b32.xlu0 %v4977, 112
        %v5624 = vpop.permute.xlu0 %5623
        %5625 = vrot.lane.b32.xlu0 %v4982, 112
        %v5626 = vpop.permute.xlu0 %5625
        %5627 = vrot.lane.b32.xlu0 %v4987, 112
        %v5628 = vpop.permute.xlu0 %5627
        %5629 = vrot.lane.b32.xlu0 %v4992, 112
        %v5630 = vpop.permute.xlu0 %5629
        %5631 = vrot.lane.b32.xlu0 %v4997, 112
        %v5632 = vpop.permute.xlu0 %5631
        %5633 = vrot.lane.b32.xlu0 %v5002, 112
        %v5634 = vpop.permute.xlu0 %5633
        %5635 = vrot.lane.b32.xlu0 %v5007, 112
        %v5636 = vpop.permute.xlu0 %5635
        %v5637 = vsel %vm1299, %v5574, 0
        %v5639 = vsel %vm1299, %v5576, 0
        %v5641 = vsel %vm1299, %v5578, 0
        %v5643 = vsel %vm1299, %v5580, 0
        %v5645 = vsel %vm1299, %v5582, 0
        %v5647 = vsel %vm1299, %v5584, 0
        %v5649 = vsel %vm1299, %v5586, 0
        %v5651 = vsel %vm1299, %v5588, 0
        %v5653 = vsel %vm1299, %v5590, 0
        %v5655 = vsel %vm1299, %v5592, 0
        %v5657 = vsel %vm1299, %v5594, 0
        %v5659 = vsel %vm1299, %v5596, 0
        %v5661 = vsel %vm1299, %v5598, 0
        %v5663 = vsel %vm1299, %v5600, 0
        %v5665 = vsel %vm1299, %v5602, 0
        %v5667 = vsel %vm1299, %v5604, 0
        %v5669 = vsel %vm1299, %v5606, 0
        %v5671 = vsel %vm1299, %v5608, 0
        %v5673 = vsel %vm1299, %v5610, 0
        %v5675 = vsel %vm1299, %v5612, 0
        %v5677 = vsel %vm1299, %v5614, 0
        %v5679 = vsel %vm1299, %v5616, 0
        %v5681 = vsel %vm1299, %v5618, 0
        %v5683 = vsel %vm1299, %v5620, 0
        %v5685 = vsel %vm1299, %v5622, 0
        %v5687 = vsel %vm1299, %v5624, 0
        %v5689 = vsel %vm1299, %v5626, 0
        %v5691 = vsel %vm1299, %v5628, 0
        %v5693 = vsel %vm1299, %v5630, 0
        %v5695 = vsel %vm1299, %v5632, 0
        %v5697 = vsel %vm1299, %v5634, 0
        %v5699 = vsel %vm1299, %v5636, 0
        %5701 = vmatprep.subr.mxu0 0.0
        %5702 = vmatpush1.xpose.msra.mxu0 %v5669
        %5703 = vmatprep.subr.mxu0 0.0
        %5704 = vmatpush1.xpose.msra.mxu0 %v5671
        %5705 = vmatprep.subr.mxu0 0.0
        %5706 = vmatpush1.xpose.msra.mxu0 %v5673
        %5707 = vmatprep.subr.mxu0 0.0
        %5708 = vmatpush1.xpose.msra.mxu0 %v5675
        %5709 = vmatprep.subr.mxu0 0.0
        %5710 = vmatpush1.xpose.msra.mxu0 %v5677
        %5711 = vmatprep.subr.mxu0 0.0
        %5712 = vmatpush1.xpose.msra.mxu0 %v5679
        %5713 = vmatprep.subr.mxu0 0.0
        %5714 = vmatpush1.xpose.msra.mxu0 %v5681
        %5715 = vmatprep.subr.mxu0 0.0
        %5716 = vmatpush1.xpose.msra.mxu0 %v5683
        %5717 = vmatprep.subr.mxu0 0.0
        %5718 = vmatpush1.xpose.msra.mxu0 %v5685
        %5719 = vmatprep.subr.mxu0 0.0
        %5720 = vmatpush1.xpose.msra.mxu0 %v5687
        %5721 = vmatprep.subr.mxu0 0.0
        %5722 = vmatpush1.xpose.msra.mxu0 %v5689
        %5723 = vmatprep.subr.mxu0 0.0
        %5724 = vmatpush1.xpose.msra.mxu0 %v5691
        %5725 = vmatprep.subr.mxu0 0.0
        %5726 = vmatpush1.xpose.msra.mxu0 %v5693
        %5727 = vmatprep.subr.mxu0 0.0
        %5728 = vmatpush1.xpose.msra.mxu0 %v5695
        %5729 = vmatprep.subr.mxu0 0.0
        %5730 = vmatpush1.xpose.msra.mxu0 %v5697
        %5731 = vmatprep.subr.mxu0 0.0
        %5732 = vmatpush1.xpose.msra.mxu0 %v5699
        %5733 = vmatprep.subr.mxu0 0.0
        %5734 = vmatpush1.xpose.msra.mxu0 0.0
        %5735 = vmatprep.subr.mxu0 0.0
        %5736 = vmatpush1.xpose.msra.mxu0 0.0
        %5737 = vmatprep.subr.mxu0 0.0
        %5738 = vmatpush1.xpose.msra.mxu0 0.0
        %5739 = vmatprep.subr.mxu0 0.0
        %5740 = vmatpush1.xpose.msra.mxu0 0.0
        %5741 = vmatprep.subr.mxu0 0.0
        %5742 = vmatpush1.xpose.msra.mxu0 0.0
        %5743 = vmatprep.subr.mxu0 0.0
        %5744 = vmatpush1.xpose.msra.mxu0 0.0
        %5745 = vmatprep.subr.mxu0 0.0
        %5746 = vmatpush1.xpose.msra.mxu0 0.0
        %5747 = vmatprep.subr.mxu0 0.0
        %5748 = vmatpush1.xpose.msra.mxu0 0.0
        %5749 = vmatprep.subr.mxu0 0.0
        %5750 = vmatpush1.xpose.msra.mxu0 0.0
        %5751 = vmatprep.subr.mxu0 0.0
        %5752 = vmatpush1.xpose.msra.mxu0 0.0
        %5753 = vmatprep.subr.mxu0 0.0
        %5754 = vmatpush1.xpose.msra.mxu0 0.0
        %5755 = vmatprep.subr.mxu0 0.0
        %5756 = vmatpush1.xpose.msra.mxu0 0.0
        %5757 = vmatprep.subr.mxu0 0.0
        %5758 = vmatpush1.xpose.msra.mxu0 0.0
        %5759 = vmatprep.subr.mxu0 0.0
        %5760 = vmatpush1.xpose.msra.mxu0 0.0
        %5761 = vmatprep.subr.mxu0 0.0
        %5762 = vmatpush1.xpose.msra.mxu0 0.0
        %5763 = vmatprep.subr.mxu0 0.0
        %5764 = vmatpush1.xpose.msra.mxu0 0.0
        %5765 = vmatprep.mubr.f32.mxu0 0.0
        %5766 = vmatmul.mubr.f32.gmra.mrb[0].mxu0 %v5637
        %v5767 = vpop.f32.mrb[0].mxu0
        %v5768 = vadd.f32 %v581, %v5767
        %v5769 = vpop.f32.mrb[0].mxu0
        %5770 = vmatprep.mubr.f32.mxu0 0.0
        %5771 = vmatmul.mubr.f32.gmra.mrb[0].mxu0 %v5639
        %v5772 = vpop.f32.mrb[0].mxu0
        %v5773 = vadd.f32 %v582, %v5772
        %v5774 = vpop.f32.mrb[0].mxu0
        %5775 = vmatprep.mubr.f32.mxu0 0.0
        %5776 = vmatmul.mubr.f32.gmra.mrb[0].mxu0 %v5641
        %v5777 = vpop.f32.mrb[0].mxu0
        %v5778 = vadd.f32 %v583, %v5777
        %v5779 = vpop.f32.mrb[0].mxu0
        %5780 = vmatprep.mubr.f32.mxu0 0.0
        %5781 = vmatmul.mubr.f32.gmra.mrb[0].mxu0 %v5643
        %v5782 = vpop.f32.mrb[0].mxu0
        %v5783 = vadd.f32 %v584, %v5782
        %v5784 = vpop.f32.mrb[0].mxu0
        %5785 = vmatprep.mubr.f32.mxu0 0.0
        %5786 = vmatmul.mubr.f32.gmra.mrb[0].mxu0 %v5645
        %v5787 = vpop.f32.mrb[0].mxu0
        %v5788 = vadd.f32 %v585, %v5787
        %v5789 = vpop.f32.mrb[0].mxu0
        %5790 = vmatprep.mubr.f32.mxu0 0.0
        %5791 = vmatmul.mubr.f32.gmra.mrb[0].mxu0 %v5647
        %v5792 = vpop.f32.mrb[0].mxu0
        %v5793 = vadd.f32 %v586, %v5792
        %v5794 = vpop.f32.mrb[0].mxu0
        %5795 = vmatprep.mubr.f32.mxu0 0.0
        %5796 = vmatmul.mubr.f32.gmra.mrb[0].mxu0 %v5649
        %v5797 = vpop.f32.mrb[0].mxu0
        %v5798 = vadd.f32 %v587, %v5797
        %v5799 = vpop.f32.mrb[0].mxu0
        %5800 = vmatprep.mubr.f32.mxu0 0.0
        %5801 = vmatmul.mubr.f32.gmra.mrb[0].mxu0 %v5651
        %v5802 = vpop.f32.mrb[0].mxu0
        %v5803 = vadd.f32 %v588, %v5802
        %v5804 = vpop.f32.mrb[0].mxu0
        %5805 = vmatprep.mubr.f32.mxu0 0.0
        %5806 = vmatmul.mubr.f32.gmra.mrb[0].mxu0 %v5653
        %v5807 = vpop.f32.mrb[0].mxu0
        %v5808 = vadd.f32 %v589, %v5807
        %v5809 = vpop.f32.mrb[0].mxu0
        %5810 = vmatprep.mubr.f32.mxu0 0.0
        %5811 = vmatmul.mubr.f32.gmra.mrb[0].mxu0 %v5655
        %v5812 = vpop.f32.mrb[0].mxu0
        %v5813 = vadd.f32 %v590, %v5812
        %v5814 = vpop.f32.mrb[0].mxu0
        %5815 = vmatprep.mubr.f32.mxu0 0.0
        %5816 = vmatmul.mubr.f32.gmra.mrb[0].mxu0 %v5657
        %v5817 = vpop.f32.mrb[0].mxu0
        %v5818 = vadd.f32 %v591, %v5817
        %v5819 = vpop.f32.mrb[0].mxu0
        %5820 = vmatprep.mubr.f32.mxu0 0.0
        %5821 = vmatmul.mubr.f32.gmra.mrb[0].mxu0 %v5659
        %v5822 = vpop.f32.mrb[0].mxu0
        %v5823 = vadd.f32 %v592, %v5822
        %v5824 = vpop.f32.mrb[0].mxu0
        %5825 = vmatprep.mubr.f32.mxu0 0.0
        %5826 = vmatmul.mubr.f32.gmra.mrb[0].mxu0 %v5661
        %v5827 = vpop.f32.mrb[0].mxu0
        %v5828 = vadd.f32 %v593, %v5827
        %v5829 = vpop.f32.mrb[0].mxu0
        %5830 = vmatprep.mubr.f32.mxu0 0.0
        %5831 = vmatmul.mubr.f32.gmra.mrb[0].mxu0 %v5663
        %v5832 = vpop.f32.mrb[0].mxu0
        %v5833 = vadd.f32 %v594, %v5832
        %v5834 = vpop.f32.mrb[0].mxu0
        %5835 = vmatprep.mubr.f32.mxu0 0.0
        %5836 = vmatmul.mubr.f32.gmra.mrb[0].mxu0 %v5665
        %v5837 = vpop.f32.mrb[0].mxu0
        %v5838 = vadd.f32 %v595, %v5837
        %v5839 = vpop.f32.mrb[0].mxu0
        %5840 = vmatprep.mubr.f32.mxu0 0.0
        %5841 = vmatmul.mubr.f32.gmra.mrb[0].mxu0 %v5667
        %v5842 = vpop.f32.mrb[0].mxu0
        %v5843 = vadd.f32 %v596, %v5842
        %v5844 = vpop.f32.mrb[0].mxu0
        %5845 = vdwg.mxu0
        %5846 = vmax.xlane.f32.xlu0 %v5768
        %v5847 = vpop.xlane.xlu0 %5846
        %5848 = vmax.xlane.f32.xlu0 %v5773
        %v5849 = vpop.xlane.xlu0 %5848
        %5850 = vmax.xlane.f32.xlu0 %v5778
        %v5851 = vpop.xlane.xlu0 %5850
        %5852 = vmax.xlane.f32.xlu0 %v5783
        %v5853 = vpop.xlane.xlu0 %5852
        %5854 = vmax.xlane.f32.xlu0 %v5788
        %v5855 = vpop.xlane.xlu0 %5854
        %5856 = vmax.xlane.f32.xlu0 %v5793
        %v5857 = vpop.xlane.xlu0 %5856
        %5858 = vmax.xlane.f32.xlu0 %v5798
        %v5859 = vpop.xlane.xlu0 %5858
        %5860 = vmax.xlane.f32.xlu0 %v5803
        %v5861 = vpop.xlane.xlu0 %5860
        %5862 = vmax.xlane.f32.xlu0 %v5808
        %v5863 = vpop.xlane.xlu0 %5862
        %5864 = vmax.xlane.f32.xlu0 %v5813
        %v5865 = vpop.xlane.xlu0 %5864
        %5866 = vmax.xlane.f32.xlu0 %v5818
        %v5867 = vpop.xlane.xlu0 %5866
        %5868 = vmax.xlane.f32.xlu0 %v5823
        %v5869 = vpop.xlane.xlu0 %5868
        %5870 = vmax.xlane.f32.xlu0 %v5828
        %v5871 = vpop.xlane.xlu0 %5870
        %5872 = vmax.xlane.f32.xlu0 %v5833
        %v5873 = vpop.xlane.xlu0 %5872
        %5874 = vmax.xlane.f32.xlu0 %v5838
        %v5875 = vpop.xlane.xlu0 %5874
        %5876 = vmax.xlane.f32.xlu0 %v5843
        %v5877 = vpop.xlane.xlu0 %5876
        %v5878 = vsub.f32 %v5768, %v5847
        %v5879 = vsub.f32 %v5773, %v5849
        %v5880 = vsub.f32 %v5778, %v5851
        %v5881 = vsub.f32 %v5783, %v5853
        %v5882 = vsub.f32 %v5788, %v5855
        %v5883 = vsub.f32 %v5793, %v5857
        %v5884 = vsub.f32 %v5798, %v5859
        %v5885 = vsub.f32 %v5803, %v5861
        %v5886 = vsub.f32 %v5808, %v5863
        %v5887 = vsub.f32 %v5813, %v5865
        %v5888 = vsub.f32 %v5818, %v5867
        %v5889 = vsub.f32 %v5823, %v5869
        %v5890 = vsub.f32 %v5828, %v5871
        %v5891 = vsub.f32 %v5833, %v5873
        %v5892 = vsub.f32 %v5838, %v5875
        %v5893 = vsub.f32 %v5843, %v5877
        %v5894 = vmul.f32 %v5878, 1.442695
        %v5895 = vpow.pop %v5894
        %v5896 = vmul.f32 %v5879, 1.442695
        %v5897 = vpow.pop %v5896
        %v5898 = vmul.f32 %v5880, 1.442695
        %v5899 = vpow.pop %v5898
        %v5900 = vmul.f32 %v5881, 1.442695
        %v5901 = vpow.pop %v5900
        %v5902 = vmul.f32 %v5882, 1.442695
        %v5903 = vpow.pop %v5902
        %v5904 = vmul.f32 %v5883, 1.442695
        %v5905 = vpow.pop %v5904
        %v5906 = vmul.f32 %v5884, 1.442695
        %v5907 = vpow.pop %v5906
        %v5908 = vmul.f32 %v5885, 1.442695
        %v5909 = vpow.pop %v5908
        %v5910 = vmul.f32 %v5886, 1.442695
        %v5911 = vpow.pop %v5910
        %v5912 = vmul.f32 %v5887, 1.442695
        %v5913 = vpow.pop %v5912
        %v5914 = vmul.f32 %v5888, 1.442695
        %v5915 = vpow.pop %v5914
        %v5916 = vmul.f32 %v5889, 1.442695
        %v5917 = vpow.pop %v5916
        %v5918 = vmul.f32 %v5890, 1.442695
        %v5919 = vpow.pop %v5918
        %v5920 = vmul.f32 %v5891, 1.442695
        %v5921 = vpow.pop %v5920
        %v5922 = vmul.f32 %v5892, 1.442695
        %v5923 = vpow.pop %v5922
        %v5924 = vmul.f32 %v5893, 1.442695
        %v5925 = vpow.pop %v5924
        %5926 = vadd.xlane.f32.xlu0 %v5895
        %v5927 = vpop.xlane.xlu0 %5926
        %5928 = vadd.xlane.f32.xlu0 %v5897
        %v5929 = vpop.xlane.xlu0 %5928
        %5930 = vadd.xlane.f32.xlu0 %v5899
        %v5931 = vpop.xlane.xlu0 %5930
        %5932 = vadd.xlane.f32.xlu0 %v5901
        %v5933 = vpop.xlane.xlu0 %5932
        %5934 = vadd.xlane.f32.xlu0 %v5903
        %v5935 = vpop.xlane.xlu0 %5934
        %5936 = vadd.xlane.f32.xlu0 %v5905
        %v5937 = vpop.xlane.xlu0 %5936
        %5938 = vadd.xlane.f32.xlu0 %v5907
        %v5939 = vpop.xlane.xlu0 %5938
        %5940 = vadd.xlane.f32.xlu0 %v5909
        %v5941 = vpop.xlane.xlu0 %5940
        %5942 = vadd.xlane.f32.xlu0 %v5911
        %v5943 = vpop.xlane.xlu0 %5942
        %5944 = vadd.xlane.f32.xlu0 %v5913
        %v5945 = vpop.xlane.xlu0 %5944
        %5946 = vadd.xlane.f32.xlu0 %v5915
        %v5947 = vpop.xlane.xlu0 %5946
        %5948 = vadd.xlane.f32.xlu0 %v5917
        %v5949 = vpop.xlane.xlu0 %5948
        %5950 = vadd.xlane.f32.xlu0 %v5919
        %v5951 = vpop.xlane.xlu0 %5950
        %5952 = vadd.xlane.f32.xlu0 %v5921
        %v5953 = vpop.xlane.xlu0 %5952
        %5954 = vadd.xlane.f32.xlu0 %v5923
        %v5955 = vpop.xlane.xlu0 %5954
        %5956 = vadd.xlane.f32.xlu0 %v5925
        %v5957 = vpop.xlane.xlu0 %5956
        %v5958 = vrcp.pop %v5927
        %v5959 = vrcp.pop %v5929
        %v5960 = vrcp.pop %v5931
        %v5961 = vrcp.pop %v5933
        %v5962 = vrcp.pop %v5935
        %v5963 = vrcp.pop %v5937
        %v5964 = vrcp.pop %v5939
        %v5965 = vrcp.pop %v5941
        %v5966 = vrcp.pop %v5943
        %v5967 = vrcp.pop %v5945
        %v5968 = vrcp.pop %v5947
        %v5969 = vrcp.pop %v5949
        %v5970 = vrcp.pop %v5951
        %v5971 = vrcp.pop %v5953
        %v5972 = vrcp.pop %v5955
        %v5973 = vrcp.pop %v5957
        %v5974 = vmul.f32 %v5895, %v5958
        %v5975 = vmul.f32 %v5897, %v5959
        %v5976 = vmul.f32 %v5899, %v5960
        %v5977 = vmul.f32 %v5901, %v5961
        %v5978 = vmul.f32 %v5903, %v5962
        %v5979 = vmul.f32 %v5905, %v5963
        %v5980 = vmul.f32 %v5907, %v5964
        %v5981 = vmul.f32 %v5909, %v5965
        %v5982 = vmul.f32 %v5911, %v5966
        %v5983 = vmul.f32 %v5913, %v5967
        %v5984 = vmul.f32 %v5915, %v5968
        %v5985 = vmul.f32 %v5917, %v5969
        %v5986 = vmul.f32 %v5919, %v5970
        %v5987 = vmul.f32 %v5921, %v5971
        %v5988 = vmul.f32 %v5923, %v5972
        %v5989 = vmul.f32 %v5925, %v5973
        %6006 = vrot.lane.b32.xlu0 %v5094, 64
        %v6007 = vpop.permute.xlu0 %6006
        %6008 = vrot.lane.b32.xlu0 %v5100, 64
        %v6009 = vpop.permute.xlu0 %6008
        %6010 = vrot.lane.b32.xlu0 %v5106, 64
        %v6011 = vpop.permute.xlu0 %6010
        %6012 = vrot.lane.b32.xlu0 %v5112, 64
        %v6013 = vpop.permute.xlu0 %6012
        %6014 = vrot.lane.b32.xlu0 %v5118, 64
        %v6015 = vpop.permute.xlu0 %6014
        %6016 = vrot.lane.b32.xlu0 %v5124, 64
        %v6017 = vpop.permute.xlu0 %6016
        %6018 = vrot.lane.b32.xlu0 %v5130, 64
        %v6019 = vpop.permute.xlu0 %6018
        %6020 = vrot.lane.b32.xlu0 %v5136, 64
        %v6021 = vpop.permute.xlu0 %6020
        %6022 = vrot.lane.b32.xlu0 %v5142, 64
        %v6023 = vpop.permute.xlu0 %6022
        %6024 = vrot.lane.b32.xlu0 %v5148, 64
        %v6025 = vpop.permute.xlu0 %6024
        %6026 = vrot.lane.b32.xlu0 %v5154, 64
        %v6027 = vpop.permute.xlu0 %6026
        %6028 = vrot.lane.b32.xlu0 %v5160, 64
        %v6029 = vpop.permute.xlu0 %6028
        %6030 = vrot.lane.b32.xlu0 %v5166, 64
        %v6031 = vpop.permute.xlu0 %6030
        %6032 = vrot.lane.b32.xlu0 %v5172, 64
        %v6033 = vpop.permute.xlu0 %6032
        %6034 = vrot.lane.b32.xlu0 %v5178, 64
        %v6035 = vpop.permute.xlu0 %6034
        %6036 = vrot.lane.b32.xlu0 %v5184, 64
        %v6037 = vpop.permute.xlu0 %6036
        %6054 = vmatprep.subr.mxu0 0.0
        %6055 = vmatpush1.msra.mxu0 %v6007
        %6056 = vmatprep.subr.mxu0 0.0
        %6057 = vmatpush1.msra.mxu0 %v6009
        %6058 = vmatprep.subr.mxu0 0.0
        %6059 = vmatpush1.msra.mxu0 %v6011
        %6060 = vmatprep.subr.mxu0 0.0
        %6061 = vmatpush1.msra.mxu0 %v6013
        %6062 = vmatprep.subr.mxu0 0.0
        %6063 = vmatpush1.msra.mxu0 %v6015
        %6064 = vmatprep.subr.mxu0 0.0
        %6065 = vmatpush1.msra.mxu0 %v6017
        %6066 = vmatprep.subr.mxu0 0.0
        %6067 = vmatpush1.msra.mxu0 %v6019
        %6068 = vmatprep.subr.mxu0 0.0
        %6069 = vmatpush1.msra.mxu0 %v6021
        %6070 = vmatprep.subr.mxu0 0.0
        %6071 = vmatpush1.msra.mxu0 %v6023
        %6072 = vmatprep.subr.mxu0 0.0
        %6073 = vmatpush1.msra.mxu0 %v6025
        %6074 = vmatprep.subr.mxu0 0.0
        %6075 = vmatpush1.msra.mxu0 %v6027
        %6076 = vmatprep.subr.mxu0 0.0
        %6077 = vmatpush1.msra.mxu0 %v6029
        %6078 = vmatprep.subr.mxu0 0.0
        %6079 = vmatpush1.msra.mxu0 %v6031
        %6080 = vmatprep.subr.mxu0 0.0
        %6081 = vmatpush1.msra.mxu0 %v6033
        %6082 = vmatprep.subr.mxu0 0.0
        %6083 = vmatpush1.msra.mxu0 %v6035
        %6084 = vmatprep.subr.mxu0 0.0
        %6085 = vmatpush1.msra.mxu0 %v6037
        %6086 = vmatprep.subr.mxu0 0.0
        %6087 = vmatpush1.msra.mxu0 0.0
        %6088 = vmatprep.subr.mxu0 0.0
        %6089 = vmatpush1.msra.mxu0 0.0
        %6090 = vmatprep.subr.mxu0 0.0
        %6091 = vmatpush1.msra.mxu0 0.0
        %6092 = vmatprep.subr.mxu0 0.0
        %6093 = vmatpush1.msra.mxu0 0.0
        %6094 = vmatprep.subr.mxu0 0.0
        %6095 = vmatpush1.msra.mxu0 0.0
        %6096 = vmatprep.subr.mxu0 0.0
        %6097 = vmatpush1.msra.mxu0 0.0
        %6098 = vmatprep.subr.mxu0 0.0
        %6099 = vmatpush1.msra.mxu0 0.0
        %6100 = vmatprep.subr.mxu0 0.0
        %6101 = vmatpush1.msra.mxu0 0.0
        %6102 = vmatprep.subr.mxu0 0.0
        %6103 = vmatpush1.msra.mxu0 0.0
        %6104 = vmatprep.subr.mxu0 0.0
        %6105 = vmatpush1.msra.mxu0 0.0
        %6106 = vmatprep.subr.mxu0 0.0
        %6107 = vmatpush1.msra.mxu0 0.0
        %6108 = vmatprep.subr.mxu0 0.0
        %6109 = vmatpush1.msra.mxu0 0.0
        %6110 = vmatprep.subr.mxu0 0.0
        %6111 = vmatpush1.msra.mxu0 0.0
        %6112 = vmatprep.subr.mxu0 0.0
        %6113 = vmatpush1.msra.mxu0 0.0
        %6114 = vmatprep.subr.mxu0 0.0
        %6115 = vmatpush1.msra.mxu0 0.0
        %6116 = vmatprep.subr.mxu0 0.0
        %6117 = vmatpush1.msra.mxu0 0.0
        %6118 = vmatprep.mubr.f32.mxu0 0.0
        %6119 = vmatmul.mubr.f32.gmra.mrb[0].mxu0 %v5974
        %v6120 = vpop.f32.mrb[0].mxu0
        %v6121 = vadd.f32 0.0, %v6120
        %v6122 = vpop.f32.mrb[0].mxu0
        %6123 = vmatprep.mubr.f32.mxu0 0.0
        %6124 = vmatmul.mubr.f32.gmra.mrb[0].mxu0 %v5975
        %v6125 = vpop.f32.mrb[0].mxu0
        %v6126 = vadd.f32 0.0, %v6125
        %v6127 = vpop.f32.mrb[0].mxu0
        %6128 = vmatprep.mubr.f32.mxu0 0.0
        %6129 = vmatmul.mubr.f32.gmra.mrb[0].mxu0 %v5976
        %v6130 = vpop.f32.mrb[0].mxu0
        %v6131 = vadd.f32 0.0, %v6130
        %v6132 = vpop.f32.mrb[0].mxu0
        %6133 = vmatprep.mubr.f32.mxu0 0.0
        %6134 = vmatmul.mubr.f32.gmra.mrb[0].mxu0 %v5977
        %v6135 = vpop.f32.mrb[0].mxu0
        %v6136 = vadd.f32 0.0, %v6135
        %v6137 = vpop.f32.mrb[0].mxu0
        %6138 = vmatprep.mubr.f32.mxu0 0.0
        %6139 = vmatmul.mubr.f32.gmra.mrb[0].mxu0 %v5978
        %v6140 = vpop.f32.mrb[0].mxu0
        %v6141 = vadd.f32 0.0, %v6140
        %v6142 = vpop.f32.mrb[0].mxu0
        %6143 = vmatprep.mubr.f32.mxu0 0.0
        %6144 = vmatmul.mubr.f32.gmra.mrb[0].mxu0 %v5979
        %v6145 = vpop.f32.mrb[0].mxu0
        %v6146 = vadd.f32 0.0, %v6145
        %v6147 = vpop.f32.mrb[0].mxu0
        %6148 = vmatprep.mubr.f32.mxu0 0.0
        %6149 = vmatmul.mubr.f32.gmra.mrb[0].mxu0 %v5980
        %v6150 = vpop.f32.mrb[0].mxu0
        %v6151 = vadd.f32 0.0, %v6150
        %v6152 = vpop.f32.mrb[0].mxu0
        %6153 = vmatprep.mubr.f32.mxu0 0.0
        %6154 = vmatmul.mubr.f32.gmra.mrb[0].mxu0 %v5981
        %v6155 = vpop.f32.mrb[0].mxu0
        %v6156 = vadd.f32 0.0, %v6155
        %v6157 = vpop.f32.mrb[0].mxu0
        %6158 = vmatprep.mubr.f32.mxu0 0.0
        %6159 = vmatmul.mubr.f32.gmra.mrb[0].mxu0 %v5982
        %v6160 = vpop.f32.mrb[0].mxu0
        %v6161 = vadd.f32 0.0, %v6160
        %v6162 = vpop.f32.mrb[0].mxu0
        %6163 = vmatprep.mubr.f32.mxu0 0.0
        %6164 = vmatmul.mubr.f32.gmra.mrb[0].mxu0 %v5983
        %v6165 = vpop.f32.mrb[0].mxu0
        %v6166 = vadd.f32 0.0, %v6165
        %v6167 = vpop.f32.mrb[0].mxu0
        %6168 = vmatprep.mubr.f32.mxu0 0.0
        %6169 = vmatmul.mubr.f32.gmra.mrb[0].mxu0 %v5984
        %v6170 = vpop.f32.mrb[0].mxu0
        %v6171 = vadd.f32 0.0, %v6170
        %v6172 = vpop.f32.mrb[0].mxu0
        %6173 = vmatprep.mubr.f32.mxu0 0.0
        %6174 = vmatmul.mubr.f32.gmra.mrb[0].mxu0 %v5985
        %v6175 = vpop.f32.mrb[0].mxu0
        %v6176 = vadd.f32 0.0, %v6175
        %v6177 = vpop.f32.mrb[0].mxu0
        %6178 = vmatprep.mubr.f32.mxu0 0.0
        %6179 = vmatmul.mubr.f32.gmra.mrb[0].mxu0 %v5986
        %v6180 = vpop.f32.mrb[0].mxu0
        %v6181 = vadd.f32 0.0, %v6180
        %v6182 = vpop.f32.mrb[0].mxu0
        %6183 = vmatprep.mubr.f32.mxu0 0.0
        %6184 = vmatmul.mubr.f32.gmra.mrb[0].mxu0 %v5987
        %v6185 = vpop.f32.mrb[0].mxu0
        %v6186 = vadd.f32 0.0, %v6185
        %v6187 = vpop.f32.mrb[0].mxu0
        %6188 = vmatprep.mubr.f32.mxu0 0.0
        %6189 = vmatmul.mubr.f32.gmra.mrb[0].mxu0 %v5988
        %v6190 = vpop.f32.mrb[0].mxu0
        %v6191 = vadd.f32 0.0, %v6190
        %v6192 = vpop.f32.mrb[0].mxu0
        %6193 = vmatprep.mubr.f32.mxu0 0.0
        %6194 = vmatmul.mubr.f32.gmra.mrb[0].mxu0 %v5989
        %v6195 = vpop.f32.mrb[0].mxu0
        %v6196 = vadd.f32 0.0, %v6195
        %v6197 = vpop.f32.mrb[0].mxu0
        %6198 = vdwg.mxu0
        %6199 = vmatprep.subr.mxu0 0.0
        %6200 = vmatpush1.msra.mxu0 %v5094
        %6201 = vmatprep.subr.mxu0 0.0
        %6202 = vmatpush1.msra.mxu0 %v5100
        %6203 = vmatprep.subr.mxu0 0.0
        %6204 = vmatpush1.msra.mxu0 %v5106
        %6205 = vmatprep.subr.mxu0 0.0
        %6206 = vmatpush1.msra.mxu0 %v5112
        %6207 = vmatprep.subr.mxu0 0.0
        %6208 = vmatpush1.msra.mxu0 %v5118
        %6209 = vmatprep.subr.mxu0 0.0
        %6210 = vmatpush1.msra.mxu0 %v5124
        %6211 = vmatprep.subr.mxu0 0.0
        %6212 = vmatpush1.msra.mxu0 %v5130
        %6213 = vmatprep.subr.mxu0 0.0
        %6214 = vmatpush1.msra.mxu0 %v5136
        %6215 = vmatprep.subr.mxu0 0.0
        %6216 = vmatpush1.msra.mxu0 %v5142
        %6217 = vmatprep.subr.mxu0 0.0
        %6218 = vmatpush1.msra.mxu0 %v5148
        %6219 = vmatprep.subr.mxu0 0.0
        %6220 = vmatpush1.msra.mxu0 %v5154
        %6221 = vmatprep.subr.mxu0 0.0
        %6222 = vmatpush1.msra.mxu0 %v5160
        %6223 = vmatprep.subr.mxu0 0.0
        %6224 = vmatpush1.msra.mxu0 %v5166
        %6225 = vmatprep.subr.mxu0 0.0
        %6226 = vmatpush1.msra.mxu0 %v5172
        %6227 = vmatprep.subr.mxu0 0.0
        %6228 = vmatpush1.msra.mxu0 %v5178
        %6229 = vmatprep.subr.mxu0 0.0
        %6230 = vmatpush1.msra.mxu0 %v5184
        %6231 = vmatprep.subr.mxu0 0.0
        %6232 = vmatpush1.msra.mxu0 0.0
        %6233 = vmatprep.subr.mxu0 0.0
        %6234 = vmatpush1.msra.mxu0 0.0
        %6235 = vmatprep.subr.mxu0 0.0
        %6236 = vmatpush1.msra.mxu0 0.0
        %6237 = vmatprep.subr.mxu0 0.0
        %6238 = vmatpush1.msra.mxu0 0.0
        %6239 = vmatprep.subr.mxu0 0.0
        %6240 = vmatpush1.msra.mxu0 0.0
        %6241 = vmatprep.subr.mxu0 0.0
        %6242 = vmatpush1.msra.mxu0 0.0
        %6243 = vmatprep.subr.mxu0 0.0
        %6244 = vmatpush1.msra.mxu0 0.0
        %6245 = vmatprep.subr.mxu0 0.0
        %6246 = vmatpush1.msra.mxu0 0.0
        %6247 = vmatprep.subr.mxu0 0.0
        %6248 = vmatpush1.msra.mxu0 0.0
        %6249 = vmatprep.subr.mxu0 0.0
        %6250 = vmatpush1.msra.mxu0 0.0
        %6251 = vmatprep.subr.mxu0 0.0
        %6252 = vmatpush1.msra.mxu0 0.0
        %6253 = vmatprep.subr.mxu0 0.0
        %6254 = vmatpush1.msra.mxu0 0.0
        %6255 = vmatprep.subr.mxu0 0.0
        %6256 = vmatpush1.msra.mxu0 0.0
        %6257 = vmatprep.subr.mxu0 0.0
        %6258 = vmatpush1.msra.mxu0 0.0
        %6259 = vmatprep.subr.mxu0 0.0
        %6260 = vmatpush1.msra.mxu0 0.0
        %6261 = vmatprep.subr.mxu0 0.0
        %6262 = vmatpush1.msra.mxu0 0.0
        %6263 = vmatprep.mubr.f32.mxu0 0.0
        %6264 = vmatmul.mubr.f32.gmra.mrb[0].mxu0 %v5557
        %v6265 = vpop.f32.mrb[0].mxu0
        %v6266 = vadd.f32 %v6121, %v6265
        %v6267 = vpop.f32.mrb[0].mxu0
        %6268 = vmatprep.mubr.f32.mxu0 0.0
        %6269 = vmatmul.mubr.f32.gmra.mrb[0].mxu0 %v5558
        %v6270 = vpop.f32.mrb[0].mxu0
        %v6271 = vadd.f32 %v6126, %v6270
        %v6272 = vpop.f32.mrb[0].mxu0
        %6273 = vmatprep.mubr.f32.mxu0 0.0
        %6274 = vmatmul.mubr.f32.gmra.mrb[0].mxu0 %v5559
        %v6275 = vpop.f32.mrb[0].mxu0
        %v6276 = vadd.f32 %v6131, %v6275
        %v6277 = vpop.f32.mrb[0].mxu0
        %6278 = vmatprep.mubr.f32.mxu0 0.0
        %6279 = vmatmul.mubr.f32.gmra.mrb[0].mxu0 %v5560
        %v6280 = vpop.f32.mrb[0].mxu0
        %v6281 = vadd.f32 %v6136, %v6280
        %v6282 = vpop.f32.mrb[0].mxu0
        %6283 = vmatprep.mubr.f32.mxu0 0.0
        %6284 = vmatmul.mubr.f32.gmra.mrb[0].mxu0 %v5561
        %v6285 = vpop.f32.mrb[0].mxu0
        %v6286 = vadd.f32 %v6141, %v6285
        %v6287 = vpop.f32.mrb[0].mxu0
        %6288 = vmatprep.mubr.f32.mxu0 0.0
        %6289 = vmatmul.mubr.f32.gmra.mrb[0].mxu0 %v5562
        %v6290 = vpop.f32.mrb[0].mxu0
        %v6291 = vadd.f32 %v6146, %v6290
        %v6292 = vpop.f32.mrb[0].mxu0
        %6293 = vmatprep.mubr.f32.mxu0 0.0
        %6294 = vmatmul.mubr.f32.gmra.mrb[0].mxu0 %v5563
        %v6295 = vpop.f32.mrb[0].mxu0
        %v6296 = vadd.f32 %v6151, %v6295
        %v6297 = vpop.f32.mrb[0].mxu0
        %6298 = vmatprep.mubr.f32.mxu0 0.0
        %6299 = vmatmul.mubr.f32.gmra.mrb[0].mxu0 %v5564
        %v6300 = vpop.f32.mrb[0].mxu0
        %v6301 = vadd.f32 %v6156, %v6300
        %v6302 = vpop.f32.mrb[0].mxu0
        %6303 = vmatprep.mubr.f32.mxu0 0.0
        %6304 = vmatmul.mubr.f32.gmra.mrb[0].mxu0 %v5565
        %v6305 = vpop.f32.mrb[0].mxu0
        %v6306 = vadd.f32 %v6161, %v6305
        %v6307 = vpop.f32.mrb[0].mxu0
        %6308 = vmatprep.mubr.f32.mxu0 0.0
        %6309 = vmatmul.mubr.f32.gmra.mrb[0].mxu0 %v5566
        %v6310 = vpop.f32.mrb[0].mxu0
        %v6311 = vadd.f32 %v6166, %v6310
        %v6312 = vpop.f32.mrb[0].mxu0
        %6313 = vmatprep.mubr.f32.mxu0 0.0
        %6314 = vmatmul.mubr.f32.gmra.mrb[0].mxu0 %v5567
        %v6315 = vpop.f32.mrb[0].mxu0
        %v6316 = vadd.f32 %v6171, %v6315
        %v6317 = vpop.f32.mrb[0].mxu0
        %6318 = vmatprep.mubr.f32.mxu0 0.0
        %6319 = vmatmul.mubr.f32.gmra.mrb[0].mxu0 %v5568
        %v6320 = vpop.f32.mrb[0].mxu0
        %v6321 = vadd.f32 %v6176, %v6320
        %v6322 = vpop.f32.mrb[0].mxu0
        %6323 = vmatprep.mubr.f32.mxu0 0.0
        %6324 = vmatmul.mubr.f32.gmra.mrb[0].mxu0 %v5569
        %v6325 = vpop.f32.mrb[0].mxu0
        %v6326 = vadd.f32 %v6181, %v6325
        %v6327 = vpop.f32.mrb[0].mxu0
        %6328 = vmatprep.mubr.f32.mxu0 0.0
        %6329 = vmatmul.mubr.f32.gmra.mrb[0].mxu0 %v5570
        %v6330 = vpop.f32.mrb[0].mxu0
        %v6331 = vadd.f32 %v6186, %v6330
        %v6332 = vpop.f32.mrb[0].mxu0
        %6333 = vmatprep.mubr.f32.mxu0 0.0
        %6334 = vmatmul.mubr.f32.gmra.mrb[0].mxu0 %v5571
        %v6335 = vpop.f32.mrb[0].mxu0
        %v6336 = vadd.f32 %v6191, %v6335
        %v6337 = vpop.f32.mrb[0].mxu0
        %6338 = vmatprep.mubr.f32.mxu0 0.0
        %6339 = vmatmul.mubr.f32.gmra.mrb[0].mxu0 %v5572
        %v6340 = vpop.f32.mrb[0].mxu0
        %v6341 = vadd.f32 %v6196, %v6340
        %v6342 = vpop.f32.mrb[0].mxu0
        %6343 = vdwg.mxu0
        %6344 = vrot.lane.b32.xlu0 %v4772, 96
        %v6345 = vpop.permute.xlu0 %6344
        %6346 = vrot.lane.b32.xlu0 %v4777, 96
        %v6347 = vpop.permute.xlu0 %6346
        %6348 = vrot.lane.b32.xlu0 %v4782, 96
        %v6349 = vpop.permute.xlu0 %6348
        %6350 = vrot.lane.b32.xlu0 %v4787, 96
        %v6351 = vpop.permute.xlu0 %6350
        %6352 = vrot.lane.b32.xlu0 %v4792, 96
        %v6353 = vpop.permute.xlu0 %6352
        %6354 = vrot.lane.b32.xlu0 %v4797, 96
        %v6355 = vpop.permute.xlu0 %6354
        %6356 = vrot.lane.b32.xlu0 %v4802, 96
        %v6357 = vpop.permute.xlu0 %6356
        %6358 = vrot.lane.b32.xlu0 %v4807, 96
        %v6359 = vpop.permute.xlu0 %6358
        %6360 = vrot.lane.b32.xlu0 %v4812, 96
        %v6361 = vpop.permute.xlu0 %6360
        %6362 = vrot.lane.b32.xlu0 %v4817, 96
        %v6363 = vpop.permute.xlu0 %6362
        %6364 = vrot.lane.b32.xlu0 %v4822, 96
        %v6365 = vpop.permute.xlu0 %6364
        %6366 = vrot.lane.b32.xlu0 %v4827, 96
        %v6367 = vpop.permute.xlu0 %6366
        %6368 = vrot.lane.b32.xlu0 %v4832, 96
        %v6369 = vpop.permute.xlu0 %6368
        %6370 = vrot.lane.b32.xlu0 %v4837, 96
        %v6371 = vpop.permute.xlu0 %6370
        %6372 = vrot.lane.b32.xlu0 %v4842, 96
        %v6373 = vpop.permute.xlu0 %6372
        %6374 = vrot.lane.b32.xlu0 %v4847, 96
        %v6375 = vpop.permute.xlu0 %6374
        %6376 = vrot.lane.b32.xlu0 %v4932, 96
        %v6377 = vpop.permute.xlu0 %6376
        %6378 = vrot.lane.b32.xlu0 %v4937, 96
        %v6379 = vpop.permute.xlu0 %6378
        %6380 = vrot.lane.b32.xlu0 %v4942, 96
        %v6381 = vpop.permute.xlu0 %6380
        %6382 = vrot.lane.b32.xlu0 %v4947, 96
        %v6383 = vpop.permute.xlu0 %6382
        %6384 = vrot.lane.b32.xlu0 %v4952, 96
        %v6385 = vpop.permute.xlu0 %6384
        %6386 = vrot.lane.b32.xlu0 %v4957, 96
        %v6387 = vpop.permute.xlu0 %6386
        %6388 = vrot.lane.b32.xlu0 %v4962, 96
        %v6389 = vpop.permute.xlu0 %6388
        %6390 = vrot.lane.b32.xlu0 %v4967, 96
        %v6391 = vpop.permute.xlu0 %6390
        %6392 = vrot.lane.b32.xlu0 %v4972, 96
        %v6393 = vpop.permute.xlu0 %6392
        %6394 = vrot.lane.b32.xlu0 %v4977, 96
        %v6395 = vpop.permute.xlu0 %6394
        %6396 = vrot.lane.b32.xlu0 %v4982, 96
        %v6397 = vpop.permute.xlu0 %6396
        %6398 = vrot.lane.b32.xlu0 %v4987, 96
        %v6399 = vpop.permute.xlu0 %6398
        %6400 = vrot.lane.b32.xlu0 %v4992, 96
        %v6401 = vpop.permute.xlu0 %6400
        %6402 = vrot.lane.b32.xlu0 %v4997, 96
        %v6403 = vpop.permute.xlu0 %6402
        %6404 = vrot.lane.b32.xlu0 %v5002, 96
        %v6405 = vpop.permute.xlu0 %6404
        %6406 = vrot.lane.b32.xlu0 %v5007, 96
        %v6407 = vpop.permute.xlu0 %6406
        %v6408 = vsel %vm1299, %v6345, 0
        %v6410 = vsel %vm1299, %v6347, 0
        %v6412 = vsel %vm1299, %v6349, 0
        %v6414 = vsel %vm1299, %v6351, 0
        %v6416 = vsel %vm1299, %v6353, 0
        %v6418 = vsel %vm1299, %v6355, 0
        %v6420 = vsel %vm1299, %v6357, 0
        %v6422 = vsel %vm1299, %v6359, 0
        %v6424 = vsel %vm1299, %v6361, 0
        %v6426 = vsel %vm1299, %v6363, 0
        %v6428 = vsel %vm1299, %v6365, 0
        %v6430 = vsel %vm1299, %v6367, 0
        %v6432 = vsel %vm1299, %v6369, 0
        %v6434 = vsel %vm1299, %v6371, 0
        %v6436 = vsel %vm1299, %v6373, 0
        %v6438 = vsel %vm1299, %v6375, 0
        %v6440 = vsel %vm1299, %v6377, 0
        %v6442 = vsel %vm1299, %v6379, 0
        %v6444 = vsel %vm1299, %v6381, 0
        %v6446 = vsel %vm1299, %v6383, 0
        %v6448 = vsel %vm1299, %v6385, 0
        %v6450 = vsel %vm1299, %v6387, 0
        %v6452 = vsel %vm1299, %v6389, 0
        %v6454 = vsel %vm1299, %v6391, 0
        %v6456 = vsel %vm1299, %v6393, 0
        %v6458 = vsel %vm1299, %v6395, 0
        %v6460 = vsel %vm1299, %v6397, 0
        %v6462 = vsel %vm1299, %v6399, 0
        %v6464 = vsel %vm1299, %v6401, 0
        %v6466 = vsel %vm1299, %v6403, 0
        %v6468 = vsel %vm1299, %v6405, 0
        %v6470 = vsel %vm1299, %v6407, 0
        %6472 = vmatprep.subr.mxu0 0.0
        %6473 = vmatpush1.xpose.msra.mxu0 %v6440
        %6474 = vmatprep.subr.mxu0 0.0
        %6475 = vmatpush1.xpose.msra.mxu0 %v6442
        %6476 = vmatprep.subr.mxu0 0.0
        %6477 = vmatpush1.xpose.msra.mxu0 %v6444
        %6478 = vmatprep.subr.mxu0 0.0
        %6479 = vmatpush1.xpose.msra.mxu0 %v6446
        %6480 = vmatprep.subr.mxu0 0.0
        %6481 = vmatpush1.xpose.msra.mxu0 %v6448
        %6482 = vmatprep.subr.mxu0 0.0
        %6483 = vmatpush1.xpose.msra.mxu0 %v6450
        %6484 = vmatprep.subr.mxu0 0.0
        %6485 = vmatpush1.xpose.msra.mxu0 %v6452
        %6486 = vmatprep.subr.mxu0 0.0
        %6487 = vmatpush1.xpose.msra.mxu0 %v6454
        %6488 = vmatprep.subr.mxu0 0.0
        %6489 = vmatpush1.xpose.msra.mxu0 %v6456
        %6490 = vmatprep.subr.mxu0 0.0
        %6491 = vmatpush1.xpose.msra.mxu0 %v6458
        %6492 = vmatprep.subr.mxu0 0.0
        %6493 = vmatpush1.xpose.msra.mxu0 %v6460
        %6494 = vmatprep.subr.mxu0 0.0
        %6495 = vmatpush1.xpose.msra.mxu0 %v6462
        %6496 = vmatprep.subr.mxu0 0.0
        %6497 = vmatpush1.xpose.msra.mxu0 %v6464
        %6498 = vmatprep.subr.mxu0 0.0
        %6499 = vmatpush1.xpose.msra.mxu0 %v6466
        %6500 = vmatprep.subr.mxu0 0.0
        %6501 = vmatpush1.xpose.msra.mxu0 %v6468
        %6502 = vmatprep.subr.mxu0 0.0
        %6503 = vmatpush1.xpose.msra.mxu0 %v6470
        %6504 = vmatprep.subr.mxu0 0.0
        %6505 = vmatpush1.xpose.msra.mxu0 0.0
        %6506 = vmatprep.subr.mxu0 0.0
        %6507 = vmatpush1.xpose.msra.mxu0 0.0
        %6508 = vmatprep.subr.mxu0 0.0
        %6509 = vmatpush1.xpose.msra.mxu0 0.0
        %6510 = vmatprep.subr.mxu0 0.0
        %6511 = vmatpush1.xpose.msra.mxu0 0.0
        %6512 = vmatprep.subr.mxu0 0.0
        %6513 = vmatpush1.xpose.msra.mxu0 0.0
        %6514 = vmatprep.subr.mxu0 0.0
        %6515 = vmatpush1.xpose.msra.mxu0 0.0
        %6516 = vmatprep.subr.mxu0 0.0
        %6517 = vmatpush1.xpose.msra.mxu0 0.0
        %6518 = vmatprep.subr.mxu0 0.0
        %6519 = vmatpush1.xpose.msra.mxu0 0.0
        %6520 = vmatprep.subr.mxu0 0.0
        %6521 = vmatpush1.xpose.msra.mxu0 0.0
        %6522 = vmatprep.subr.mxu0 0.0
        %6523 = vmatpush1.xpose.msra.mxu0 0.0
        %6524 = vmatprep.subr.mxu0 0.0
        %6525 = vmatpush1.xpose.msra.mxu0 0.0
        %6526 = vmatprep.subr.mxu0 0.0
        %6527 = vmatpush1.xpose.msra.mxu0 0.0
        %6528 = vmatprep.subr.mxu0 0.0
        %6529 = vmatpush1.xpose.msra.mxu0 0.0
        %6530 = vmatprep.subr.mxu0 0.0
        %6531 = vmatpush1.xpose.msra.mxu0 0.0
        %6532 = vmatprep.subr.mxu0 0.0
        %6533 = vmatpush1.xpose.msra.mxu0 0.0
        %6534 = vmatprep.subr.mxu0 0.0
        %6535 = vmatpush1.xpose.msra.mxu0 0.0
        %6536 = vmatprep.mubr.f32.mxu0 0.0
        %6537 = vmatmul.mubr.f32.gmra.mrb[0].mxu0 %v6408
        %v6538 = vpop.f32.mrb[0].mxu0
        %v6539 = vadd.f32 %v581, %v6538
        %v6540 = vpop.f32.mrb[0].mxu0
        %6541 = vmatprep.mubr.f32.mxu0 0.0
        %6542 = vmatmul.mubr.f32.gmra.mrb[0].mxu0 %v6410
        %v6543 = vpop.f32.mrb[0].mxu0
        %v6544 = vadd.f32 %v582, %v6543
        %v6545 = vpop.f32.mrb[0].mxu0
        %6546 = vmatprep.mubr.f32.mxu0 0.0
        %6547 = vmatmul.mubr.f32.gmra.mrb[0].mxu0 %v6412
        %v6548 = vpop.f32.mrb[0].mxu0
        %v6549 = vadd.f32 %v583, %v6548
        %v6550 = vpop.f32.mrb[0].mxu0
        %6551 = vmatprep.mubr.f32.mxu0 0.0
        %6552 = vmatmul.mubr.f32.gmra.mrb[0].mxu0 %v6414
        %v6553 = vpop.f32.mrb[0].mxu0
        %v6554 = vadd.f32 %v584, %v6553
        %v6555 = vpop.f32.mrb[0].mxu0
        %6556 = vmatprep.mubr.f32.mxu0 0.0
        %6557 = vmatmul.mubr.f32.gmra.mrb[0].mxu0 %v6416
        %v6558 = vpop.f32.mrb[0].mxu0
        %v6559 = vadd.f32 %v585, %v6558
        %v6560 = vpop.f32.mrb[0].mxu0
        %6561 = vmatprep.mubr.f32.mxu0 0.0
        %6562 = vmatmul.mubr.f32.gmra.mrb[0].mxu0 %v6418
        %v6563 = vpop.f32.mrb[0].mxu0
        %v6564 = vadd.f32 %v586, %v6563
        %v6565 = vpop.f32.mrb[0].mxu0
        %6566 = vmatprep.mubr.f32.mxu0 0.0
        %6567 = vmatmul.mubr.f32.gmra.mrb[0].mxu0 %v6420
        %v6568 = vpop.f32.mrb[0].mxu0
        %v6569 = vadd.f32 %v587, %v6568
        %v6570 = vpop.f32.mrb[0].mxu0
        %6571 = vmatprep.mubr.f32.mxu0 0.0
        %6572 = vmatmul.mubr.f32.gmra.mrb[0].mxu0 %v6422
        %v6573 = vpop.f32.mrb[0].mxu0
        %v6574 = vadd.f32 %v588, %v6573
        %v6575 = vpop.f32.mrb[0].mxu0
        %6576 = vmatprep.mubr.f32.mxu0 0.0
        %6577 = vmatmul.mubr.f32.gmra.mrb[0].mxu0 %v6424
        %v6578 = vpop.f32.mrb[0].mxu0
        %v6579 = vadd.f32 %v589, %v6578
        %v6580 = vpop.f32.mrb[0].mxu0
        %6581 = vmatprep.mubr.f32.mxu0 0.0
        %6582 = vmatmul.mubr.f32.gmra.mrb[0].mxu0 %v6426
        %v6583 = vpop.f32.mrb[0].mxu0
        %v6584 = vadd.f32 %v590, %v6583
        %v6585 = vpop.f32.mrb[0].mxu0
        %6586 = vmatprep.mubr.f32.mxu0 0.0
        %6587 = vmatmul.mubr.f32.gmra.mrb[0].mxu0 %v6428
        %v6588 = vpop.f32.mrb[0].mxu0
        %v6589 = vadd.f32 %v591, %v6588
        %v6590 = vpop.f32.mrb[0].mxu0
        %6591 = vmatprep.mubr.f32.mxu0 0.0
        %6592 = vmatmul.mubr.f32.gmra.mrb[0].mxu0 %v6430
        %v6593 = vpop.f32.mrb[0].mxu0
        %v6594 = vadd.f32 %v592, %v6593
        %v6595 = vpop.f32.mrb[0].mxu0
        %6596 = vmatprep.mubr.f32.mxu0 0.0
        %6597 = vmatmul.mubr.f32.gmra.mrb[0].mxu0 %v6432
        %v6598 = vpop.f32.mrb[0].mxu0
        %v6599 = vadd.f32 %v593, %v6598
        %v6600 = vpop.f32.mrb[0].mxu0
        %6601 = vmatprep.mubr.f32.mxu0 0.0
        %6602 = vmatmul.mubr.f32.gmra.mrb[0].mxu0 %v6434
        %v6603 = vpop.f32.mrb[0].mxu0
        %v6604 = vadd.f32 %v594, %v6603
        %v6605 = vpop.f32.mrb[0].mxu0
        %6606 = vmatprep.mubr.f32.mxu0 0.0
        %6607 = vmatmul.mubr.f32.gmra.mrb[0].mxu0 %v6436
        %v6608 = vpop.f32.mrb[0].mxu0
        %v6609 = vadd.f32 %v595, %v6608
        %v6610 = vpop.f32.mrb[0].mxu0
        %6611 = vmatprep.mubr.f32.mxu0 0.0
        %6612 = vmatmul.mubr.f32.gmra.mrb[0].mxu0 %v6438
        %v6613 = vpop.f32.mrb[0].mxu0
        %v6614 = vadd.f32 %v596, %v6613
        %v6615 = vpop.f32.mrb[0].mxu0
        %6616 = vdwg.mxu0
        %6617 = vmax.xlane.f32.xlu0 %v6539
        %v6618 = vpop.xlane.xlu0 %6617
        %6619 = vmax.xlane.f32.xlu0 %v6544
        %v6620 = vpop.xlane.xlu0 %6619
        %6621 = vmax.xlane.f32.xlu0 %v6549
        %v6622 = vpop.xlane.xlu0 %6621
        %6623 = vmax.xlane.f32.xlu0 %v6554
        %v6624 = vpop.xlane.xlu0 %6623
        %6625 = vmax.xlane.f32.xlu0 %v6559
        %v6626 = vpop.xlane.xlu0 %6625
        %6627 = vmax.xlane.f32.xlu0 %v6564
        %v6628 = vpop.xlane.xlu0 %6627
        %6629 = vmax.xlane.f32.xlu0 %v6569
        %v6630 = vpop.xlane.xlu0 %6629
        %6631 = vmax.xlane.f32.xlu0 %v6574
        %v6632 = vpop.xlane.xlu0 %6631
        %6633 = vmax.xlane.f32.xlu0 %v6579
        %v6634 = vpop.xlane.xlu0 %6633
        %6635 = vmax.xlane.f32.xlu0 %v6584
        %v6636 = vpop.xlane.xlu0 %6635
        %6637 = vmax.xlane.f32.xlu0 %v6589
        %v6638 = vpop.xlane.xlu0 %6637
        %6639 = vmax.xlane.f32.xlu0 %v6594
        %v6640 = vpop.xlane.xlu0 %6639
        %6641 = vmax.xlane.f32.xlu0 %v6599
        %v6642 = vpop.xlane.xlu0 %6641
        %6643 = vmax.xlane.f32.xlu0 %v6604
        %v6644 = vpop.xlane.xlu0 %6643
        %6645 = vmax.xlane.f32.xlu0 %v6609
        %v6646 = vpop.xlane.xlu0 %6645
        %6647 = vmax.xlane.f32.xlu0 %v6614
        %v6648 = vpop.xlane.xlu0 %6647
        %v6649 = vsub.f32 %v6539, %v6618
        %v6650 = vsub.f32 %v6544, %v6620
        %v6651 = vsub.f32 %v6549, %v6622
        %v6652 = vsub.f32 %v6554, %v6624
        %v6653 = vsub.f32 %v6559, %v6626
        %v6654 = vsub.f32 %v6564, %v6628
        %v6655 = vsub.f32 %v6569, %v6630
        %v6656 = vsub.f32 %v6574, %v6632
        %v6657 = vsub.f32 %v6579, %v6634
        %v6658 = vsub.f32 %v6584, %v6636
        %v6659 = vsub.f32 %v6589, %v6638
        %v6660 = vsub.f32 %v6594, %v6640
        %v6661 = vsub.f32 %v6599, %v6642
        %v6662 = vsub.f32 %v6604, %v6644
        %v6663 = vsub.f32 %v6609, %v6646
        %v6664 = vsub.f32 %v6614, %v6648
        %v6665 = vmul.f32 %v6649, 1.442695
        %v6666 = vpow.pop %v6665
        %v6667 = vmul.f32 %v6650, 1.442695
        %v6668 = vpow.pop %v6667
        %v6669 = vmul.f32 %v6651, 1.442695
        %v6670 = vpow.pop %v6669
        %v6671 = vmul.f32 %v6652, 1.442695
        %v6672 = vpow.pop %v6671
        %v6673 = vmul.f32 %v6653, 1.442695
        %v6674 = vpow.pop %v6673
        %v6675 = vmul.f32 %v6654, 1.442695
        %v6676 = vpow.pop %v6675
        %v6677 = vmul.f32 %v6655, 1.442695
        %v6678 = vpow.pop %v6677
        %v6679 = vmul.f32 %v6656, 1.442695
        %v6680 = vpow.pop %v6679
        %v6681 = vmul.f32 %v6657, 1.442695
        %v6682 = vpow.pop %v6681
        %v6683 = vmul.f32 %v6658, 1.442695
        %v6684 = vpow.pop %v6683
        %v6685 = vmul.f32 %v6659, 1.442695
        %v6686 = vpow.pop %v6685
        %v6687 = vmul.f32 %v6660, 1.442695
        %v6688 = vpow.pop %v6687
        %v6689 = vmul.f32 %v6661, 1.442695
        %v6690 = vpow.pop %v6689
        %v6691 = vmul.f32 %v6662, 1.442695
        %v6692 = vpow.pop %v6691
        %v6693 = vmul.f32 %v6663, 1.442695
        %v6694 = vpow.pop %v6693
        %v6695 = vmul.f32 %v6664, 1.442695
        %v6696 = vpow.pop %v6695
        %6697 = vadd.xlane.f32.xlu0 %v6666
        %v6698 = vpop.xlane.xlu0 %6697
        %6699 = vadd.xlane.f32.xlu0 %v6668
        %v6700 = vpop.xlane.xlu0 %6699
        %6701 = vadd.xlane.f32.xlu0 %v6670
        %v6702 = vpop.xlane.xlu0 %6701
        %6703 = vadd.xlane.f32.xlu0 %v6672
        %v6704 = vpop.xlane.xlu0 %6703
        %6705 = vadd.xlane.f32.xlu0 %v6674
        %v6706 = vpop.xlane.xlu0 %6705
        %6707 = vadd.xlane.f32.xlu0 %v6676
        %v6708 = vpop.xlane.xlu0 %6707
        %6709 = vadd.xlane.f32.xlu0 %v6678
        %v6710 = vpop.xlane.xlu0 %6709
        %6711 = vadd.xlane.f32.xlu0 %v6680
        %v6712 = vpop.xlane.xlu0 %6711
        %6713 = vadd.xlane.f32.xlu0 %v6682
        %v6714 = vpop.xlane.xlu0 %6713
        %6715 = vadd.xlane.f32.xlu0 %v6684
        %v6716 = vpop.xlane.xlu0 %6715
        %6717 = vadd.xlane.f32.xlu0 %v6686
        %v6718 = vpop.xlane.xlu0 %6717
        %6719 = vadd.xlane.f32.xlu0 %v6688
        %v6720 = vpop.xlane.xlu0 %6719
        %6721 = vadd.xlane.f32.xlu0 %v6690
        %v6722 = vpop.xlane.xlu0 %6721
        %6723 = vadd.xlane.f32.xlu0 %v6692
        %v6724 = vpop.xlane.xlu0 %6723
        %6725 = vadd.xlane.f32.xlu0 %v6694
        %v6726 = vpop.xlane.xlu0 %6725
        %6727 = vadd.xlane.f32.xlu0 %v6696
        %v6728 = vpop.xlane.xlu0 %6727
        %v6729 = vrcp.pop %v6698
        %v6730 = vrcp.pop %v6700
        %v6731 = vrcp.pop %v6702
        %v6732 = vrcp.pop %v6704
        %v6733 = vrcp.pop %v6706
        %v6734 = vrcp.pop %v6708
        %v6735 = vrcp.pop %v6710
        %v6736 = vrcp.pop %v6712
        %v6737 = vrcp.pop %v6714
        %v6738 = vrcp.pop %v6716
        %v6739 = vrcp.pop %v6718
        %v6740 = vrcp.pop %v6720
        %v6741 = vrcp.pop %v6722
        %v6742 = vrcp.pop %v6724
        %v6743 = vrcp.pop %v6726
        %v6744 = vrcp.pop %v6728
        %v6745 = vmul.f32 %v6666, %v6729
        %v6746 = vmul.f32 %v6668, %v6730
        %v6747 = vmul.f32 %v6670, %v6731
        %v6748 = vmul.f32 %v6672, %v6732
        %v6749 = vmul.f32 %v6674, %v6733
        %v6750 = vmul.f32 %v6676, %v6734
        %v6751 = vmul.f32 %v6678, %v6735
        %v6752 = vmul.f32 %v6680, %v6736
        %v6753 = vmul.f32 %v6682, %v6737
        %v6754 = vmul.f32 %v6684, %v6738
        %v6755 = vmul.f32 %v6686, %v6739
        %v6756 = vmul.f32 %v6688, %v6740
        %v6757 = vmul.f32 %v6690, %v6741
        %v6758 = vmul.f32 %v6692, %v6742
        %v6759 = vmul.f32 %v6694, %v6743
        %v6760 = vmul.f32 %v6696, %v6744
        %6761 = vmatprep.subr.mxu0 0.0
        %6762 = vmatpush1.msra.mxu0 %v5096
        %6763 = vmatprep.subr.mxu0 0.0
        %6764 = vmatpush1.msra.mxu0 %v5102
        %6765 = vmatprep.subr.mxu0 0.0
        %6766 = vmatpush1.msra.mxu0 %v5108
        %6767 = vmatprep.subr.mxu0 0.0
        %6768 = vmatpush1.msra.mxu0 %v5114
        %6769 = vmatprep.subr.mxu0 0.0
        %6770 = vmatpush1.msra.mxu0 %v5120
        %6771 = vmatprep.subr.mxu0 0.0
        %6772 = vmatpush1.msra.mxu0 %v5126
        %6773 = vmatprep.subr.mxu0 0.0
        %6774 = vmatpush1.msra.mxu0 %v5132
        %6775 = vmatprep.subr.mxu0 0.0
        %6776 = vmatpush1.msra.mxu0 %v5138
        %6777 = vmatprep.subr.mxu0 0.0
        %6778 = vmatpush1.msra.mxu0 %v5144
        %6779 = vmatprep.subr.mxu0 0.0
        %6780 = vmatpush1.msra.mxu0 %v5150
        %6781 = vmatprep.subr.mxu0 0.0
        %6782 = vmatpush1.msra.mxu0 %v5156
        %6783 = vmatprep.subr.mxu0 0.0
        %6784 = vmatpush1.msra.mxu0 %v5162
        %6785 = vmatprep.subr.mxu0 0.0
        %6786 = vmatpush1.msra.mxu0 %v5168
        %6787 = vmatprep.subr.mxu0 0.0
        %6788 = vmatpush1.msra.mxu0 %v5174
        %6789 = vmatprep.subr.mxu0 0.0
        %6790 = vmatpush1.msra.mxu0 %v5180
        %6791 = vmatprep.subr.mxu0 0.0
        %6792 = vmatpush1.msra.mxu0 %v5186
        %6793 = vmatprep.subr.mxu0 0.0
        %6794 = vmatpush1.msra.mxu0 0.0
        %6795 = vmatprep.subr.mxu0 0.0
        %6796 = vmatpush1.msra.mxu0 0.0
        %6797 = vmatprep.subr.mxu0 0.0
        %6798 = vmatpush1.msra.mxu0 0.0
        %6799 = vmatprep.subr.mxu0 0.0
        %6800 = vmatpush1.msra.mxu0 0.0
        %6801 = vmatprep.subr.mxu0 0.0
        %6802 = vmatpush1.msra.mxu0 0.0
        %6803 = vmatprep.subr.mxu0 0.0
        %6804 = vmatpush1.msra.mxu0 0.0
        %6805 = vmatprep.subr.mxu0 0.0
        %6806 = vmatpush1.msra.mxu0 0.0
        %6807 = vmatprep.subr.mxu0 0.0
        %6808 = vmatpush1.msra.mxu0 0.0
        %6809 = vmatprep.subr.mxu0 0.0
        %6810 = vmatpush1.msra.mxu0 0.0
        %6811 = vmatprep.subr.mxu0 0.0
        %6812 = vmatpush1.msra.mxu0 0.0
        %6813 = vmatprep.subr.mxu0 0.0
        %6814 = vmatpush1.msra.mxu0 0.0
        %6815 = vmatprep.subr.mxu0 0.0
        %6816 = vmatpush1.msra.mxu0 0.0
        %6817 = vmatprep.subr.mxu0 0.0
        %6818 = vmatpush1.msra.mxu0 0.0
        %6819 = vmatprep.subr.mxu0 0.0
        %6820 = vmatpush1.msra.mxu0 0.0
        %6821 = vmatprep.subr.mxu0 0.0
        %6822 = vmatpush1.msra.mxu0 0.0
        %6823 = vmatprep.subr.mxu0 0.0
        %6824 = vmatpush1.msra.mxu0 0.0
        %6825 = vmatprep.mubr.f32.mxu0 0.0
        %6826 = vmatmul.mubr.f32.gmra.mrb[0].mxu0 %v6745
        %v6827 = vpop.f32.mrb[0].mxu0
        %v6828 = vadd.f32 0.0, %v6827
        %v6829 = vpop.f32.mrb[0].mxu0
        %6830 = vmatprep.mubr.f32.mxu0 0.0
        %6831 = vmatmul.mubr.f32.gmra.mrb[0].mxu0 %v6746
        %v6832 = vpop.f32.mrb[0].mxu0
        %v6833 = vadd.f32 0.0, %v6832
        %v6834 = vpop.f32.mrb[0].mxu0
        %6835 = vmatprep.mubr.f32.mxu0 0.0
        %6836 = vmatmul.mubr.f32.gmra.mrb[0].mxu0 %v6747
        %v6837 = vpop.f32.mrb[0].mxu0
        %v6838 = vadd.f32 0.0, %v6837
        %v6839 = vpop.f32.mrb[0].mxu0
        %6840 = vmatprep.mubr.f32.mxu0 0.0
        %6841 = vmatmul.mubr.f32.gmra.mrb[0].mxu0 %v6748
        %v6842 = vpop.f32.mrb[0].mxu0
        %v6843 = vadd.f32 0.0, %v6842
        %v6844 = vpop.f32.mrb[0].mxu0
        %6845 = vmatprep.mubr.f32.mxu0 0.0
        %6846 = vmatmul.mubr.f32.gmra.mrb[0].mxu0 %v6749
        %v6847 = vpop.f32.mrb[0].mxu0
        %v6848 = vadd.f32 0.0, %v6847
        %v6849 = vpop.f32.mrb[0].mxu0
        %6850 = vmatprep.mubr.f32.mxu0 0.0
        %6851 = vmatmul.mubr.f32.gmra.mrb[0].mxu0 %v6750
        %v6852 = vpop.f32.mrb[0].mxu0
        %v6853 = vadd.f32 0.0, %v6852
        %v6854 = vpop.f32.mrb[0].mxu0
        %6855 = vmatprep.mubr.f32.mxu0 0.0
        %6856 = vmatmul.mubr.f32.gmra.mrb[0].mxu0 %v6751
        %v6857 = vpop.f32.mrb[0].mxu0
        %v6858 = vadd.f32 0.0, %v6857
        %v6859 = vpop.f32.mrb[0].mxu0
        %6860 = vmatprep.mubr.f32.mxu0 0.0
        %6861 = vmatmul.mubr.f32.gmra.mrb[0].mxu0 %v6752
        %v6862 = vpop.f32.mrb[0].mxu0
        %v6863 = vadd.f32 0.0, %v6862
        %v6864 = vpop.f32.mrb[0].mxu0
        %6865 = vmatprep.mubr.f32.mxu0 0.0
        %6866 = vmatmul.mubr.f32.gmra.mrb[0].mxu0 %v6753
        %v6867 = vpop.f32.mrb[0].mxu0
        %v6868 = vadd.f32 0.0, %v6867
        %v6869 = vpop.f32.mrb[0].mxu0
        %6870 = vmatprep.mubr.f32.mxu0 0.0
        %6871 = vmatmul.mubr.f32.gmra.mrb[0].mxu0 %v6754
        %v6872 = vpop.f32.mrb[0].mxu0
        %v6873 = vadd.f32 0.0, %v6872
        %v6874 = vpop.f32.mrb[0].mxu0
        %6875 = vmatprep.mubr.f32.mxu0 0.0
        %6876 = vmatmul.mubr.f32.gmra.mrb[0].mxu0 %v6755
        %v6877 = vpop.f32.mrb[0].mxu0
        %v6878 = vadd.f32 0.0, %v6877
        %v6879 = vpop.f32.mrb[0].mxu0
        %6880 = vmatprep.mubr.f32.mxu0 0.0
        %6881 = vmatmul.mubr.f32.gmra.mrb[0].mxu0 %v6756
        %v6882 = vpop.f32.mrb[0].mxu0
        %v6883 = vadd.f32 0.0, %v6882
        %v6884 = vpop.f32.mrb[0].mxu0
        %6885 = vmatprep.mubr.f32.mxu0 0.0
        %6886 = vmatmul.mubr.f32.gmra.mrb[0].mxu0 %v6757
        %v6887 = vpop.f32.mrb[0].mxu0
        %v6888 = vadd.f32 0.0, %v6887
        %v6889 = vpop.f32.mrb[0].mxu0
        %6890 = vmatprep.mubr.f32.mxu0 0.0
        %6891 = vmatmul.mubr.f32.gmra.mrb[0].mxu0 %v6758
        %v6892 = vpop.f32.mrb[0].mxu0
        %v6893 = vadd.f32 0.0, %v6892
        %v6894 = vpop.f32.mrb[0].mxu0
        %6895 = vmatprep.mubr.f32.mxu0 0.0
        %6896 = vmatmul.mubr.f32.gmra.mrb[0].mxu0 %v6759
        %v6897 = vpop.f32.mrb[0].mxu0
        %v6898 = vadd.f32 0.0, %v6897
        %v6899 = vpop.f32.mrb[0].mxu0
        %6900 = vmatprep.mubr.f32.mxu0 0.0
        %6901 = vmatmul.mubr.f32.gmra.mrb[0].mxu0 %v6760
        %v6902 = vpop.f32.mrb[0].mxu0
        %v6903 = vadd.f32 0.0, %v6902
        %v6904 = vpop.f32.mrb[0].mxu0
        %6905 = vdwg.mxu0
        %v6906 = vadd.f32 %v6266, %v6828
        %v6907 = vadd.f32 %v6271, %v6833
        %v6908 = vadd.f32 %v6276, %v6838
        %v6909 = vadd.f32 %v6281, %v6843
        %v6910 = vadd.f32 %v6286, %v6848
        %v6911 = vadd.f32 %v6291, %v6853
        %v6912 = vadd.f32 %v6296, %v6858
        %v6913 = vadd.f32 %v6301, %v6863
        %v6914 = vadd.f32 %v6306, %v6868
        %v6915 = vadd.f32 %v6311, %v6873
        %v6916 = vadd.f32 %v6316, %v6878
        %v6917 = vadd.f32 %v6321, %v6883
        %v6918 = vadd.f32 %v6326, %v6888
        %v6919 = vadd.f32 %v6331, %v6893
        %v6920 = vadd.f32 %v6336, %v6898
        %v6921 = vadd.f32 %v6341, %v6903
        %6922 = vrot.lane.b32.xlu0 %v4772, 80
        %v6923 = vpop.permute.xlu0 %6922
        %6924 = vrot.lane.b32.xlu0 %v4777, 80
        %v6925 = vpop.permute.xlu0 %6924
        %6926 = vrot.lane.b32.xlu0 %v4782, 80
        %v6927 = vpop.permute.xlu0 %6926
        %6928 = vrot.lane.b32.xlu0 %v4787, 80
        %v6929 = vpop.permute.xlu0 %6928
        %6930 = vrot.lane.b32.xlu0 %v4792, 80
        %v6931 = vpop.permute.xlu0 %6930
        %6932 = vrot.lane.b32.xlu0 %v4797, 80
        %v6933 = vpop.permute.xlu0 %6932
        %6934 = vrot.lane.b32.xlu0 %v4802, 80
        %v6935 = vpop.permute.xlu0 %6934
        %6936 = vrot.lane.b32.xlu0 %v4807, 80
        %v6937 = vpop.permute.xlu0 %6936
        %6938 = vrot.lane.b32.xlu0 %v4812, 80
        %v6939 = vpop.permute.xlu0 %6938
        %6940 = vrot.lane.b32.xlu0 %v4817, 80
        %v6941 = vpop.permute.xlu0 %6940
        %6942 = vrot.lane.b32.xlu0 %v4822, 80
        %v6943 = vpop.permute.xlu0 %6942
        %6944 = vrot.lane.b32.xlu0 %v4827, 80
        %v6945 = vpop.permute.xlu0 %6944
        %6946 = vrot.lane.b32.xlu0 %v4832, 80
        %v6947 = vpop.permute.xlu0 %6946
        %6948 = vrot.lane.b32.xlu0 %v4837, 80
        %v6949 = vpop.permute.xlu0 %6948
        %6950 = vrot.lane.b32.xlu0 %v4842, 80
        %v6951 = vpop.permute.xlu0 %6950
        %6952 = vrot.lane.b32.xlu0 %v4847, 80
        %v6953 = vpop.permute.xlu0 %6952
        %6954 = vrot.lane.b32.xlu0 %v4932, 80
        %v6955 = vpop.permute.xlu0 %6954
        %6956 = vrot.lane.b32.xlu0 %v4937, 80
        %v6957 = vpop.permute.xlu0 %6956
        %6958 = vrot.lane.b32.xlu0 %v4942, 80
        %v6959 = vpop.permute.xlu0 %6958
        %6960 = vrot.lane.b32.xlu0 %v4947, 80
        %v6961 = vpop.permute.xlu0 %6960
        %6962 = vrot.lane.b32.xlu0 %v4952, 80
        %v6963 = vpop.permute.xlu0 %6962
        %6964 = vrot.lane.b32.xlu0 %v4957, 80
        %v6965 = vpop.permute.xlu0 %6964
        %6966 = vrot.lane.b32.xlu0 %v4962, 80
        %v6967 = vpop.permute.xlu0 %6966
        %6968 = vrot.lane.b32.xlu0 %v4967, 80
        %v6969 = vpop.permute.xlu0 %6968
        %6970 = vrot.lane.b32.xlu0 %v4972, 80
        %v6971 = vpop.permute.xlu0 %6970
        %6972 = vrot.lane.b32.xlu0 %v4977, 80
        %v6973 = vpop.permute.xlu0 %6972
        %6974 = vrot.lane.b32.xlu0 %v4982, 80
        %v6975 = vpop.permute.xlu0 %6974
        %6976 = vrot.lane.b32.xlu0 %v4987, 80
        %v6977 = vpop.permute.xlu0 %6976
        %6978 = vrot.lane.b32.xlu0 %v4992, 80
        %v6979 = vpop.permute.xlu0 %6978
        %6980 = vrot.lane.b32.xlu0 %v4997, 80
        %v6981 = vpop.permute.xlu0 %6980
        %6982 = vrot.lane.b32.xlu0 %v5002, 80
        %v6983 = vpop.permute.xlu0 %6982
        %6984 = vrot.lane.b32.xlu0 %v5007, 80
        %v6985 = vpop.permute.xlu0 %6984
        %v6986 = vsel %vm1299, %v6923, 0
        %v6988 = vsel %vm1299, %v6925, 0
        %v6990 = vsel %vm1299, %v6927, 0
        %v6992 = vsel %vm1299, %v6929, 0
        %v6994 = vsel %vm1299, %v6931, 0
        %v6996 = vsel %vm1299, %v6933, 0
        %v6998 = vsel %vm1299, %v6935, 0
        %v7000 = vsel %vm1299, %v6937, 0
        %v7002 = vsel %vm1299, %v6939, 0
        %v7004 = vsel %vm1299, %v6941, 0
        %v7006 = vsel %vm1299, %v6943, 0
        %v7008 = vsel %vm1299, %v6945, 0
        %v7010 = vsel %vm1299, %v6947, 0
        %v7012 = vsel %vm1299, %v6949, 0
        %v7014 = vsel %vm1299, %v6951, 0
        %v7016 = vsel %vm1299, %v6953, 0
        %v7018 = vsel %vm1299, %v6955, 0
        %v7020 = vsel %vm1299, %v6957, 0
        %v7022 = vsel %vm1299, %v6959, 0
        %v7024 = vsel %vm1299, %v6961, 0
        %v7026 = vsel %vm1299, %v6963, 0
        %v7028 = vsel %vm1299, %v6965, 0
        %v7030 = vsel %vm1299, %v6967, 0
        %v7032 = vsel %vm1299, %v6969, 0
        %v7034 = vsel %vm1299, %v6971, 0
        %v7036 = vsel %vm1299, %v6973, 0
        %v7038 = vsel %vm1299, %v6975, 0
        %v7040 = vsel %vm1299, %v6977, 0
        %v7042 = vsel %vm1299, %v6979, 0
        %v7044 = vsel %vm1299, %v6981, 0
        %v7046 = vsel %vm1299, %v6983, 0
        %v7048 = vsel %vm1299, %v6985, 0
        %7050 = vmatprep.subr.mxu0 0.0
        %7051 = vmatpush1.xpose.msra.mxu0 %v7018
        %7052 = vmatprep.subr.mxu0 0.0
        %7053 = vmatpush1.xpose.msra.mxu0 %v7020
        %7054 = vmatprep.subr.mxu0 0.0
        %7055 = vmatpush1.xpose.msra.mxu0 %v7022
        %7056 = vmatprep.subr.mxu0 0.0
        %7057 = vmatpush1.xpose.msra.mxu0 %v7024
        %7058 = vmatprep.subr.mxu0 0.0
        %7059 = vmatpush1.xpose.msra.mxu0 %v7026
        %7060 = vmatprep.subr.mxu0 0.0
        %7061 = vmatpush1.xpose.msra.mxu0 %v7028
        %7062 = vmatprep.subr.mxu0 0.0
        %7063 = vmatpush1.xpose.msra.mxu0 %v7030
        %7064 = vmatprep.subr.mxu0 0.0
        %7065 = vmatpush1.xpose.msra.mxu0 %v7032
        %7066 = vmatprep.subr.mxu0 0.0
        %7067 = vmatpush1.xpose.msra.mxu0 %v7034
        %7068 = vmatprep.subr.mxu0 0.0
        %7069 = vmatpush1.xpose.msra.mxu0 %v7036
        %7070 = vmatprep.subr.mxu0 0.0
        %7071 = vmatpush1.xpose.msra.mxu0 %v7038
        %7072 = vmatprep.subr.mxu0 0.0
        %7073 = vmatpush1.xpose.msra.mxu0 %v7040
        %7074 = vmatprep.subr.mxu0 0.0
        %7075 = vmatpush1.xpose.msra.mxu0 %v7042
        %7076 = vmatprep.subr.mxu0 0.0
        %7077 = vmatpush1.xpose.msra.mxu0 %v7044
        %7078 = vmatprep.subr.mxu0 0.0
        %7079 = vmatpush1.xpose.msra.mxu0 %v7046
        %7080 = vmatprep.subr.mxu0 0.0
        %7081 = vmatpush1.xpose.msra.mxu0 %v7048
        %7082 = vmatprep.subr.mxu0 0.0
        %7083 = vmatpush1.xpose.msra.mxu0 0.0
        %7084 = vmatprep.subr.mxu0 0.0
        %7085 = vmatpush1.xpose.msra.mxu0 0.0
        %7086 = vmatprep.subr.mxu0 0.0
        %7087 = vmatpush1.xpose.msra.mxu0 0.0
        %7088 = vmatprep.subr.mxu0 0.0
        %7089 = vmatpush1.xpose.msra.mxu0 0.0
        %7090 = vmatprep.subr.mxu0 0.0
        %7091 = vmatpush1.xpose.msra.mxu0 0.0
        %7092 = vmatprep.subr.mxu0 0.0
        %7093 = vmatpush1.xpose.msra.mxu0 0.0
        %7094 = vmatprep.subr.mxu0 0.0
        %7095 = vmatpush1.xpose.msra.mxu0 0.0
        %7096 = vmatprep.subr.mxu0 0.0
        %7097 = vmatpush1.xpose.msra.mxu0 0.0
        %7098 = vmatprep.subr.mxu0 0.0
        %7099 = vmatpush1.xpose.msra.mxu0 0.0
        %7100 = vmatprep.subr.mxu0 0.0
        %7101 = vmatpush1.xpose.msra.mxu0 0.0
        %7102 = vmatprep.subr.mxu0 0.0
        %7103 = vmatpush1.xpose.msra.mxu0 0.0
        %7104 = vmatprep.subr.mxu0 0.0
        %7105 = vmatpush1.xpose.msra.mxu0 0.0
        %7106 = vmatprep.subr.mxu0 0.0
        %7107 = vmatpush1.xpose.msra.mxu0 0.0
        %7108 = vmatprep.subr.mxu0 0.0
        %7109 = vmatpush1.xpose.msra.mxu0 0.0
        %7110 = vmatprep.subr.mxu0 0.0
        %7111 = vmatpush1.xpose.msra.mxu0 0.0
        %7112 = vmatprep.subr.mxu0 0.0
        %7113 = vmatpush1.xpose.msra.mxu0 0.0
        %7114 = vmatprep.mubr.f32.mxu0 0.0
        %7115 = vmatmul.mubr.f32.gmra.mrb[0].mxu0 %v6986
        %v7116 = vpop.f32.mrb[0].mxu0
        %v7117 = vadd.f32 %v581, %v7116
        %v7118 = vpop.f32.mrb[0].mxu0
        %7119 = vmatprep.mubr.f32.mxu0 0.0
        %7120 = vmatmul.mubr.f32.gmra.mrb[0].mxu0 %v6988
        %v7121 = vpop.f32.mrb[0].mxu0
        %v7122 = vadd.f32 %v582, %v7121
        %v7123 = vpop.f32.mrb[0].mxu0
        %7124 = vmatprep.mubr.f32.mxu0 0.0
        %7125 = vmatmul.mubr.f32.gmra.mrb[0].mxu0 %v6990
        %v7126 = vpop.f32.mrb[0].mxu0
        %v7127 = vadd.f32 %v583, %v7126
        %v7128 = vpop.f32.mrb[0].mxu0
        %7129 = vmatprep.mubr.f32.mxu0 0.0
        %7130 = vmatmul.mubr.f32.gmra.mrb[0].mxu0 %v6992
        %v7131 = vpop.f32.mrb[0].mxu0
        %v7132 = vadd.f32 %v584, %v7131
        %v7133 = vpop.f32.mrb[0].mxu0
        %7134 = vmatprep.mubr.f32.mxu0 0.0
        %7135 = vmatmul.mubr.f32.gmra.mrb[0].mxu0 %v6994
        %v7136 = vpop.f32.mrb[0].mxu0
        %v7137 = vadd.f32 %v585, %v7136
        %v7138 = vpop.f32.mrb[0].mxu0
        %7139 = vmatprep.mubr.f32.mxu0 0.0
        %7140 = vmatmul.mubr.f32.gmra.mrb[0].mxu0 %v6996
        %v7141 = vpop.f32.mrb[0].mxu0
        %v7142 = vadd.f32 %v586, %v7141
        %v7143 = vpop.f32.mrb[0].mxu0
        %7144 = vmatprep.mubr.f32.mxu0 0.0
        %7145 = vmatmul.mubr.f32.gmra.mrb[0].mxu0 %v6998
        %v7146 = vpop.f32.mrb[0].mxu0
        %v7147 = vadd.f32 %v587, %v7146
        %v7148 = vpop.f32.mrb[0].mxu0
        %7149 = vmatprep.mubr.f32.mxu0 0.0
        %7150 = vmatmul.mubr.f32.gmra.mrb[0].mxu0 %v7000
        %v7151 = vpop.f32.mrb[0].mxu0
        %v7152 = vadd.f32 %v588, %v7151
        %v7153 = vpop.f32.mrb[0].mxu0
        %7154 = vmatprep.mubr.f32.mxu0 0.0
        %7155 = vmatmul.mubr.f32.gmra.mrb[0].mxu0 %v7002
        %v7156 = vpop.f32.mrb[0].mxu0
        %v7157 = vadd.f32 %v589, %v7156
        %v7158 = vpop.f32.mrb[0].mxu0
        %7159 = vmatprep.mubr.f32.mxu0 0.0
        %7160 = vmatmul.mubr.f32.gmra.mrb[0].mxu0 %v7004
        %v7161 = vpop.f32.mrb[0].mxu0
        %v7162 = vadd.f32 %v590, %v7161
        %v7163 = vpop.f32.mrb[0].mxu0
        %7164 = vmatprep.mubr.f32.mxu0 0.0
        %7165 = vmatmul.mubr.f32.gmra.mrb[0].mxu0 %v7006
        %v7166 = vpop.f32.mrb[0].mxu0
        %v7167 = vadd.f32 %v591, %v7166
        %v7168 = vpop.f32.mrb[0].mxu0
        %7169 = vmatprep.mubr.f32.mxu0 0.0
        %7170 = vmatmul.mubr.f32.gmra.mrb[0].mxu0 %v7008
        %v7171 = vpop.f32.mrb[0].mxu0
        %v7172 = vadd.f32 %v592, %v7171
        %v7173 = vpop.f32.mrb[0].mxu0
        %7174 = vmatprep.mubr.f32.mxu0 0.0
        %7175 = vmatmul.mubr.f32.gmra.mrb[0].mxu0 %v7010
        %v7176 = vpop.f32.mrb[0].mxu0
        %v7177 = vadd.f32 %v593, %v7176
        %v7178 = vpop.f32.mrb[0].mxu0
        %7179 = vmatprep.mubr.f32.mxu0 0.0
        %7180 = vmatmul.mubr.f32.gmra.mrb[0].mxu0 %v7012
        %v7181 = vpop.f32.mrb[0].mxu0
        %v7182 = vadd.f32 %v594, %v7181
        %v7183 = vpop.f32.mrb[0].mxu0
        %7184 = vmatprep.mubr.f32.mxu0 0.0
        %7185 = vmatmul.mubr.f32.gmra.mrb[0].mxu0 %v7014
        %v7186 = vpop.f32.mrb[0].mxu0
        %v7187 = vadd.f32 %v595, %v7186
        %v7188 = vpop.f32.mrb[0].mxu0
        %7189 = vmatprep.mubr.f32.mxu0 0.0
        %7190 = vmatmul.mubr.f32.gmra.mrb[0].mxu0 %v7016
        %v7191 = vpop.f32.mrb[0].mxu0
        %v7192 = vadd.f32 %v596, %v7191
        %v7193 = vpop.f32.mrb[0].mxu0
        %7194 = vdwg.mxu0
        %7195 = vmax.xlane.f32.xlu0 %v7117
        %v7196 = vpop.xlane.xlu0 %7195
        %7197 = vmax.xlane.f32.xlu0 %v7122
        %v7198 = vpop.xlane.xlu0 %7197
        %7199 = vmax.xlane.f32.xlu0 %v7127
        %v7200 = vpop.xlane.xlu0 %7199
        %7201 = vmax.xlane.f32.xlu0 %v7132
        %v7202 = vpop.xlane.xlu0 %7201
        %7203 = vmax.xlane.f32.xlu0 %v7137
        %v7204 = vpop.xlane.xlu0 %7203
        %7205 = vmax.xlane.f32.xlu0 %v7142
        %v7206 = vpop.xlane.xlu0 %7205
        %7207 = vmax.xlane.f32.xlu0 %v7147
        %v7208 = vpop.xlane.xlu0 %7207
        %7209 = vmax.xlane.f32.xlu0 %v7152
        %v7210 = vpop.xlane.xlu0 %7209
        %7211 = vmax.xlane.f32.xlu0 %v7157
        %v7212 = vpop.xlane.xlu0 %7211
        %7213 = vmax.xlane.f32.xlu0 %v7162
        %v7214 = vpop.xlane.xlu0 %7213
        %7215 = vmax.xlane.f32.xlu0 %v7167
        %v7216 = vpop.xlane.xlu0 %7215
        %7217 = vmax.xlane.f32.xlu0 %v7172
        %v7218 = vpop.xlane.xlu0 %7217
        %7219 = vmax.xlane.f32.xlu0 %v7177
        %v7220 = vpop.xlane.xlu0 %7219
        %7221 = vmax.xlane.f32.xlu0 %v7182
        %v7222 = vpop.xlane.xlu0 %7221
        %7223 = vmax.xlane.f32.xlu0 %v7187
        %v7224 = vpop.xlane.xlu0 %7223
        %7225 = vmax.xlane.f32.xlu0 %v7192
        %v7226 = vpop.xlane.xlu0 %7225
        %v7227 = vsub.f32 %v7117, %v7196
        %v7228 = vsub.f32 %v7122, %v7198
        %v7229 = vsub.f32 %v7127, %v7200
        %v7230 = vsub.f32 %v7132, %v7202
        %v7231 = vsub.f32 %v7137, %v7204
        %v7232 = vsub.f32 %v7142, %v7206
        %v7233 = vsub.f32 %v7147, %v7208
        %v7234 = vsub.f32 %v7152, %v7210
        %v7235 = vsub.f32 %v7157, %v7212
        %v7236 = vsub.f32 %v7162, %v7214
        %v7237 = vsub.f32 %v7167, %v7216
        %v7238 = vsub.f32 %v7172, %v7218
        %v7239 = vsub.f32 %v7177, %v7220
        %v7240 = vsub.f32 %v7182, %v7222
        %v7241 = vsub.f32 %v7187, %v7224
        %v7242 = vsub.f32 %v7192, %v7226
        %v7243 = vmul.f32 %v7227, 1.442695
        %v7244 = vpow.pop %v7243
        %v7245 = vmul.f32 %v7228, 1.442695
        %v7246 = vpow.pop %v7245
        %v7247 = vmul.f32 %v7229, 1.442695
        %v7248 = vpow.pop %v7247
        %v7249 = vmul.f32 %v7230, 1.442695
        %v7250 = vpow.pop %v7249
        %v7251 = vmul.f32 %v7231, 1.442695
        %v7252 = vpow.pop %v7251
        %v7253 = vmul.f32 %v7232, 1.442695
        %v7254 = vpow.pop %v7253
        %v7255 = vmul.f32 %v7233, 1.442695
        %v7256 = vpow.pop %v7255
        %v7257 = vmul.f32 %v7234, 1.442695
        %v7258 = vpow.pop %v7257
        %v7259 = vmul.f32 %v7235, 1.442695
        %v7260 = vpow.pop %v7259
        %v7261 = vmul.f32 %v7236, 1.442695
        %v7262 = vpow.pop %v7261
        %v7263 = vmul.f32 %v7237, 1.442695
        %v7264 = vpow.pop %v7263
        %v7265 = vmul.f32 %v7238, 1.442695
        %v7266 = vpow.pop %v7265
        %v7267 = vmul.f32 %v7239, 1.442695
        %v7268 = vpow.pop %v7267
        %v7269 = vmul.f32 %v7240, 1.442695
        %v7270 = vpow.pop %v7269
        %v7271 = vmul.f32 %v7241, 1.442695
        %v7272 = vpow.pop %v7271
        %v7273 = vmul.f32 %v7242, 1.442695
        %v7274 = vpow.pop %v7273
        %7275 = vadd.xlane.f32.xlu0 %v7244
        %v7276 = vpop.xlane.xlu0 %7275
        %7277 = vadd.xlane.f32.xlu0 %v7246
        %v7278 = vpop.xlane.xlu0 %7277
        %7279 = vadd.xlane.f32.xlu0 %v7248
        %v7280 = vpop.xlane.xlu0 %7279
        %7281 = vadd.xlane.f32.xlu0 %v7250
        %v7282 = vpop.xlane.xlu0 %7281
        %7283 = vadd.xlane.f32.xlu0 %v7252
        %v7284 = vpop.xlane.xlu0 %7283
        %7285 = vadd.xlane.f32.xlu0 %v7254
        %v7286 = vpop.xlane.xlu0 %7285
        %7287 = vadd.xlane.f32.xlu0 %v7256
        %v7288 = vpop.xlane.xlu0 %7287
        %7289 = vadd.xlane.f32.xlu0 %v7258
        %v7290 = vpop.xlane.xlu0 %7289
        %7291 = vadd.xlane.f32.xlu0 %v7260
        %v7292 = vpop.xlane.xlu0 %7291
        %7293 = vadd.xlane.f32.xlu0 %v7262
        %v7294 = vpop.xlane.xlu0 %7293
        %7295 = vadd.xlane.f32.xlu0 %v7264
        %v7296 = vpop.xlane.xlu0 %7295
        %7297 = vadd.xlane.f32.xlu0 %v7266
        %v7298 = vpop.xlane.xlu0 %7297
        %7299 = vadd.xlane.f32.xlu0 %v7268
        %v7300 = vpop.xlane.xlu0 %7299
        %7301 = vadd.xlane.f32.xlu0 %v7270
        %v7302 = vpop.xlane.xlu0 %7301
        %7303 = vadd.xlane.f32.xlu0 %v7272
        %v7304 = vpop.xlane.xlu0 %7303
        %7305 = vadd.xlane.f32.xlu0 %v7274
        %v7306 = vpop.xlane.xlu0 %7305
        %v7307 = vrcp.pop %v7276
        %v7308 = vrcp.pop %v7278
        %v7309 = vrcp.pop %v7280
        %v7310 = vrcp.pop %v7282
        %v7311 = vrcp.pop %v7284
        %v7312 = vrcp.pop %v7286
        %v7313 = vrcp.pop %v7288
        %v7314 = vrcp.pop %v7290
        %v7315 = vrcp.pop %v7292
        %v7316 = vrcp.pop %v7294
        %v7317 = vrcp.pop %v7296
        %v7318 = vrcp.pop %v7298
        %v7319 = vrcp.pop %v7300
        %v7320 = vrcp.pop %v7302
        %v7321 = vrcp.pop %v7304
        %v7322 = vrcp.pop %v7306
        %v7323 = vmul.f32 %v7244, %v7307
        %v7324 = vmul.f32 %v7246, %v7308
        %v7325 = vmul.f32 %v7248, %v7309
        %v7326 = vmul.f32 %v7250, %v7310
        %v7327 = vmul.f32 %v7252, %v7311
        %v7328 = vmul.f32 %v7254, %v7312
        %v7329 = vmul.f32 %v7256, %v7313
        %v7330 = vmul.f32 %v7258, %v7314
        %v7331 = vmul.f32 %v7260, %v7315
        %v7332 = vmul.f32 %v7262, %v7316
        %v7333 = vmul.f32 %v7264, %v7317
        %v7334 = vmul.f32 %v7266, %v7318
        %v7335 = vmul.f32 %v7268, %v7319
        %v7336 = vmul.f32 %v7270, %v7320
        %v7337 = vmul.f32 %v7272, %v7321
        %v7338 = vmul.f32 %v7274, %v7322
        %7355 = vrot.lane.b32.xlu0 %v5096, 64
        %v7356 = vpop.permute.xlu0 %7355
        %7357 = vrot.lane.b32.xlu0 %v5102, 64
        %v7358 = vpop.permute.xlu0 %7357
        %7359 = vrot.lane.b32.xlu0 %v5108, 64
        %v7360 = vpop.permute.xlu0 %7359
        %7361 = vrot.lane.b32.xlu0 %v5114, 64
        %v7362 = vpop.permute.xlu0 %7361
        %7363 = vrot.lane.b32.xlu0 %v5120, 64
        %v7364 = vpop.permute.xlu0 %7363
        %7365 = vrot.lane.b32.xlu0 %v5126, 64
        %v7366 = vpop.permute.xlu0 %7365
        %7367 = vrot.lane.b32.xlu0 %v5132, 64
        %v7368 = vpop.permute.xlu0 %7367
        %7369 = vrot.lane.b32.xlu0 %v5138, 64
        %v7370 = vpop.permute.xlu0 %7369
        %7371 = vrot.lane.b32.xlu0 %v5144, 64
        %v7372 = vpop.permute.xlu0 %7371
        %7373 = vrot.lane.b32.xlu0 %v5150, 64
        %v7374 = vpop.permute.xlu0 %7373
        %7375 = vrot.lane.b32.xlu0 %v5156, 64
        %v7376 = vpop.permute.xlu0 %7375
        %7377 = vrot.lane.b32.xlu0 %v5162, 64
        %v7378 = vpop.permute.xlu0 %7377
        %7379 = vrot.lane.b32.xlu0 %v5168, 64
        %v7380 = vpop.permute.xlu0 %7379
        %7381 = vrot.lane.b32.xlu0 %v5174, 64
        %v7382 = vpop.permute.xlu0 %7381
        %7383 = vrot.lane.b32.xlu0 %v5180, 64
        %v7384 = vpop.permute.xlu0 %7383
        %7385 = vrot.lane.b32.xlu0 %v5186, 64
        %v7386 = vpop.permute.xlu0 %7385
        %7403 = vmatprep.subr.mxu0 0.0
        %7404 = vmatpush1.msra.mxu0 %v7356
        %7405 = vmatprep.subr.mxu0 0.0
        %7406 = vmatpush1.msra.mxu0 %v7358
        %7407 = vmatprep.subr.mxu0 0.0
        %7408 = vmatpush1.msra.mxu0 %v7360
        %7409 = vmatprep.subr.mxu0 0.0
        %7410 = vmatpush1.msra.mxu0 %v7362
        %7411 = vmatprep.subr.mxu0 0.0
        %7412 = vmatpush1.msra.mxu0 %v7364
        %7413 = vmatprep.subr.mxu0 0.0
        %7414 = vmatpush1.msra.mxu0 %v7366
        %7415 = vmatprep.subr.mxu0 0.0
        %7416 = vmatpush1.msra.mxu0 %v7368
        %7417 = vmatprep.subr.mxu0 0.0
        %7418 = vmatpush1.msra.mxu0 %v7370
        %7419 = vmatprep.subr.mxu0 0.0
        %7420 = vmatpush1.msra.mxu0 %v7372
        %7421 = vmatprep.subr.mxu0 0.0
        %7422 = vmatpush1.msra.mxu0 %v7374
        %7423 = vmatprep.subr.mxu0 0.0
        %7424 = vmatpush1.msra.mxu0 %v7376
        %7425 = vmatprep.subr.mxu0 0.0
        %7426 = vmatpush1.msra.mxu0 %v7378
        %7427 = vmatprep.subr.mxu0 0.0
        %7428 = vmatpush1.msra.mxu0 %v7380
        %7429 = vmatprep.subr.mxu0 0.0
        %7430 = vmatpush1.msra.mxu0 %v7382
        %7431 = vmatprep.subr.mxu0 0.0
        %7432 = vmatpush1.msra.mxu0 %v7384
        %7433 = vmatprep.subr.mxu0 0.0
        %7434 = vmatpush1.msra.mxu0 %v7386
        %7435 = vmatprep.subr.mxu0 0.0
        %7436 = vmatpush1.msra.mxu0 0.0
        %7437 = vmatprep.subr.mxu0 0.0
        %7438 = vmatpush1.msra.mxu0 0.0
        %7439 = vmatprep.subr.mxu0 0.0
        %7440 = vmatpush1.msra.mxu0 0.0
        %7441 = vmatprep.subr.mxu0 0.0
        %7442 = vmatpush1.msra.mxu0 0.0
        %7443 = vmatprep.subr.mxu0 0.0
        %7444 = vmatpush1.msra.mxu0 0.0
        %7445 = vmatprep.subr.mxu0 0.0
        %7446 = vmatpush1.msra.mxu0 0.0
        %7447 = vmatprep.subr.mxu0 0.0
        %7448 = vmatpush1.msra.mxu0 0.0
        %7449 = vmatprep.subr.mxu0 0.0
        %7450 = vmatpush1.msra.mxu0 0.0
        %7451 = vmatprep.subr.mxu0 0.0
        %7452 = vmatpush1.msra.mxu0 0.0
        %7453 = vmatprep.subr.mxu0 0.0
        %7454 = vmatpush1.msra.mxu0 0.0
        %7455 = vmatprep.subr.mxu0 0.0
        %7456 = vmatpush1.msra.mxu0 0.0
        %7457 = vmatprep.subr.mxu0 0.0
        %7458 = vmatpush1.msra.mxu0 0.0
        %7459 = vmatprep.subr.mxu0 0.0
        %7460 = vmatpush1.msra.mxu0 0.0
        %7461 = vmatprep.subr.mxu0 0.0
        %7462 = vmatpush1.msra.mxu0 0.0
        %7463 = vmatprep.subr.mxu0 0.0
        %7464 = vmatpush1.msra.mxu0 0.0
        %7465 = vmatprep.subr.mxu0 0.0
        %7466 = vmatpush1.msra.mxu0 0.0
        %7467 = vmatprep.mubr.f32.mxu0 0.0
        %7468 = vmatmul.mubr.f32.gmra.mrb[0].mxu0 %v7323
        %v7469 = vpop.f32.mrb[0].mxu0
        %v7470 = vadd.f32 0.0, %v7469
        %v7471 = vpop.f32.mrb[0].mxu0
        %7472 = vmatprep.mubr.f32.mxu0 0.0
        %7473 = vmatmul.mubr.f32.gmra.mrb[0].mxu0 %v7324
        %v7474 = vpop.f32.mrb[0].mxu0
        %v7475 = vadd.f32 0.0, %v7474
        %v7476 = vpop.f32.mrb[0].mxu0
        %7477 = vmatprep.mubr.f32.mxu0 0.0
        %7478 = vmatmul.mubr.f32.gmra.mrb[0].mxu0 %v7325
        %v7479 = vpop.f32.mrb[0].mxu0
        %v7480 = vadd.f32 0.0, %v7479
        %v7481 = vpop.f32.mrb[0].mxu0
        %7482 = vmatprep.mubr.f32.mxu0 0.0
        %7483 = vmatmul.mubr.f32.gmra.mrb[0].mxu0 %v7326
        %v7484 = vpop.f32.mrb[0].mxu0
        %v7485 = vadd.f32 0.0, %v7484
        %v7486 = vpop.f32.mrb[0].mxu0
        %7487 = vmatprep.mubr.f32.mxu0 0.0
        %7488 = vmatmul.mubr.f32.gmra.mrb[0].mxu0 %v7327
        %v7489 = vpop.f32.mrb[0].mxu0
        %v7490 = vadd.f32 0.0, %v7489
        %v7491 = vpop.f32.mrb[0].mxu0
        %7492 = vmatprep.mubr.f32.mxu0 0.0
        %7493 = vmatmul.mubr.f32.gmra.mrb[0].mxu0 %v7328
        %v7494 = vpop.f32.mrb[0].mxu0
        %v7495 = vadd.f32 0.0, %v7494
        %v7496 = vpop.f32.mrb[0].mxu0
        %7497 = vmatprep.mubr.f32.mxu0 0.0
        %7498 = vmatmul.mubr.f32.gmra.mrb[0].mxu0 %v7329
        %v7499 = vpop.f32.mrb[0].mxu0
        %v7500 = vadd.f32 0.0, %v7499
        %v7501 = vpop.f32.mrb[0].mxu0
        %7502 = vmatprep.mubr.f32.mxu0 0.0
        %7503 = vmatmul.mubr.f32.gmra.mrb[0].mxu0 %v7330
        %v7504 = vpop.f32.mrb[0].mxu0
        %v7505 = vadd.f32 0.0, %v7504
        %v7506 = vpop.f32.mrb[0].mxu0
        %7507 = vmatprep.mubr.f32.mxu0 0.0
        %7508 = vmatmul.mubr.f32.gmra.mrb[0].mxu0 %v7331
        %v7509 = vpop.f32.mrb[0].mxu0
        %v7510 = vadd.f32 0.0, %v7509
        %v7511 = vpop.f32.mrb[0].mxu0
        %7512 = vmatprep.mubr.f32.mxu0 0.0
        %7513 = vmatmul.mubr.f32.gmra.mrb[0].mxu0 %v7332
        %v7514 = vpop.f32.mrb[0].mxu0
        %v7515 = vadd.f32 0.0, %v7514
        %v7516 = vpop.f32.mrb[0].mxu0
        %7517 = vmatprep.mubr.f32.mxu0 0.0
        %7518 = vmatmul.mubr.f32.gmra.mrb[0].mxu0 %v7333
        %v7519 = vpop.f32.mrb[0].mxu0
        %v7520 = vadd.f32 0.0, %v7519
        %v7521 = vpop.f32.mrb[0].mxu0
        %7522 = vmatprep.mubr.f32.mxu0 0.0
        %7523 = vmatmul.mubr.f32.gmra.mrb[0].mxu0 %v7334
        %v7524 = vpop.f32.mrb[0].mxu0
        %v7525 = vadd.f32 0.0, %v7524
        %v7526 = vpop.f32.mrb[0].mxu0
        %7527 = vmatprep.mubr.f32.mxu0 0.0
        %7528 = vmatmul.mubr.f32.gmra.mrb[0].mxu0 %v7335
        %v7529 = vpop.f32.mrb[0].mxu0
        %v7530 = vadd.f32 0.0, %v7529
        %v7531 = vpop.f32.mrb[0].mxu0
        %7532 = vmatprep.mubr.f32.mxu0 0.0
        %7533 = vmatmul.mubr.f32.gmra.mrb[0].mxu0 %v7336
        %v7534 = vpop.f32.mrb[0].mxu0
        %v7535 = vadd.f32 0.0, %v7534
        %v7536 = vpop.f32.mrb[0].mxu0
        %7537 = vmatprep.mubr.f32.mxu0 0.0
        %7538 = vmatmul.mubr.f32.gmra.mrb[0].mxu0 %v7337
        %v7539 = vpop.f32.mrb[0].mxu0
        %v7540 = vadd.f32 0.0, %v7539
        %v7541 = vpop.f32.mrb[0].mxu0
        %7542 = vmatprep.mubr.f32.mxu0 0.0
        %7543 = vmatmul.mubr.f32.gmra.mrb[0].mxu0 %v7338
        %v7544 = vpop.f32.mrb[0].mxu0
        %v7545 = vadd.f32 0.0, %v7544
        %v7546 = vpop.f32.mrb[0].mxu0
        %7547 = vdwg.mxu0
        %v7548 = vadd.f32 %v6906, %v7470
        %v7549 = vadd.f32 %v6907, %v7475
        %v7550 = vadd.f32 %v6908, %v7480
        %v7551 = vadd.f32 %v6909, %v7485
        %v7552 = vadd.f32 %v6910, %v7490
        %v7553 = vadd.f32 %v6911, %v7495
        %v7554 = vadd.f32 %v6912, %v7500
        %v7555 = vadd.f32 %v6913, %v7505
        %v7556 = vadd.f32 %v6914, %v7510
        %v7557 = vadd.f32 %v6915, %v7515
        %v7558 = vadd.f32 %v6916, %v7520
        %v7559 = vadd.f32 %v6917, %v7525
        %v7560 = vadd.f32 %v6918, %v7530
        %v7561 = vadd.f32 %v6919, %v7535
        %v7562 = vadd.f32 %v6920, %v7540
        %v7563 = vadd.f32 %v6921, %v7545
        %v7565 = vlaneseq
        %v7566 = vshrl.u32 %v7565, 7
        %v7567 = vsub.s32 0, %v7566
        %v7568 = vrot.slane %v4631, %v7567
        %v7570 = vadd.f32 %v7548, %v7568
        %v7571 = vadd.f32 %v7549, %v7568
        %v7572 = vadd.f32 %v7550, %v7568
        %v7573 = vadd.f32 %v7551, %v7568
        %v7574 = vadd.f32 %v7552, %v7568
        %v7575 = vadd.f32 %v7553, %v7568
        %v7576 = vadd.f32 %v7554, %v7568
        %v7577 = vadd.f32 %v7555, %v7568
        %v7578 = vadd.f32 %v7556, %v7568
        %v7579 = vadd.f32 %v7557, %v7568
        %v7580 = vadd.f32 %v7558, %v7568
        %v7581 = vadd.f32 %v7559, %v7568
        %v7582 = vadd.f32 %v7560, %v7568
        %v7583 = vadd.f32 %v7561, %v7568
        %v7584 = vadd.f32 %v7562, %v7568
        %v7585 = vadd.f32 %v7563, %v7568
        %v7586 = vadd.f32 %v4610, %v7570
        %v7587 = vadd.f32 %v4611, %v7571
        %v7588 = vadd.f32 %v4612, %v7572
        %v7589 = vadd.f32 %v4613, %v7573
        %v7590 = vadd.f32 %v4614, %v7574
        %v7591 = vadd.f32 %v4615, %v7575
        %v7592 = vadd.f32 %v4616, %v7576
        %v7593 = vadd.f32 %v4617, %v7577
        %v7594 = vadd.f32 %v4618, %v7578
        %v7595 = vadd.f32 %v4619, %v7579
        %v7596 = vadd.f32 %v4620, %v7580
        %v7597 = vadd.f32 %v4621, %v7581
        %v7598 = vadd.f32 %v4622, %v7582
        %v7599 = vadd.f32 %v4623, %v7583
        %v7600 = vadd.f32 %v4624, %v7584
        %v7601 = vadd.f32 %v4625, %v7585
        %v7602 = vsel %vm769, %v7586, 0.0
        %7603 = vadd.xlane.f32.xlu0 %v7602
        %v7604 = vpop.xlane.xlu0 %7603
        %v7605 = vsel %vm769, %v7587, 0.0
        %7606 = vadd.xlane.f32.xlu0 %v7605
        %v7607 = vpop.xlane.xlu0 %7606
        %v7608 = vsel %vm769, %v7588, 0.0
        %7609 = vadd.xlane.f32.xlu0 %v7608
        %v7610 = vpop.xlane.xlu0 %7609
        %v7611 = vsel %vm769, %v7589, 0.0
        %7612 = vadd.xlane.f32.xlu0 %v7611
        %v7613 = vpop.xlane.xlu0 %7612
        %v7614 = vsel %vm769, %v7590, 0.0
        %7615 = vadd.xlane.f32.xlu0 %v7614
        %v7616 = vpop.xlane.xlu0 %7615
        %v7617 = vsel %vm769, %v7591, 0.0
        %7618 = vadd.xlane.f32.xlu0 %v7617
        %v7619 = vpop.xlane.xlu0 %7618
        %v7620 = vsel %vm769, %v7592, 0.0
        %7621 = vadd.xlane.f32.xlu0 %v7620
        %v7622 = vpop.xlane.xlu0 %7621
        %v7623 = vsel %vm769, %v7593, 0.0
        %7624 = vadd.xlane.f32.xlu0 %v7623
        %v7625 = vpop.xlane.xlu0 %7624
        %v7626 = vsel %vm769, %v7594, 0.0
        %7627 = vadd.xlane.f32.xlu0 %v7626
        %v7628 = vpop.xlane.xlu0 %7627
        %v7629 = vsel %vm769, %v7595, 0.0
        %7630 = vadd.xlane.f32.xlu0 %v7629
        %v7631 = vpop.xlane.xlu0 %7630
        %v7632 = vsel %vm769, %v7596, 0.0
        %7633 = vadd.xlane.f32.xlu0 %v7632
        %v7634 = vpop.xlane.xlu0 %7633
        %v7635 = vsel %vm769, %v7597, 0.0
        %7636 = vadd.xlane.f32.xlu0 %v7635
        %v7637 = vpop.xlane.xlu0 %7636
        %v7638 = vsel %vm769, %v7598, 0.0
        %7639 = vadd.xlane.f32.xlu0 %v7638
        %v7640 = vpop.xlane.xlu0 %7639
        %v7641 = vsel %vm769, %v7599, 0.0
        %7642 = vadd.xlane.f32.xlu0 %v7641
        %v7643 = vpop.xlane.xlu0 %7642
        %v7644 = vsel %vm769, %v7600, 0.0
        %7645 = vadd.xlane.f32.xlu0 %v7644
        %v7646 = vpop.xlane.xlu0 %7645
        %v7647 = vsel %vm769, %v7601, 0.0
        %7648 = vadd.xlane.f32.xlu0 %v7647
        %v7649 = vpop.xlane.xlu0 %7648
        %v7650 = vmul.f32 %v7604, %v3762
        %v7651 = vmul.f32 %v7607, %v3762
        %v7652 = vmul.f32 %v7610, %v3762
        %v7653 = vmul.f32 %v7613, %v3762
        %v7654 = vmul.f32 %v7616, %v3762
        %v7655 = vmul.f32 %v7619, %v3762
        %v7656 = vmul.f32 %v7622, %v3762
        %v7657 = vmul.f32 %v7625, %v3762
        %v7658 = vmul.f32 %v7628, %v3762
        %v7659 = vmul.f32 %v7631, %v3762
        %v7660 = vmul.f32 %v7634, %v3762
        %v7661 = vmul.f32 %v7637, %v3762
        %v7662 = vmul.f32 %v7640, %v3762
        %v7663 = vmul.f32 %v7643, %v3762
        %v7664 = vmul.f32 %v7646, %v3762
        %v7665 = vmul.f32 %v7649, %v3762
        %v7666 = vsub.f32 %v7586, %v7650
        %v7667 = vsub.f32 %v7587, %v7651
        %v7668 = vsub.f32 %v7588, %v7652
        %v7669 = vsub.f32 %v7589, %v7653
        %v7670 = vsub.f32 %v7590, %v7654
        %v7671 = vsub.f32 %v7591, %v7655
        %v7672 = vsub.f32 %v7592, %v7656
        %v7673 = vsub.f32 %v7593, %v7657
        %v7674 = vsub.f32 %v7594, %v7658
        %v7675 = vsub.f32 %v7595, %v7659
        %v7676 = vsub.f32 %v7596, %v7660
        %v7677 = vsub.f32 %v7597, %v7661
        %v7678 = vsub.f32 %v7598, %v7662
        %v7679 = vsub.f32 %v7599, %v7663
        %v7680 = vsub.f32 %v7600, %v7664
        %v7681 = vsub.f32 %v7601, %v7665
        %v7682 = vmul.f32 %v7666, %v7666
        %v7683 = vmul.f32 %v7667, %v7667
        %v7684 = vmul.f32 %v7668, %v7668
        %v7685 = vmul.f32 %v7669, %v7669
        %v7686 = vmul.f32 %v7670, %v7670
        %v7687 = vmul.f32 %v7671, %v7671
        %v7688 = vmul.f32 %v7672, %v7672
        %v7689 = vmul.f32 %v7673, %v7673
        %v7690 = vmul.f32 %v7674, %v7674
        %v7691 = vmul.f32 %v7675, %v7675
        %v7692 = vmul.f32 %v7676, %v7676
        %v7693 = vmul.f32 %v7677, %v7677
        %v7694 = vmul.f32 %v7678, %v7678
        %v7695 = vmul.f32 %v7679, %v7679
        %v7696 = vmul.f32 %v7680, %v7680
        %v7697 = vmul.f32 %v7681, %v7681
        %v7698 = vsel %vm769, %v7682, 0.0
        %7699 = vadd.xlane.f32.xlu0 %v7698
        %v7700 = vpop.xlane.xlu0 %7699
        %v7701 = vsel %vm769, %v7683, 0.0
        %7702 = vadd.xlane.f32.xlu0 %v7701
        %v7703 = vpop.xlane.xlu0 %7702
        %v7704 = vsel %vm769, %v7684, 0.0
        %7705 = vadd.xlane.f32.xlu0 %v7704
        %v7706 = vpop.xlane.xlu0 %7705
        %v7707 = vsel %vm769, %v7685, 0.0
        %7708 = vadd.xlane.f32.xlu0 %v7707
        %v7709 = vpop.xlane.xlu0 %7708
        %v7710 = vsel %vm769, %v7686, 0.0
        %7711 = vadd.xlane.f32.xlu0 %v7710
        %v7712 = vpop.xlane.xlu0 %7711
        %v7713 = vsel %vm769, %v7687, 0.0
        %7714 = vadd.xlane.f32.xlu0 %v7713
        %v7715 = vpop.xlane.xlu0 %7714
        %v7716 = vsel %vm769, %v7688, 0.0
        %7717 = vadd.xlane.f32.xlu0 %v7716
        %v7718 = vpop.xlane.xlu0 %7717
        %v7719 = vsel %vm769, %v7689, 0.0
        %7720 = vadd.xlane.f32.xlu0 %v7719
        %v7721 = vpop.xlane.xlu0 %7720
        %v7722 = vsel %vm769, %v7690, 0.0
        %7723 = vadd.xlane.f32.xlu0 %v7722
        %v7724 = vpop.xlane.xlu0 %7723
        %v7725 = vsel %vm769, %v7691, 0.0
        %7726 = vadd.xlane.f32.xlu0 %v7725
        %v7727 = vpop.xlane.xlu0 %7726
        %v7728 = vsel %vm769, %v7692, 0.0
        %7729 = vadd.xlane.f32.xlu0 %v7728
        %v7730 = vpop.xlane.xlu0 %7729
        %v7731 = vsel %vm769, %v7693, 0.0
        %7732 = vadd.xlane.f32.xlu0 %v7731
        %v7733 = vpop.xlane.xlu0 %7732
        %v7734 = vsel %vm769, %v7694, 0.0
        %7735 = vadd.xlane.f32.xlu0 %v7734
        %v7736 = vpop.xlane.xlu0 %7735
        %v7737 = vsel %vm769, %v7695, 0.0
        %7738 = vadd.xlane.f32.xlu0 %v7737
        %v7739 = vpop.xlane.xlu0 %7738
        %v7740 = vsel %vm769, %v7696, 0.0
        %7741 = vadd.xlane.f32.xlu0 %v7740
        %v7742 = vpop.xlane.xlu0 %7741
        %v7743 = vsel %vm769, %v7697, 0.0
        %7744 = vadd.xlane.f32.xlu0 %v7743
        %v7745 = vpop.xlane.xlu0 %7744
        %v7746 = vmul.f32 %v7700, %v3762
        %v7747 = vmul.f32 %v7703, %v3762
        %v7748 = vmul.f32 %v7706, %v3762
        %v7749 = vmul.f32 %v7709, %v3762
        %v7750 = vmul.f32 %v7712, %v3762
        %v7751 = vmul.f32 %v7715, %v3762
        %v7752 = vmul.f32 %v7718, %v3762
        %v7753 = vmul.f32 %v7721, %v3762
        %v7754 = vmul.f32 %v7724, %v3762
        %v7755 = vmul.f32 %v7727, %v3762
        %v7756 = vmul.f32 %v7730, %v3762
        %v7757 = vmul.f32 %v7733, %v3762
        %v7758 = vmul.f32 %v7736, %v3762
        %v7759 = vmul.f32 %v7739, %v3762
        %v7760 = vmul.f32 %v7742, %v3762
        %v7761 = vmul.f32 %v7745, %v3762
        %v7762 = vadd.f32 %v7746, 1e-05
        %v7763 = vadd.f32 %v7747, 1e-05
        %v7764 = vadd.f32 %v7748, 1e-05
        %v7765 = vadd.f32 %v7749, 1e-05
        %v7766 = vadd.f32 %v7750, 1e-05
        %v7767 = vadd.f32 %v7751, 1e-05
        %v7768 = vadd.f32 %v7752, 1e-05
        %v7769 = vadd.f32 %v7753, 1e-05
        %v7770 = vadd.f32 %v7754, 1e-05
        %v7771 = vadd.f32 %v7755, 1e-05
        %v7772 = vadd.f32 %v7756, 1e-05
        %v7773 = vadd.f32 %v7757, 1e-05
        %v7774 = vadd.f32 %v7758, 1e-05
        %v7775 = vadd.f32 %v7759, 1e-05
        %v7776 = vadd.f32 %v7760, 1e-05
        %v7777 = vadd.f32 %v7761, 1e-05
        %v7778 = vrsqrt.pop %v7762
        %v7779 = vrsqrt.pop %v7763
        %v7780 = vrsqrt.pop %v7764
        %v7781 = vrsqrt.pop %v7765
        %v7782 = vrsqrt.pop %v7766
        %v7783 = vrsqrt.pop %v7767
        %v7784 = vrsqrt.pop %v7768
        %v7785 = vrsqrt.pop %v7769
        %v7786 = vrsqrt.pop %v7770
        %v7787 = vrsqrt.pop %v7771
        %v7788 = vrsqrt.pop %v7772
        %v7789 = vrsqrt.pop %v7773
        %v7790 = vrsqrt.pop %v7774
        %v7791 = vrsqrt.pop %v7775
        %v7792 = vrsqrt.pop %v7776
        %v7793 = vrsqrt.pop %v7777
        %v7794 = vmul.f32 %v7666, %v7778
        %v7795 = vmul.f32 %v7667, %v7779
        %v7796 = vmul.f32 %v7668, %v7780
        %v7797 = vmul.f32 %v7669, %v7781
        %v7798 = vmul.f32 %v7670, %v7782
        %v7799 = vmul.f32 %v7671, %v7783
        %v7800 = vmul.f32 %v7672, %v7784
        %v7801 = vmul.f32 %v7673, %v7785
        %v7802 = vmul.f32 %v7674, %v7786
        %v7803 = vmul.f32 %v7675, %v7787
        %v7804 = vmul.f32 %v7676, %v7788
        %v7805 = vmul.f32 %v7677, %v7789
        %v7806 = vmul.f32 %v7678, %v7790
        %v7807 = vmul.f32 %v7679, %v7791
        %v7808 = vmul.f32 %v7680, %v7792
        %v7809 = vmul.f32 %v7681, %v7793
        %v7811 = vlaneseq
        %v7812 = vshrl.u32 %v7811, 7
        %v7813 = vsub.s32 0, %v7812
        %v7814 = vrot.slane %v4635, %v7813
        %v7816 = vmul.f32 %v7794, %v7814
        %v7817 = vmul.f32 %v7795, %v7814
        %v7818 = vmul.f32 %v7796, %v7814
        %v7819 = vmul.f32 %v7797, %v7814
        %v7820 = vmul.f32 %v7798, %v7814
        %v7821 = vmul.f32 %v7799, %v7814
        %v7822 = vmul.f32 %v7800, %v7814
        %v7823 = vmul.f32 %v7801, %v7814
        %v7824 = vmul.f32 %v7802, %v7814
        %v7825 = vmul.f32 %v7803, %v7814
        %v7826 = vmul.f32 %v7804, %v7814
        %v7827 = vmul.f32 %v7805, %v7814
        %v7828 = vmul.f32 %v7806, %v7814
        %v7829 = vmul.f32 %v7807, %v7814
        %v7830 = vmul.f32 %v7808, %v7814
        %v7831 = vmul.f32 %v7809, %v7814
        %v7833 = vlaneseq
        %v7834 = vshrl.u32 %v7833, 7
        %v7835 = vsub.s32 0, %v7834
        %v7836 = vrot.slane %v4637, %v7835
        %v7838 = vadd.f32 %v7816, %v7836
        %v7839 = vadd.f32 %v7817, %v7836
        %v7840 = vadd.f32 %v7818, %v7836
        %v7841 = vadd.f32 %v7819, %v7836
        %v7842 = vadd.f32 %v7820, %v7836
        %v7843 = vadd.f32 %v7821, %v7836
        %v7844 = vadd.f32 %v7822, %v7836
        %v7845 = vadd.f32 %v7823, %v7836
        %v7846 = vadd.f32 %v7824, %v7836
        %v7847 = vadd.f32 %v7825, %v7836
        %v7848 = vadd.f32 %v7826, %v7836
        %v7849 = vadd.f32 %v7827, %v7836
        %v7850 = vadd.f32 %v7828, %v7836
        %v7851 = vadd.f32 %v7829, %v7836
        %v7852 = vadd.f32 %v7830, %v7836
        %v7853 = vadd.f32 %v7831, %v7836
        %s7854 = scalar_lea.vmem [#allocation8], 64
        %v7855 = vld [vmem:[%s7854] sm:$0xff]
        %v7856 = vld [vmem:[%s7854 + $0x8] sm:$0xff]
        %v7857 = vld [vmem:[%s7854 + $0x10] sm:$0xff]
        %v7858 = vld [vmem:[%s7854 + $0x18] sm:$0xff]
        %v7859 = vld [vmem:[%s7854 + $0x20] sm:$0xff]
        %v7860 = vld [vmem:[%s7854 + $0x28] sm:$0xff]
        %v7861 = vld [vmem:[%s7854 + $0x30] sm:$0xff]
        %v7862 = vld [vmem:[%s7854 + $0x38] sm:$0xff]
        %s7863 = scalar_lea.vmem %s8, 1
        %v7864 = vld [vmem:[%s7863] sm:$0x1]
        %v7866 = vlaneseq
        %v7867 = vshrl.u32 %v7866, 7
        %v7868 = vsub.s32 0, %v7867
        %v7869 = vrot.slane %v7864, %v7868
        %v7872 = vsel %vm769, %v7838, 0
        %v7875 = vsel %vm769, %v7839, 0
        %v7878 = vsel %vm769, %v7840, 0
        %v7881 = vsel %vm769, %v7841, 0
        %v7884 = vsel %vm769, %v7842, 0
        %v7887 = vsel %vm769, %v7843, 0
        %v7890 = vsel %vm769, %v7844, 0
        %v7893 = vsel %vm769, %v7845, 0
        %v7896 = vsel %vm769, %v7846, 0
        %v7899 = vsel %vm769, %v7847, 0
        %v7902 = vsel %vm769, %v7848, 0
        %v7905 = vsel %vm769, %v7849, 0
        %v7908 = vsel %vm769, %v7850, 0
        %v7911 = vsel %vm769, %v7851, 0
        %v7914 = vsel %vm769, %v7852, 0
        %v7917 = vsel %vm769, %v7853, 0
        %7919 = vmatprep.subr.mxu0 0.0
        %7920 = vmatpush1.msra.mxu0 %v7855
        %7921 = vmatprep.subr.mxu0 0.0
        %7922 = vmatpush1.msra.mxu0 %v7856
        %7923 = vmatprep.subr.mxu0 0.0
        %7924 = vmatpush1.msra.mxu0 %v7857
        %7925 = vmatprep.subr.mxu0 0.0
        %7926 = vmatpush1.msra.mxu0 %v7858
        %7927 = vmatprep.subr.mxu0 0.0
        %7928 = vmatpush1.msra.mxu0 %v7859
        %7929 = vmatprep.subr.mxu0 0.0
        %7930 = vmatpush1.msra.mxu0 %v7860
        %7931 = vmatprep.subr.mxu0 0.0
        %7932 = vmatpush1.msra.mxu0 %v7861
        %7933 = vmatprep.subr.mxu0 0.0
        %7934 = vmatpush1.msra.mxu0 %v7862
        %7935 = vmatprep.subr.mxu0 0.0
        %7936 = vmatpush1.msra.mxu0 0.0
        %7937 = vmatprep.subr.mxu0 0.0
        %7938 = vmatpush1.msra.mxu0 0.0
        %7939 = vmatprep.subr.mxu0 0.0
        %7940 = vmatpush1.msra.mxu0 0.0
        %7941 = vmatprep.subr.mxu0 0.0
        %7942 = vmatpush1.msra.mxu0 0.0
        %7943 = vmatprep.subr.mxu0 0.0
        %7944 = vmatpush1.msra.mxu0 0.0
        %7945 = vmatprep.subr.mxu0 0.0
        %7946 = vmatpush1.msra.mxu0 0.0
        %7947 = vmatprep.subr.mxu0 0.0
        %7948 = vmatpush1.msra.mxu0 0.0
        %7949 = vmatprep.subr.mxu0 0.0
        %7950 = vmatpush1.msra.mxu0 0.0
        %7951 = vmatprep.subr.mxu0 0.0
        %7952 = vmatpush1.msra.mxu0 0.0
        %7953 = vmatprep.subr.mxu0 0.0
        %7954 = vmatpush1.msra.mxu0 0.0
        %7955 = vmatprep.subr.mxu0 0.0
        %7956 = vmatpush1.msra.mxu0 0.0
        %7957 = vmatprep.subr.mxu0 0.0
        %7958 = vmatpush1.msra.mxu0 0.0
        %7959 = vmatprep.subr.mxu0 0.0
        %7960 = vmatpush1.msra.mxu0 0.0
        %7961 = vmatprep.subr.mxu0 0.0
        %7962 = vmatpush1.msra.mxu0 0.0
        %7963 = vmatprep.subr.mxu0 0.0
        %7964 = vmatpush1.msra.mxu0 0.0
        %7965 = vmatprep.subr.mxu0 0.0
        %7966 = vmatpush1.msra.mxu0 0.0
        %7967 = vmatprep.subr.mxu0 0.0
        %7968 = vmatpush1.msra.mxu0 0.0
        %7969 = vmatprep.subr.mxu0 0.0
        %7970 = vmatpush1.msra.mxu0 0.0
        %7971 = vmatprep.subr.mxu0 0.0
        %7972 = vmatpush1.msra.mxu0 0.0
        %7973 = vmatprep.subr.mxu0 0.0
        %7974 = vmatpush1.msra.mxu0 0.0
        %7975 = vmatprep.subr.mxu0 0.0
        %7976 = vmatpush1.msra.mxu0 0.0
        %7977 = vmatprep.subr.mxu0 0.0
        %7978 = vmatpush1.msra.mxu0 0.0
        %7979 = vmatprep.subr.mxu0 0.0
        %7980 = vmatpush1.msra.mxu0 0.0
        %7981 = vmatprep.subr.mxu0 0.0
        %7982 = vmatpush1.msra.mxu0 0.0
        %7983 = vmatprep.mubr.f32.mxu0 0.0
        %7984 = vmatmul.mubr.f32.gmra.mrb[0].mxu0 %v7872
        %v7985 = vpop.f32.mrb[0].mxu0
        %v7986 = vadd.f32 %v7869, %v7985
        %v7987 = vpop.f32.mrb[0].mxu0
        %7988 = vmatprep.mubr.f32.mxu0 0.0
        %7989 = vmatmul.mubr.f32.gmra.mrb[0].mxu0 %v7875
        %v7990 = vpop.f32.mrb[0].mxu0
        %v7991 = vadd.f32 %v7869, %v7990
        %v7992 = vpop.f32.mrb[0].mxu0
        %7993 = vmatprep.mubr.f32.mxu0 0.0
        %7994 = vmatmul.mubr.f32.gmra.mrb[0].mxu0 %v7878
        %v7995 = vpop.f32.mrb[0].mxu0
        %v7996 = vadd.f32 %v7869, %v7995
        %v7997 = vpop.f32.mrb[0].mxu0
        %7998 = vmatprep.mubr.f32.mxu0 0.0
        %7999 = vmatmul.mubr.f32.gmra.mrb[0].mxu0 %v7881
        %v8000 = vpop.f32.mrb[0].mxu0
        %v8001 = vadd.f32 %v7869, %v8000
        %v8002 = vpop.f32.mrb[0].mxu0
        %8003 = vmatprep.mubr.f32.mxu0 0.0
        %8004 = vmatmul.mubr.f32.gmra.mrb[0].mxu0 %v7884
        %v8005 = vpop.f32.mrb[0].mxu0
        %v8006 = vadd.f32 %v7869, %v8005
        %v8007 = vpop.f32.mrb[0].mxu0
        %8008 = vmatprep.mubr.f32.mxu0 0.0
        %8009 = vmatmul.mubr.f32.gmra.mrb[0].mxu0 %v7887
        %v8010 = vpop.f32.mrb[0].mxu0
        %v8011 = vadd.f32 %v7869, %v8010
        %v8012 = vpop.f32.mrb[0].mxu0
        %8013 = vmatprep.mubr.f32.mxu0 0.0
        %8014 = vmatmul.mubr.f32.gmra.mrb[0].mxu0 %v7890
        %v8015 = vpop.f32.mrb[0].mxu0
        %v8016 = vadd.f32 %v7869, %v8015
        %v8017 = vpop.f32.mrb[0].mxu0
        %8018 = vmatprep.mubr.f32.mxu0 0.0
        %8019 = vmatmul.mubr.f32.gmra.mrb[0].mxu0 %v7893
        %v8020 = vpop.f32.mrb[0].mxu0
        %v8021 = vadd.f32 %v7869, %v8020
        %v8022 = vpop.f32.mrb[0].mxu0
        %8023 = vmatprep.mubr.f32.mxu0 0.0
        %8024 = vmatmul.mubr.f32.gmra.mrb[0].mxu0 %v7896
        %v8025 = vpop.f32.mrb[0].mxu0
        %v8026 = vadd.f32 %v7869, %v8025
        %v8027 = vpop.f32.mrb[0].mxu0
        %8028 = vmatprep.mubr.f32.mxu0 0.0
        %8029 = vmatmul.mubr.f32.gmra.mrb[0].mxu0 %v7899
        %v8030 = vpop.f32.mrb[0].mxu0
        %v8031 = vadd.f32 %v7869, %v8030
        %v8032 = vpop.f32.mrb[0].mxu0
        %8033 = vmatprep.mubr.f32.mxu0 0.0
        %8034 = vmatmul.mubr.f32.gmra.mrb[0].mxu0 %v7902
        %v8035 = vpop.f32.mrb[0].mxu0
        %v8036 = vadd.f32 %v7869, %v8035
        %v8037 = vpop.f32.mrb[0].mxu0
        %8038 = vmatprep.mubr.f32.mxu0 0.0
        %8039 = vmatmul.mubr.f32.gmra.mrb[0].mxu0 %v7905
        %v8040 = vpop.f32.mrb[0].mxu0
        %v8041 = vadd.f32 %v7869, %v8040
        %v8042 = vpop.f32.mrb[0].mxu0
        %8043 = vmatprep.mubr.f32.mxu0 0.0
        %8044 = vmatmul.mubr.f32.gmra.mrb[0].mxu0 %v7908
        %v8045 = vpop.f32.mrb[0].mxu0
        %v8046 = vadd.f32 %v7869, %v8045
        %v8047 = vpop.f32.mrb[0].mxu0
        %8048 = vmatprep.mubr.f32.mxu0 0.0
        %8049 = vmatmul.mubr.f32.gmra.mrb[0].mxu0 %v7911
        %v8050 = vpop.f32.mrb[0].mxu0
        %v8051 = vadd.f32 %v7869, %v8050
        %v8052 = vpop.f32.mrb[0].mxu0
        %8053 = vmatprep.mubr.f32.mxu0 0.0
        %8054 = vmatmul.mubr.f32.gmra.mrb[0].mxu0 %v7914
        %v8055 = vpop.f32.mrb[0].mxu0
        %v8056 = vadd.f32 %v7869, %v8055
        %v8057 = vpop.f32.mrb[0].mxu0
        %8058 = vmatprep.mubr.f32.mxu0 0.0
        %8059 = vmatmul.mubr.f32.gmra.mrb[0].mxu0 %v7917
        %v8060 = vpop.f32.mrb[0].mxu0
        %v8061 = vadd.f32 %v7869, %v8060
        %v8062 = vpop.f32.mrb[0].mxu0
        %8063 = vdwg.mxu0
        %v8064 = vmax.f32 %v7986, 0.0
        %v8065 = vmax.f32 %v7991, 0.0
        %v8066 = vmax.f32 %v7996, 0.0
        %v8067 = vmax.f32 %v8001, 0.0
        %v8068 = vmax.f32 %v8006, 0.0
        %v8069 = vmax.f32 %v8011, 0.0
        %v8070 = vmax.f32 %v8016, 0.0
        %v8071 = vmax.f32 %v8021, 0.0
        %v8072 = vmax.f32 %v8026, 0.0
        %v8073 = vmax.f32 %v8031, 0.0
        %v8074 = vmax.f32 %v8036, 0.0
        %v8075 = vmax.f32 %v8041, 0.0
        %v8076 = vmax.f32 %v8046, 0.0
        %v8077 = vmax.f32 %v8051, 0.0
        %v8078 = vmax.f32 %v8056, 0.0
        %v8079 = vmax.f32 %v8061, 0.0
        %s8080 = scalar_lea.vmem %s9, 128
        %v8081 = vld [vmem:[%s8080] sm:$0xff]
        %v8082 = vld [vmem:[%s8080 + $0x8] sm:$0xff]
        %v8083 = vld [vmem:[%s8080 + $0x10] sm:$0xff]
        %v8084 = vld [vmem:[%s8080 + $0x18] sm:$0xff]
        %v8085 = vld [vmem:[%s8080 + $0x20] sm:$0xff]
        %v8086 = vld [vmem:[%s8080 + $0x28] sm:$0xff]
        %v8087 = vld [vmem:[%s8080 + $0x30] sm:$0xff]
        %v8088 = vld [vmem:[%s8080 + $0x38] sm:$0xff]
        %v8089 = vld [vmem:[%s8080 + $0x40] sm:$0xff]
        %v8090 = vld [vmem:[%s8080 + $0x48] sm:$0xff]
        %v8091 = vld [vmem:[%s8080 + $0x50] sm:$0xff]
        %v8092 = vld [vmem:[%s8080 + $0x58] sm:$0xff]
        %v8093 = vld [vmem:[%s8080 + $0x60] sm:$0xff]
        %v8094 = vld [vmem:[%s8080 + $0x68] sm:$0xff]
        %v8095 = vld [vmem:[%s8080 + $0x70] sm:$0xff]
        %v8096 = vld [vmem:[%s8080 + $0x78] sm:$0xff]
        %v8098 = vlaneseq
        %v8099 = vshrl.u32 %v8098, 7
        %v8100 = vsub.s32 0, %v8099
        %v8101 = vrot.slane %v4633, %v8100
        %8103 = vmatprep.subr.mxu0 0.0
        %8104 = vmatpush1.msra.mxu0 %v8081
        %8105 = vmatprep.subr.mxu0 0.0
        %8106 = vmatpush1.msra.mxu0 %v8082
        %8107 = vmatprep.subr.mxu0 0.0
        %8108 = vmatpush1.msra.mxu0 %v8083
        %8109 = vmatprep.subr.mxu0 0.0
        %8110 = vmatpush1.msra.mxu0 %v8084
        %8111 = vmatprep.subr.mxu0 0.0
        %8112 = vmatpush1.msra.mxu0 %v8085
        %8113 = vmatprep.subr.mxu0 0.0
        %8114 = vmatpush1.msra.mxu0 %v8086
        %8115 = vmatprep.subr.mxu0 0.0
        %8116 = vmatpush1.msra.mxu0 %v8087
        %8117 = vmatprep.subr.mxu0 0.0
        %8118 = vmatpush1.msra.mxu0 %v8088
        %8119 = vmatprep.subr.mxu0 0.0
        %8120 = vmatpush1.msra.mxu0 %v8089
        %8121 = vmatprep.subr.mxu0 0.0
        %8122 = vmatpush1.msra.mxu0 %v8090
        %8123 = vmatprep.subr.mxu0 0.0
        %8124 = vmatpush1.msra.mxu0 %v8091
        %8125 = vmatprep.subr.mxu0 0.0
        %8126 = vmatpush1.msra.mxu0 %v8092
        %8127 = vmatprep.subr.mxu0 0.0
        %8128 = vmatpush1.msra.mxu0 %v8093
        %8129 = vmatprep.subr.mxu0 0.0
        %8130 = vmatpush1.msra.mxu0 %v8094
        %8131 = vmatprep.subr.mxu0 0.0
        %8132 = vmatpush1.msra.mxu0 %v8095
        %8133 = vmatprep.subr.mxu0 0.0
        %8134 = vmatpush1.msra.mxu0 %v8096
        %8135 = vmatprep.subr.mxu0 0.0
        %8136 = vmatpush1.msra.mxu0 0.0
        %8137 = vmatprep.subr.mxu0 0.0
        %8138 = vmatpush1.msra.mxu0 0.0
        %8139 = vmatprep.subr.mxu0 0.0
        %8140 = vmatpush1.msra.mxu0 0.0
        %8141 = vmatprep.subr.mxu0 0.0
        %8142 = vmatpush1.msra.mxu0 0.0
        %8143 = vmatprep.subr.mxu0 0.0
        %8144 = vmatpush1.msra.mxu0 0.0
        %8145 = vmatprep.subr.mxu0 0.0
        %8146 = vmatpush1.msra.mxu0 0.0
        %8147 = vmatprep.subr.mxu0 0.0
        %8148 = vmatpush1.msra.mxu0 0.0
        %8149 = vmatprep.subr.mxu0 0.0
        %8150 = vmatpush1.msra.mxu0 0.0
        %8151 = vmatprep.subr.mxu0 0.0
        %8152 = vmatpush1.msra.mxu0 0.0
        %8153 = vmatprep.subr.mxu0 0.0
        %8154 = vmatpush1.msra.mxu0 0.0
        %8155 = vmatprep.subr.mxu0 0.0
        %8156 = vmatpush1.msra.mxu0 0.0
        %8157 = vmatprep.subr.mxu0 0.0
        %8158 = vmatpush1.msra.mxu0 0.0
        %8159 = vmatprep.subr.mxu0 0.0
        %8160 = vmatpush1.msra.mxu0 0.0
        %8161 = vmatprep.subr.mxu0 0.0
        %8162 = vmatpush1.msra.mxu0 0.0
        %8163 = vmatprep.subr.mxu0 0.0
        %8164 = vmatpush1.msra.mxu0 0.0
        %8165 = vmatprep.subr.mxu0 0.0
        %8166 = vmatpush1.msra.mxu0 0.0
        %8167 = vmatprep.mubr.f32.mxu0 0.0
        %8168 = vmatmul.mubr.f32.gmra.mrb[0].mxu0 %v8064
        %v8169 = vpop.f32.mrb[0].mxu0
        %v8170 = vadd.f32 %v8101, %v8169
        %v8171 = vpop.f32.mrb[0].mxu0
        %8172 = vmatprep.mubr.f32.mxu0 0.0
        %8173 = vmatmul.mubr.f32.gmra.mrb[0].mxu0 %v8065
        %v8174 = vpop.f32.mrb[0].mxu0
        %v8175 = vadd.f32 %v8101, %v8174
        %v8176 = vpop.f32.mrb[0].mxu0
        %8177 = vmatprep.mubr.f32.mxu0 0.0
        %8178 = vmatmul.mubr.f32.gmra.mrb[0].mxu0 %v8066
        %v8179 = vpop.f32.mrb[0].mxu0
        %v8180 = vadd.f32 %v8101, %v8179
        %v8181 = vpop.f32.mrb[0].mxu0
        %8182 = vmatprep.mubr.f32.mxu0 0.0
        %8183 = vmatmul.mubr.f32.gmra.mrb[0].mxu0 %v8067
        %v8184 = vpop.f32.mrb[0].mxu0
        %v8185 = vadd.f32 %v8101, %v8184
        %v8186 = vpop.f32.mrb[0].mxu0
        %8187 = vmatprep.mubr.f32.mxu0 0.0
        %8188 = vmatmul.mubr.f32.gmra.mrb[0].mxu0 %v8068
        %v8189 = vpop.f32.mrb[0].mxu0
        %v8190 = vadd.f32 %v8101, %v8189
        %v8191 = vpop.f32.mrb[0].mxu0
        %8192 = vmatprep.mubr.f32.mxu0 0.0
        %8193 = vmatmul.mubr.f32.gmra.mrb[0].mxu0 %v8069
        %v8194 = vpop.f32.mrb[0].mxu0
        %v8195 = vadd.f32 %v8101, %v8194
        %v8196 = vpop.f32.mrb[0].mxu0
        %8197 = vmatprep.mubr.f32.mxu0 0.0
        %8198 = vmatmul.mubr.f32.gmra.mrb[0].mxu0 %v8070
        %v8199 = vpop.f32.mrb[0].mxu0
        %v8200 = vadd.f32 %v8101, %v8199
        %v8201 = vpop.f32.mrb[0].mxu0
        %8202 = vmatprep.mubr.f32.mxu0 0.0
        %8203 = vmatmul.mubr.f32.gmra.mrb[0].mxu0 %v8071
        %v8204 = vpop.f32.mrb[0].mxu0
        %v8205 = vadd.f32 %v8101, %v8204
        %v8206 = vpop.f32.mrb[0].mxu0
        %8207 = vmatprep.mubr.f32.mxu0 0.0
        %8208 = vmatmul.mubr.f32.gmra.mrb[0].mxu0 %v8072
        %v8209 = vpop.f32.mrb[0].mxu0
        %v8210 = vadd.f32 %v8101, %v8209
        %v8211 = vpop.f32.mrb[0].mxu0
        %8212 = vmatprep.mubr.f32.mxu0 0.0
        %8213 = vmatmul.mubr.f32.gmra.mrb[0].mxu0 %v8073
        %v8214 = vpop.f32.mrb[0].mxu0
        %v8215 = vadd.f32 %v8101, %v8214
        %v8216 = vpop.f32.mrb[0].mxu0
        %8217 = vmatprep.mubr.f32.mxu0 0.0
        %8218 = vmatmul.mubr.f32.gmra.mrb[0].mxu0 %v8074
        %v8219 = vpop.f32.mrb[0].mxu0
        %v8220 = vadd.f32 %v8101, %v8219
        %v8221 = vpop.f32.mrb[0].mxu0
        %8222 = vmatprep.mubr.f32.mxu0 0.0
        %8223 = vmatmul.mubr.f32.gmra.mrb[0].mxu0 %v8075
        %v8224 = vpop.f32.mrb[0].mxu0
        %v8225 = vadd.f32 %v8101, %v8224
        %v8226 = vpop.f32.mrb[0].mxu0
        %8227 = vmatprep.mubr.f32.mxu0 0.0
        %8228 = vmatmul.mubr.f32.gmra.mrb[0].mxu0 %v8076
        %v8229 = vpop.f32.mrb[0].mxu0
        %v8230 = vadd.f32 %v8101, %v8229
        %v8231 = vpop.f32.mrb[0].mxu0
        %8232 = vmatprep.mubr.f32.mxu0 0.0
        %8233 = vmatmul.mubr.f32.gmra.mrb[0].mxu0 %v8077
        %v8234 = vpop.f32.mrb[0].mxu0
        %v8235 = vadd.f32 %v8101, %v8234
        %v8236 = vpop.f32.mrb[0].mxu0
        %8237 = vmatprep.mubr.f32.mxu0 0.0
        %8238 = vmatmul.mubr.f32.gmra.mrb[0].mxu0 %v8078
        %v8239 = vpop.f32.mrb[0].mxu0
        %v8240 = vadd.f32 %v8101, %v8239
        %v8241 = vpop.f32.mrb[0].mxu0
        %8242 = vmatprep.mubr.f32.mxu0 0.0
        %8243 = vmatmul.mubr.f32.gmra.mrb[0].mxu0 %v8079
        %v8244 = vpop.f32.mrb[0].mxu0
        %v8245 = vadd.f32 %v8101, %v8244
        %v8246 = vpop.f32.mrb[0].mxu0
        %8247 = vdwg.mxu0
        %v8248 = vadd.f32 %v7838, %v8170
        %v8249 = vadd.f32 %v7839, %v8175
        %v8250 = vadd.f32 %v7840, %v8180
        %v8251 = vadd.f32 %v7841, %v8185
        %v8252 = vadd.f32 %v7842, %v8190
        %v8253 = vadd.f32 %v7843, %v8195
        %v8254 = vadd.f32 %v7844, %v8200
        %v8255 = vadd.f32 %v7845, %v8205
        %v8256 = vadd.f32 %v7846, %v8210
        %v8257 = vadd.f32 %v7847, %v8215
        %v8258 = vadd.f32 %v7848, %v8220
        %v8259 = vadd.f32 %v7849, %v8225
        %v8260 = vadd.f32 %v7850, %v8230
        %v8261 = vadd.f32 %v7851, %v8235
        %v8262 = vadd.f32 %v7852, %v8240
        %v8263 = vadd.f32 %v7853, %v8245
        %v8264 = vsel %vm769, %v8248, 0.0
        %8265 = vadd.xlane.f32.xlu0 %v8264
        %v8266 = vpop.xlane.xlu0 %8265
        %v8267 = vsel %vm769, %v8249, 0.0
        %8268 = vadd.xlane.f32.xlu0 %v8267
        %v8269 = vpop.xlane.xlu0 %8268
        %v8270 = vsel %vm769, %v8250, 0.0
        %8271 = vadd.xlane.f32.xlu0 %v8270
        %v8272 = vpop.xlane.xlu0 %8271
        %v8273 = vsel %vm769, %v8251, 0.0
        %8274 = vadd.xlane.f32.xlu0 %v8273
        %v8275 = vpop.xlane.xlu0 %8274
        %v8276 = vsel %vm769, %v8252, 0.0
        %8277 = vadd.xlane.f32.xlu0 %v8276
        %v8278 = vpop.xlane.xlu0 %8277
        %v8279 = vsel %vm769, %v8253, 0.0
        %8280 = vadd.xlane.f32.xlu0 %v8279
        %v8281 = vpop.xlane.xlu0 %8280
        %v8282 = vsel %vm769, %v8254, 0.0
        %8283 = vadd.xlane.f32.xlu0 %v8282
        %v8284 = vpop.xlane.xlu0 %8283
        %v8285 = vsel %vm769, %v8255, 0.0
        %8286 = vadd.xlane.f32.xlu0 %v8285
        %v8287 = vpop.xlane.xlu0 %8286
        %v8288 = vsel %vm769, %v8256, 0.0
        %8289 = vadd.xlane.f32.xlu0 %v8288
        %v8290 = vpop.xlane.xlu0 %8289
        %v8291 = vsel %vm769, %v8257, 0.0
        %8292 = vadd.xlane.f32.xlu0 %v8291
        %v8293 = vpop.xlane.xlu0 %8292
        %v8294 = vsel %vm769, %v8258, 0.0
        %8295 = vadd.xlane.f32.xlu0 %v8294
        %v8296 = vpop.xlane.xlu0 %8295
        %v8297 = vsel %vm769, %v8259, 0.0
        %8298 = vadd.xlane.f32.xlu0 %v8297
        %v8299 = vpop.xlane.xlu0 %8298
        %v8300 = vsel %vm769, %v8260, 0.0
        %8301 = vadd.xlane.f32.xlu0 %v8300
        %v8302 = vpop.xlane.xlu0 %8301
        %v8303 = vsel %vm769, %v8261, 0.0
        %8304 = vadd.xlane.f32.xlu0 %v8303
        %v8305 = vpop.xlane.xlu0 %8304
        %v8306 = vsel %vm769, %v8262, 0.0
        %8307 = vadd.xlane.f32.xlu0 %v8306
        %v8308 = vpop.xlane.xlu0 %8307
        %v8309 = vsel %vm769, %v8263, 0.0
        %8310 = vadd.xlane.f32.xlu0 %v8309
        %v8311 = vpop.xlane.xlu0 %8310
        %v8312 = vmul.f32 %v8266, %v3762
        %v8313 = vmul.f32 %v8269, %v3762
        %v8314 = vmul.f32 %v8272, %v3762
        %v8315 = vmul.f32 %v8275, %v3762
        %v8316 = vmul.f32 %v8278, %v3762
        %v8317 = vmul.f32 %v8281, %v3762
        %v8318 = vmul.f32 %v8284, %v3762
        %v8319 = vmul.f32 %v8287, %v3762
        %v8320 = vmul.f32 %v8290, %v3762
        %v8321 = vmul.f32 %v8293, %v3762
        %v8322 = vmul.f32 %v8296, %v3762
        %v8323 = vmul.f32 %v8299, %v3762
        %v8324 = vmul.f32 %v8302, %v3762
        %v8325 = vmul.f32 %v8305, %v3762
        %v8326 = vmul.f32 %v8308, %v3762
        %v8327 = vmul.f32 %v8311, %v3762
        %v8328 = vsub.f32 %v8248, %v8312
        %v8329 = vsub.f32 %v8249, %v8313
        %v8330 = vsub.f32 %v8250, %v8314
        %v8331 = vsub.f32 %v8251, %v8315
        %v8332 = vsub.f32 %v8252, %v8316
        %v8333 = vsub.f32 %v8253, %v8317
        %v8334 = vsub.f32 %v8254, %v8318
        %v8335 = vsub.f32 %v8255, %v8319
        %v8336 = vsub.f32 %v8256, %v8320
        %v8337 = vsub.f32 %v8257, %v8321
        %v8338 = vsub.f32 %v8258, %v8322
        %v8339 = vsub.f32 %v8259, %v8323
        %v8340 = vsub.f32 %v8260, %v8324
        %v8341 = vsub.f32 %v8261, %v8325
        %v8342 = vsub.f32 %v8262, %v8326
        %v8343 = vsub.f32 %v8263, %v8327
        %v8344 = vmul.f32 %v8328, %v8328
        %v8345 = vmul.f32 %v8329, %v8329
        %v8346 = vmul.f32 %v8330, %v8330
        %v8347 = vmul.f32 %v8331, %v8331
        %v8348 = vmul.f32 %v8332, %v8332
        %v8349 = vmul.f32 %v8333, %v8333
        %v8350 = vmul.f32 %v8334, %v8334
        %v8351 = vmul.f32 %v8335, %v8335
        %v8352 = vmul.f32 %v8336, %v8336
        %v8353 = vmul.f32 %v8337, %v8337
        %v8354 = vmul.f32 %v8338, %v8338
        %v8355 = vmul.f32 %v8339, %v8339
        %v8356 = vmul.f32 %v8340, %v8340
        %v8357 = vmul.f32 %v8341, %v8341
        %v8358 = vmul.f32 %v8342, %v8342
        %v8359 = vmul.f32 %v8343, %v8343
        %v8360 = vsel %vm769, %v8344, 0.0
        %8361 = vadd.xlane.f32.xlu0 %v8360
        %v8362 = vpop.xlane.xlu0 %8361
        %v8363 = vsel %vm769, %v8345, 0.0
        %8364 = vadd.xlane.f32.xlu0 %v8363
        %v8365 = vpop.xlane.xlu0 %8364
        %v8366 = vsel %vm769, %v8346, 0.0
        %8367 = vadd.xlane.f32.xlu0 %v8366
        %v8368 = vpop.xlane.xlu0 %8367
        %v8369 = vsel %vm769, %v8347, 0.0
        %8370 = vadd.xlane.f32.xlu0 %v8369
        %v8371 = vpop.xlane.xlu0 %8370
        %v8372 = vsel %vm769, %v8348, 0.0
        %8373 = vadd.xlane.f32.xlu0 %v8372
        %v8374 = vpop.xlane.xlu0 %8373
        %v8375 = vsel %vm769, %v8349, 0.0
        %8376 = vadd.xlane.f32.xlu0 %v8375
        %v8377 = vpop.xlane.xlu0 %8376
        %v8378 = vsel %vm769, %v8350, 0.0
        %8379 = vadd.xlane.f32.xlu0 %v8378
        %v8380 = vpop.xlane.xlu0 %8379
        %v8381 = vsel %vm769, %v8351, 0.0
        %8382 = vadd.xlane.f32.xlu0 %v8381
        %v8383 = vpop.xlane.xlu0 %8382
        %v8384 = vsel %vm769, %v8352, 0.0
        %8385 = vadd.xlane.f32.xlu0 %v8384
        %v8386 = vpop.xlane.xlu0 %8385
        %v8387 = vsel %vm769, %v8353, 0.0
        %8388 = vadd.xlane.f32.xlu0 %v8387
        %v8389 = vpop.xlane.xlu0 %8388
        %v8390 = vsel %vm769, %v8354, 0.0
        %8391 = vadd.xlane.f32.xlu0 %v8390
        %v8392 = vpop.xlane.xlu0 %8391
        %v8393 = vsel %vm769, %v8355, 0.0
        %8394 = vadd.xlane.f32.xlu0 %v8393
        %v8395 = vpop.xlane.xlu0 %8394
        %v8396 = vsel %vm769, %v8356, 0.0
        %8397 = vadd.xlane.f32.xlu0 %v8396
        %v8398 = vpop.xlane.xlu0 %8397
        %v8399 = vsel %vm769, %v8357, 0.0
        %8400 = vadd.xlane.f32.xlu0 %v8399
        %v8401 = vpop.xlane.xlu0 %8400
        %v8402 = vsel %vm769, %v8358, 0.0
        %8403 = vadd.xlane.f32.xlu0 %v8402
        %v8404 = vpop.xlane.xlu0 %8403
        %v8405 = vsel %vm769, %v8359, 0.0
        %8406 = vadd.xlane.f32.xlu0 %v8405
        %v8407 = vpop.xlane.xlu0 %8406
        %v8408 = vmul.f32 %v8362, %v3762
        %v8409 = vmul.f32 %v8365, %v3762
        %v8410 = vmul.f32 %v8368, %v3762
        %v8411 = vmul.f32 %v8371, %v3762
        %v8412 = vmul.f32 %v8374, %v3762
        %v8413 = vmul.f32 %v8377, %v3762
        %v8414 = vmul.f32 %v8380, %v3762
        %v8415 = vmul.f32 %v8383, %v3762
        %v8416 = vmul.f32 %v8386, %v3762
        %v8417 = vmul.f32 %v8389, %v3762
        %v8418 = vmul.f32 %v8392, %v3762
        %v8419 = vmul.f32 %v8395, %v3762
        %v8420 = vmul.f32 %v8398, %v3762
        %v8421 = vmul.f32 %v8401, %v3762
        %v8422 = vmul.f32 %v8404, %v3762
        %v8423 = vmul.f32 %v8407, %v3762
        %v8424 = vadd.f32 %v8408, 1e-05
        %v8425 = vadd.f32 %v8409, 1e-05
        %v8426 = vadd.f32 %v8410, 1e-05
        %v8427 = vadd.f32 %v8411, 1e-05
        %v8428 = vadd.f32 %v8412, 1e-05
        %v8429 = vadd.f32 %v8413, 1e-05
        %v8430 = vadd.f32 %v8414, 1e-05
        %v8431 = vadd.f32 %v8415, 1e-05
        %v8432 = vadd.f32 %v8416, 1e-05
        %v8433 = vadd.f32 %v8417, 1e-05
        %v8434 = vadd.f32 %v8418, 1e-05
        %v8435 = vadd.f32 %v8419, 1e-05
        %v8436 = vadd.f32 %v8420, 1e-05
        %v8437 = vadd.f32 %v8421, 1e-05
        %v8438 = vadd.f32 %v8422, 1e-05
        %v8439 = vadd.f32 %v8423, 1e-05
        %v8440 = vrsqrt.pop %v8424
        %v8441 = vrsqrt.pop %v8425
        %v8442 = vrsqrt.pop %v8426
        %v8443 = vrsqrt.pop %v8427
        %v8444 = vrsqrt.pop %v8428
        %v8445 = vrsqrt.pop %v8429
        %v8446 = vrsqrt.pop %v8430
        %v8447 = vrsqrt.pop %v8431
        %v8448 = vrsqrt.pop %v8432
        %v8449 = vrsqrt.pop %v8433
        %v8450 = vrsqrt.pop %v8434
        %v8451 = vrsqrt.pop %v8435
        %v8452 = vrsqrt.pop %v8436
        %v8453 = vrsqrt.pop %v8437
        %v8454 = vrsqrt.pop %v8438
        %v8455 = vrsqrt.pop %v8439
        %v8456 = vmul.f32 %v8328, %v8440
        %v8457 = vmul.f32 %v8329, %v8441
        %v8458 = vmul.f32 %v8330, %v8442
        %v8459 = vmul.f32 %v8331, %v8443
        %v8460 = vmul.f32 %v8332, %v8444
        %v8461 = vmul.f32 %v8333, %v8445
        %v8462 = vmul.f32 %v8334, %v8446
        %v8463 = vmul.f32 %v8335, %v8447
        %v8464 = vmul.f32 %v8336, %v8448
        %v8465 = vmul.f32 %v8337, %v8449
        %v8466 = vmul.f32 %v8338, %v8450
        %v8467 = vmul.f32 %v8339, %v8451
        %v8468 = vmul.f32 %v8340, %v8452
        %v8469 = vmul.f32 %v8341, %v8453
        %v8470 = vmul.f32 %v8342, %v8454
        %v8471 = vmul.f32 %v8343, %v8455
        %v8473 = vlaneseq
        %v8474 = vshrl.u32 %v8473, 7
        %v8475 = vsub.s32 0, %v8474
        %v8476 = vrot.slane %v4639, %v8475
        %v8478 = vmul.f32 %v8456, %v8476
        %v8479 = vmul.f32 %v8457, %v8476
        %v8480 = vmul.f32 %v8458, %v8476
        %v8481 = vmul.f32 %v8459, %v8476
        %v8482 = vmul.f32 %v8460, %v8476
        %v8483 = vmul.f32 %v8461, %v8476
        %v8484 = vmul.f32 %v8462, %v8476
        %v8485 = vmul.f32 %v8463, %v8476
        %v8486 = vmul.f32 %v8464, %v8476
        %v8487 = vmul.f32 %v8465, %v8476
        %v8488 = vmul.f32 %v8466, %v8476
        %v8489 = vmul.f32 %v8467, %v8476
        %v8490 = vmul.f32 %v8468, %v8476
        %v8491 = vmul.f32 %v8469, %v8476
        %v8492 = vmul.f32 %v8470, %v8476
        %v8493 = vmul.f32 %v8471, %v8476
        %v8495 = vlaneseq
        %v8496 = vshrl.u32 %v8495, 7
        %v8497 = vsub.s32 0, %v8496
        %v8498 = vrot.slane %v4641, %v8497
        %v8500 = vadd.f32 %v8478, %v8498
        %v8501 = vadd.f32 %v8479, %v8498
        %v8502 = vadd.f32 %v8480, %v8498
        %v8503 = vadd.f32 %v8481, %v8498
        %v8504 = vadd.f32 %v8482, %v8498
        %v8505 = vadd.f32 %v8483, %v8498
        %v8506 = vadd.f32 %v8484, %v8498
        %v8507 = vadd.f32 %v8485, %v8498
        %v8508 = vadd.f32 %v8486, %v8498
        %v8509 = vadd.f32 %v8487, %v8498
        %v8510 = vadd.f32 %v8488, %v8498
        %v8511 = vadd.f32 %v8489, %v8498
        %v8512 = vadd.f32 %v8490, %v8498
        %v8513 = vadd.f32 %v8491, %v8498
        %v8514 = vadd.f32 %v8492, %v8498
        %v8515 = vadd.f32 %v8493, %v8498
        %v8516 = vld [vmem:[#allocation2] sm:$0xff]
        %8517 = vmatprep.subr.mxu0 0.0
        %8518 = vmatpush1.msra.mxu0 %v8500
        %8519 = vmatprep.subr.mxu0 0.0
        %8520 = vmatpush1.msra.mxu0 %v8501
        %8521 = vmatprep.subr.mxu0 0.0
        %8522 = vmatpush1.msra.mxu0 %v8502
        %8523 = vmatprep.subr.mxu0 0.0
        %8524 = vmatpush1.msra.mxu0 %v8503
        %8525 = vmatprep.subr.mxu0 0.0
        %8526 = vmatpush1.msra.mxu0 %v8504
        %8527 = vmatprep.subr.mxu0 0.0
        %8528 = vmatpush1.msra.mxu0 %v8505
        %8529 = vmatprep.subr.mxu0 0.0
        %8530 = vmatpush1.msra.mxu0 %v8506
        %8531 = vmatprep.subr.mxu0 0.0
        %8532 = vmatpush1.msra.mxu0 %v8507
        %8533 = vmatprep.subr.mxu0 0.0
        %8534 = vmatpush1.msra.mxu0 %v8508
        %8535 = vmatprep.subr.mxu0 0.0
        %8536 = vmatpush1.msra.mxu0 %v8509
        %8537 = vmatprep.subr.mxu0 0.0
        %8538 = vmatpush1.msra.mxu0 %v8510
        %8539 = vmatprep.subr.mxu0 0.0
        %8540 = vmatpush1.msra.mxu0 %v8511
        %8541 = vmatprep.subr.mxu0 0.0
        %8542 = vmatpush1.msra.mxu0 %v8512
        %8543 = vmatprep.subr.mxu0 0.0
        %8544 = vmatpush1.msra.mxu0 %v8513
        %8545 = vmatprep.subr.mxu0 0.0
        %8546 = vmatpush1.msra.mxu0 %v8514
        %8547 = vmatprep.subr.mxu0 0.0
        %8548 = vmatpush1.msra.mxu0 %v8515
        %8549 = vmatprep.subr.mxu0 0.0
        %8550 = vmatpush1.msra.mxu0 0.0
        %8551 = vmatprep.subr.mxu0 0.0
        %8552 = vmatpush1.msra.mxu0 0.0
        %8553 = vmatprep.subr.mxu0 0.0
        %8554 = vmatpush1.msra.mxu0 0.0
        %8555 = vmatprep.subr.mxu0 0.0
        %8556 = vmatpush1.msra.mxu0 0.0
        %8557 = vmatprep.subr.mxu0 0.0
        %8558 = vmatpush1.msra.mxu0 0.0
        %8559 = vmatprep.subr.mxu0 0.0
        %8560 = vmatpush1.msra.mxu0 0.0
        %8561 = vmatprep.subr.mxu0 0.0
        %8562 = vmatpush1.msra.mxu0 0.0
        %8563 = vmatprep.subr.mxu0 0.0
        %8564 = vmatpush1.msra.mxu0 0.0
        %8565 = vmatprep.subr.mxu0 0.0
        %8566 = vmatpush1.msra.mxu0 0.0
        %8567 = vmatprep.subr.mxu0 0.0
        %8568 = vmatpush1.msra.mxu0 0.0
        %8569 = vmatprep.subr.mxu0 0.0
        %8570 = vmatpush1.msra.mxu0 0.0
        %8571 = vmatprep.subr.mxu0 0.0
        %8572 = vmatpush1.msra.mxu0 0.0
        %8573 = vmatprep.subr.mxu0 0.0
        %8574 = vmatpush1.msra.mxu0 0.0
        %8575 = vmatprep.subr.mxu0 0.0
        %8576 = vmatpush1.msra.mxu0 0.0
        %8577 = vmatprep.subr.mxu0 0.0
        %8578 = vmatpush1.msra.mxu0 0.0
        %8579 = vmatprep.subr.mxu0 0.0
        %8580 = vmatpush1.msra.mxu0 0.0
        %8581 = vmatprep.mubr.f32.mxu0 0.0
        %8582 = vmatmul.mubr.f32.gmra.mrb[0].mxu0 %v8516
        %v8583 = vpop.f32.mrb[0].mxu0
        %v8584 = vadd.f32 0.0, %v8583
        %v8585 = vpop.f32.mrb[0].mxu0
        %8586 = vdwg.mxu0
        %v8587 = vld [vmem:[#allocation10] sm:$0xff]
        %v8588 = vld [vmem:[#allocation10 + $0x8] sm:$0xff]
        %v8589 = vld [vmem:[#allocation10 + $0x10] sm:$0xff]
        %v8590 = vld [vmem:[#allocation10 + $0x18] sm:$0xff]
        %v8591 = vld [vmem:[#allocation10 + $0x20] sm:$0xff]
        %v8592 = vld [vmem:[#allocation10 + $0x28] sm:$0xff]
        %v8593 = vld [vmem:[#allocation10 + $0x30] sm:$0xff]
        %v8594 = vld [vmem:[#allocation10 + $0x38] sm:$0xff]
        %v8595 = vld [vmem:[%s12] sm:$0x1]
        %v8597 = vlaneseq
        %v8598 = vshrl.u32 %v8597, 7
        %v8599 = vsub.s32 0, %v8598
        %v8600 = vrot.slane %v8595, %v8599
        %v8603 = vsel %vm769, %v8584, 0
        %8605 = vmatprep.subr.mxu0 0.0
        %8606 = vmatpush1.msra.mxu0 %v8587
        %8607 = vmatprep.subr.mxu0 0.0
        %8608 = vmatpush1.msra.mxu0 %v8588
        %8609 = vmatprep.subr.mxu0 0.0
        %8610 = vmatpush1.msra.mxu0 %v8589
        %8611 = vmatprep.subr.mxu0 0.0
        %8612 = vmatpush1.msra.mxu0 %v8590
        %8613 = vmatprep.subr.mxu0 0.0
        %8614 = vmatpush1.msra.mxu0 %v8591
        %8615 = vmatprep.subr.mxu0 0.0
        %8616 = vmatpush1.msra.mxu0 %v8592
        %8617 = vmatprep.subr.mxu0 0.0
        %8618 = vmatpush1.msra.mxu0 %v8593
        %8619 = vmatprep.subr.mxu0 0.0
        %8620 = vmatpush1.msra.mxu0 %v8594
        %8621 = vmatprep.subr.mxu0 0.0
        %8622 = vmatpush1.msra.mxu0 0.0
        %8623 = vmatprep.subr.mxu0 0.0
        %8624 = vmatpush1.msra.mxu0 0.0
        %8625 = vmatprep.subr.mxu0 0.0
        %8626 = vmatpush1.msra.mxu0 0.0
        %8627 = vmatprep.subr.mxu0 0.0
        %8628 = vmatpush1.msra.mxu0 0.0
        %8629 = vmatprep.subr.mxu0 0.0
        %8630 = vmatpush1.msra.mxu0 0.0
        %8631 = vmatprep.subr.mxu0 0.0
        %8632 = vmatpush1.msra.mxu0 0.0
        %8633 = vmatprep.subr.mxu0 0.0
        %8634 = vmatpush1.msra.mxu0 0.0
        %8635 = vmatprep.subr.mxu0 0.0
        %8636 = vmatpush1.msra.mxu0 0.0
        %8637 = vmatprep.subr.mxu0 0.0
        %8638 = vmatpush1.msra.mxu0 0.0
        %8639 = vmatprep.subr.mxu0 0.0
        %8640 = vmatpush1.msra.mxu0 0.0
        %8641 = vmatprep.subr.mxu0 0.0
        %8642 = vmatpush1.msra.mxu0 0.0
        %8643 = vmatprep.subr.mxu0 0.0
        %8644 = vmatpush1.msra.mxu0 0.0
        %8645 = vmatprep.subr.mxu0 0.0
        %8646 = vmatpush1.msra.mxu0 0.0
        %8647 = vmatprep.subr.mxu0 0.0
        %8648 = vmatpush1.msra.mxu0 0.0
        %8649 = vmatprep.subr.mxu0 0.0
        %8650 = vmatpush1.msra.mxu0 0.0
        %8651 = vmatprep.subr.mxu0 0.0
        %8652 = vmatpush1.msra.mxu0 0.0
        %8653 = vmatprep.subr.mxu0 0.0
        %8654 = vmatpush1.msra.mxu0 0.0
        %8655 = vmatprep.subr.mxu0 0.0
        %8656 = vmatpush1.msra.mxu0 0.0
        %8657 = vmatprep.subr.mxu0 0.0
        %8658 = vmatpush1.msra.mxu0 0.0
        %8659 = vmatprep.subr.mxu0 0.0
        %8660 = vmatpush1.msra.mxu0 0.0
        %8661 = vmatprep.subr.mxu0 0.0
        %8662 = vmatpush1.msra.mxu0 0.0
        %8663 = vmatprep.subr.mxu0 0.0
        %8664 = vmatpush1.msra.mxu0 0.0
        %8665 = vmatprep.subr.mxu0 0.0
        %8666 = vmatpush1.msra.mxu0 0.0
        %8667 = vmatprep.subr.mxu0 0.0
        %8668 = vmatpush1.msra.mxu0 0.0
        %8669 = vmatprep.mubr.f32.mxu0 0.0
        %8670 = vmatmul.mubr.f32.gmra.mrb[0].mxu0 %v8603
        %v8671 = vpop.f32.mrb[0].mxu0
        %v8672 = vadd.f32 %v8600, %v8671
        %v8673 = vpop.f32.mrb[0].mxu0
        %8674 = vdwg.mxu0
        %v8675 = vmax.f32 %v8672, 0.0
        %v8676 = vld [vmem:[#allocation11] sm:$0xff]
        %v8677 = vld [vmem:[#allocation11 + $0x8] sm:$0xff]
        %v8678 = vld [vmem:[#allocation11 + $0x10] sm:$0xff]
        %v8679 = vld [vmem:[#allocation11 + $0x18] sm:$0xff]
        %v8680 = vld [vmem:[#allocation11 + $0x20] sm:$0xff]
        %v8681 = vld [vmem:[#allocation11 + $0x28] sm:$0xff]
        %v8682 = vld [vmem:[#allocation11 + $0x30] sm:$0xff]
        %v8683 = vld [vmem:[#allocation11 + $0x38] sm:$0xff]
        %v8684 = vld [vmem:[%s14] sm:$0x1]
        %v8686 = vlaneseq
        %v8687 = vshrl.u32 %v8686, 7
        %v8688 = vsub.s32 0, %v8687
        %v8689 = vrot.slane %v8684, %v8688
        %v8692 = vsel %vm769, %v8675, 0
        %8694 = vmatprep.subr.mxu0 0.0
        %8695 = vmatpush1.msra.mxu0 %v8676
        %8696 = vmatprep.subr.mxu0 0.0
        %8697 = vmatpush1.msra.mxu0 %v8677
        %8698 = vmatprep.subr.mxu0 0.0
        %8699 = vmatpush1.msra.mxu0 %v8678
        %8700 = vmatprep.subr.mxu0 0.0
        %8701 = vmatpush1.msra.mxu0 %v8679
        %8702 = vmatprep.subr.mxu0 0.0
        %8703 = vmatpush1.msra.mxu0 %v8680
        %8704 = vmatprep.subr.mxu0 0.0
        %8705 = vmatpush1.msra.mxu0 %v8681
        %8706 = vmatprep.subr.mxu0 0.0
        %8707 = vmatpush1.msra.mxu0 %v8682
        %8708 = vmatprep.subr.mxu0 0.0
        %8709 = vmatpush1.msra.mxu0 %v8683
        %8710 = vmatprep.subr.mxu0 0.0
        %8711 = vmatpush1.msra.mxu0 0.0
        %8712 = vmatprep.subr.mxu0 0.0
        %8713 = vmatpush1.msra.mxu0 0.0
        %8714 = vmatprep.subr.mxu0 0.0
        %8715 = vmatpush1.msra.mxu0 0.0
        %8716 = vmatprep.subr.mxu0 0.0
        %8717 = vmatpush1.msra.mxu0 0.0
        %8718 = vmatprep.subr.mxu0 0.0
        %8719 = vmatpush1.msra.mxu0 0.0
        %8720 = vmatprep.subr.mxu0 0.0
        %8721 = vmatpush1.msra.mxu0 0.0
        %8722 = vmatprep.subr.mxu0 0.0
        %8723 = vmatpush1.msra.mxu0 0.0
        %8724 = vmatprep.subr.mxu0 0.0
        %8725 = vmatpush1.msra.mxu0 0.0
        %8726 = vmatprep.subr.mxu0 0.0
        %8727 = vmatpush1.msra.mxu0 0.0
        %8728 = vmatprep.subr.mxu0 0.0
        %8729 = vmatpush1.msra.mxu0 0.0
        %8730 = vmatprep.subr.mxu0 0.0
        %8731 = vmatpush1.msra.mxu0 0.0
        %8732 = vmatprep.subr.mxu0 0.0
        %8733 = vmatpush1.msra.mxu0 0.0
        %8734 = vmatprep.subr.mxu0 0.0
        %8735 = vmatpush1.msra.mxu0 0.0
        %8736 = vmatprep.subr.mxu0 0.0
        %8737 = vmatpush1.msra.mxu0 0.0
        %8738 = vmatprep.subr.mxu0 0.0
        %8739 = vmatpush1.msra.mxu0 0.0
        %8740 = vmatprep.subr.mxu0 0.0
        %8741 = vmatpush1.msra.mxu0 0.0
        %8742 = vmatprep.subr.mxu0 0.0
        %8743 = vmatpush1.msra.mxu0 0.0
        %8744 = vmatprep.subr.mxu0 0.0
        %8745 = vmatpush1.msra.mxu0 0.0
        %8746 = vmatprep.subr.mxu0 0.0
        %8747 = vmatpush1.msra.mxu0 0.0
        %8748 = vmatprep.subr.mxu0 0.0
        %8749 = vmatpush1.msra.mxu0 0.0
        %8750 = vmatprep.subr.mxu0 0.0
        %8751 = vmatpush1.msra.mxu0 0.0
        %8752 = vmatprep.subr.mxu0 0.0
        %8753 = vmatpush1.msra.mxu0 0.0
        %8754 = vmatprep.subr.mxu0 0.0
        %8755 = vmatpush1.msra.mxu0 0.0
        %8756 = vmatprep.subr.mxu0 0.0
        %8757 = vmatpush1.msra.mxu0 0.0
        %8758 = vmatprep.mubr.f32.mxu0 0.0
        %8759 = vmatmul.mubr.f32.gmra.mrb[0].mxu0 %v8692
        %v8760 = vpop.f32.mrb[0].mxu0
        %v8761 = vadd.f32 %v8689, %v8760
        %v8762 = vpop.f32.mrb[0].mxu0
        %8763 = vdwg.mxu0
        %8764 = vst [vmem:[%s574] sm:$0xff] %v8761
        %s8765 = sand.u32 %s361, 1
        %s8766 = scalar_lea.sflag [#allocation4], %s8765
        %s8767 = sand.u32 %s361, 1
        %s8768 = smul.addr %s8767, 8
        %s8769 = scalar_lea.vmem [#allocation13], %s8768
        // Predicated region
        $region105: #{tpu_custom_call.1} parent=79 // pred_check
          %p8770 = pneg %p371
        $region106: #{tpu_custom_call.1} parent=79 // pred_check_branch
          %8772 = sbr.rel (%p8770) target = $region108
        $region107: #{tpu_custom_call.1} parent=79 // pred_region
          %s8774 = ssub.s32 128, 128
          %8775 = vsyncadd %s8766, %s8774
          %s8776 = smul.addr %s33, 128
          %s8777 = scalar_lea.hbm %s15, %s8776
          %s8779 = sshll.u32 %s8769, 4
          %s8780 = int_to_ptr.vmem [resolvable:$true] %s8779
          %8782 = dma.vmem_to_hbm [thread:$0]  %s8780, 128, %s8777, %s8766
        $region108: #{tpu_custom_call.1} parent=79 // pred_fallthru
          _
      $region80: #{tpu_custom_call.1} parent=5 // pred_fallthru
        _
      %p8783 = scmp.le.s32.totalorder 2, %s28
      // Predicated region
      $region109: #{tpu_custom_call.1} parent=5 // pred_check
        %p8784 = pneg %p8783
      $region110: #{tpu_custom_call.1} parent=5 // pred_check_branch
        %8786 = sbr.rel (%p8784) target = $region112
      $region111: #{tpu_custom_call.1} parent=5 // pred_region
        %s8787 = ssub.s32 %s28, 2
        // Predicated region
        $region113: #{tpu_custom_call.1} parent=111 // pred_check
          %p8788 = pneg %p377
        $region114: #{tpu_custom_call.1} parent=111 // pred_check_branch
          %8790 = sbr.rel (%p8788) target = $region116
        $region115: #{tpu_custom_call.1} parent=111 // pred_region
          %s8791 = sand.u32 %s362, 1
          %s8792 = scalar_lea.sflag [#allocation4], %s8791
          %s8793 = sand.u32 %s362, 1
          %s8794 = smul.addr %s8793, 8
          %s8795 = scalar_lea.vmem [#allocation13], %s8794
          %8796 = dma.done %s8792, 128
        $region116: #{tpu_custom_call.1} parent=111 // pred_fallthru
          _
      $region112: #{tpu_custom_call.1} parent=5 // pred_fallthru
        _
    $region6: #{tpu_custom_call.1} parent=1 // loop_footer
      %s32 = sadd.s32 1, %s28
    $region7: #{tpu_custom_call.1} parent=1 // loop_footer_branch
      %27 = sbr.rel target = $region3
    $region8: #{tpu_custom_call.1} parent=1 // loop_exit
      _
    %8797 = vsyncpa [#allocation3], 1
    %s8798 = scalar_lea.sflag [#allocation3], 1
    %8799 = vsyncpa %s8798, 1
    %8800 = vsyncpa [#allocation6], 1
    %8801 = vsyncpa [#allocation9], 1
    %8802 = vsyncpa [#allocation12], 1
    %8803 = vsyncpa [#allocation4], 1
    %s8804 = scalar_lea.sflag [#allocation4], 1
    %8805 = vsyncpa %s8804, 1

</llo_original>
